<compile_context>
chip_gen: v7x
topology: tpu7x:2x2x1
jax: 0.10.0
libtpu: 0.0.40
codegen_flags: <defaults>
</compile_context>

<pallas_src>
import functools

import jax
import jax.numpy as jnp
from jax.experimental import pallas as pl
from jax.experimental.pallas import tpu as pltpu


# ----------------------------------------------------------------------------
# Fused forward kernel.  One grid step processes TB images.
# Row layout of every activation slab: row = image_row * TB + image_in_tile.
# Conv output lane layout (interleaved for cheap W-pool):
#   lane = (w % 2) * 448 + (w // 2) * C + c      (C = 32 after conv1, 64 after conv2)
# so the 2x2 W-pool is max(lanes[0:448], lanes[448:896]) and the pooled layout
# is j*C + c (j = pooled column), which is exactly what the next stage expects.
# ----------------------------------------------------------------------------
def _fused_kernel(x_ref, b1k_ref, c1b_ref, b2k_ref, c2b_ref,
                  w1_ref, fb1_ref, w2_ref, fb2_ref, o_ref, *, TB):
    f32 = jnp.float32
    bf16 = jnp.bfloat16

    # ---- conv1 (3x3, pad 1) + bias + ReLU: ONE K=96 MXU pass ----
    lhs1 = x_ref[...].reshape(28 * TB, 96)                       # bf16, row = i*TB + b
    h1 = jnp.dot(lhs1, b1k_ref[...], preferred_element_type=f32) + c1b_ref[...]
    h1 = jnp.maximum(h1, 0.0)                                    # (28*TB, 896)

    # ---- maxpool1 2x2: H via reshape-max, W via half-slab max ----
    hp1 = h1.reshape(14, 2, TB, 896).max(axis=1).reshape(14 * TB, 896)
    p1 = jnp.maximum(hp1[:, :448], hp1[:, 448:]).astype(bf16)    # (14*TB, 448), lane = j*32+c

    # ---- conv2 (3x3, pad 1) + bias + ReLU: 3 accumulated kh band matmuls ----
    zrow = jnp.zeros((TB, 448), bf16)
    p1p = jnp.concatenate([zrow, p1, zrow], axis=0)              # H-padded, (16*TB, 448)
    acc2 = jnp.zeros((14 * TB, 896), f32)
    for kh in range(3):
        acc2 = acc2 + jnp.dot(p1p[kh * TB:(kh + 14) * TB, :], b2k_ref[kh],
                              preferred_element_type=f32)
    h2 = jnp.maximum(acc2 + c2b_ref[...], 0.0)                   # (14*TB, 896)

    # ---- maxpool2 2x2 ----
    hp2 = h2.reshape(7, 2, TB, 896).max(axis=1).reshape(7 * TB, 896)
    p2 = jnp.maximum(hp2[:, :448], hp2[:, 448:]).astype(bf16)    # (7*TB, 448), lane = j*64+c

    # ---- fc1 + ReLU (contract over h via 7 accumulated dots), dropout, fc2 ----
    accf = jnp.zeros((TB, 128), f32)
    for h in range(7):
        accf = accf + jnp.dot(p2[h * TB:(h + 1) * TB, :], w1_ref[h],
                              preferred_element_type=f32)
    y1 = jnp.maximum(accf + fb1_ref[...], 0.0)
    # TODO(synk): nn.Dropout(0.5) is applied as eval-mode identity; stochastic
    # training-mode dropout is not reproduced here.
    y2 = jnp.dot(y1.astype(bf16), w2_ref[...], preferred_element_type=f32) + fb2_ref[...]
    o_ref[...] = y2.astype(o_ref.dtype)                          # (TB, 128), cols 27..127 unused


# ----------------------------------------------------------------------------
# Band-matrix construction (weight-only preprocessing, runs once in XLA).
# band[kh, w'*Cin + ci, w*Cout + co] = W[kh, w'-w+1, ci, co] if 0 <= w'-w+1 <= 2,
# i.e. the kw taps and the W zero-padding of a 3x3 "same" conv folded into one
# dense matmul per kh tap.
# ----------------------------------------------------------------------------
def _conv1_band(w1_hwc, width=28):
    # w1_hwc: (3, 3, 32) = (kh, kw, cout); cin == 1
    idx = jnp.arange(width)
    off = idx[:, None] - idx[None, :] + 1                          # w' - w + 1
    valid = ((off >= 0) & (off <= 2)).astype(w1_hwc.dtype)
    offc = jnp.clip(off, 0, 2)
    band = w1_hwc[:, offc, :] * valid[None, :, :, None]            # (3, W', W, 32)
    return band.reshape(3, width, width * w1_hwc.shape[-1])        # (3, 28, 896)


def _conv2_band(w2_hwio, width=14):
    # w2_hwio: (3, 3, 32, 64) = (kh, kw, cin, cout)
    cin, cout = w2_hwio.shape[2], w2_hwio.shape[3]
    idx = jnp.arange(width)
    off = idx[:, None] - idx[None, :] + 1
    valid = ((off >= 0) & (off <= 2)).astype(w2_hwio.dtype)
    offc = jnp.clip(off, 0, 2)
    band = w2_hwio[:, offc] * valid[None, :, :, None, None]        # (3, W', W, cin, cout)
    band = jnp.transpose(band, (0, 1, 3, 2, 4))                    # (3, W', cin, W, cout)
    return band.reshape(3, width * cin, width * cout)              # (3, 448, 896)


def _interleave_pool_cols(band, nblocks, csize):
    # Reorder output columns w*csize + c -> (w%2)*(nblocks//2*csize) + (w//2)*csize + c
    # so the 2x2 W-pool becomes max(first half of lanes, second half of lanes).
    lead = band.shape[:-1]
    b = band.reshape(lead + (nblocks // 2, 2, csize))
    b = jnp.swapaxes(b, -3, -2)
    return b.reshape(lead + (nblocks * csize,))


# ----------------------------------------------------------------------------
# Parameters (PyTorch layouts / PyTorch-default-style init) and forward wrapper.
# ----------------------------------------------------------------------------
def init_params(key):
    ks = jax.random.split(key, 8)

    def u(k, shape, fan_in):
        bound = 1.0 / jnp.sqrt(float(fan_in))
        return jax.random.uniform(k, shape, jnp.float32, -bound, bound)

    return {
        "conv1_w": u(ks[0], (32, 1, 3, 3), 9),        # (out, in, kh, kw)
        "conv1_b": u(ks[1], (32,), 9),
        "conv2_w": u(ks[2], (64, 32, 3, 3), 288),
        "conv2_b": u(ks[3], (64,), 288),
        "fc1_w": u(ks[4], (128, 3136), 3136),         # columns in torch CHW flatten order
        "fc1_b": u(ks[5], (128,), 3136),
        "fc2_w": u(ks[6], (27, 128), 128),
        "fc2_b": u(ks[7], (128,), 128) if False else u(ks[7], (27,), 128),
    }


def handwriting_cnn_forward(x_nchw, params):
    B, C, H, W = x_nchw.shape
    assert (C, H, W) == (1, 28, 28), "HandwritingCNN requires (B, 1, 28, 28) input"

    # Batch tile: large enough to amortize fixed per-step cost and feed the MXU,
    # capped at 64 so live f32 slabs (~20 MB total at TB=64) fit v7x VMEM; always
    # a multiple of 16 so bf16 sublane packing / TB-row pool slices stay aligned.
    if B >= 64:
        TB = 64
    else:
        TB = max(16, ((B + 15) // 16) * 16)
    Bp = ((B + TB - 1) // TB) * TB

    # ---- input prep: one-time XLA im2col over kh (replaces in-kernel relayout) ---
    x = x_nchw.reshape(B, 28, 28).astype(jnp.bfloat16)
    if Bp != B:
        x = jnp.pad(x, ((0, Bp - B), (0, 0), (0, 0)))
    xh = jnp.pad(x, ((0, 0), (1, 1), (0, 0)))                      # zero H-pad: (Bp, 30, 28)
    taps = [jnp.pad(xh[:, kh:kh + 28, :], ((0, 0), (0, 0), (0, 4)))  # lane pad 28 -> 32
            for kh in range(3)]
    x_col = jnp.concatenate(taps, axis=-1)                         # (Bp, 28, 96): lane = kh*32 + w'
    x_col = jnp.transpose(x_col, (1, 0, 2))                        # (28, Bp, 96): row-major (i, b)

    # --- weight-only preprocessing (cheap; could be cached outside the fwd) ---
    w1 = jnp.transpose(params["conv1_w"], (2, 3, 1, 0))[:, :, 0, :]   # (kh, kw, cout)
    w2 = jnp.transpose(params["conv2_w"], (2, 3, 1, 0))               # (kh, kw, cin, cout)

    b1 = _interleave_pool_cols(_conv1_band(w1), 28, 32)               # (3, 28, 896), pool-friendly cols
    b1 = jnp.pad(b1, ((0, 0), (0, 4), (0, 0)))                        # rows kh*32 + w' (28..31 zero)
    b1k = b1.reshape(96, 896).astype(jnp.bfloat16)                    # merged K=96 conv1 band

    b2k = _interleave_pool_cols(_conv2_band(w2), 14, 64).astype(jnp.bfloat16)  # (3, 448, 896)

    # Tiled biases are invariant under the w-block column interleave.
    c1b = jnp.tile(params["conv1_b"], 28).reshape(1, 896).astype(jnp.float32)
    c2b = jnp.tile(params["conv2_b"], 14).reshape(1, 896).astype(jnp.float32)

    # fc1: torch flattens in CHW order; permute once to our HWC lane layout.
    fc1 = params["fc1_w"].reshape(128, 64, 7, 7)                      # (k, c, h, w)
    fc1 = jnp.transpose(fc1, (2, 3, 1, 0)).reshape(7, 448, 128).astype(jnp.bfloat16)
    fb1 = params["fc1_b"].reshape(1, 128).astype(jnp.float32)

    # fc2: zero-pad to 128 output lanes (lane-dense output, MXU-aligned N).
    fc2 = jnp.zeros((128, 128), jnp.float32).at[:, :27].set(
        jnp.transpose(params["fc2_w"], (1, 0))).astype(jnp.bfloat16)
    fb2 = jnp.zeros((1, 128), jnp.float32).at[0, :27].set(params["fc2_b"])

    kernel = functools.partial(_fused_kernel, TB=TB)
    out = pl.pallas_call(
        kernel,
        out_shape=jax.ShapeDtypeStruct((Bp, 128), jnp.float32),
        grid=(Bp // TB,),
        in_specs=[
            pl.BlockSpec((28, TB, 96), lambda b: (0, b, 0)),    # im2col'd images (batch-tiled, bf16)
            pl.BlockSpec((96, 896), lambda b: (0, 0)),          # conv1 merged band weights
            pl.BlockSpec((1, 896), lambda b: (0, 0)),           # conv1 bias (tiled)
            pl.BlockSpec((3, 448, 896), lambda b: (0, 0, 0)),   # conv2 band weights
            pl.BlockSpec((1, 896), lambda b: (0, 0)),           # conv2 bias (tiled)
            pl.BlockSpec((7, 448, 128), lambda b: (0, 0, 0)),   # fc1 weights (HWC order)
            pl.BlockSpec((1, 128), lambda b: (0, 0)),           # fc1 bias
            pl.BlockSpec((128, 128), lambda b: (0, 0)),         # fc2 weights (lane-padded)
            pl.BlockSpec((1, 128), lambda b: (0, 0)),           # fc2 bias (lane-padded)
        ],
        out_specs=pl.BlockSpec((TB, 128), lambda b: (b, 0)),    # lane-dense output block
        compiler_params=pltpu.CompilerParams(
            dimension_semantics=("parallel",),
            # Peak in-kernel VMEM at TB=64 is ~20 MB (h1 + hp1 + double-buffered
            # weights); 48 MB gives headroom on v5e/v6e and stays under v7x's
            # 64 MB physical VMEM.
            vmem_limit_bytes=48 * 1024 * 1024,
        ),
    )(x_col, b1k, c1b, b2k, c2b, fc1, fb1, fc2, fb2)
    return out[:B, :27]


if __name__ == "__main__":
    key = jax.random.PRNGKey(0)
    pkey, xkey = jax.random.split(key)
    params = init_params(pkey)
    # Spatial size is fixed at 28x28 by the Linear(64*7*7, 128) layer.
    x = jax.random.normal(xkey, (2, 1, 28, 28), jnp.float32)

    fwd = jax.jit(handwriting_cnn_forward)
    out = fwd(x, params)
    out = jax.block_until_ready(out)

    assert out.shape == (2, 27), out.shape
    assert out.dtype == jnp.float32
    assert bool(jnp.all(jnp.isfinite(out)))
    print("KERNEL_OK")
</pallas_src>

<mosaic_0001>
module attributes {stable_mosaic.version = 11 : i64} {
  func.func @_fused_kernel(%arg0: i32, %arg1: memref<28x16x96xbf16, #tpu.memory_space<vmem>>, %arg2: memref<96x896xbf16, #tpu.memory_space<vmem>>, %arg3: memref<1x896xf32, #tpu.memory_space<vmem>>, %arg4: memref<3x448x896xbf16, #tpu.memory_space<vmem>>, %arg5: memref<1x896xf32, #tpu.memory_space<vmem>>, %arg6: memref<7x448x128xbf16, #tpu.memory_space<vmem>>, %arg7: memref<1x128xf32, #tpu.memory_space<vmem>>, %arg8: memref<128x128xbf16, #tpu.memory_space<vmem>>, %arg9: memref<1x128xf32, #tpu.memory_space<vmem>>, %arg10: memref<16x128xf32, #tpu.memory_space<vmem>>) attributes {dimension_semantics = [#tpu.dimension_semantics<parallel>], iteration_bounds = array<i64: 1>, scalar_prefetch = 0 : i64, scratch_operands = 0 : i64, tpu.core_type = #tpu.core_type<tc>, window_params = [{transform_indices = @transform_0, window_bounds = array<i64: 28, 16, 96>}, {pipeline_mode = #tpu.pipeline_mode<synchronous>, transform_indices = @transform_1, window_bounds = array<i64: 96, 896>}, {pipeline_mode = #tpu.pipeline_mode<synchronous>, transform_indices = @transform_2, window_bounds = array<i64: 1, 896>}, {pipeline_mode = #tpu.pipeline_mode<synchronous>, transform_indices = @transform_3, window_bounds = array<i64: 3, 448, 896>}, {pipeline_mode = #tpu.pipeline_mode<synchronous>, transform_indices = @transform_4, window_bounds = array<i64: 1, 896>}, {pipeline_mode = #tpu.pipeline_mode<synchronous>, transform_indices = @transform_5, window_bounds = array<i64: 7, 448, 128>}, {pipeline_mode = #tpu.pipeline_mode<synchronous>, transform_indices = @transform_6, window_bounds = array<i64: 1, 128>}, {pipeline_mode = #tpu.pipeline_mode<synchronous>, transform_indices = @transform_7, window_bounds = array<i64: 128, 128>}, {pipeline_mode = #tpu.pipeline_mode<synchronous>, transform_indices = @transform_8, window_bounds = array<i64: 1, 128>}, {transform_indices = @transform_9, window_bounds = array<i64: 16, 128>}]} {
    %c0 = arith.constant 0 : index
    %c0_0 = arith.constant 0 : index
    %c0_1 = arith.constant 0 : index
    %0 = vector.load %arg1[%c0, %c0_0, %c0_1] : memref<28x16x96xbf16, #tpu.memory_space<vmem>>, vector<28x16x96xbf16>
    %1 = vector.shape_cast %0 : vector<28x16x96xbf16> to vector<448x96xbf16>
    %c0_2 = arith.constant 0 : index
    %c0_3 = arith.constant 0 : index
    %2 = vector.load %arg2[%c0_2, %c0_3] : memref<96x896xbf16, #tpu.memory_space<vmem>>, vector<96x896xbf16>
    %cst = arith.constant dense<0.000000e+00> : vector<448x896xf32>
    %3 = tpu.matmul %1, %2, %cst {dimension_numbers = #tpu.dot_dimension_numbers<[1], [0], [0], [1], [0, 0, 1, 1], [], []>} : vector<448x96xbf16>, vector<96x896xbf16>, vector<448x896xf32> -> vector<448x896xf32>
    %c0_4 = arith.constant 0 : index
    %c0_5 = arith.constant 0 : index
    %4 = vector.load %arg3[%c0_4, %c0_5] : memref<1x896xf32, #tpu.memory_space<vmem>>, vector<1x896xf32>
    %5 = vector.broadcast %4 : vector<1x896xf32> to vector<448x896xf32>
    %6 = arith.addf %3, %5 : vector<448x896xf32>
    %cst_6 = arith.constant 0.000000e+00 : f32
    %7 = vector.broadcast %cst_6 : f32 to vector<448x896xf32>
    %8 = arith.maximumf %6, %7 : vector<448x896xf32>
    %9 = vector.shape_cast %8 : vector<448x896xf32> to vector<14x2x16x896xf32>
    %cst_7 = arith.constant dense<0xFF800000> : vector<14x16x896xf32>
    %10 = vector.multi_reduction <maximumf>, %9, %cst_7 [1] : vector<14x2x16x896xf32> to vector<14x16x896xf32>
    %11 = vector.shape_cast %10 : vector<14x16x896xf32> to vector<224x896xf32>
    %12 = vector.extract_strided_slice %11 {offsets = [0, 0], sizes = [224, 448], strides = [1, 1]} : vector<224x896xf32> to vector<224x448xf32>
    %13 = vector.extract_strided_slice %11 {offsets = [0, 448], sizes = [224, 448], strides = [1, 1]} : vector<224x896xf32> to vector<224x448xf32>
    %14 = arith.maximumf %12, %13 : vector<224x448xf32>
    %15 = arith.truncf %14 : vector<224x448xf32> to vector<224x448xbf16>
    %cst_8 = arith.constant 0.000000e+00 : bf16
    %16 = vector.broadcast %cst_8 : bf16 to vector<16x448xbf16>
    %17 = tpu.concatenate %16, %15, %16 in 0 : vector<16x448xbf16>, vector<224x448xbf16>, vector<16x448xbf16> -> vector<256x448xbf16>
    %cst_9 = arith.constant 0.000000e+00 : f32
    %18 = vector.broadcast %cst_9 : f32 to vector<224x896xf32>
    %19 = vector.extract_strided_slice %17 {offsets = [0, 0], sizes = [224, 448], strides = [1, 1]} : vector<256x448xbf16> to vector<224x448xbf16>
    %c0_10 = arith.constant 0 : index
    %c0_11 = arith.constant 0 : index
    %c0_12 = arith.constant 0 : index
    %20 = vector.load %arg4[%c0_10, %c0_11, %c0_12] : memref<3x448x896xbf16, #tpu.memory_space<vmem>>, vector<1x448x896xbf16>
    %21 = vector.shape_cast %20 : vector<1x448x896xbf16> to vector<448x896xbf16>
    %cst_13 = arith.constant dense<0.000000e+00> : vector<224x896xf32>
    %22 = tpu.matmul %19, %21, %cst_13 {dimension_numbers = #tpu.dot_dimension_numbers<[1], [0], [0], [1], [0, 0, 1, 1], [], []>} : vector<224x448xbf16>, vector<448x896xbf16>, vector<224x896xf32> -> vector<224x896xf32>
    %23 = arith.addf %18, %22 : vector<224x896xf32>
    %24 = vector.extract_strided_slice %17 {offsets = [16, 0], sizes = [224, 448], strides = [1, 1]} : vector<256x448xbf16> to vector<224x448xbf16>
    %c1 = arith.constant 1 : index
    %c0_14 = arith.constant 0 : index
    %c0_15 = arith.constant 0 : index
    %25 = vector.load %arg4[%c1, %c0_14, %c0_15] : memref<3x448x896xbf16, #tpu.memory_space<vmem>>, vector<1x448x896xbf16>
    %26 = vector.shape_cast %25 : vector<1x448x896xbf16> to vector<448x896xbf16>
    %cst_16 = arith.constant dense<0.000000e+00> : vector<224x896xf32>
    %27 = tpu.matmul %24, %26, %cst_16 {dimension_numbers = #tpu.dot_dimension_numbers<[1], [0], [0], [1], [0, 0, 1, 1], [], []>} : vector<224x448xbf16>, vector<448x896xbf16>, vector<224x896xf32> -> vector<224x896xf32>
    %28 = arith.addf %23, %27 : vector<224x896xf32>
    %29 = vector.extract_strided_slice %17 {offsets = [32, 0], sizes = [224, 448], strides = [1, 1]} : vector<256x448xbf16> to vector<224x448xbf16>
    %c2 = arith.constant 2 : index
    %c0_17 = arith.constant 0 : index
    %c0_18 = arith.constant 0 : index
    %30 = vector.load %arg4[%c2, %c0_17, %c0_18] : memref<3x448x896xbf16, #tpu.memory_space<vmem>>, vector<1x448x896xbf16>
    %31 = vector.shape_cast %30 : vector<1x448x896xbf16> to vector<448x896xbf16>
    %cst_19 = arith.constant dense<0.000000e+00> : vector<224x896xf32>
    %32 = tpu.matmul %29, %31, %cst_19 {dimension_numbers = #tpu.dot_dimension_numbers<[1], [0], [0], [1], [0, 0, 1, 1], [], []>} : vector<224x448xbf16>, vector<448x896xbf16>, vector<224x896xf32> -> vector<224x896xf32>
    %33 = arith.addf %28, %32 : vector<224x896xf32>
    %c0_20 = arith.constant 0 : index
    %c0_21 = arith.constant 0 : index
    %34 = vector.load %arg5[%c0_20, %c0_21] : memref<1x896xf32, #tpu.memory_space<vmem>>, vector<1x896xf32>
    %35 = vector.broadcast %34 : vector<1x896xf32> to vector<224x896xf32>
    %36 = arith.addf %33, %35 : vector<224x896xf32>
    %cst_22 = arith.constant 0.000000e+00 : f32
    %37 = vector.broadcast %cst_22 : f32 to vector<224x896xf32>
    %38 = arith.maximumf %36, %37 : vector<224x896xf32>
    %39 = vector.shape_cast %38 : vector<224x896xf32> to vector<7x2x16x896xf32>
    %cst_23 = arith.constant dense<0xFF800000> : vector<7x16x896xf32>
    %40 = vector.multi_reduction <maximumf>, %39, %cst_23 [1] : vector<7x2x16x896xf32> to vector<7x16x896xf32>
    %41 = vector.shape_cast %40 : vector<7x16x896xf32> to vector<112x896xf32>
    %42 = vector.extract_strided_slice %41 {offsets = [0, 0], sizes = [112, 448], strides = [1, 1]} : vector<112x896xf32> to vector<112x448xf32>
    %43 = vector.extract_strided_slice %41 {offsets = [0, 448], sizes = [112, 448], strides = [1, 1]} : vector<112x896xf32> to vector<112x448xf32>
    %44 = arith.maximumf %42, %43 : vector<112x448xf32>
    %45 = arith.truncf %44 : vector<112x448xf32> to vector<112x448xbf16>
    %cst_24 = arith.constant 0.000000e+00 : f32
    %46 = vector.broadcast %cst_24 : f32 to vector<16x128xf32>
    %47 = vector.extract_strided_slice %45 {offsets = [0, 0], sizes = [16, 448], strides = [1, 1]} : vector<112x448xbf16> to vector<16x448xbf16>
    %c0_25 = arith.constant 0 : index
    %c0_26 = arith.constant 0 : index
    %c0_27 = arith.constant 0 : index
    %48 = vector.load %arg6[%c0_25, %c0_26, %c0_27] : memref<7x448x128xbf16, #tpu.memory_space<vmem>>, vector<1x448x128xbf16>
    %49 = vector.shape_cast %48 : vector<1x448x128xbf16> to vector<448x128xbf16>
    %cst_28 = arith.constant dense<0.000000e+00> : vector<16x128xf32>
    %50 = tpu.matmul %47, %49, %cst_28 {dimension_numbers = #tpu.dot_dimension_numbers<[1], [0], [0], [1], [0, 0, 1, 1], [], []>} : vector<16x448xbf16>, vector<448x128xbf16>, vector<16x128xf32> -> vector<16x128xf32>
    %51 = arith.addf %46, %50 : vector<16x128xf32>
    %52 = vector.extract_strided_slice %45 {offsets = [16, 0], sizes = [16, 448], strides = [1, 1]} : vector<112x448xbf16> to vector<16x448xbf16>
    %c1_29 = arith.constant 1 : index
    %c0_30 = arith.constant 0 : index
    %c0_31 = arith.constant 0 : index
    %53 = vector.load %arg6[%c1_29, %c0_30, %c0_31] : memref<7x448x128xbf16, #tpu.memory_space<vmem>>, vector<1x448x128xbf16>
    %54 = vector.shape_cast %53 : vector<1x448x128xbf16> to vector<448x128xbf16>
    %cst_32 = arith.constant dense<0.000000e+00> : vector<16x128xf32>
    %55 = tpu.matmul %52, %54, %cst_32 {dimension_numbers = #tpu.dot_dimension_numbers<[1], [0], [0], [1], [0, 0, 1, 1], [], []>} : vector<16x448xbf16>, vector<448x128xbf16>, vector<16x128xf32> -> vector<16x128xf32>
    %56 = arith.addf %51, %55 : vector<16x128xf32>
    %57 = vector.extract_strided_slice %45 {offsets = [32, 0], sizes = [16, 448], strides = [1, 1]} : vector<112x448xbf16> to vector<16x448xbf16>
    %c2_33 = arith.constant 2 : index
    %c0_34 = arith.constant 0 : index
    %c0_35 = arith.constant 0 : index
    %58 = vector.load %arg6[%c2_33, %c0_34, %c0_35] : memref<7x448x128xbf16, #tpu.memory_space<vmem>>, vector<1x448x128xbf16>
    %59 = vector.shape_cast %58 : vector<1x448x128xbf16> to vector<448x128xbf16>
    %cst_36 = arith.constant dense<0.000000e+00> : vector<16x128xf32>
    %60 = tpu.matmul %57, %59, %cst_36 {dimension_numbers = #tpu.dot_dimension_numbers<[1], [0], [0], [1], [0, 0, 1, 1], [], []>} : vector<16x448xbf16>, vector<448x128xbf16>, vector<16x128xf32> -> vector<16x128xf32>
    %61 = arith.addf %56, %60 : vector<16x128xf32>
    %62 = vector.extract_strided_slice %45 {offsets = [48, 0], sizes = [16, 448], strides = [1, 1]} : vector<112x448xbf16> to vector<16x448xbf16>
    %c3 = arith.constant 3 : index
    %c0_37 = arith.constant 0 : index
    %c0_38 = arith.constant 0 : index
    %63 = vector.load %arg6[%c3, %c0_37, %c0_38] : memref<7x448x128xbf16, #tpu.memory_space<vmem>>, vector<1x448x128xbf16>
    %64 = vector.shape_cast %63 : vector<1x448x128xbf16> to vector<448x128xbf16>
    %cst_39 = arith.constant dense<0.000000e+00> : vector<16x128xf32>
    %65 = tpu.matmul %62, %64, %cst_39 {dimension_numbers = #tpu.dot_dimension_numbers<[1], [0], [0], [1], [0, 0, 1, 1], [], []>} : vector<16x448xbf16>, vector<448x128xbf16>, vector<16x128xf32> -> vector<16x128xf32>
    %66 = arith.addf %61, %65 : vector<16x128xf32>
    %67 = vector.extract_strided_slice %45 {offsets = [64, 0], sizes = [16, 448], strides = [1, 1]} : vector<112x448xbf16> to vector<16x448xbf16>
    %c4 = arith.constant 4 : index
    %c0_40 = arith.constant 0 : index
    %c0_41 = arith.constant 0 : index
    %68 = vector.load %arg6[%c4, %c0_40, %c0_41] : memref<7x448x128xbf16, #tpu.memory_space<vmem>>, vector<1x448x128xbf16>
    %69 = vector.shape_cast %68 : vector<1x448x128xbf16> to vector<448x128xbf16>
    %cst_42 = arith.constant dense<0.000000e+00> : vector<16x128xf32>
    %70 = tpu.matmul %67, %69, %cst_42 {dimension_numbers = #tpu.dot_dimension_numbers<[1], [0], [0], [1], [0, 0, 1, 1], [], []>} : vector<16x448xbf16>, vector<448x128xbf16>, vector<16x128xf32> -> vector<16x128xf32>
    %71 = arith.addf %66, %70 : vector<16x128xf32>
    %72 = vector.extract_strided_slice %45 {offsets = [80, 0], sizes = [16, 448], strides = [1, 1]} : vector<112x448xbf16> to vector<16x448xbf16>
    %c5 = arith.constant 5 : index
    %c0_43 = arith.constant 0 : index
    %c0_44 = arith.constant 0 : index
    %73 = vector.load %arg6[%c5, %c0_43, %c0_44] : memref<7x448x128xbf16, #tpu.memory_space<vmem>>, vector<1x448x128xbf16>
    %74 = vector.shape_cast %73 : vector<1x448x128xbf16> to vector<448x128xbf16>
    %cst_45 = arith.constant dense<0.000000e+00> : vector<16x128xf32>
    %75 = tpu.matmul %72, %74, %cst_45 {dimension_numbers = #tpu.dot_dimension_numbers<[1], [0], [0], [1], [0, 0, 1, 1], [], []>} : vector<16x448xbf16>, vector<448x128xbf16>, vector<16x128xf32> -> vector<16x128xf32>
    %76 = arith.addf %71, %75 : vector<16x128xf32>
    %77 = vector.extract_strided_slice %45 {offsets = [96, 0], sizes = [16, 448], strides = [1, 1]} : vector<112x448xbf16> to vector<16x448xbf16>
    %c6 = arith.constant 6 : index
    %c0_46 = arith.constant 0 : index
    %c0_47 = arith.constant 0 : index
    %78 = vector.load %arg6[%c6, %c0_46, %c0_47] : memref<7x448x128xbf16, #tpu.memory_space<vmem>>, vector<1x448x128xbf16>
    %79 = vector.shape_cast %78 : vector<1x448x128xbf16> to vector<448x128xbf16>
    %cst_48 = arith.constant dense<0.000000e+00> : vector<16x128xf32>
    %80 = tpu.matmul %77, %79, %cst_48 {dimension_numbers = #tpu.dot_dimension_numbers<[1], [0], [0], [1], [0, 0, 1, 1], [], []>} : vector<16x448xbf16>, vector<448x128xbf16>, vector<16x128xf32> -> vector<16x128xf32>
    %81 = arith.addf %76, %80 : vector<16x128xf32>
    %c0_49 = arith.constant 0 : index
    %c0_50 = arith.constant 0 : index
    %82 = vector.load %arg7[%c0_49, %c0_50] : memref<1x128xf32, #tpu.memory_space<vmem>>, vector<1x128xf32>
    %83 = vector.broadcast %82 : vector<1x128xf32> to vector<16x128xf32>
    %84 = arith.addf %81, %83 : vector<16x128xf32>
    %cst_51 = arith.constant 0.000000e+00 : f32
    %85 = vector.broadcast %cst_51 : f32 to vector<16x128xf32>
    %86 = arith.maximumf %84, %85 : vector<16x128xf32>
    %87 = arith.truncf %86 : vector<16x128xf32> to vector<16x128xbf16>
    %c0_52 = arith.constant 0 : index
    %c0_53 = arith.constant 0 : index
    %88 = vector.load %arg8[%c0_52, %c0_53] : memref<128x128xbf16, #tpu.memory_space<vmem>>, vector<128x128xbf16>
    %cst_54 = arith.constant dense<0.000000e+00> : vector<16x128xf32>
    %89 = tpu.matmul %87, %88, %cst_54 {dimension_numbers = #tpu.dot_dimension_numbers<[1], [0], [0], [1], [0, 0, 1, 1], [], []>} : vector<16x128xbf16>, vector<128x128xbf16>, vector<16x128xf32> -> vector<16x128xf32>
    %c0_55 = arith.constant 0 : index
    %c0_56 = arith.constant 0 : index
    %90 = vector.load %arg9[%c0_55, %c0_56] : memref<1x128xf32, #tpu.memory_space<vmem>>, vector<1x128xf32>
    %91 = vector.broadcast %90 : vector<1x128xf32> to vector<16x128xf32>
    %92 = arith.addf %89, %91 : vector<16x128xf32>
    %c0_57 = arith.constant 0 : index
    %c0_58 = arith.constant 0 : index
    %93 = vector.load %arg10[%c0_57, %c0_58] : memref<16x128xf32, #tpu.memory_space<vmem>>, vector<16x128xf32>
    tpu.vector_store %arg10[%c0_57, %c0_58], %92 {strides = array<i32>} : memref<16x128xf32, #tpu.memory_space<vmem>>, vector<16x128xf32>,
    return
  }
  func.func @transform_0(%arg0: i32) -> (i32, i32, i32) {
    %c0_i32 = arith.constant 0 : i32
    %c0_i32_0 = arith.constant 0 : i32
    %c0_i32_1 = arith.constant 0 : i32
    return %c0_i32, %arg0, %c0_i32_0 : i32, i32, i32
  }
  func.func @transform_1(%arg0: i32) -> (i32, i32) {
    %c0_i32 = arith.constant 0 : i32
    %c0_i32_0 = arith.constant 0 : i32
    %c0_i32_1 = arith.constant 0 : i32
    return %c0_i32, %c0_i32_0 : i32, i32
  }
  func.func @transform_2(%arg0: i32) -> (i32, i32) {
    %c0_i32 = arith.constant 0 : i32
    %c0_i32_0 = arith.constant 0 : i32
    %c0_i32_1 = arith.constant 0 : i32
    return %c0_i32, %c0_i32_0 : i32, i32
  }
  func.func @transform_3(%arg0: i32) -> (i32, i32, i32) {
    %c0_i32 = arith.constant 0 : i32
    %c0_i32_0 = arith.constant 0 : i32
    %c0_i32_1 = arith.constant 0 : i32
    %c0_i32_2 = arith.constant 0 : i32
    return %c0_i32, %c0_i32_0, %c0_i32_1 : i32, i32, i32
  }
  func.func @transform_4(%arg0: i32) -> (i32, i32) {
    %c0_i32 = arith.constant 0 : i32
    %c0_i32_0 = arith.constant 0 : i32
    %c0_i32_1 = arith.constant 0 : i32
    return %c0_i32, %c0_i32_0 : i32, i32
  }
  func.func @transform_5(%arg0: i32) -> (i32, i32, i32) {
    %c0_i32 = arith.constant 0 : i32
    %c0_i32_0 = arith.constant 0 : i32
    %c0_i32_1 = arith.constant 0 : i32
    %c0_i32_2 = arith.constant 0 : i32
    return %c0_i32, %c0_i32_0, %c0_i32_1 : i32, i32, i32
  }
  func.func @transform_6(%arg0: i32) -> (i32, i32) {
    %c0_i32 = arith.constant 0 : i32
    %c0_i32_0 = arith.constant 0 : i32
    %c0_i32_1 = arith.constant 0 : i32
    return %c0_i32, %c0_i32_0 : i32, i32
  }
  func.func @transform_7(%arg0: i32) -> (i32, i32) {
    %c0_i32 = arith.constant 0 : i32
    %c0_i32_0 = arith.constant 0 : i32
    %c0_i32_1 = arith.constant 0 : i32
    return %c0_i32, %c0_i32_0 : i32, i32
  }
  func.func @transform_8(%arg0: i32) -> (i32, i32) {
    %c0_i32 = arith.constant 0 : i32
    %c0_i32_0 = arith.constant 0 : i32
    %c0_i32_1 = arith.constant 0 : i32
    return %c0_i32, %c0_i32_0 : i32, i32
  }
  func.func @transform_9(%arg0: i32) -> (i32, i32) {
    %c0_i32 = arith.constant 0 : i32
    %c0_i32_0 = arith.constant 0 : i32
    return %arg0, %c0_i32 : i32, i32
  }
}

</mosaic_0001>

<llo_original>
// kernel: tile.13
$region0: #{tile.13}
  #allocation0 [shape = 's32[1]{0}', space=sflag, size = 0x4, scoped, tag = 'scoped memory for tile.13']
  %s0 = inlined_call_operand.vmem [shape: f32[32], index: 0, kind: input, shape index: {}]
  %s1 = inlined_call_operand.vmem [shape: f32[28,32], index: 1, kind: output, shape index: {}]
  // Predicated region
  $region2: #{tile.13} parent=0 // pred_check
    _
  $region3: #{tile.13} parent=0 // pred_check_branch
    %3 = sbr.rel (0) target = $region5
  $region4: #{tile.13} parent=0 // pred_region
    _
  $region5: #{tile.13} parent=0 // pred_fallthru
    _
  %v4 = vld [vmem:[%s0] ss:$0 sm:$0xff]
  %5 = vst [vmem:[%s1] sm:$0xff] %v4
  %s6 = scalar_lea.vmem %s1, 8
  %7 = vst [vmem:[%s6] sm:$0xff] %v4
  %s8 = scalar_lea.vmem %s1, 16
  %9 = vst [vmem:[%s8] sm:$0xff] %v4
  %s10 = scalar_lea.vmem %s1, 24
  %11 = vst [vmem:[%s10] sm:$0xff] %v4

// kernel: tile.14
$region0: #{tile.14}
  %s0 = inlined_call_operand.vmem [shape: f32[28,32], index: 0, kind: input, shape index: {}]
  %s1 = inlined_call_operand.vmem [shape: f32[1,896], index: 1, kind: output, shape index: {}]
  $region1: #{tile.14} parent=0
    #allocation0 [shape = 'u8[28672]{0}', space=vmem, size = 0x7000, scoped, tag = 'scoped mem for output reshape']
    %v2 = vld [vmem:[%s0] ss:$4 sm:$0x7f]
    %vm3 = vcmask 261120
    %4 = vst.msk [vmem:[#allocation0] ss:$8 sm:$0xf] %vm3, %v2
    %5 = vst.msk [vmem:[#allocation0] ss:$8 sm:$0x70] %vm3, %v2
    %s6 = scalar_lea.vmem %s0, 3
    %v7 = vld [vmem:[%s6] ss:$4 sm:$0x7f]
    %8 = vrot.lane.b32.xlu0 %v7, 96
    %v9 = vpop.permute.xlu0 %8
    %vm10 = vcmask 1048320
    %11 = vst.msk [vmem:[#allocation0] ss:$8 sm:$0xf] %vm10, %v9
    %12 = vst.msk [vmem:[#allocation0] ss:$8 sm:$0x70] %vm10, %v9
    %s13 = scalar_lea.vmem %s0, 2
    %v14 = vld [vmem:[%s13] ss:$4 sm:$0x7f]
    %15 = vrot.lane.b32.xlu0 %v14, 64
    %v16 = vpop.permute.xlu0 %15
    %vm17 = vcmask 785920
    %18 = vst.msk [vmem:[#allocation0] ss:$8 sm:$0xf] %vm17, %v16
    %19 = vst.msk [vmem:[#allocation0] ss:$8 sm:$0x70] %vm17, %v16
    %s20 = scalar_lea.vmem %s0, 1
    %v21 = vld [vmem:[%s20] ss:$4 sm:$0x7f]
    %22 = vrot.lane.b32.xlu0 %v21, 32
    %v23 = vpop.permute.xlu0 %22
    %vm24 = vcmask 523520
    %25 = vst.msk [vmem:[#allocation0] ss:$8 sm:$0xf] %vm24, %v23
    %26 = vst.msk [vmem:[#allocation0] ss:$8 sm:$0x70] %vm24, %v23
    %s28 = sshllo.u32 0, 1
    %v30 = vld [vmem:[#allocation0] sm:%s28]
    %s31 = sshllo.u32 0, 1
    %32 = vst [vmem:[%s1] sm:%s31] %v30
    %s33 = scalar_lea.vmem [#allocation0], 8
    %v34 = vld [vmem:[%s33] sm:%s28]
    %s35 = sshllo.u32 0, 1
    %s36 = scalar_lea.vmem %s1, 1
    %37 = vst [vmem:[%s36] sm:%s35] %v34
    %s38 = scalar_lea.vmem [#allocation0], 16
    %v39 = vld [vmem:[%s38] sm:%s28]
    %s40 = sshllo.u32 0, 1
    %s41 = smul.addr 1, 2
    %s42 = scalar_lea.vmem %s1, %s41
    %43 = vst [vmem:[%s42] sm:%s40] %v39
    %s44 = scalar_lea.vmem [#allocation0], 24
    %v45 = vld [vmem:[%s44] sm:%s28]
    %s46 = sshllo.u32 0, 1
    %s47 = smul.addr 1, 3
    %s48 = scalar_lea.vmem %s1, %s47
    %49 = vst [vmem:[%s48] sm:%s46] %v45
    %s50 = scalar_lea.vmem [#allocation0], 32
    %v51 = vld [vmem:[%s50] sm:%s28]
    %s52 = sshllo.u32 0, 1
    %s53 = smul.addr 1, 4
    %s54 = scalar_lea.vmem %s1, %s53
    %55 = vst [vmem:[%s54] sm:%s52] %v51
    %s56 = scalar_lea.vmem [#allocation0], 40
    %v57 = vld [vmem:[%s56] sm:%s28]
    %s58 = sshllo.u32 0, 1
    %s59 = smul.addr 1, 5
    %s60 = scalar_lea.vmem %s1, %s59
    %61 = vst [vmem:[%s60] sm:%s58] %v57
    %s62 = scalar_lea.vmem [#allocation0], 48
    %v63 = vld [vmem:[%s62] sm:%s28]
    %s64 = sshllo.u32 0, 1
    %s65 = smul.addr 1, 6
    %s66 = scalar_lea.vmem %s1, %s65
    %67 = vst [vmem:[%s66] sm:%s64] %v63

// kernel: tile.18
$region0: #{tile.18}
  #allocation0 [shape = 's32[1]{0}', space=sflag, size = 0x4, scoped, tag = 'scoped memory for tile.18']
  %s0 = inlined_call_operand.vmem [shape: f32[64], index: 0, kind: input, shape index: {}]
  %s1 = inlined_call_operand.vmem [shape: f32[14,64], index: 1, kind: output, shape index: {}]
  // Predicated region
  $region2: #{tile.18} parent=0 // pred_check
    _
  $region3: #{tile.18} parent=0 // pred_check_branch
    %3 = sbr.rel (0) target = $region5
  $region4: #{tile.18} parent=0 // pred_region
    _
  $region5: #{tile.18} parent=0 // pred_fallthru
    _
  %v4 = vld [vmem:[%s0] ss:$0 sm:$0xff]
  %5 = vst [vmem:[%s1] sm:$0xff] %v4
  %s6 = scalar_lea.vmem %s1, 8
  %7 = vst [vmem:[%s6] sm:$0xff] %v4

// kernel: tile.19
$region0: #{tile.19}
  %s0 = inlined_call_operand.vmem [shape: f32[14,64], index: 0, kind: input, shape index: {}]
  %s1 = inlined_call_operand.vmem [shape: f32[1,896], index: 1, kind: output, shape index: {}]
  $region1: #{tile.19} parent=0
    #allocation0 [shape = 'u8[28672]{0}', space=vmem, size = 0x7000, scoped, tag = 'scoped mem for output reshape']
    %v2 = vld [vmem:[%s0] ss:$2 sm:$0x7f]
    %vm3 = vcmask 523264
    %4 = vst.msk [vmem:[#allocation0] ss:$8 sm:$0xf] %vm3, %v2
    %5 = vst.msk [vmem:[#allocation0] ss:$8 sm:$0x70] %vm3, %v2
    %s6 = scalar_lea.vmem %s0, 1
    %v7 = vld [vmem:[%s6] ss:$2 sm:$0x7f]
    %8 = vrot.lane.b32.xlu0 %v7, 64
    %v9 = vpop.permute.xlu0 %8
    %vm10 = vcmask 1048064
    %11 = vst.msk [vmem:[#allocation0] ss:$8 sm:$0xf] %vm10, %v9
    %12 = vst.msk [vmem:[#allocation0] ss:$8 sm:$0x70] %vm10, %v9
    %s14 = sshllo.u32 0, 1
    %v16 = vld [vmem:[#allocation0] sm:%s14]
    %s17 = sshllo.u32 0, 1
    %18 = vst [vmem:[%s1] sm:%s17] %v16
    %s19 = scalar_lea.vmem [#allocation0], 8
    %v20 = vld [vmem:[%s19] sm:%s14]
    %s21 = sshllo.u32 0, 1
    %s22 = scalar_lea.vmem %s1, 1
    %23 = vst [vmem:[%s22] sm:%s21] %v20
    %s24 = scalar_lea.vmem [#allocation0], 16
    %v25 = vld [vmem:[%s24] sm:%s14]
    %s26 = sshllo.u32 0, 1
    %s27 = smul.addr 1, 2
    %s28 = scalar_lea.vmem %s1, %s27
    %29 = vst [vmem:[%s28] sm:%s26] %v25
    %s30 = scalar_lea.vmem [#allocation0], 24
    %v31 = vld [vmem:[%s30] sm:%s14]
    %s32 = sshllo.u32 0, 1
    %s33 = smul.addr 1, 3
    %s34 = scalar_lea.vmem %s1, %s33
    %35 = vst [vmem:[%s34] sm:%s32] %v31
    %s36 = scalar_lea.vmem [#allocation0], 32
    %v37 = vld [vmem:[%s36] sm:%s14]
    %s38 = sshllo.u32 0, 1
    %s39 = smul.addr 1, 4
    %s40 = scalar_lea.vmem %s1, %s39
    %41 = vst [vmem:[%s40] sm:%s38] %v37
    %s42 = scalar_lea.vmem [#allocation0], 40
    %v43 = vld [vmem:[%s42] sm:%s14]
    %s44 = sshllo.u32 0, 1
    %s45 = smul.addr 1, 5
    %s46 = scalar_lea.vmem %s1, %s45
    %47 = vst [vmem:[%s46] sm:%s44] %v43
    %s48 = scalar_lea.vmem [#allocation0], 48
    %v49 = vld [vmem:[%s48] sm:%s14]
    %s50 = sshllo.u32 0, 1
    %s51 = smul.addr 1, 6
    %s52 = scalar_lea.vmem %s1, %s51
    %53 = vst [vmem:[%s52] sm:%s50] %v49

// kernel: handwriting_cnn_forward.1
$region0: #{handwriting_cnn_forward.1}
  #allocation0 [shape = 'u32[]', space=smem, size = 0x4, offset = 0x4, fixed_abs, tag = 'smem constant byte address 0x4 - core index']
  #allocation1 [shape = 'u32[144,128]{1,0:T(1,128)}', space=vmem, size = 0x12000, scoped, tag = 'internal scratch']
  %s0 = inlined_call_operand.vmem [shape: bf16[28,16,96], index: 0, kind: input, shape index: {}]
  %s1 = inlined_call_operand.vmem [shape: bf16[96,896], index: 1, kind: input, shape index: {}]
  %s2 = inlined_call_operand.vmem [shape: f32[1,896], index: 2, kind: input, shape index: {}]
  %s3 = inlined_call_operand.vmem [shape: bf16[3,448,896], index: 3, kind: input, shape index: {}]
  %s4 = inlined_call_operand.vmem [shape: f32[1,896], index: 4, kind: input, shape index: {}]
  %s5 = inlined_call_operand.vmem [shape: bf16[7,448,128], index: 5, kind: input, shape index: {}]
  %s6 = inlined_call_operand.vmem [shape: f32[1,128], index: 6, kind: input, shape index: {}]
  %s7 = inlined_call_operand.vmem [shape: bf16[128,128], index: 7, kind: input, shape index: {}]
  %s8 = inlined_call_operand.vmem [shape: f32[1,128], index: 8, kind: input, shape index: {}]
  %s9 = inlined_call_operand.vmem [shape: f32[16,128], index: 9, kind: output, shape index: {}]
  %s10 = sld [smem:[#allocation0]]
  $region46: #{handwriting_cnn_forward.1} parent=0
    _
  %s12 = ssub.s32 1, %s10
  %s13 = scalar_select 0, %s12, %s10
  // Predicated region
  $region2: #{handwriting_cnn_forward.1} parent=0 // pred_check
    _
  $region3: #{handwriting_cnn_forward.1} parent=0 // pred_check_branch
    %15 = sbr.rel (0) target = $region5
  $region4: #{handwriting_cnn_forward.1} parent=0 // pred_region
    _
  $region5: #{handwriting_cnn_forward.1} parent=0 // pred_fallthru
    _
  // Predicated region
  $region6: #{handwriting_cnn_forward.1} parent=0 // pred_check
    _
  $region7: #{handwriting_cnn_forward.1} parent=0 // pred_check_branch
    %17 = sbr.rel (0) target = $region9
  $region8: #{handwriting_cnn_forward.1} parent=0 // pred_region
    _
  $region9: #{handwriting_cnn_forward.1} parent=0 // pred_fallthru
    _
  // Predicated region
  $region10: #{handwriting_cnn_forward.1} parent=0 // pred_check
    _
  $region11: #{handwriting_cnn_forward.1} parent=0 // pred_check_branch
    %19 = sbr.rel (0) target = $region13
  $region12: #{handwriting_cnn_forward.1} parent=0 // pred_region
    _
  $region13: #{handwriting_cnn_forward.1} parent=0 // pred_fallthru
    _
  // Predicated region
  $region14: #{handwriting_cnn_forward.1} parent=0 // pred_check
    _
  $region15: #{handwriting_cnn_forward.1} parent=0 // pred_check_branch
    %21 = sbr.rel (0) target = $region17
  $region16: #{handwriting_cnn_forward.1} parent=0 // pred_region
    _
  $region17: #{handwriting_cnn_forward.1} parent=0 // pred_fallthru
    _
  // Predicated region
  $region18: #{handwriting_cnn_forward.1} parent=0 // pred_check
    _
  $region19: #{handwriting_cnn_forward.1} parent=0 // pred_check_branch
    %23 = sbr.rel (0) target = $region21
  $region20: #{handwriting_cnn_forward.1} parent=0 // pred_region
    _
  $region21: #{handwriting_cnn_forward.1} parent=0 // pred_fallthru
    _
  // Predicated region
  $region22: #{handwriting_cnn_forward.1} parent=0 // pred_check
    _
  $region23: #{handwriting_cnn_forward.1} parent=0 // pred_check_branch
    %25 = sbr.rel (0) target = $region25
  $region24: #{handwriting_cnn_forward.1} parent=0 // pred_region
    _
  $region25: #{handwriting_cnn_forward.1} parent=0 // pred_fallthru
    _
  // Predicated region
  $region26: #{handwriting_cnn_forward.1} parent=0 // pred_check
    _
  $region27: #{handwriting_cnn_forward.1} parent=0 // pred_check_branch
    %27 = sbr.rel (0) target = $region29
  $region28: #{handwriting_cnn_forward.1} parent=0 // pred_region
    _
  $region29: #{handwriting_cnn_forward.1} parent=0 // pred_fallthru
    _
  // Predicated region
  $region30: #{handwriting_cnn_forward.1} parent=0 // pred_check
    _
  $region31: #{handwriting_cnn_forward.1} parent=0 // pred_check_branch
    %29 = sbr.rel (0) target = $region33
  $region32: #{handwriting_cnn_forward.1} parent=0 // pred_region
    _
  $region33: #{handwriting_cnn_forward.1} parent=0 // pred_fallthru
    _
  // Predicated region
  $region34: #{handwriting_cnn_forward.1} parent=0 // pred_check
    _
  $region35: #{handwriting_cnn_forward.1} parent=0 // pred_check_branch
    %31 = sbr.rel (0) target = $region37
  $region36: #{handwriting_cnn_forward.1} parent=0 // pred_region
    _
  $region37: #{handwriting_cnn_forward.1} parent=0 // pred_fallthru
    _
  %v33 = vld [vmem:[%s0] sm:$0xf]
  %v34 = vld [vmem:[%s0 + $0x4] sm:$0xf]
  %v35 = vld [vmem:[%s0 + $0x8] sm:$0xf]
  %v36 = vld [vmem:[%s0 + $0xc] sm:$0xf]
  %v37 = vld [vmem:[%s0 + $0x10] sm:$0xf]
  %v38 = vld [vmem:[%s0 + $0x14] sm:$0xf]
  %v39 = vld [vmem:[%s0 + $0x18] sm:$0xf]
  %v40 = vld [vmem:[%s0 + $0x1c] sm:$0xf]
  %v41 = vld [vmem:[%s0 + $0x20] sm:$0xf]
  %v42 = vld [vmem:[%s0 + $0x24] sm:$0xf]
  %v43 = vld [vmem:[%s0 + $0x28] sm:$0xf]
  %v44 = vld [vmem:[%s0 + $0x2c] sm:$0xf]
  %v45 = vld [vmem:[%s0 + $0x30] sm:$0xf]
  %v46 = vld [vmem:[%s0 + $0x34] sm:$0xf]
  %v47 = vld [vmem:[%s0 + $0x38] sm:$0xf]
  %v48 = vld [vmem:[%s0 + $0x3c] sm:$0xf]
  %v49 = vld [vmem:[%s0 + $0x40] sm:$0xf]
  %v50 = vld [vmem:[%s0 + $0x44] sm:$0xf]
  %v51 = vld [vmem:[%s0 + $0x48] sm:$0xf]
  %v52 = vld [vmem:[%s0 + $0x4c] sm:$0xf]
  %v53 = vld [vmem:[%s0 + $0x50] sm:$0xf]
  %v54 = vld [vmem:[%s0 + $0x54] sm:$0xf]
  %v55 = vld [vmem:[%s0 + $0x58] sm:$0xf]
  %v56 = vld [vmem:[%s0 + $0x5c] sm:$0xf]
  %v57 = vld [vmem:[%s0 + $0x60] sm:$0xf]
  %v58 = vld [vmem:[%s0 + $0x64] sm:$0xf]
  %v59 = vld [vmem:[%s0 + $0x68] sm:$0xf]
  %v60 = vld [vmem:[%s0 + $0x6c] sm:$0xf]
  %v61 = vld [vmem:[%s0 + $0x70] sm:$0xf]
  %v62 = vld [vmem:[%s0 + $0x74] sm:$0xf]
  %v63 = vld [vmem:[%s0 + $0x78] sm:$0xf]
  %v64 = vld [vmem:[%s0 + $0x7c] sm:$0xf]
  %v65 = vld [vmem:[%s0 + $0x80] sm:$0xf]
  %v66 = vld [vmem:[%s0 + $0x84] sm:$0xf]
  %v67 = vld [vmem:[%s0 + $0x88] sm:$0xf]
  %v68 = vld [vmem:[%s0 + $0x8c] sm:$0xf]
  %v69 = vld [vmem:[%s0 + $0x90] sm:$0xf]
  %v70 = vld [vmem:[%s0 + $0x94] sm:$0xf]
  %v71 = vld [vmem:[%s0 + $0x98] sm:$0xf]
  %v72 = vld [vmem:[%s0 + $0x9c] sm:$0xf]
  %v73 = vld [vmem:[%s0 + $0xa0] sm:$0xf]
  %v74 = vld [vmem:[%s0 + $0xa4] sm:$0xf]
  %v75 = vld [vmem:[%s0 + $0xa8] sm:$0xf]
  %v76 = vld [vmem:[%s0 + $0xac] sm:$0xf]
  %v77 = vld [vmem:[%s0 + $0xb0] sm:$0xf]
  %v78 = vld [vmem:[%s0 + $0xb4] sm:$0xf]
  %v79 = vld [vmem:[%s0 + $0xb8] sm:$0xf]
  %v80 = vld [vmem:[%s0 + $0xbc] sm:$0xf]
  %v81 = vld [vmem:[%s0 + $0xc0] sm:$0xf]
  %v82 = vld [vmem:[%s0 + $0xc4] sm:$0xf]
  %v83 = vld [vmem:[%s0 + $0xc8] sm:$0xf]
  %v84 = vld [vmem:[%s0 + $0xcc] sm:$0xf]
  %v85 = vld [vmem:[%s0 + $0xd0] sm:$0xf]
  %v86 = vld [vmem:[%s0 + $0xd4] sm:$0xf]
  %v87 = vld [vmem:[%s0 + $0xd8] sm:$0xf]
  %v88 = vld [vmem:[%s0 + $0xdc] sm:$0xf]
  %v89 = vld [vmem:[%s1] sm:$0xff]
  %v90 = vld [vmem:[%s1 + $0x8] sm:$0xff]
  %v91 = vld [vmem:[%s1 + $0x10] sm:$0xff]
  %v92 = vld [vmem:[%s1 + $0x18] sm:$0xf]
  %v93 = vld [vmem:[%s1 + $0x1c] sm:$0xff]
  %v94 = vld [vmem:[%s1 + $0x24] sm:$0xff]
  %v95 = vld [vmem:[%s1 + $0x2c] sm:$0xff]
  %v96 = vld [vmem:[%s1 + $0x34] sm:$0xf]
  %v97 = vld [vmem:[%s1 + $0x38] sm:$0xff]
  %v98 = vld [vmem:[%s1 + $0x40] sm:$0xff]
  %v99 = vld [vmem:[%s1 + $0x48] sm:$0xff]
  %v100 = vld [vmem:[%s1 + $0x50] sm:$0xf]
  %v101 = vld [vmem:[%s1 + $0x54] sm:$0xff]
  %v102 = vld [vmem:[%s1 + $0x5c] sm:$0xff]
  %v103 = vld [vmem:[%s1 + $0x64] sm:$0xff]
  %v104 = vld [vmem:[%s1 + $0x6c] sm:$0xf]
  %v105 = vld [vmem:[%s1 + $0x70] sm:$0xff]
  %v106 = vld [vmem:[%s1 + $0x78] sm:$0xff]
  %v107 = vld [vmem:[%s1 + $0x80] sm:$0xff]
  %v108 = vld [vmem:[%s1 + $0x88] sm:$0xf]
  %v109 = vld [vmem:[%s1 + $0x8c] sm:$0xff]
  %v110 = vld [vmem:[%s1 + $0x94] sm:$0xff]
  %v111 = vld [vmem:[%s1 + $0x9c] sm:$0xff]
  %v112 = vld [vmem:[%s1 + $0xa4] sm:$0xf]
  %v113 = vld [vmem:[%s1 + $0xa8] sm:$0xff]
  %v114 = vld [vmem:[%s1 + $0xb0] sm:$0xff]
  %v115 = vld [vmem:[%s1 + $0xb8] sm:$0xff]
  %v116 = vld [vmem:[%s1 + $0xc0] sm:$0xf]
  %v117 = vld [vmem:[%s1 + $0xc4] sm:$0xff]
  %v118 = vld [vmem:[%s1 + $0xcc] sm:$0xff]
  %v119 = vld [vmem:[%s1 + $0xd4] sm:$0xff]
  %v120 = vld [vmem:[%s1 + $0xdc] sm:$0xf]
  %v121 = vld [vmem:[%s1 + $0xe0] sm:$0xff]
  %v122 = vld [vmem:[%s1 + $0xe8] sm:$0xff]
  %v123 = vld [vmem:[%s1 + $0xf0] sm:$0xff]
  %v124 = vld [vmem:[%s1 + $0xf8] sm:$0xf]
  %v125 = vld [vmem:[%s1 + $0xfc] sm:$0xff]
  %v126 = vld [vmem:[%s1 + $0x104] sm:$0xff]
  %v127 = vld [vmem:[%s1 + $0x10c] sm:$0xff]
  %v128 = vld [vmem:[%s1 + $0x114] sm:$0xf]
  %v129 = vld [vmem:[%s1 + $0x118] sm:$0xff]
  %v130 = vld [vmem:[%s1 + $0x120] sm:$0xff]
  %v131 = vld [vmem:[%s1 + $0x128] sm:$0xff]
  %v132 = vld [vmem:[%s1 + $0x130] sm:$0xf]
  %v133 = vld [vmem:[%s1 + $0x134] sm:$0xff]
  %v134 = vld [vmem:[%s1 + $0x13c] sm:$0xff]
  %v135 = vld [vmem:[%s1 + $0x144] sm:$0xff]
  %v136 = vld [vmem:[%s1 + $0x14c] sm:$0xf]
  %v137 = vld [vmem:[%s2] sm:$0xff]
  %v139 = vlaneseq
  %v140 = vshrl.u32 %v139, 7
  %v141 = vsub.s32 0, %v140
  %v142 = vrot.slane %v137, %v141
  %v143 = vlaneseq
  %v144 = vshrl.u32 %v143, 7
  %v145 = vsub.s32 1, %v144
  %v146 = vrot.slane %v137, %v145
  %v147 = vlaneseq
  %v148 = vshrl.u32 %v147, 7
  %v149 = vsub.s32 2, %v148
  %v150 = vrot.slane %v137, %v149
  %v151 = vlaneseq
  %v152 = vshrl.u32 %v151, 7
  %v153 = vsub.s32 3, %v152
  %v154 = vrot.slane %v137, %v153
  %v155 = vlaneseq
  %v156 = vshrl.u32 %v155, 7
  %v157 = vsub.s32 4, %v156
  %v158 = vrot.slane %v137, %v157
  %v159 = vlaneseq
  %v160 = vshrl.u32 %v159, 7
  %v161 = vsub.s32 5, %v160
  %v162 = vrot.slane %v137, %v161
  %v163 = vlaneseq
  %v164 = vshrl.u32 %v163, 7
  %v165 = vsub.s32 6, %v164
  %v166 = vrot.slane %v137, %v165
  %v230 = vunpack.c.l.b16 %v33
  %v231 = vunpack.c.l.b16 %v34
  %v232 = vunpack.c.l.b16 %v35
  %v233 = vunpack.c.l.b16 %v36
  %v234 = vunpack.c.l.b16 %v37
  %v235 = vunpack.c.l.b16 %v38
  %v236 = vunpack.c.l.b16 %v39
  %v237 = vunpack.c.l.b16 %v40
  %v238 = vunpack.c.l.b16 %v41
  %v239 = vunpack.c.l.b16 %v42
  %v240 = vunpack.c.l.b16 %v43
  %v241 = vunpack.c.l.b16 %v44
  %v242 = vunpack.c.l.b16 %v45
  %v243 = vunpack.c.l.b16 %v46
  %v244 = vunpack.c.l.b16 %v47
  %v245 = vunpack.c.l.b16 %v48
  %v246 = vunpack.c.l.b16 %v49
  %v247 = vunpack.c.l.b16 %v50
  %v248 = vunpack.c.l.b16 %v51
  %v249 = vunpack.c.l.b16 %v52
  %v250 = vunpack.c.l.b16 %v53
  %v251 = vunpack.c.l.b16 %v54
  %v252 = vunpack.c.l.b16 %v55
  %v253 = vunpack.c.l.b16 %v56
  %v254 = vunpack.c.l.b16 %v57
  %v255 = vunpack.c.l.b16 %v58
  %v256 = vunpack.c.l.b16 %v59
  %v257 = vunpack.c.l.b16 %v60
  %v258 = vunpack.c.l.b16 %v61
  %v259 = vunpack.c.l.b16 %v62
  %v260 = vunpack.c.l.b16 %v63
  %v261 = vunpack.c.l.b16 %v64
  %v262 = vunpack.c.l.b16 %v65
  %v263 = vunpack.c.l.b16 %v66
  %v264 = vunpack.c.l.b16 %v67
  %v265 = vunpack.c.l.b16 %v68
  %v266 = vunpack.c.l.b16 %v69
  %v267 = vunpack.c.l.b16 %v70
  %v268 = vunpack.c.l.b16 %v71
  %v269 = vunpack.c.l.b16 %v72
  %v270 = vunpack.c.l.b16 %v73
  %v271 = vunpack.c.l.b16 %v74
  %v272 = vunpack.c.l.b16 %v75
  %v273 = vunpack.c.l.b16 %v76
  %v274 = vunpack.c.l.b16 %v77
  %v275 = vunpack.c.l.b16 %v78
  %v276 = vunpack.c.l.b16 %v79
  %v277 = vunpack.c.l.b16 %v80
  %v278 = vunpack.c.l.b16 %v81
  %v279 = vunpack.c.l.b16 %v82
  %v280 = vunpack.c.l.b16 %v83
  %v281 = vunpack.c.l.b16 %v84
  %v282 = vunpack.c.l.b16 %v85
  %v283 = vunpack.c.l.b16 %v86
  %v284 = vunpack.c.l.b16 %v87
  %v285 = vunpack.c.l.b16 %v88
  %v286 = vpack.c.b16 %v231, %v230
  %v287 = vpack.c.b16 %v233, %v232
  %v288 = vpack.c.b16 %v235, %v234
  %v289 = vpack.c.b16 %v237, %v236
  %v290 = vpack.c.b16 %v239, %v238
  %v291 = vpack.c.b16 %v241, %v240
  %v292 = vpack.c.b16 %v243, %v242
  %v293 = vpack.c.b16 %v245, %v244
  %v294 = vpack.c.b16 %v247, %v246
  %v295 = vpack.c.b16 %v249, %v248
  %v296 = vpack.c.b16 %v251, %v250
  %v297 = vpack.c.b16 %v253, %v252
  %v298 = vpack.c.b16 %v255, %v254
  %v299 = vpack.c.b16 %v257, %v256
  %v300 = vpack.c.b16 %v259, %v258
  %v301 = vpack.c.b16 %v261, %v260
  %v302 = vpack.c.b16 %v263, %v262
  %v303 = vpack.c.b16 %v265, %v264
  %v304 = vpack.c.b16 %v267, %v266
  %v305 = vpack.c.b16 %v269, %v268
  %v306 = vpack.c.b16 %v271, %v270
  %v307 = vpack.c.b16 %v273, %v272
  %v308 = vpack.c.b16 %v275, %v274
  %v309 = vpack.c.b16 %v277, %v276
  %v310 = vpack.c.b16 %v279, %v278
  %v311 = vpack.c.b16 %v281, %v280
  %v312 = vpack.c.b16 %v283, %v282
  %v313 = vpack.c.b16 %v285, %v284
  %v362 = vunpack.c.l.b16 %v89
  %v363 = vunpack.c.h.b16 %v89
  %v364 = vunpack.c.l.b16 %v90
  %v365 = vunpack.c.h.b16 %v90
  %v366 = vunpack.c.l.b16 %v91
  %v367 = vunpack.c.h.b16 %v91
  %v368 = vunpack.c.l.b16 %v92
  %v369 = vunpack.c.l.b16 %v93
  %v370 = vunpack.c.h.b16 %v93
  %v371 = vunpack.c.l.b16 %v94
  %v372 = vunpack.c.h.b16 %v94
  %v373 = vunpack.c.l.b16 %v95
  %v374 = vunpack.c.h.b16 %v95
  %v375 = vunpack.c.l.b16 %v96
  %v376 = vunpack.c.l.b16 %v97
  %v377 = vunpack.c.h.b16 %v97
  %v378 = vunpack.c.l.b16 %v98
  %v379 = vunpack.c.h.b16 %v98
  %v380 = vunpack.c.l.b16 %v99
  %v381 = vunpack.c.h.b16 %v99
  %v382 = vunpack.c.l.b16 %v100
  %v383 = vunpack.c.l.b16 %v101
  %v384 = vunpack.c.h.b16 %v101
  %v385 = vunpack.c.l.b16 %v102
  %v386 = vunpack.c.h.b16 %v102
  %v387 = vunpack.c.l.b16 %v103
  %v388 = vunpack.c.h.b16 %v103
  %v389 = vunpack.c.l.b16 %v104
  %v390 = vunpack.c.l.b16 %v105
  %v391 = vunpack.c.h.b16 %v105
  %v392 = vunpack.c.l.b16 %v106
  %v393 = vunpack.c.h.b16 %v106
  %v394 = vunpack.c.l.b16 %v107
  %v395 = vunpack.c.h.b16 %v107
  %v396 = vunpack.c.l.b16 %v108
  %v397 = vunpack.c.l.b16 %v109
  %v398 = vunpack.c.h.b16 %v109
  %v399 = vunpack.c.l.b16 %v110
  %v400 = vunpack.c.h.b16 %v110
  %v401 = vunpack.c.l.b16 %v111
  %v402 = vunpack.c.h.b16 %v111
  %v403 = vunpack.c.l.b16 %v112
  %v404 = vunpack.c.l.b16 %v113
  %v405 = vunpack.c.h.b16 %v113
  %v406 = vunpack.c.l.b16 %v114
  %v407 = vunpack.c.h.b16 %v114
  %v408 = vunpack.c.l.b16 %v115
  %v409 = vunpack.c.h.b16 %v115
  %v410 = vunpack.c.l.b16 %v116
  %v411 = vunpack.c.l.b16 %v117
  %v412 = vunpack.c.h.b16 %v117
  %v413 = vunpack.c.l.b16 %v118
  %v414 = vunpack.c.h.b16 %v118
  %v415 = vunpack.c.l.b16 %v119
  %v416 = vunpack.c.h.b16 %v119
  %v417 = vunpack.c.l.b16 %v120
  %v418 = vunpack.c.l.b16 %v121
  %v419 = vunpack.c.h.b16 %v121
  %v420 = vunpack.c.l.b16 %v122
  %v421 = vunpack.c.h.b16 %v122
  %v422 = vunpack.c.l.b16 %v123
  %v423 = vunpack.c.h.b16 %v123
  %v424 = vunpack.c.l.b16 %v124
  %v425 = vunpack.c.l.b16 %v125
  %v426 = vunpack.c.h.b16 %v125
  %v427 = vunpack.c.l.b16 %v126
  %v428 = vunpack.c.h.b16 %v126
  %v429 = vunpack.c.l.b16 %v127
  %v430 = vunpack.c.h.b16 %v127
  %v431 = vunpack.c.l.b16 %v128
  %v432 = vunpack.c.l.b16 %v129
  %v433 = vunpack.c.h.b16 %v129
  %v434 = vunpack.c.l.b16 %v130
  %v435 = vunpack.c.h.b16 %v130
  %v436 = vunpack.c.l.b16 %v131
  %v437 = vunpack.c.h.b16 %v131
  %v438 = vunpack.c.l.b16 %v132
  %v439 = vunpack.c.l.b16 %v133
  %v440 = vunpack.c.h.b16 %v133
  %v441 = vunpack.c.l.b16 %v134
  %v442 = vunpack.c.h.b16 %v134
  %v443 = vunpack.c.l.b16 %v135
  %v444 = vunpack.c.h.b16 %v135
  %v445 = vunpack.c.l.b16 %v136
  %v446 = vpack.c.b16 %v369, %v362
  %v447 = vpack.c.b16 %v370, %v363
  %v448 = vpack.c.b16 %v371, %v364
  %v449 = vpack.c.b16 %v372, %v365
  %v450 = vpack.c.b16 %v373, %v366
  %v451 = vpack.c.b16 %v374, %v367
  %v452 = vpack.c.b16 %v375, %v368
  %v453 = vpack.c.b16 %v383, %v376
  %v454 = vpack.c.b16 %v384, %v377
  %v455 = vpack.c.b16 %v385, %v378
  %v456 = vpack.c.b16 %v386, %v379
  %v457 = vpack.c.b16 %v387, %v380
  %v458 = vpack.c.b16 %v388, %v381
  %v459 = vpack.c.b16 %v389, %v382
  %v460 = vpack.c.b16 %v397, %v390
  %v461 = vpack.c.b16 %v398, %v391
  %v462 = vpack.c.b16 %v399, %v392
  %v463 = vpack.c.b16 %v400, %v393
  %v464 = vpack.c.b16 %v401, %v394
  %v465 = vpack.c.b16 %v402, %v395
  %v466 = vpack.c.b16 %v403, %v396
  %v467 = vpack.c.b16 %v411, %v404
  %v468 = vpack.c.b16 %v412, %v405
  %v469 = vpack.c.b16 %v413, %v406
  %v470 = vpack.c.b16 %v414, %v407
  %v471 = vpack.c.b16 %v415, %v408
  %v472 = vpack.c.b16 %v416, %v409
  %v473 = vpack.c.b16 %v417, %v410
  %v474 = vpack.c.b16 %v425, %v418
  %v475 = vpack.c.b16 %v426, %v419
  %v476 = vpack.c.b16 %v427, %v420
  %v477 = vpack.c.b16 %v428, %v421
  %v478 = vpack.c.b16 %v429, %v422
  %v479 = vpack.c.b16 %v430, %v423
  %v480 = vpack.c.b16 %v431, %v424
  %v481 = vpack.c.b16 %v439, %v432
  %v482 = vpack.c.b16 %v440, %v433
  %v483 = vpack.c.b16 %v441, %v434
  %v484 = vpack.c.b16 %v442, %v435
  %v485 = vpack.c.b16 %v443, %v436
  %v486 = vpack.c.b16 %v444, %v437
  %v487 = vpack.c.b16 %v445, %v438
  %vm530 = vcmask 785408
  %v532 = vsel %vm530, %v286, 0
  %v535 = vsel %vm530, %v287, 0
  %v538 = vsel %vm530, %v288, 0
  %v541 = vsel %vm530, %v289, 0
  %v544 = vsel %vm530, %v290, 0
  %v547 = vsel %vm530, %v291, 0
  %v550 = vsel %vm530, %v292, 0
  %v553 = vsel %vm530, %v293, 0
  %v556 = vsel %vm530, %v294, 0
  %v559 = vsel %vm530, %v295, 0
  %v562 = vsel %vm530, %v296, 0
  %v565 = vsel %vm530, %v297, 0
  %v568 = vsel %vm530, %v298, 0
  %v571 = vsel %vm530, %v299, 0
  %v574 = vsel %vm530, %v300, 0
  %v577 = vsel %vm530, %v301, 0
  %v580 = vsel %vm530, %v302, 0
  %v583 = vsel %vm530, %v303, 0
  %v586 = vsel %vm530, %v304, 0
  %v589 = vsel %vm530, %v305, 0
  %v592 = vsel %vm530, %v306, 0
  %v595 = vsel %vm530, %v307, 0
  %v598 = vsel %vm530, %v308, 0
  %v601 = vsel %vm530, %v309, 0
  %v604 = vsel %vm530, %v310, 0
  %v607 = vsel %vm530, %v311, 0
  %v610 = vsel %vm530, %v312, 0
  %v613 = vsel %vm530, %v313, 0
  %615 = vmatprep.subr.bf16.mxu0 %v447
  %616 = vmatpush1.bf16.msra.mxu0 %v446
  %617 = vmatprep.subr.bf16.mxu0 %v454
  %618 = vmatpush1.bf16.msra.mxu0 %v453
  %619 = vmatprep.subr.bf16.mxu0 %v461
  %620 = vmatpush1.bf16.msra.mxu0 %v460
  %621 = vmatprep.subr.bf16.mxu0 %v468
  %622 = vmatpush1.bf16.msra.mxu0 %v467
  %623 = vmatprep.subr.bf16.mxu0 %v475
  %624 = vmatpush1.bf16.msra.mxu0 %v474
  %625 = vmatprep.subr.bf16.mxu0 %v482
  %626 = vmatpush1.bf16.msra.mxu0 %v481
  %627 = vmatprep.subr.bf16.mxu0 0
  %628 = vmatpush1.bf16.msra.mxu0 0
  %629 = vmatprep.subr.bf16.mxu0 0
  %630 = vmatpush1.bf16.msra.mxu0 0
  %631 = vmatprep.subr.bf16.mxu0 0
  %632 = vmatpush1.bf16.msra.mxu0 0
  %633 = vmatprep.subr.bf16.mxu0 0
  %634 = vmatpush1.bf16.msra.mxu0 0
  %635 = vmatprep.subr.bf16.mxu0 0
  %636 = vmatpush1.bf16.msra.mxu0 0
  %637 = vmatprep.subr.bf16.mxu0 0
  %638 = vmatpush1.bf16.msra.mxu0 0
  %639 = vmatprep.subr.bf16.mxu0 0
  %640 = vmatpush1.bf16.msra.mxu0 0
  %641 = vmatprep.subr.bf16.mxu0 0
  %642 = vmatpush1.bf16.msra.mxu0 0
  %643 = vmatprep.subr.bf16.mxu0 0
  %644 = vmatpush1.bf16.msra.mxu0 0
  %645 = vmatprep.subr.bf16.mxu0 0
  %646 = vmatpush1.bf16.msra.mxu0 0
  %647 = vmatprep.mubr.bf16.mxu0 0
  %648 = vmatmul.mubr.bf16.gmra.mrb[0].mxu0 %v532
  %v649 = vpop.f32.mrb[0].mxu0
  %v650 = vadd.f32 %v142, %v649
  %v651 = vpop.f32.mrb[0].mxu0
  %v652 = vadd.f32 %v146, %v651
  %v653 = vpop.f32.mrb[0].mxu0
  %v654 = vadd.f32 %v142, %v653
  %v655 = vpop.f32.mrb[0].mxu0
  %v656 = vadd.f32 %v146, %v655
  %657 = vmatprep.mubr.bf16.mxu0 0
  %658 = vmatmul.mubr.bf16.gmra.mrb[0].mxu0 %v535
  %v659 = vpop.f32.mrb[0].mxu0
  %v660 = vadd.f32 %v142, %v659
  %v661 = vpop.f32.mrb[0].mxu0
  %v662 = vadd.f32 %v146, %v661
  %v663 = vpop.f32.mrb[0].mxu0
  %v664 = vadd.f32 %v142, %v663
  %v665 = vpop.f32.mrb[0].mxu0
  %v666 = vadd.f32 %v146, %v665
  %667 = vmatprep.mubr.bf16.mxu0 0
  %668 = vmatmul.mubr.bf16.gmra.mrb[0].mxu0 %v538
  %v669 = vpop.f32.mrb[0].mxu0
  %v670 = vadd.f32 %v142, %v669
  %v671 = vpop.f32.mrb[0].mxu0
  %v672 = vadd.f32 %v146, %v671
  %v673 = vpop.f32.mrb[0].mxu0
  %v674 = vadd.f32 %v142, %v673
  %v675 = vpop.f32.mrb[0].mxu0
  %v676 = vadd.f32 %v146, %v675
  %677 = vmatprep.mubr.bf16.mxu0 0
  %678 = vmatmul.mubr.bf16.gmra.mrb[0].mxu0 %v541
  %v679 = vpop.f32.mrb[0].mxu0
  %v680 = vadd.f32 %v142, %v679
  %v681 = vpop.f32.mrb[0].mxu0
  %v682 = vadd.f32 %v146, %v681
  %v683 = vpop.f32.mrb[0].mxu0
  %v684 = vadd.f32 %v142, %v683
  %v685 = vpop.f32.mrb[0].mxu0
  %v686 = vadd.f32 %v146, %v685
  %687 = vmatprep.mubr.bf16.mxu0 0
  %688 = vmatmul.mubr.bf16.gmra.mrb[0].mxu0 %v544
  %v689 = vpop.f32.mrb[0].mxu0
  %v690 = vadd.f32 %v142, %v689
  %v691 = vpop.f32.mrb[0].mxu0
  %v692 = vadd.f32 %v146, %v691
  %v693 = vpop.f32.mrb[0].mxu0
  %v694 = vadd.f32 %v142, %v693
  %v695 = vpop.f32.mrb[0].mxu0
  %v696 = vadd.f32 %v146, %v695
  %697 = vmatprep.mubr.bf16.mxu0 0
  %698 = vmatmul.mubr.bf16.gmra.mrb[0].mxu0 %v547
  %v699 = vpop.f32.mrb[0].mxu0
  %v700 = vadd.f32 %v142, %v699
  %v701 = vpop.f32.mrb[0].mxu0
  %v702 = vadd.f32 %v146, %v701
  %v703 = vpop.f32.mrb[0].mxu0
  %v704 = vadd.f32 %v142, %v703
  %v705 = vpop.f32.mrb[0].mxu0
  %v706 = vadd.f32 %v146, %v705
  %707 = vmatprep.mubr.bf16.mxu0 0
  %708 = vmatmul.mubr.bf16.gmra.mrb[0].mxu0 %v550
  %v709 = vpop.f32.mrb[0].mxu0
  %v710 = vadd.f32 %v142, %v709
  %v711 = vpop.f32.mrb[0].mxu0
  %v712 = vadd.f32 %v146, %v711
  %v713 = vpop.f32.mrb[0].mxu0
  %v714 = vadd.f32 %v142, %v713
  %v715 = vpop.f32.mrb[0].mxu0
  %v716 = vadd.f32 %v146, %v715
  %717 = vmatprep.mubr.bf16.mxu0 0
  %718 = vmatmul.mubr.bf16.gmra.mrb[0].mxu0 %v553
  %v719 = vpop.f32.mrb[0].mxu0
  %v720 = vadd.f32 %v142, %v719
  %v721 = vpop.f32.mrb[0].mxu0
  %v722 = vadd.f32 %v146, %v721
  %v723 = vpop.f32.mrb[0].mxu0
  %v724 = vadd.f32 %v142, %v723
  %v725 = vpop.f32.mrb[0].mxu0
  %v726 = vadd.f32 %v146, %v725
  %727 = vmatprep.mubr.bf16.mxu0 0
  %728 = vmatmul.mubr.bf16.gmra.mrb[0].mxu0 %v556
  %v729 = vpop.f32.mrb[0].mxu0
  %v730 = vadd.f32 %v142, %v729
  %v731 = vpop.f32.mrb[0].mxu0
  %v732 = vadd.f32 %v146, %v731
  %v733 = vpop.f32.mrb[0].mxu0
  %v734 = vadd.f32 %v142, %v733
  %v735 = vpop.f32.mrb[0].mxu0
  %v736 = vadd.f32 %v146, %v735
  %737 = vmatprep.mubr.bf16.mxu0 0
  %738 = vmatmul.mubr.bf16.gmra.mrb[0].mxu0 %v559
  %v739 = vpop.f32.mrb[0].mxu0
  %v740 = vadd.f32 %v142, %v739
  %v741 = vpop.f32.mrb[0].mxu0
  %v742 = vadd.f32 %v146, %v741
  %v743 = vpop.f32.mrb[0].mxu0
  %v744 = vadd.f32 %v142, %v743
  %v745 = vpop.f32.mrb[0].mxu0
  %v746 = vadd.f32 %v146, %v745
  %747 = vmatprep.mubr.bf16.mxu0 0
  %748 = vmatmul.mubr.bf16.gmra.mrb[0].mxu0 %v562
  %v749 = vpop.f32.mrb[0].mxu0
  %v750 = vadd.f32 %v142, %v749
  %v751 = vpop.f32.mrb[0].mxu0
  %v752 = vadd.f32 %v146, %v751
  %v753 = vpop.f32.mrb[0].mxu0
  %v754 = vadd.f32 %v142, %v753
  %v755 = vpop.f32.mrb[0].mxu0
  %v756 = vadd.f32 %v146, %v755
  %757 = vmatprep.mubr.bf16.mxu0 0
  %758 = vmatmul.mubr.bf16.gmra.mrb[0].mxu0 %v565
  %v759 = vpop.f32.mrb[0].mxu0
  %v760 = vadd.f32 %v142, %v759
  %v761 = vpop.f32.mrb[0].mxu0
  %v762 = vadd.f32 %v146, %v761
  %v763 = vpop.f32.mrb[0].mxu0
  %v764 = vadd.f32 %v142, %v763
  %v765 = vpop.f32.mrb[0].mxu0
  %v766 = vadd.f32 %v146, %v765
  %767 = vmatprep.mubr.bf16.mxu0 0
  %768 = vmatmul.mubr.bf16.gmra.mrb[0].mxu0 %v568
  %v769 = vpop.f32.mrb[0].mxu0
  %v770 = vadd.f32 %v142, %v769
  %v771 = vpop.f32.mrb[0].mxu0
  %v772 = vadd.f32 %v146, %v771
  %v773 = vpop.f32.mrb[0].mxu0
  %v774 = vadd.f32 %v142, %v773
  %v775 = vpop.f32.mrb[0].mxu0
  %v776 = vadd.f32 %v146, %v775
  %777 = vmatprep.mubr.bf16.mxu0 0
  %778 = vmatmul.mubr.bf16.gmra.mrb[0].mxu0 %v571
  %v779 = vpop.f32.mrb[0].mxu0
  %v780 = vadd.f32 %v142, %v779
  %v781 = vpop.f32.mrb[0].mxu0
  %v782 = vadd.f32 %v146, %v781
  %v783 = vpop.f32.mrb[0].mxu0
  %v784 = vadd.f32 %v142, %v783
  %v785 = vpop.f32.mrb[0].mxu0
  %v786 = vadd.f32 %v146, %v785
  %787 = vmatprep.mubr.bf16.mxu0 0
  %788 = vmatmul.mubr.bf16.gmra.mrb[0].mxu0 %v574
  %v789 = vpop.f32.mrb[0].mxu0
  %v790 = vadd.f32 %v142, %v789
  %v791 = vpop.f32.mrb[0].mxu0
  %v792 = vadd.f32 %v146, %v791
  %v793 = vpop.f32.mrb[0].mxu0
  %v794 = vadd.f32 %v142, %v793
  %v795 = vpop.f32.mrb[0].mxu0
  %v796 = vadd.f32 %v146, %v795
  %797 = vmatprep.mubr.bf16.mxu0 0
  %798 = vmatmul.mubr.bf16.gmra.mrb[0].mxu0 %v577
  %v799 = vpop.f32.mrb[0].mxu0
  %v800 = vadd.f32 %v142, %v799
  %v801 = vpop.f32.mrb[0].mxu0
  %v802 = vadd.f32 %v146, %v801
  %v803 = vpop.f32.mrb[0].mxu0
  %v804 = vadd.f32 %v142, %v803
  %v805 = vpop.f32.mrb[0].mxu0
  %v806 = vadd.f32 %v146, %v805
  %807 = vmatprep.mubr.bf16.mxu0 0
  %808 = vmatmul.mubr.bf16.gmra.mrb[0].mxu0 %v580
  %v809 = vpop.f32.mrb[0].mxu0
  %v810 = vadd.f32 %v142, %v809
  %v811 = vpop.f32.mrb[0].mxu0
  %v812 = vadd.f32 %v146, %v811
  %v813 = vpop.f32.mrb[0].mxu0
  %v814 = vadd.f32 %v142, %v813
  %v815 = vpop.f32.mrb[0].mxu0
  %v816 = vadd.f32 %v146, %v815
  %817 = vmatprep.mubr.bf16.mxu0 0
  %818 = vmatmul.mubr.bf16.gmra.mrb[0].mxu0 %v583
  %v819 = vpop.f32.mrb[0].mxu0
  %v820 = vadd.f32 %v142, %v819
  %v821 = vpop.f32.mrb[0].mxu0
  %v822 = vadd.f32 %v146, %v821
  %v823 = vpop.f32.mrb[0].mxu0
  %v824 = vadd.f32 %v142, %v823
  %v825 = vpop.f32.mrb[0].mxu0
  %v826 = vadd.f32 %v146, %v825
  %827 = vmatprep.mubr.bf16.mxu0 0
  %828 = vmatmul.mubr.bf16.gmra.mrb[0].mxu0 %v586
  %v829 = vpop.f32.mrb[0].mxu0
  %v830 = vadd.f32 %v142, %v829
  %v831 = vpop.f32.mrb[0].mxu0
  %v832 = vadd.f32 %v146, %v831
  %v833 = vpop.f32.mrb[0].mxu0
  %v834 = vadd.f32 %v142, %v833
  %v835 = vpop.f32.mrb[0].mxu0
  %v836 = vadd.f32 %v146, %v835
  %837 = vmatprep.mubr.bf16.mxu0 0
  %838 = vmatmul.mubr.bf16.gmra.mrb[0].mxu0 %v589
  %v839 = vpop.f32.mrb[0].mxu0
  %v840 = vadd.f32 %v142, %v839
  %v841 = vpop.f32.mrb[0].mxu0
  %v842 = vadd.f32 %v146, %v841
  %v843 = vpop.f32.mrb[0].mxu0
  %v844 = vadd.f32 %v142, %v843
  %v845 = vpop.f32.mrb[0].mxu0
  %v846 = vadd.f32 %v146, %v845
  %847 = vmatprep.mubr.bf16.mxu0 0
  %848 = vmatmul.mubr.bf16.gmra.mrb[0].mxu0 %v592
  %v849 = vpop.f32.mrb[0].mxu0
  %v850 = vadd.f32 %v142, %v849
  %v851 = vpop.f32.mrb[0].mxu0
  %v852 = vadd.f32 %v146, %v851
  %v853 = vpop.f32.mrb[0].mxu0
  %v854 = vadd.f32 %v142, %v853
  %v855 = vpop.f32.mrb[0].mxu0
  %v856 = vadd.f32 %v146, %v855
  %857 = vmatprep.mubr.bf16.mxu0 0
  %858 = vmatmul.mubr.bf16.gmra.mrb[0].mxu0 %v595
  %v859 = vpop.f32.mrb[0].mxu0
  %v860 = vadd.f32 %v142, %v859
  %v861 = vpop.f32.mrb[0].mxu0
  %v862 = vadd.f32 %v146, %v861
  %v863 = vpop.f32.mrb[0].mxu0
  %v864 = vadd.f32 %v142, %v863
  %v865 = vpop.f32.mrb[0].mxu0
  %v866 = vadd.f32 %v146, %v865
  %867 = vmatprep.mubr.bf16.mxu0 0
  %868 = vmatmul.mubr.bf16.gmra.mrb[0].mxu0 %v598
  %v869 = vpop.f32.mrb[0].mxu0
  %v870 = vadd.f32 %v142, %v869
  %v871 = vpop.f32.mrb[0].mxu0
  %v872 = vadd.f32 %v146, %v871
  %v873 = vpop.f32.mrb[0].mxu0
  %v874 = vadd.f32 %v142, %v873
  %v875 = vpop.f32.mrb[0].mxu0
  %v876 = vadd.f32 %v146, %v875
  %877 = vmatprep.mubr.bf16.mxu0 0
  %878 = vmatmul.mubr.bf16.gmra.mrb[0].mxu0 %v601
  %v879 = vpop.f32.mrb[0].mxu0
  %v880 = vadd.f32 %v142, %v879
  %v881 = vpop.f32.mrb[0].mxu0
  %v882 = vadd.f32 %v146, %v881
  %v883 = vpop.f32.mrb[0].mxu0
  %v884 = vadd.f32 %v142, %v883
  %v885 = vpop.f32.mrb[0].mxu0
  %v886 = vadd.f32 %v146, %v885
  %887 = vmatprep.mubr.bf16.mxu0 0
  %888 = vmatmul.mubr.bf16.gmra.mrb[0].mxu0 %v604
  %v889 = vpop.f32.mrb[0].mxu0
  %v890 = vadd.f32 %v142, %v889
  %v891 = vpop.f32.mrb[0].mxu0
  %v892 = vadd.f32 %v146, %v891
  %v893 = vpop.f32.mrb[0].mxu0
  %v894 = vadd.f32 %v142, %v893
  %v895 = vpop.f32.mrb[0].mxu0
  %v896 = vadd.f32 %v146, %v895
  %897 = vmatprep.mubr.bf16.mxu0 0
  %898 = vmatmul.mubr.bf16.gmra.mrb[0].mxu0 %v607
  %v899 = vpop.f32.mrb[0].mxu0
  %v900 = vadd.f32 %v142, %v899
  %v901 = vpop.f32.mrb[0].mxu0
  %v902 = vadd.f32 %v146, %v901
  %v903 = vpop.f32.mrb[0].mxu0
  %v904 = vadd.f32 %v142, %v903
  %v905 = vpop.f32.mrb[0].mxu0
  %v906 = vadd.f32 %v146, %v905
  %907 = vmatprep.mubr.bf16.mxu0 0
  %908 = vmatmul.mubr.bf16.gmra.mrb[0].mxu0 %v610
  %v909 = vpop.f32.mrb[0].mxu0
  %v910 = vadd.f32 %v142, %v909
  %v911 = vpop.f32.mrb[0].mxu0
  %v912 = vadd.f32 %v146, %v911
  %v913 = vpop.f32.mrb[0].mxu0
  %v914 = vadd.f32 %v142, %v913
  %v915 = vpop.f32.mrb[0].mxu0
  %v916 = vadd.f32 %v146, %v915
  %917 = vmatprep.mubr.bf16.mxu0 0
  %918 = vmatmul.mubr.bf16.gmra.mrb[0].mxu0 %v613
  %v919 = vpop.f32.mrb[0].mxu0
  %v920 = vadd.f32 %v142, %v919
  %v921 = vpop.f32.mrb[0].mxu0
  %v922 = vadd.f32 %v146, %v921
  %v923 = vpop.f32.mrb[0].mxu0
  %v924 = vadd.f32 %v142, %v923
  %v925 = vpop.f32.mrb[0].mxu0
  %v926 = vadd.f32 %v146, %v925
  %927 = vdwg.mxu0
  %928 = vmatprep.subr.bf16.mxu0 %v449
  %929 = vmatpush1.bf16.msra.mxu0 %v448
  %930 = vmatprep.subr.bf16.mxu0 %v456
  %931 = vmatpush1.bf16.msra.mxu0 %v455
  %932 = vmatprep.subr.bf16.mxu0 %v463
  %933 = vmatpush1.bf16.msra.mxu0 %v462
  %934 = vmatprep.subr.bf16.mxu0 %v470
  %935 = vmatpush1.bf16.msra.mxu0 %v469
  %936 = vmatprep.subr.bf16.mxu0 %v477
  %937 = vmatpush1.bf16.msra.mxu0 %v476
  %938 = vmatprep.subr.bf16.mxu0 %v484
  %939 = vmatpush1.bf16.msra.mxu0 %v483
  %940 = vmatprep.subr.bf16.mxu0 0
  %941 = vmatpush1.bf16.msra.mxu0 0
  %942 = vmatprep.subr.bf16.mxu0 0
  %943 = vmatpush1.bf16.msra.mxu0 0
  %944 = vmatprep.subr.bf16.mxu0 0
  %945 = vmatpush1.bf16.msra.mxu0 0
  %946 = vmatprep.subr.bf16.mxu0 0
  %947 = vmatpush1.bf16.msra.mxu0 0
  %948 = vmatprep.subr.bf16.mxu0 0
  %949 = vmatpush1.bf16.msra.mxu0 0
  %950 = vmatprep.subr.bf16.mxu0 0
  %951 = vmatpush1.bf16.msra.mxu0 0
  %952 = vmatprep.subr.bf16.mxu0 0
  %953 = vmatpush1.bf16.msra.mxu0 0
  %954 = vmatprep.subr.bf16.mxu0 0
  %955 = vmatpush1.bf16.msra.mxu0 0
  %956 = vmatprep.subr.bf16.mxu0 0
  %957 = vmatpush1.bf16.msra.mxu0 0
  %958 = vmatprep.subr.bf16.mxu0 0
  %959 = vmatpush1.bf16.msra.mxu0 0
  %960 = vmatprep.mubr.bf16.mxu0 0
  %961 = vmatmul.mubr.bf16.gmra.mrb[0].mxu0 %v532
  %v962 = vpop.f32.mrb[0].mxu0
  %v963 = vadd.f32 %v150, %v962
  %v964 = vpop.f32.mrb[0].mxu0
  %v965 = vadd.f32 %v154, %v964
  %v966 = vpop.f32.mrb[0].mxu0
  %v967 = vadd.f32 %v150, %v966
  %v968 = vpop.f32.mrb[0].mxu0
  %v969 = vadd.f32 %v154, %v968
  %970 = vmatprep.mubr.bf16.mxu0 0
  %971 = vmatmul.mubr.bf16.gmra.mrb[0].mxu0 %v535
  %v972 = vpop.f32.mrb[0].mxu0
  %v973 = vadd.f32 %v150, %v972
  %v974 = vpop.f32.mrb[0].mxu0
  %v975 = vadd.f32 %v154, %v974
  %v976 = vpop.f32.mrb[0].mxu0
  %v977 = vadd.f32 %v150, %v976
  %v978 = vpop.f32.mrb[0].mxu0
  %v979 = vadd.f32 %v154, %v978
  %980 = vmatprep.mubr.bf16.mxu0 0
  %981 = vmatmul.mubr.bf16.gmra.mrb[0].mxu0 %v538
  %v982 = vpop.f32.mrb[0].mxu0
  %v983 = vadd.f32 %v150, %v982
  %v984 = vpop.f32.mrb[0].mxu0
  %v985 = vadd.f32 %v154, %v984
  %v986 = vpop.f32.mrb[0].mxu0
  %v987 = vadd.f32 %v150, %v986
  %v988 = vpop.f32.mrb[0].mxu0
  %v989 = vadd.f32 %v154, %v988
  %990 = vmatprep.mubr.bf16.mxu0 0
  %991 = vmatmul.mubr.bf16.gmra.mrb[0].mxu0 %v541
  %v992 = vpop.f32.mrb[0].mxu0
  %v993 = vadd.f32 %v150, %v992
  %v994 = vpop.f32.mrb[0].mxu0
  %v995 = vadd.f32 %v154, %v994
  %v996 = vpop.f32.mrb[0].mxu0
  %v997 = vadd.f32 %v150, %v996
  %v998 = vpop.f32.mrb[0].mxu0
  %v999 = vadd.f32 %v154, %v998
  %1000 = vmatprep.mubr.bf16.mxu0 0
  %1001 = vmatmul.mubr.bf16.gmra.mrb[0].mxu0 %v544
  %v1002 = vpop.f32.mrb[0].mxu0
  %v1003 = vadd.f32 %v150, %v1002
  %v1004 = vpop.f32.mrb[0].mxu0
  %v1005 = vadd.f32 %v154, %v1004
  %v1006 = vpop.f32.mrb[0].mxu0
  %v1007 = vadd.f32 %v150, %v1006
  %v1008 = vpop.f32.mrb[0].mxu0
  %v1009 = vadd.f32 %v154, %v1008
  %1010 = vmatprep.mubr.bf16.mxu0 0
  %1011 = vmatmul.mubr.bf16.gmra.mrb[0].mxu0 %v547
  %v1012 = vpop.f32.mrb[0].mxu0
  %v1013 = vadd.f32 %v150, %v1012
  %v1014 = vpop.f32.mrb[0].mxu0
  %v1015 = vadd.f32 %v154, %v1014
  %v1016 = vpop.f32.mrb[0].mxu0
  %v1017 = vadd.f32 %v150, %v1016
  %v1018 = vpop.f32.mrb[0].mxu0
  %v1019 = vadd.f32 %v154, %v1018
  %1020 = vmatprep.mubr.bf16.mxu0 0
  %1021 = vmatmul.mubr.bf16.gmra.mrb[0].mxu0 %v550
  %v1022 = vpop.f32.mrb[0].mxu0
  %v1023 = vadd.f32 %v150, %v1022
  %v1024 = vpop.f32.mrb[0].mxu0
  %v1025 = vadd.f32 %v154, %v1024
  %v1026 = vpop.f32.mrb[0].mxu0
  %v1027 = vadd.f32 %v150, %v1026
  %v1028 = vpop.f32.mrb[0].mxu0
  %v1029 = vadd.f32 %v154, %v1028
  %1030 = vmatprep.mubr.bf16.mxu0 0
  %1031 = vmatmul.mubr.bf16.gmra.mrb[0].mxu0 %v553
  %v1032 = vpop.f32.mrb[0].mxu0
  %v1033 = vadd.f32 %v150, %v1032
  %v1034 = vpop.f32.mrb[0].mxu0
  %v1035 = vadd.f32 %v154, %v1034
  %v1036 = vpop.f32.mrb[0].mxu0
  %v1037 = vadd.f32 %v150, %v1036
  %v1038 = vpop.f32.mrb[0].mxu0
  %v1039 = vadd.f32 %v154, %v1038
  %1040 = vmatprep.mubr.bf16.mxu0 0
  %1041 = vmatmul.mubr.bf16.gmra.mrb[0].mxu0 %v556
  %v1042 = vpop.f32.mrb[0].mxu0
  %v1043 = vadd.f32 %v150, %v1042
  %v1044 = vpop.f32.mrb[0].mxu0
  %v1045 = vadd.f32 %v154, %v1044
  %v1046 = vpop.f32.mrb[0].mxu0
  %v1047 = vadd.f32 %v150, %v1046
  %v1048 = vpop.f32.mrb[0].mxu0
  %v1049 = vadd.f32 %v154, %v1048
  %1050 = vmatprep.mubr.bf16.mxu0 0
  %1051 = vmatmul.mubr.bf16.gmra.mrb[0].mxu0 %v559
  %v1052 = vpop.f32.mrb[0].mxu0
  %v1053 = vadd.f32 %v150, %v1052
  %v1054 = vpop.f32.mrb[0].mxu0
  %v1055 = vadd.f32 %v154, %v1054
  %v1056 = vpop.f32.mrb[0].mxu0
  %v1057 = vadd.f32 %v150, %v1056
  %v1058 = vpop.f32.mrb[0].mxu0
  %v1059 = vadd.f32 %v154, %v1058
  %1060 = vmatprep.mubr.bf16.mxu0 0
  %1061 = vmatmul.mubr.bf16.gmra.mrb[0].mxu0 %v562
  %v1062 = vpop.f32.mrb[0].mxu0
  %v1063 = vadd.f32 %v150, %v1062
  %v1064 = vpop.f32.mrb[0].mxu0
  %v1065 = vadd.f32 %v154, %v1064
  %v1066 = vpop.f32.mrb[0].mxu0
  %v1067 = vadd.f32 %v150, %v1066
  %v1068 = vpop.f32.mrb[0].mxu0
  %v1069 = vadd.f32 %v154, %v1068
  %1070 = vmatprep.mubr.bf16.mxu0 0
  %1071 = vmatmul.mubr.bf16.gmra.mrb[0].mxu0 %v565
  %v1072 = vpop.f32.mrb[0].mxu0
  %v1073 = vadd.f32 %v150, %v1072
  %v1074 = vpop.f32.mrb[0].mxu0
  %v1075 = vadd.f32 %v154, %v1074
  %v1076 = vpop.f32.mrb[0].mxu0
  %v1077 = vadd.f32 %v150, %v1076
  %v1078 = vpop.f32.mrb[0].mxu0
  %v1079 = vadd.f32 %v154, %v1078
  %1080 = vmatprep.mubr.bf16.mxu0 0
  %1081 = vmatmul.mubr.bf16.gmra.mrb[0].mxu0 %v568
  %v1082 = vpop.f32.mrb[0].mxu0
  %v1083 = vadd.f32 %v150, %v1082
  %v1084 = vpop.f32.mrb[0].mxu0
  %v1085 = vadd.f32 %v154, %v1084
  %v1086 = vpop.f32.mrb[0].mxu0
  %v1087 = vadd.f32 %v150, %v1086
  %v1088 = vpop.f32.mrb[0].mxu0
  %v1089 = vadd.f32 %v154, %v1088
  %1090 = vmatprep.mubr.bf16.mxu0 0
  %1091 = vmatmul.mubr.bf16.gmra.mrb[0].mxu0 %v571
  %v1092 = vpop.f32.mrb[0].mxu0
  %v1093 = vadd.f32 %v150, %v1092
  %v1094 = vpop.f32.mrb[0].mxu0
  %v1095 = vadd.f32 %v154, %v1094
  %v1096 = vpop.f32.mrb[0].mxu0
  %v1097 = vadd.f32 %v150, %v1096
  %v1098 = vpop.f32.mrb[0].mxu0
  %v1099 = vadd.f32 %v154, %v1098
  %1100 = vmatprep.mubr.bf16.mxu0 0
  %1101 = vmatmul.mubr.bf16.gmra.mrb[0].mxu0 %v574
  %v1102 = vpop.f32.mrb[0].mxu0
  %v1103 = vadd.f32 %v150, %v1102
  %v1104 = vpop.f32.mrb[0].mxu0
  %v1105 = vadd.f32 %v154, %v1104
  %v1106 = vpop.f32.mrb[0].mxu0
  %v1107 = vadd.f32 %v150, %v1106
  %v1108 = vpop.f32.mrb[0].mxu0
  %v1109 = vadd.f32 %v154, %v1108
  %1110 = vmatprep.mubr.bf16.mxu0 0
  %1111 = vmatmul.mubr.bf16.gmra.mrb[0].mxu0 %v577
  %v1112 = vpop.f32.mrb[0].mxu0
  %v1113 = vadd.f32 %v150, %v1112
  %v1114 = vpop.f32.mrb[0].mxu0
  %v1115 = vadd.f32 %v154, %v1114
  %v1116 = vpop.f32.mrb[0].mxu0
  %v1117 = vadd.f32 %v150, %v1116
  %v1118 = vpop.f32.mrb[0].mxu0
  %v1119 = vadd.f32 %v154, %v1118
  %1120 = vmatprep.mubr.bf16.mxu0 0
  %1121 = vmatmul.mubr.bf16.gmra.mrb[0].mxu0 %v580
  %v1122 = vpop.f32.mrb[0].mxu0
  %v1123 = vadd.f32 %v150, %v1122
  %v1124 = vpop.f32.mrb[0].mxu0
  %v1125 = vadd.f32 %v154, %v1124
  %v1126 = vpop.f32.mrb[0].mxu0
  %v1127 = vadd.f32 %v150, %v1126
  %v1128 = vpop.f32.mrb[0].mxu0
  %v1129 = vadd.f32 %v154, %v1128
  %1130 = vmatprep.mubr.bf16.mxu0 0
  %1131 = vmatmul.mubr.bf16.gmra.mrb[0].mxu0 %v583
  %v1132 = vpop.f32.mrb[0].mxu0
  %v1133 = vadd.f32 %v150, %v1132
  %v1134 = vpop.f32.mrb[0].mxu0
  %v1135 = vadd.f32 %v154, %v1134
  %v1136 = vpop.f32.mrb[0].mxu0
  %v1137 = vadd.f32 %v150, %v1136
  %v1138 = vpop.f32.mrb[0].mxu0
  %v1139 = vadd.f32 %v154, %v1138
  %1140 = vmatprep.mubr.bf16.mxu0 0
  %1141 = vmatmul.mubr.bf16.gmra.mrb[0].mxu0 %v586
  %v1142 = vpop.f32.mrb[0].mxu0
  %v1143 = vadd.f32 %v150, %v1142
  %v1144 = vpop.f32.mrb[0].mxu0
  %v1145 = vadd.f32 %v154, %v1144
  %v1146 = vpop.f32.mrb[0].mxu0
  %v1147 = vadd.f32 %v150, %v1146
  %v1148 = vpop.f32.mrb[0].mxu0
  %v1149 = vadd.f32 %v154, %v1148
  %1150 = vmatprep.mubr.bf16.mxu0 0
  %1151 = vmatmul.mubr.bf16.gmra.mrb[0].mxu0 %v589
  %v1152 = vpop.f32.mrb[0].mxu0
  %v1153 = vadd.f32 %v150, %v1152
  %v1154 = vpop.f32.mrb[0].mxu0
  %v1155 = vadd.f32 %v154, %v1154
  %v1156 = vpop.f32.mrb[0].mxu0
  %v1157 = vadd.f32 %v150, %v1156
  %v1158 = vpop.f32.mrb[0].mxu0
  %v1159 = vadd.f32 %v154, %v1158
  %1160 = vmatprep.mubr.bf16.mxu0 0
  %1161 = vmatmul.mubr.bf16.gmra.mrb[0].mxu0 %v592
  %v1162 = vpop.f32.mrb[0].mxu0
  %v1163 = vadd.f32 %v150, %v1162
  %v1164 = vpop.f32.mrb[0].mxu0
  %v1165 = vadd.f32 %v154, %v1164
  %v1166 = vpop.f32.mrb[0].mxu0
  %v1167 = vadd.f32 %v150, %v1166
  %v1168 = vpop.f32.mrb[0].mxu0
  %v1169 = vadd.f32 %v154, %v1168
  %1170 = vmatprep.mubr.bf16.mxu0 0
  %1171 = vmatmul.mubr.bf16.gmra.mrb[0].mxu0 %v595
  %v1172 = vpop.f32.mrb[0].mxu0
  %v1173 = vadd.f32 %v150, %v1172
  %v1174 = vpop.f32.mrb[0].mxu0
  %v1175 = vadd.f32 %v154, %v1174
  %v1176 = vpop.f32.mrb[0].mxu0
  %v1177 = vadd.f32 %v150, %v1176
  %v1178 = vpop.f32.mrb[0].mxu0
  %v1179 = vadd.f32 %v154, %v1178
  %1180 = vmatprep.mubr.bf16.mxu0 0
  %1181 = vmatmul.mubr.bf16.gmra.mrb[0].mxu0 %v598
  %v1182 = vpop.f32.mrb[0].mxu0
  %v1183 = vadd.f32 %v150, %v1182
  %v1184 = vpop.f32.mrb[0].mxu0
  %v1185 = vadd.f32 %v154, %v1184
  %v1186 = vpop.f32.mrb[0].mxu0
  %v1187 = vadd.f32 %v150, %v1186
  %v1188 = vpop.f32.mrb[0].mxu0
  %v1189 = vadd.f32 %v154, %v1188
  %1190 = vmatprep.mubr.bf16.mxu0 0
  %1191 = vmatmul.mubr.bf16.gmra.mrb[0].mxu0 %v601
  %v1192 = vpop.f32.mrb[0].mxu0
  %v1193 = vadd.f32 %v150, %v1192
  %v1194 = vpop.f32.mrb[0].mxu0
  %v1195 = vadd.f32 %v154, %v1194
  %v1196 = vpop.f32.mrb[0].mxu0
  %v1197 = vadd.f32 %v150, %v1196
  %v1198 = vpop.f32.mrb[0].mxu0
  %v1199 = vadd.f32 %v154, %v1198
  %1200 = vmatprep.mubr.bf16.mxu0 0
  %1201 = vmatmul.mubr.bf16.gmra.mrb[0].mxu0 %v604
  %v1202 = vpop.f32.mrb[0].mxu0
  %v1203 = vadd.f32 %v150, %v1202
  %v1204 = vpop.f32.mrb[0].mxu0
  %v1205 = vadd.f32 %v154, %v1204
  %v1206 = vpop.f32.mrb[0].mxu0
  %v1207 = vadd.f32 %v150, %v1206
  %v1208 = vpop.f32.mrb[0].mxu0
  %v1209 = vadd.f32 %v154, %v1208
  %1210 = vmatprep.mubr.bf16.mxu0 0
  %1211 = vmatmul.mubr.bf16.gmra.mrb[0].mxu0 %v607
  %v1212 = vpop.f32.mrb[0].mxu0
  %v1213 = vadd.f32 %v150, %v1212
  %v1214 = vpop.f32.mrb[0].mxu0
  %v1215 = vadd.f32 %v154, %v1214
  %v1216 = vpop.f32.mrb[0].mxu0
  %v1217 = vadd.f32 %v150, %v1216
  %v1218 = vpop.f32.mrb[0].mxu0
  %v1219 = vadd.f32 %v154, %v1218
  %1220 = vmatprep.mubr.bf16.mxu0 0
  %1221 = vmatmul.mubr.bf16.gmra.mrb[0].mxu0 %v610
  %v1222 = vpop.f32.mrb[0].mxu0
  %v1223 = vadd.f32 %v150, %v1222
  %v1224 = vpop.f32.mrb[0].mxu0
  %v1225 = vadd.f32 %v154, %v1224
  %v1226 = vpop.f32.mrb[0].mxu0
  %v1227 = vadd.f32 %v150, %v1226
  %v1228 = vpop.f32.mrb[0].mxu0
  %v1229 = vadd.f32 %v154, %v1228
  %1230 = vmatprep.mubr.bf16.mxu0 0
  %1231 = vmatmul.mubr.bf16.gmra.mrb[0].mxu0 %v613
  %v1232 = vpop.f32.mrb[0].mxu0
  %v1233 = vadd.f32 %v150, %v1232
  %v1234 = vpop.f32.mrb[0].mxu0
  %v1235 = vadd.f32 %v154, %v1234
  %v1236 = vpop.f32.mrb[0].mxu0
  %v1237 = vadd.f32 %v150, %v1236
  %v1238 = vpop.f32.mrb[0].mxu0
  %v1239 = vadd.f32 %v154, %v1238
  %1240 = vdwg.mxu0
  %1241 = vmatprep.subr.bf16.mxu0 %v451
  %1242 = vmatpush1.bf16.msra.mxu0 %v450
  %1243 = vmatprep.subr.bf16.mxu0 %v458
  %1244 = vmatpush1.bf16.msra.mxu0 %v457
  %1245 = vmatprep.subr.bf16.mxu0 %v465
  %1246 = vmatpush1.bf16.msra.mxu0 %v464
  %1247 = vmatprep.subr.bf16.mxu0 %v472
  %1248 = vmatpush1.bf16.msra.mxu0 %v471
  %1249 = vmatprep.subr.bf16.mxu0 %v479
  %1250 = vmatpush1.bf16.msra.mxu0 %v478
  %1251 = vmatprep.subr.bf16.mxu0 %v486
  %1252 = vmatpush1.bf16.msra.mxu0 %v485
  %1253 = vmatprep.subr.bf16.mxu0 0
  %1254 = vmatpush1.bf16.msra.mxu0 0
  %1255 = vmatprep.subr.bf16.mxu0 0
  %1256 = vmatpush1.bf16.msra.mxu0 0
  %1257 = vmatprep.subr.bf16.mxu0 0
  %1258 = vmatpush1.bf16.msra.mxu0 0
  %1259 = vmatprep.subr.bf16.mxu0 0
  %1260 = vmatpush1.bf16.msra.mxu0 0
  %1261 = vmatprep.subr.bf16.mxu0 0
  %1262 = vmatpush1.bf16.msra.mxu0 0
  %1263 = vmatprep.subr.bf16.mxu0 0
  %1264 = vmatpush1.bf16.msra.mxu0 0
  %1265 = vmatprep.subr.bf16.mxu0 0
  %1266 = vmatpush1.bf16.msra.mxu0 0
  %1267 = vmatprep.subr.bf16.mxu0 0
  %1268 = vmatpush1.bf16.msra.mxu0 0
  %1269 = vmatprep.subr.bf16.mxu0 0
  %1270 = vmatpush1.bf16.msra.mxu0 0
  %1271 = vmatprep.subr.bf16.mxu0 0
  %1272 = vmatpush1.bf16.msra.mxu0 0
  %1273 = vmatprep.mubr.bf16.mxu0 0
  %1274 = vmatmul.mubr.bf16.gmra.mrb[0].mxu0 %v532
  %v1275 = vpop.f32.mrb[0].mxu0
  %v1276 = vadd.f32 %v158, %v1275
  %v1277 = vpop.f32.mrb[0].mxu0
  %v1278 = vadd.f32 %v162, %v1277
  %v1279 = vpop.f32.mrb[0].mxu0
  %v1280 = vadd.f32 %v158, %v1279
  %v1281 = vpop.f32.mrb[0].mxu0
  %v1282 = vadd.f32 %v162, %v1281
  %1283 = vmatprep.mubr.bf16.mxu0 0
  %1284 = vmatmul.mubr.bf16.gmra.mrb[0].mxu0 %v535
  %v1285 = vpop.f32.mrb[0].mxu0
  %v1286 = vadd.f32 %v158, %v1285
  %v1287 = vpop.f32.mrb[0].mxu0
  %v1288 = vadd.f32 %v162, %v1287
  %v1289 = vpop.f32.mrb[0].mxu0
  %v1290 = vadd.f32 %v158, %v1289
  %v1291 = vpop.f32.mrb[0].mxu0
  %v1292 = vadd.f32 %v162, %v1291
  %1293 = vmatprep.mubr.bf16.mxu0 0
  %1294 = vmatmul.mubr.bf16.gmra.mrb[0].mxu0 %v538
  %v1295 = vpop.f32.mrb[0].mxu0
  %v1296 = vadd.f32 %v158, %v1295
  %v1297 = vpop.f32.mrb[0].mxu0
  %v1298 = vadd.f32 %v162, %v1297
  %v1299 = vpop.f32.mrb[0].mxu0
  %v1300 = vadd.f32 %v158, %v1299
  %v1301 = vpop.f32.mrb[0].mxu0
  %v1302 = vadd.f32 %v162, %v1301
  %1303 = vmatprep.mubr.bf16.mxu0 0
  %1304 = vmatmul.mubr.bf16.gmra.mrb[0].mxu0 %v541
  %v1305 = vpop.f32.mrb[0].mxu0
  %v1306 = vadd.f32 %v158, %v1305
  %v1307 = vpop.f32.mrb[0].mxu0
  %v1308 = vadd.f32 %v162, %v1307
  %v1309 = vpop.f32.mrb[0].mxu0
  %v1310 = vadd.f32 %v158, %v1309
  %v1311 = vpop.f32.mrb[0].mxu0
  %v1312 = vadd.f32 %v162, %v1311
  %1313 = vmatprep.mubr.bf16.mxu0 0
  %1314 = vmatmul.mubr.bf16.gmra.mrb[0].mxu0 %v544
  %v1315 = vpop.f32.mrb[0].mxu0
  %v1316 = vadd.f32 %v158, %v1315
  %v1317 = vpop.f32.mrb[0].mxu0
  %v1318 = vadd.f32 %v162, %v1317
  %v1319 = vpop.f32.mrb[0].mxu0
  %v1320 = vadd.f32 %v158, %v1319
  %v1321 = vpop.f32.mrb[0].mxu0
  %v1322 = vadd.f32 %v162, %v1321
  %1323 = vmatprep.mubr.bf16.mxu0 0
  %1324 = vmatmul.mubr.bf16.gmra.mrb[0].mxu0 %v547
  %v1325 = vpop.f32.mrb[0].mxu0
  %v1326 = vadd.f32 %v158, %v1325
  %v1327 = vpop.f32.mrb[0].mxu0
  %v1328 = vadd.f32 %v162, %v1327
  %v1329 = vpop.f32.mrb[0].mxu0
  %v1330 = vadd.f32 %v158, %v1329
  %v1331 = vpop.f32.mrb[0].mxu0
  %v1332 = vadd.f32 %v162, %v1331
  %1333 = vmatprep.mubr.bf16.mxu0 0
  %1334 = vmatmul.mubr.bf16.gmra.mrb[0].mxu0 %v550
  %v1335 = vpop.f32.mrb[0].mxu0
  %v1336 = vadd.f32 %v158, %v1335
  %v1337 = vpop.f32.mrb[0].mxu0
  %v1338 = vadd.f32 %v162, %v1337
  %v1339 = vpop.f32.mrb[0].mxu0
  %v1340 = vadd.f32 %v158, %v1339
  %v1341 = vpop.f32.mrb[0].mxu0
  %v1342 = vadd.f32 %v162, %v1341
  %1343 = vmatprep.mubr.bf16.mxu0 0
  %1344 = vmatmul.mubr.bf16.gmra.mrb[0].mxu0 %v553
  %v1345 = vpop.f32.mrb[0].mxu0
  %v1346 = vadd.f32 %v158, %v1345
  %v1347 = vpop.f32.mrb[0].mxu0
  %v1348 = vadd.f32 %v162, %v1347
  %v1349 = vpop.f32.mrb[0].mxu0
  %v1350 = vadd.f32 %v158, %v1349
  %v1351 = vpop.f32.mrb[0].mxu0
  %v1352 = vadd.f32 %v162, %v1351
  %1353 = vmatprep.mubr.bf16.mxu0 0
  %1354 = vmatmul.mubr.bf16.gmra.mrb[0].mxu0 %v556
  %v1355 = vpop.f32.mrb[0].mxu0
  %v1356 = vadd.f32 %v158, %v1355
  %v1357 = vpop.f32.mrb[0].mxu0
  %v1358 = vadd.f32 %v162, %v1357
  %v1359 = vpop.f32.mrb[0].mxu0
  %v1360 = vadd.f32 %v158, %v1359
  %v1361 = vpop.f32.mrb[0].mxu0
  %v1362 = vadd.f32 %v162, %v1361
  %1363 = vmatprep.mubr.bf16.mxu0 0
  %1364 = vmatmul.mubr.bf16.gmra.mrb[0].mxu0 %v559
  %v1365 = vpop.f32.mrb[0].mxu0
  %v1366 = vadd.f32 %v158, %v1365
  %v1367 = vpop.f32.mrb[0].mxu0
  %v1368 = vadd.f32 %v162, %v1367
  %v1369 = vpop.f32.mrb[0].mxu0
  %v1370 = vadd.f32 %v158, %v1369
  %v1371 = vpop.f32.mrb[0].mxu0
  %v1372 = vadd.f32 %v162, %v1371
  %1373 = vmatprep.mubr.bf16.mxu0 0
  %1374 = vmatmul.mubr.bf16.gmra.mrb[0].mxu0 %v562
  %v1375 = vpop.f32.mrb[0].mxu0
  %v1376 = vadd.f32 %v158, %v1375
  %v1377 = vpop.f32.mrb[0].mxu0
  %v1378 = vadd.f32 %v162, %v1377
  %v1379 = vpop.f32.mrb[0].mxu0
  %v1380 = vadd.f32 %v158, %v1379
  %v1381 = vpop.f32.mrb[0].mxu0
  %v1382 = vadd.f32 %v162, %v1381
  %1383 = vmatprep.mubr.bf16.mxu0 0
  %1384 = vmatmul.mubr.bf16.gmra.mrb[0].mxu0 %v565
  %v1385 = vpop.f32.mrb[0].mxu0
  %v1386 = vadd.f32 %v158, %v1385
  %v1387 = vpop.f32.mrb[0].mxu0
  %v1388 = vadd.f32 %v162, %v1387
  %v1389 = vpop.f32.mrb[0].mxu0
  %v1390 = vadd.f32 %v158, %v1389
  %v1391 = vpop.f32.mrb[0].mxu0
  %v1392 = vadd.f32 %v162, %v1391
  %1393 = vmatprep.mubr.bf16.mxu0 0
  %1394 = vmatmul.mubr.bf16.gmra.mrb[0].mxu0 %v568
  %v1395 = vpop.f32.mrb[0].mxu0
  %v1396 = vadd.f32 %v158, %v1395
  %v1397 = vpop.f32.mrb[0].mxu0
  %v1398 = vadd.f32 %v162, %v1397
  %v1399 = vpop.f32.mrb[0].mxu0
  %v1400 = vadd.f32 %v158, %v1399
  %v1401 = vpop.f32.mrb[0].mxu0
  %v1402 = vadd.f32 %v162, %v1401
  %1403 = vmatprep.mubr.bf16.mxu0 0
  %1404 = vmatmul.mubr.bf16.gmra.mrb[0].mxu0 %v571
  %v1405 = vpop.f32.mrb[0].mxu0
  %v1406 = vadd.f32 %v158, %v1405
  %v1407 = vpop.f32.mrb[0].mxu0
  %v1408 = vadd.f32 %v162, %v1407
  %v1409 = vpop.f32.mrb[0].mxu0
  %v1410 = vadd.f32 %v158, %v1409
  %v1411 = vpop.f32.mrb[0].mxu0
  %v1412 = vadd.f32 %v162, %v1411
  %1413 = vmatprep.mubr.bf16.mxu0 0
  %1414 = vmatmul.mubr.bf16.gmra.mrb[0].mxu0 %v574
  %v1415 = vpop.f32.mrb[0].mxu0
  %v1416 = vadd.f32 %v158, %v1415
  %v1417 = vpop.f32.mrb[0].mxu0
  %v1418 = vadd.f32 %v162, %v1417
  %v1419 = vpop.f32.mrb[0].mxu0
  %v1420 = vadd.f32 %v158, %v1419
  %v1421 = vpop.f32.mrb[0].mxu0
  %v1422 = vadd.f32 %v162, %v1421
  %1423 = vmatprep.mubr.bf16.mxu0 0
  %1424 = vmatmul.mubr.bf16.gmra.mrb[0].mxu0 %v577
  %v1425 = vpop.f32.mrb[0].mxu0
  %v1426 = vadd.f32 %v158, %v1425
  %v1427 = vpop.f32.mrb[0].mxu0
  %v1428 = vadd.f32 %v162, %v1427
  %v1429 = vpop.f32.mrb[0].mxu0
  %v1430 = vadd.f32 %v158, %v1429
  %v1431 = vpop.f32.mrb[0].mxu0
  %v1432 = vadd.f32 %v162, %v1431
  %1433 = vmatprep.mubr.bf16.mxu0 0
  %1434 = vmatmul.mubr.bf16.gmra.mrb[0].mxu0 %v580
  %v1435 = vpop.f32.mrb[0].mxu0
  %v1436 = vadd.f32 %v158, %v1435
  %v1437 = vpop.f32.mrb[0].mxu0
  %v1438 = vadd.f32 %v162, %v1437
  %v1439 = vpop.f32.mrb[0].mxu0
  %v1440 = vadd.f32 %v158, %v1439
  %v1441 = vpop.f32.mrb[0].mxu0
  %v1442 = vadd.f32 %v162, %v1441
  %1443 = vmatprep.mubr.bf16.mxu0 0
  %1444 = vmatmul.mubr.bf16.gmra.mrb[0].mxu0 %v583
  %v1445 = vpop.f32.mrb[0].mxu0
  %v1446 = vadd.f32 %v158, %v1445
  %v1447 = vpop.f32.mrb[0].mxu0
  %v1448 = vadd.f32 %v162, %v1447
  %v1449 = vpop.f32.mrb[0].mxu0
  %v1450 = vadd.f32 %v158, %v1449
  %v1451 = vpop.f32.mrb[0].mxu0
  %v1452 = vadd.f32 %v162, %v1451
  %1453 = vmatprep.mubr.bf16.mxu0 0
  %1454 = vmatmul.mubr.bf16.gmra.mrb[0].mxu0 %v586
  %v1455 = vpop.f32.mrb[0].mxu0
  %v1456 = vadd.f32 %v158, %v1455
  %v1457 = vpop.f32.mrb[0].mxu0
  %v1458 = vadd.f32 %v162, %v1457
  %v1459 = vpop.f32.mrb[0].mxu0
  %v1460 = vadd.f32 %v158, %v1459
  %v1461 = vpop.f32.mrb[0].mxu0
  %v1462 = vadd.f32 %v162, %v1461
  %1463 = vmatprep.mubr.bf16.mxu0 0
  %1464 = vmatmul.mubr.bf16.gmra.mrb[0].mxu0 %v589
  %v1465 = vpop.f32.mrb[0].mxu0
  %v1466 = vadd.f32 %v158, %v1465
  %v1467 = vpop.f32.mrb[0].mxu0
  %v1468 = vadd.f32 %v162, %v1467
  %v1469 = vpop.f32.mrb[0].mxu0
  %v1470 = vadd.f32 %v158, %v1469
  %v1471 = vpop.f32.mrb[0].mxu0
  %v1472 = vadd.f32 %v162, %v1471
  %1473 = vmatprep.mubr.bf16.mxu0 0
  %1474 = vmatmul.mubr.bf16.gmra.mrb[0].mxu0 %v592
  %v1475 = vpop.f32.mrb[0].mxu0
  %v1476 = vadd.f32 %v158, %v1475
  %v1477 = vpop.f32.mrb[0].mxu0
  %v1478 = vadd.f32 %v162, %v1477
  %v1479 = vpop.f32.mrb[0].mxu0
  %v1480 = vadd.f32 %v158, %v1479
  %v1481 = vpop.f32.mrb[0].mxu0
  %v1482 = vadd.f32 %v162, %v1481
  %1483 = vmatprep.mubr.bf16.mxu0 0
  %1484 = vmatmul.mubr.bf16.gmra.mrb[0].mxu0 %v595
  %v1485 = vpop.f32.mrb[0].mxu0
  %v1486 = vadd.f32 %v158, %v1485
  %v1487 = vpop.f32.mrb[0].mxu0
  %v1488 = vadd.f32 %v162, %v1487
  %v1489 = vpop.f32.mrb[0].mxu0
  %v1490 = vadd.f32 %v158, %v1489
  %v1491 = vpop.f32.mrb[0].mxu0
  %v1492 = vadd.f32 %v162, %v1491
  %1493 = vmatprep.mubr.bf16.mxu0 0
  %1494 = vmatmul.mubr.bf16.gmra.mrb[0].mxu0 %v598
  %v1495 = vpop.f32.mrb[0].mxu0
  %v1496 = vadd.f32 %v158, %v1495
  %v1497 = vpop.f32.mrb[0].mxu0
  %v1498 = vadd.f32 %v162, %v1497
  %v1499 = vpop.f32.mrb[0].mxu0
  %v1500 = vadd.f32 %v158, %v1499
  %v1501 = vpop.f32.mrb[0].mxu0
  %v1502 = vadd.f32 %v162, %v1501
  %1503 = vmatprep.mubr.bf16.mxu0 0
  %1504 = vmatmul.mubr.bf16.gmra.mrb[0].mxu0 %v601
  %v1505 = vpop.f32.mrb[0].mxu0
  %v1506 = vadd.f32 %v158, %v1505
  %v1507 = vpop.f32.mrb[0].mxu0
  %v1508 = vadd.f32 %v162, %v1507
  %v1509 = vpop.f32.mrb[0].mxu0
  %v1510 = vadd.f32 %v158, %v1509
  %v1511 = vpop.f32.mrb[0].mxu0
  %v1512 = vadd.f32 %v162, %v1511
  %1513 = vmatprep.mubr.bf16.mxu0 0
  %1514 = vmatmul.mubr.bf16.gmra.mrb[0].mxu0 %v604
  %v1515 = vpop.f32.mrb[0].mxu0
  %v1516 = vadd.f32 %v158, %v1515
  %v1517 = vpop.f32.mrb[0].mxu0
  %v1518 = vadd.f32 %v162, %v1517
  %v1519 = vpop.f32.mrb[0].mxu0
  %v1520 = vadd.f32 %v158, %v1519
  %v1521 = vpop.f32.mrb[0].mxu0
  %v1522 = vadd.f32 %v162, %v1521
  %1523 = vmatprep.mubr.bf16.mxu0 0
  %1524 = vmatmul.mubr.bf16.gmra.mrb[0].mxu0 %v607
  %v1525 = vpop.f32.mrb[0].mxu0
  %v1526 = vadd.f32 %v158, %v1525
  %v1527 = vpop.f32.mrb[0].mxu0
  %v1528 = vadd.f32 %v162, %v1527
  %v1529 = vpop.f32.mrb[0].mxu0
  %v1530 = vadd.f32 %v158, %v1529
  %v1531 = vpop.f32.mrb[0].mxu0
  %v1532 = vadd.f32 %v162, %v1531
  %1533 = vmatprep.mubr.bf16.mxu0 0
  %1534 = vmatmul.mubr.bf16.gmra.mrb[0].mxu0 %v610
  %v1535 = vpop.f32.mrb[0].mxu0
  %v1536 = vadd.f32 %v158, %v1535
  %v1537 = vpop.f32.mrb[0].mxu0
  %v1538 = vadd.f32 %v162, %v1537
  %v1539 = vpop.f32.mrb[0].mxu0
  %v1540 = vadd.f32 %v158, %v1539
  %v1541 = vpop.f32.mrb[0].mxu0
  %v1542 = vadd.f32 %v162, %v1541
  %1543 = vmatprep.mubr.bf16.mxu0 0
  %1544 = vmatmul.mubr.bf16.gmra.mrb[0].mxu0 %v613
  %v1545 = vpop.f32.mrb[0].mxu0
  %v1546 = vadd.f32 %v158, %v1545
  %v1547 = vpop.f32.mrb[0].mxu0
  %v1548 = vadd.f32 %v162, %v1547
  %v1549 = vpop.f32.mrb[0].mxu0
  %v1550 = vadd.f32 %v158, %v1549
  %v1551 = vpop.f32.mrb[0].mxu0
  %v1552 = vadd.f32 %v162, %v1551
  %1553 = vdwg.mxu0
  %1554 = vmatprep.subr.bf16.mxu0 0
  %1555 = vmatpush1.bf16.msra.mxu0 %v452
  %1556 = vmatprep.subr.bf16.mxu0 0
  %1557 = vmatpush1.bf16.msra.mxu0 %v459
  %1558 = vmatprep.subr.bf16.mxu0 0
  %1559 = vmatpush1.bf16.msra.mxu0 %v466
  %1560 = vmatprep.subr.bf16.mxu0 0
  %1561 = vmatpush1.bf16.msra.mxu0 %v473
  %1562 = vmatprep.subr.bf16.mxu0 0
  %1563 = vmatpush1.bf16.msra.mxu0 %v480
  %1564 = vmatprep.subr.bf16.mxu0 0
  %1565 = vmatpush1.bf16.msra.mxu0 %v487
  %1566 = vmatprep.subr.bf16.mxu0 0
  %1567 = vmatpush1.bf16.msra.mxu0 0
  %1568 = vmatprep.subr.bf16.mxu0 0
  %1569 = vmatpush1.bf16.msra.mxu0 0
  %1570 = vmatprep.subr.bf16.mxu0 0
  %1571 = vmatpush1.bf16.msra.mxu0 0
  %1572 = vmatprep.subr.bf16.mxu0 0
  %1573 = vmatpush1.bf16.msra.mxu0 0
  %1574 = vmatprep.subr.bf16.mxu0 0
  %1575 = vmatpush1.bf16.msra.mxu0 0
  %1576 = vmatprep.subr.bf16.mxu0 0
  %1577 = vmatpush1.bf16.msra.mxu0 0
  %1578 = vmatprep.subr.bf16.mxu0 0
  %1579 = vmatpush1.bf16.msra.mxu0 0
  %1580 = vmatprep.subr.bf16.mxu0 0
  %1581 = vmatpush1.bf16.msra.mxu0 0
  %1582 = vmatprep.subr.bf16.mxu0 0
  %1583 = vmatpush1.bf16.msra.mxu0 0
  %1584 = vmatprep.subr.bf16.mxu0 0
  %1585 = vmatpush1.bf16.msra.mxu0 0
  %1586 = vmatprep.mubr.bf16.mxu0 0
  %1587 = vmatmul.mubr.bf16.gmra.mrb[0].mxu0 %v532
  %v1588 = vpop.f32.mrb[0].mxu0
  %v1589 = vadd.f32 %v166, %v1588
  %v1590 = vpop.f32.mrb[0].mxu0
  %v1591 = vpop.f32.mrb[0].mxu0
  %v1592 = vadd.f32 %v166, %v1591
  %v1593 = vpop.f32.mrb[0].mxu0
  %1594 = vmatprep.mubr.bf16.mxu0 0
  %1595 = vmatmul.mubr.bf16.gmra.mrb[0].mxu0 %v535
  %v1596 = vpop.f32.mrb[0].mxu0
  %v1597 = vadd.f32 %v166, %v1596
  %v1598 = vpop.f32.mrb[0].mxu0
  %v1599 = vpop.f32.mrb[0].mxu0
  %v1600 = vadd.f32 %v166, %v1599
  %v1601 = vpop.f32.mrb[0].mxu0
  %1602 = vmatprep.mubr.bf16.mxu0 0
  %1603 = vmatmul.mubr.bf16.gmra.mrb[0].mxu0 %v538
  %v1604 = vpop.f32.mrb[0].mxu0
  %v1605 = vadd.f32 %v166, %v1604
  %v1606 = vpop.f32.mrb[0].mxu0
  %v1607 = vpop.f32.mrb[0].mxu0
  %v1608 = vadd.f32 %v166, %v1607
  %v1609 = vpop.f32.mrb[0].mxu0
  %1610 = vmatprep.mubr.bf16.mxu0 0
  %1611 = vmatmul.mubr.bf16.gmra.mrb[0].mxu0 %v541
  %v1612 = vpop.f32.mrb[0].mxu0
  %v1613 = vadd.f32 %v166, %v1612
  %v1614 = vpop.f32.mrb[0].mxu0
  %v1615 = vpop.f32.mrb[0].mxu0
  %v1616 = vadd.f32 %v166, %v1615
  %v1617 = vpop.f32.mrb[0].mxu0
  %1618 = vmatprep.mubr.bf16.mxu0 0
  %1619 = vmatmul.mubr.bf16.gmra.mrb[0].mxu0 %v544
  %v1620 = vpop.f32.mrb[0].mxu0
  %v1621 = vadd.f32 %v166, %v1620
  %v1622 = vpop.f32.mrb[0].mxu0
  %v1623 = vpop.f32.mrb[0].mxu0
  %v1624 = vadd.f32 %v166, %v1623
  %v1625 = vpop.f32.mrb[0].mxu0
  %1626 = vmatprep.mubr.bf16.mxu0 0
  %1627 = vmatmul.mubr.bf16.gmra.mrb[0].mxu0 %v547
  %v1628 = vpop.f32.mrb[0].mxu0
  %v1629 = vadd.f32 %v166, %v1628
  %v1630 = vpop.f32.mrb[0].mxu0
  %v1631 = vpop.f32.mrb[0].mxu0
  %v1632 = vadd.f32 %v166, %v1631
  %v1633 = vpop.f32.mrb[0].mxu0
  %1634 = vmatprep.mubr.bf16.mxu0 0
  %1635 = vmatmul.mubr.bf16.gmra.mrb[0].mxu0 %v550
  %v1636 = vpop.f32.mrb[0].mxu0
  %v1637 = vadd.f32 %v166, %v1636
  %v1638 = vpop.f32.mrb[0].mxu0
  %v1639 = vpop.f32.mrb[0].mxu0
  %v1640 = vadd.f32 %v166, %v1639
  %v1641 = vpop.f32.mrb[0].mxu0
  %1642 = vmatprep.mubr.bf16.mxu0 0
  %1643 = vmatmul.mubr.bf16.gmra.mrb[0].mxu0 %v553
  %v1644 = vpop.f32.mrb[0].mxu0
  %v1645 = vadd.f32 %v166, %v1644
  %v1646 = vpop.f32.mrb[0].mxu0
  %v1647 = vpop.f32.mrb[0].mxu0
  %v1648 = vadd.f32 %v166, %v1647
  %v1649 = vpop.f32.mrb[0].mxu0
  %1650 = vmatprep.mubr.bf16.mxu0 0
  %1651 = vmatmul.mubr.bf16.gmra.mrb[0].mxu0 %v556
  %v1652 = vpop.f32.mrb[0].mxu0
  %v1653 = vadd.f32 %v166, %v1652
  %v1654 = vpop.f32.mrb[0].mxu0
  %v1655 = vpop.f32.mrb[0].mxu0
  %v1656 = vadd.f32 %v166, %v1655
  %v1657 = vpop.f32.mrb[0].mxu0
  %1658 = vmatprep.mubr.bf16.mxu0 0
  %1659 = vmatmul.mubr.bf16.gmra.mrb[0].mxu0 %v559
  %v1660 = vpop.f32.mrb[0].mxu0
  %v1661 = vadd.f32 %v166, %v1660
  %v1662 = vpop.f32.mrb[0].mxu0
  %v1663 = vpop.f32.mrb[0].mxu0
  %v1664 = vadd.f32 %v166, %v1663
  %v1665 = vpop.f32.mrb[0].mxu0
  %1666 = vmatprep.mubr.bf16.mxu0 0
  %1667 = vmatmul.mubr.bf16.gmra.mrb[0].mxu0 %v562
  %v1668 = vpop.f32.mrb[0].mxu0
  %v1669 = vadd.f32 %v166, %v1668
  %v1670 = vpop.f32.mrb[0].mxu0
  %v1671 = vpop.f32.mrb[0].mxu0
  %v1672 = vadd.f32 %v166, %v1671
  %v1673 = vpop.f32.mrb[0].mxu0
  %1674 = vmatprep.mubr.bf16.mxu0 0
  %1675 = vmatmul.mubr.bf16.gmra.mrb[0].mxu0 %v565
  %v1676 = vpop.f32.mrb[0].mxu0
  %v1677 = vadd.f32 %v166, %v1676
  %v1678 = vpop.f32.mrb[0].mxu0
  %v1679 = vpop.f32.mrb[0].mxu0
  %v1680 = vadd.f32 %v166, %v1679
  %v1681 = vpop.f32.mrb[0].mxu0
  %1682 = vmatprep.mubr.bf16.mxu0 0
  %1683 = vmatmul.mubr.bf16.gmra.mrb[0].mxu0 %v568
  %v1684 = vpop.f32.mrb[0].mxu0
  %v1685 = vadd.f32 %v166, %v1684
  %v1686 = vpop.f32.mrb[0].mxu0
  %v1687 = vpop.f32.mrb[0].mxu0
  %v1688 = vadd.f32 %v166, %v1687
  %v1689 = vpop.f32.mrb[0].mxu0
  %1690 = vmatprep.mubr.bf16.mxu0 0
  %1691 = vmatmul.mubr.bf16.gmra.mrb[0].mxu0 %v571
  %v1692 = vpop.f32.mrb[0].mxu0
  %v1693 = vadd.f32 %v166, %v1692
  %v1694 = vpop.f32.mrb[0].mxu0
  %v1695 = vpop.f32.mrb[0].mxu0
  %v1696 = vadd.f32 %v166, %v1695
  %v1697 = vpop.f32.mrb[0].mxu0
  %1698 = vmatprep.mubr.bf16.mxu0 0
  %1699 = vmatmul.mubr.bf16.gmra.mrb[0].mxu0 %v574
  %v1700 = vpop.f32.mrb[0].mxu0
  %v1701 = vadd.f32 %v166, %v1700
  %v1702 = vpop.f32.mrb[0].mxu0
  %v1703 = vpop.f32.mrb[0].mxu0
  %v1704 = vadd.f32 %v166, %v1703
  %v1705 = vpop.f32.mrb[0].mxu0
  %1706 = vmatprep.mubr.bf16.mxu0 0
  %1707 = vmatmul.mubr.bf16.gmra.mrb[0].mxu0 %v577
  %v1708 = vpop.f32.mrb[0].mxu0
  %v1709 = vadd.f32 %v166, %v1708
  %v1710 = vpop.f32.mrb[0].mxu0
  %v1711 = vpop.f32.mrb[0].mxu0
  %v1712 = vadd.f32 %v166, %v1711
  %v1713 = vpop.f32.mrb[0].mxu0
  %1714 = vmatprep.mubr.bf16.mxu0 0
  %1715 = vmatmul.mubr.bf16.gmra.mrb[0].mxu0 %v580
  %v1716 = vpop.f32.mrb[0].mxu0
  %v1717 = vadd.f32 %v166, %v1716
  %v1718 = vpop.f32.mrb[0].mxu0
  %v1719 = vpop.f32.mrb[0].mxu0
  %v1720 = vadd.f32 %v166, %v1719
  %v1721 = vpop.f32.mrb[0].mxu0
  %1722 = vmatprep.mubr.bf16.mxu0 0
  %1723 = vmatmul.mubr.bf16.gmra.mrb[0].mxu0 %v583
  %v1724 = vpop.f32.mrb[0].mxu0
  %v1725 = vadd.f32 %v166, %v1724
  %v1726 = vpop.f32.mrb[0].mxu0
  %v1727 = vpop.f32.mrb[0].mxu0
  %v1728 = vadd.f32 %v166, %v1727
  %v1729 = vpop.f32.mrb[0].mxu0
  %1730 = vmatprep.mubr.bf16.mxu0 0
  %1731 = vmatmul.mubr.bf16.gmra.mrb[0].mxu0 %v586
  %v1732 = vpop.f32.mrb[0].mxu0
  %v1733 = vadd.f32 %v166, %v1732
  %v1734 = vpop.f32.mrb[0].mxu0
  %v1735 = vpop.f32.mrb[0].mxu0
  %v1736 = vadd.f32 %v166, %v1735
  %v1737 = vpop.f32.mrb[0].mxu0
  %1738 = vmatprep.mubr.bf16.mxu0 0
  %1739 = vmatmul.mubr.bf16.gmra.mrb[0].mxu0 %v589
  %v1740 = vpop.f32.mrb[0].mxu0
  %v1741 = vadd.f32 %v166, %v1740
  %v1742 = vpop.f32.mrb[0].mxu0
  %v1743 = vpop.f32.mrb[0].mxu0
  %v1744 = vadd.f32 %v166, %v1743
  %v1745 = vpop.f32.mrb[0].mxu0
  %1746 = vmatprep.mubr.bf16.mxu0 0
  %1747 = vmatmul.mubr.bf16.gmra.mrb[0].mxu0 %v592
  %v1748 = vpop.f32.mrb[0].mxu0
  %v1749 = vadd.f32 %v166, %v1748
  %v1750 = vpop.f32.mrb[0].mxu0
  %v1751 = vpop.f32.mrb[0].mxu0
  %v1752 = vadd.f32 %v166, %v1751
  %v1753 = vpop.f32.mrb[0].mxu0
  %1754 = vmatprep.mubr.bf16.mxu0 0
  %1755 = vmatmul.mubr.bf16.gmra.mrb[0].mxu0 %v595
  %v1756 = vpop.f32.mrb[0].mxu0
  %v1757 = vadd.f32 %v166, %v1756
  %v1758 = vpop.f32.mrb[0].mxu0
  %v1759 = vpop.f32.mrb[0].mxu0
  %v1760 = vadd.f32 %v166, %v1759
  %v1761 = vpop.f32.mrb[0].mxu0
  %1762 = vmatprep.mubr.bf16.mxu0 0
  %1763 = vmatmul.mubr.bf16.gmra.mrb[0].mxu0 %v598
  %v1764 = vpop.f32.mrb[0].mxu0
  %v1765 = vadd.f32 %v166, %v1764
  %v1766 = vpop.f32.mrb[0].mxu0
  %v1767 = vpop.f32.mrb[0].mxu0
  %v1768 = vadd.f32 %v166, %v1767
  %v1769 = vpop.f32.mrb[0].mxu0
  %1770 = vmatprep.mubr.bf16.mxu0 0
  %1771 = vmatmul.mubr.bf16.gmra.mrb[0].mxu0 %v601
  %v1772 = vpop.f32.mrb[0].mxu0
  %v1773 = vadd.f32 %v166, %v1772
  %v1774 = vpop.f32.mrb[0].mxu0
  %v1775 = vpop.f32.mrb[0].mxu0
  %v1776 = vadd.f32 %v166, %v1775
  %v1777 = vpop.f32.mrb[0].mxu0
  %1778 = vmatprep.mubr.bf16.mxu0 0
  %1779 = vmatmul.mubr.bf16.gmra.mrb[0].mxu0 %v604
  %v1780 = vpop.f32.mrb[0].mxu0
  %v1781 = vadd.f32 %v166, %v1780
  %v1782 = vpop.f32.mrb[0].mxu0
  %v1783 = vpop.f32.mrb[0].mxu0
  %v1784 = vadd.f32 %v166, %v1783
  %v1785 = vpop.f32.mrb[0].mxu0
  %1786 = vmatprep.mubr.bf16.mxu0 0
  %1787 = vmatmul.mubr.bf16.gmra.mrb[0].mxu0 %v607
  %v1788 = vpop.f32.mrb[0].mxu0
  %v1789 = vadd.f32 %v166, %v1788
  %v1790 = vpop.f32.mrb[0].mxu0
  %v1791 = vpop.f32.mrb[0].mxu0
  %v1792 = vadd.f32 %v166, %v1791
  %v1793 = vpop.f32.mrb[0].mxu0
  %1794 = vmatprep.mubr.bf16.mxu0 0
  %1795 = vmatmul.mubr.bf16.gmra.mrb[0].mxu0 %v610
  %v1796 = vpop.f32.mrb[0].mxu0
  %v1797 = vadd.f32 %v166, %v1796
  %v1798 = vpop.f32.mrb[0].mxu0
  %v1799 = vpop.f32.mrb[0].mxu0
  %v1800 = vadd.f32 %v166, %v1799
  %v1801 = vpop.f32.mrb[0].mxu0
  %1802 = vmatprep.mubr.bf16.mxu0 0
  %1803 = vmatmul.mubr.bf16.gmra.mrb[0].mxu0 %v613
  %v1804 = vpop.f32.mrb[0].mxu0
  %v1805 = vadd.f32 %v166, %v1804
  %v1806 = vpop.f32.mrb[0].mxu0
  %v1807 = vpop.f32.mrb[0].mxu0
  %v1808 = vadd.f32 %v166, %v1807
  %v1809 = vpop.f32.mrb[0].mxu0
  %1810 = vdwg.mxu0
  %v1811 = vmax.f32 %v650, 0.0
  %v1812 = vmax.f32 %v652, 0.0
  %v1813 = vmax.f32 %v963, 0.0
  %v1814 = vmax.f32 %v965, 0.0
  %v1815 = vmax.f32 %v1276, 0.0
  %v1816 = vmax.f32 %v1278, 0.0
  %v1817 = vmax.f32 %v1589, 0.0
  %v1818 = vmax.f32 %v654, 0.0
  %v1819 = vmax.f32 %v656, 0.0
  %v1820 = vmax.f32 %v967, 0.0
  %v1821 = vmax.f32 %v969, 0.0
  %v1822 = vmax.f32 %v1280, 0.0
  %v1823 = vmax.f32 %v1282, 0.0
  %v1824 = vmax.f32 %v1592, 0.0
  %v1825 = vmax.f32 %v660, 0.0
  %v1826 = vmax.f32 %v662, 0.0
  %v1827 = vmax.f32 %v973, 0.0
  %v1828 = vmax.f32 %v975, 0.0
  %v1829 = vmax.f32 %v1286, 0.0
  %v1830 = vmax.f32 %v1288, 0.0
  %v1831 = vmax.f32 %v1597, 0.0
  %v1832 = vmax.f32 %v664, 0.0
  %v1833 = vmax.f32 %v666, 0.0
  %v1834 = vmax.f32 %v977, 0.0
  %v1835 = vmax.f32 %v979, 0.0
  %v1836 = vmax.f32 %v1290, 0.0
  %v1837 = vmax.f32 %v1292, 0.0
  %v1838 = vmax.f32 %v1600, 0.0
  %v1839 = vmax.f32 %v670, 0.0
  %v1840 = vmax.f32 %v672, 0.0
  %v1841 = vmax.f32 %v983, 0.0
  %v1842 = vmax.f32 %v985, 0.0
  %v1843 = vmax.f32 %v1296, 0.0
  %v1844 = vmax.f32 %v1298, 0.0
  %v1845 = vmax.f32 %v1605, 0.0
  %v1846 = vmax.f32 %v674, 0.0
  %v1847 = vmax.f32 %v676, 0.0
  %v1848 = vmax.f32 %v987, 0.0
  %v1849 = vmax.f32 %v989, 0.0
  %v1850 = vmax.f32 %v1300, 0.0
  %v1851 = vmax.f32 %v1302, 0.0
  %v1852 = vmax.f32 %v1608, 0.0
  %v1853 = vmax.f32 %v680, 0.0
  %v1854 = vmax.f32 %v682, 0.0
  %v1855 = vmax.f32 %v993, 0.0
  %v1856 = vmax.f32 %v995, 0.0
  %v1857 = vmax.f32 %v1306, 0.0
  %v1858 = vmax.f32 %v1308, 0.0
  %v1859 = vmax.f32 %v1613, 0.0
  %v1860 = vmax.f32 %v684, 0.0
  %v1861 = vmax.f32 %v686, 0.0
  %v1862 = vmax.f32 %v997, 0.0
  %v1863 = vmax.f32 %v999, 0.0
  %v1864 = vmax.f32 %v1310, 0.0
  %v1865 = vmax.f32 %v1312, 0.0
  %v1866 = vmax.f32 %v1616, 0.0
  %v1867 = vmax.f32 %v690, 0.0
  %v1868 = vmax.f32 %v692, 0.0
  %v1869 = vmax.f32 %v1003, 0.0
  %v1870 = vmax.f32 %v1005, 0.0
  %v1871 = vmax.f32 %v1316, 0.0
  %v1872 = vmax.f32 %v1318, 0.0
  %v1873 = vmax.f32 %v1621, 0.0
  %v1874 = vmax.f32 %v694, 0.0
  %v1875 = vmax.f32 %v696, 0.0
  %v1876 = vmax.f32 %v1007, 0.0
  %v1877 = vmax.f32 %v1009, 0.0
  %v1878 = vmax.f32 %v1320, 0.0
  %v1879 = vmax.f32 %v1322, 0.0
  %v1880 = vmax.f32 %v1624, 0.0
  %v1881 = vmax.f32 %v700, 0.0
  %v1882 = vmax.f32 %v702, 0.0
  %v1883 = vmax.f32 %v1013, 0.0
  %v1884 = vmax.f32 %v1015, 0.0
  %v1885 = vmax.f32 %v1326, 0.0
  %v1886 = vmax.f32 %v1328, 0.0
  %v1887 = vmax.f32 %v1629, 0.0
  %v1888 = vmax.f32 %v704, 0.0
  %v1889 = vmax.f32 %v706, 0.0
  %v1890 = vmax.f32 %v1017, 0.0
  %v1891 = vmax.f32 %v1019, 0.0
  %v1892 = vmax.f32 %v1330, 0.0
  %v1893 = vmax.f32 %v1332, 0.0
  %v1894 = vmax.f32 %v1632, 0.0
  %v1895 = vmax.f32 %v710, 0.0
  %v1896 = vmax.f32 %v712, 0.0
  %v1897 = vmax.f32 %v1023, 0.0
  %v1898 = vmax.f32 %v1025, 0.0
  %v1899 = vmax.f32 %v1336, 0.0
  %v1900 = vmax.f32 %v1338, 0.0
  %v1901 = vmax.f32 %v1637, 0.0
  %v1902 = vmax.f32 %v714, 0.0
  %v1903 = vmax.f32 %v716, 0.0
  %v1904 = vmax.f32 %v1027, 0.0
  %v1905 = vmax.f32 %v1029, 0.0
  %v1906 = vmax.f32 %v1340, 0.0
  %v1907 = vmax.f32 %v1342, 0.0
  %v1908 = vmax.f32 %v1640, 0.0
  %v1909 = vmax.f32 %v720, 0.0
  %v1910 = vmax.f32 %v722, 0.0
  %v1911 = vmax.f32 %v1033, 0.0
  %v1912 = vmax.f32 %v1035, 0.0
  %v1913 = vmax.f32 %v1346, 0.0
  %v1914 = vmax.f32 %v1348, 0.0
  %v1915 = vmax.f32 %v1645, 0.0
  %v1916 = vmax.f32 %v724, 0.0
  %v1917 = vmax.f32 %v726, 0.0
  %v1918 = vmax.f32 %v1037, 0.0
  %v1919 = vmax.f32 %v1039, 0.0
  %v1920 = vmax.f32 %v1350, 0.0
  %v1921 = vmax.f32 %v1352, 0.0
  %v1922 = vmax.f32 %v1648, 0.0
  %v1923 = vmax.f32 %v730, 0.0
  %v1924 = vmax.f32 %v732, 0.0
  %v1925 = vmax.f32 %v1043, 0.0
  %v1926 = vmax.f32 %v1045, 0.0
  %v1927 = vmax.f32 %v1356, 0.0
  %v1928 = vmax.f32 %v1358, 0.0
  %v1929 = vmax.f32 %v1653, 0.0
  %v1930 = vmax.f32 %v734, 0.0
  %v1931 = vmax.f32 %v736, 0.0
  %v1932 = vmax.f32 %v1047, 0.0
  %v1933 = vmax.f32 %v1049, 0.0
  %v1934 = vmax.f32 %v1360, 0.0
  %v1935 = vmax.f32 %v1362, 0.0
  %v1936 = vmax.f32 %v1656, 0.0
  %v1937 = vmax.f32 %v740, 0.0
  %v1938 = vmax.f32 %v742, 0.0
  %v1939 = vmax.f32 %v1053, 0.0
  %v1940 = vmax.f32 %v1055, 0.0
  %v1941 = vmax.f32 %v1366, 0.0
  %v1942 = vmax.f32 %v1368, 0.0
  %v1943 = vmax.f32 %v1661, 0.0
  %v1944 = vmax.f32 %v744, 0.0
  %v1945 = vmax.f32 %v746, 0.0
  %v1946 = vmax.f32 %v1057, 0.0
  %v1947 = vmax.f32 %v1059, 0.0
  %v1948 = vmax.f32 %v1370, 0.0
  %v1949 = vmax.f32 %v1372, 0.0
  %v1950 = vmax.f32 %v1664, 0.0
  %v1951 = vmax.f32 %v750, 0.0
  %v1952 = vmax.f32 %v752, 0.0
  %v1953 = vmax.f32 %v1063, 0.0
  %v1954 = vmax.f32 %v1065, 0.0
  %v1955 = vmax.f32 %v1376, 0.0
  %v1956 = vmax.f32 %v1378, 0.0
  %v1957 = vmax.f32 %v1669, 0.0
  %v1958 = vmax.f32 %v754, 0.0
  %v1959 = vmax.f32 %v756, 0.0
  %v1960 = vmax.f32 %v1067, 0.0
  %v1961 = vmax.f32 %v1069, 0.0
  %v1962 = vmax.f32 %v1380, 0.0
  %v1963 = vmax.f32 %v1382, 0.0
  %v1964 = vmax.f32 %v1672, 0.0
  %v1965 = vmax.f32 %v760, 0.0
  %v1966 = vmax.f32 %v762, 0.0
  %v1967 = vmax.f32 %v1073, 0.0
  %v1968 = vmax.f32 %v1075, 0.0
  %v1969 = vmax.f32 %v1386, 0.0
  %v1970 = vmax.f32 %v1388, 0.0
  %v1971 = vmax.f32 %v1677, 0.0
  %v1972 = vmax.f32 %v764, 0.0
  %v1973 = vmax.f32 %v766, 0.0
  %v1974 = vmax.f32 %v1077, 0.0
  %v1975 = vmax.f32 %v1079, 0.0
  %v1976 = vmax.f32 %v1390, 0.0
  %v1977 = vmax.f32 %v1392, 0.0
  %v1978 = vmax.f32 %v1680, 0.0
  %v1979 = vmax.f32 %v770, 0.0
  %v1980 = vmax.f32 %v772, 0.0
  %v1981 = vmax.f32 %v1083, 0.0
  %v1982 = vmax.f32 %v1085, 0.0
  %v1983 = vmax.f32 %v1396, 0.0
  %v1984 = vmax.f32 %v1398, 0.0
  %v1985 = vmax.f32 %v1685, 0.0
  %v1986 = vmax.f32 %v774, 0.0
  %v1987 = vmax.f32 %v776, 0.0
  %v1988 = vmax.f32 %v1087, 0.0
  %v1989 = vmax.f32 %v1089, 0.0
  %v1990 = vmax.f32 %v1400, 0.0
  %v1991 = vmax.f32 %v1402, 0.0
  %v1992 = vmax.f32 %v1688, 0.0
  %v1993 = vmax.f32 %v780, 0.0
  %v1994 = vmax.f32 %v782, 0.0
  %v1995 = vmax.f32 %v1093, 0.0
  %v1996 = vmax.f32 %v1095, 0.0
  %v1997 = vmax.f32 %v1406, 0.0
  %v1998 = vmax.f32 %v1408, 0.0
  %v1999 = vmax.f32 %v1693, 0.0
  %v2000 = vmax.f32 %v784, 0.0
  %v2001 = vmax.f32 %v786, 0.0
  %v2002 = vmax.f32 %v1097, 0.0
  %v2003 = vmax.f32 %v1099, 0.0
  %v2004 = vmax.f32 %v1410, 0.0
  %v2005 = vmax.f32 %v1412, 0.0
  %v2006 = vmax.f32 %v1696, 0.0
  %v2007 = vmax.f32 %v790, 0.0
  %v2008 = vmax.f32 %v792, 0.0
  %v2009 = vmax.f32 %v1103, 0.0
  %v2010 = vmax.f32 %v1105, 0.0
  %v2011 = vmax.f32 %v1416, 0.0
  %v2012 = vmax.f32 %v1418, 0.0
  %v2013 = vmax.f32 %v1701, 0.0
  %v2014 = vmax.f32 %v794, 0.0
  %v2015 = vmax.f32 %v796, 0.0
  %v2016 = vmax.f32 %v1107, 0.0
  %v2017 = vmax.f32 %v1109, 0.0
  %v2018 = vmax.f32 %v1420, 0.0
  %v2019 = vmax.f32 %v1422, 0.0
  %v2020 = vmax.f32 %v1704, 0.0
  %v2021 = vmax.f32 %v800, 0.0
  %v2022 = vmax.f32 %v802, 0.0
  %v2023 = vmax.f32 %v1113, 0.0
  %v2024 = vmax.f32 %v1115, 0.0
  %v2025 = vmax.f32 %v1426, 0.0
  %v2026 = vmax.f32 %v1428, 0.0
  %v2027 = vmax.f32 %v1709, 0.0
  %v2028 = vmax.f32 %v804, 0.0
  %v2029 = vmax.f32 %v806, 0.0
  %v2030 = vmax.f32 %v1117, 0.0
  %v2031 = vmax.f32 %v1119, 0.0
  %v2032 = vmax.f32 %v1430, 0.0
  %v2033 = vmax.f32 %v1432, 0.0
  %v2034 = vmax.f32 %v1712, 0.0
  %v2035 = vmax.f32 %v810, 0.0
  %v2036 = vmax.f32 %v812, 0.0
  %v2037 = vmax.f32 %v1123, 0.0
  %v2038 = vmax.f32 %v1125, 0.0
  %v2039 = vmax.f32 %v1436, 0.0
  %v2040 = vmax.f32 %v1438, 0.0
  %v2041 = vmax.f32 %v1717, 0.0
  %v2042 = vmax.f32 %v814, 0.0
  %v2043 = vmax.f32 %v816, 0.0
  %v2044 = vmax.f32 %v1127, 0.0
  %v2045 = vmax.f32 %v1129, 0.0
  %v2046 = vmax.f32 %v1440, 0.0
  %v2047 = vmax.f32 %v1442, 0.0
  %v2048 = vmax.f32 %v1720, 0.0
  %v2049 = vmax.f32 %v820, 0.0
  %v2050 = vmax.f32 %v822, 0.0
  %v2051 = vmax.f32 %v1133, 0.0
  %v2052 = vmax.f32 %v1135, 0.0
  %v2053 = vmax.f32 %v1446, 0.0
  %v2054 = vmax.f32 %v1448, 0.0
  %v2055 = vmax.f32 %v1725, 0.0
  %v2056 = vmax.f32 %v824, 0.0
  %v2057 = vmax.f32 %v826, 0.0
  %v2058 = vmax.f32 %v1137, 0.0
  %v2059 = vmax.f32 %v1139, 0.0
  %v2060 = vmax.f32 %v1450, 0.0
  %v2061 = vmax.f32 %v1452, 0.0
  %v2062 = vmax.f32 %v1728, 0.0
  %v2063 = vmax.f32 %v830, 0.0
  %v2064 = vmax.f32 %v832, 0.0
  %v2065 = vmax.f32 %v1143, 0.0
  %v2066 = vmax.f32 %v1145, 0.0
  %v2067 = vmax.f32 %v1456, 0.0
  %v2068 = vmax.f32 %v1458, 0.0
  %v2069 = vmax.f32 %v1733, 0.0
  %v2070 = vmax.f32 %v834, 0.0
  %v2071 = vmax.f32 %v836, 0.0
  %v2072 = vmax.f32 %v1147, 0.0
  %v2073 = vmax.f32 %v1149, 0.0
  %v2074 = vmax.f32 %v1460, 0.0
  %v2075 = vmax.f32 %v1462, 0.0
  %v2076 = vmax.f32 %v1736, 0.0
  %v2077 = vmax.f32 %v840, 0.0
  %v2078 = vmax.f32 %v842, 0.0
  %v2079 = vmax.f32 %v1153, 0.0
  %v2080 = vmax.f32 %v1155, 0.0
  %v2081 = vmax.f32 %v1466, 0.0
  %v2082 = vmax.f32 %v1468, 0.0
  %v2083 = vmax.f32 %v1741, 0.0
  %v2084 = vmax.f32 %v844, 0.0
  %v2085 = vmax.f32 %v846, 0.0
  %v2086 = vmax.f32 %v1157, 0.0
  %v2087 = vmax.f32 %v1159, 0.0
  %v2088 = vmax.f32 %v1470, 0.0
  %v2089 = vmax.f32 %v1472, 0.0
  %v2090 = vmax.f32 %v1744, 0.0
  %v2091 = vmax.f32 %v850, 0.0
  %v2092 = vmax.f32 %v852, 0.0
  %v2093 = vmax.f32 %v1163, 0.0
  %v2094 = vmax.f32 %v1165, 0.0
  %v2095 = vmax.f32 %v1476, 0.0
  %v2096 = vmax.f32 %v1478, 0.0
  %v2097 = vmax.f32 %v1749, 0.0
  %v2098 = vmax.f32 %v854, 0.0
  %v2099 = vmax.f32 %v856, 0.0
  %v2100 = vmax.f32 %v1167, 0.0
  %v2101 = vmax.f32 %v1169, 0.0
  %v2102 = vmax.f32 %v1480, 0.0
  %v2103 = vmax.f32 %v1482, 0.0
  %v2104 = vmax.f32 %v1752, 0.0
  %v2105 = vmax.f32 %v860, 0.0
  %v2106 = vmax.f32 %v862, 0.0
  %v2107 = vmax.f32 %v1173, 0.0
  %v2108 = vmax.f32 %v1175, 0.0
  %v2109 = vmax.f32 %v1486, 0.0
  %v2110 = vmax.f32 %v1488, 0.0
  %v2111 = vmax.f32 %v1757, 0.0
  %v2112 = vmax.f32 %v864, 0.0
  %v2113 = vmax.f32 %v866, 0.0
  %v2114 = vmax.f32 %v1177, 0.0
  %v2115 = vmax.f32 %v1179, 0.0
  %v2116 = vmax.f32 %v1490, 0.0
  %v2117 = vmax.f32 %v1492, 0.0
  %v2118 = vmax.f32 %v1760, 0.0
  %v2119 = vmax.f32 %v870, 0.0
  %v2120 = vmax.f32 %v872, 0.0
  %v2121 = vmax.f32 %v1183, 0.0
  %v2122 = vmax.f32 %v1185, 0.0
  %v2123 = vmax.f32 %v1496, 0.0
  %v2124 = vmax.f32 %v1498, 0.0
  %v2125 = vmax.f32 %v1765, 0.0
  %v2126 = vmax.f32 %v874, 0.0
  %v2127 = vmax.f32 %v876, 0.0
  %v2128 = vmax.f32 %v1187, 0.0
  %v2129 = vmax.f32 %v1189, 0.0
  %v2130 = vmax.f32 %v1500, 0.0
  %v2131 = vmax.f32 %v1502, 0.0
  %v2132 = vmax.f32 %v1768, 0.0
  %v2133 = vmax.f32 %v880, 0.0
  %v2134 = vmax.f32 %v882, 0.0
  %v2135 = vmax.f32 %v1193, 0.0
  %v2136 = vmax.f32 %v1195, 0.0
  %v2137 = vmax.f32 %v1506, 0.0
  %v2138 = vmax.f32 %v1508, 0.0
  %v2139 = vmax.f32 %v1773, 0.0
  %v2140 = vmax.f32 %v884, 0.0
  %v2141 = vmax.f32 %v886, 0.0
  %v2142 = vmax.f32 %v1197, 0.0
  %v2143 = vmax.f32 %v1199, 0.0
  %v2144 = vmax.f32 %v1510, 0.0
  %v2145 = vmax.f32 %v1512, 0.0
  %v2146 = vmax.f32 %v1776, 0.0
  %v2147 = vmax.f32 %v890, 0.0
  %v2148 = vmax.f32 %v892, 0.0
  %v2149 = vmax.f32 %v1203, 0.0
  %v2150 = vmax.f32 %v1205, 0.0
  %v2151 = vmax.f32 %v1516, 0.0
  %v2152 = vmax.f32 %v1518, 0.0
  %v2153 = vmax.f32 %v1781, 0.0
  %v2154 = vmax.f32 %v894, 0.0
  %v2155 = vmax.f32 %v896, 0.0
  %v2156 = vmax.f32 %v1207, 0.0
  %v2157 = vmax.f32 %v1209, 0.0
  %v2158 = vmax.f32 %v1520, 0.0
  %v2159 = vmax.f32 %v1522, 0.0
  %v2160 = vmax.f32 %v1784, 0.0
  %v2161 = vmax.f32 %v900, 0.0
  %v2162 = vmax.f32 %v902, 0.0
  %v2163 = vmax.f32 %v1213, 0.0
  %v2164 = vmax.f32 %v1215, 0.0
  %v2165 = vmax.f32 %v1526, 0.0
  %v2166 = vmax.f32 %v1528, 0.0
  %v2167 = vmax.f32 %v1789, 0.0
  %v2168 = vmax.f32 %v904, 0.0
  %v2169 = vmax.f32 %v906, 0.0
  %v2170 = vmax.f32 %v1217, 0.0
  %v2171 = vmax.f32 %v1219, 0.0
  %v2172 = vmax.f32 %v1530, 0.0
  %v2173 = vmax.f32 %v1532, 0.0
  %v2174 = vmax.f32 %v1792, 0.0
  %v2175 = vmax.f32 %v910, 0.0
  %v2176 = vmax.f32 %v912, 0.0
  %v2177 = vmax.f32 %v1223, 0.0
  %v2178 = vmax.f32 %v1225, 0.0
  %v2179 = vmax.f32 %v1536, 0.0
  %v2180 = vmax.f32 %v1538, 0.0
  %v2181 = vmax.f32 %v1797, 0.0
  %v2182 = vmax.f32 %v914, 0.0
  %v2183 = vmax.f32 %v916, 0.0
  %v2184 = vmax.f32 %v1227, 0.0
  %v2185 = vmax.f32 %v1229, 0.0
  %v2186 = vmax.f32 %v1540, 0.0
  %v2187 = vmax.f32 %v1542, 0.0
  %v2188 = vmax.f32 %v1800, 0.0
  %v2189 = vmax.f32 %v920, 0.0
  %v2190 = vmax.f32 %v922, 0.0
  %v2191 = vmax.f32 %v1233, 0.0
  %v2192 = vmax.f32 %v1235, 0.0
  %v2193 = vmax.f32 %v1546, 0.0
  %v2194 = vmax.f32 %v1548, 0.0
  %v2195 = vmax.f32 %v1805, 0.0
  %v2196 = vmax.f32 %v924, 0.0
  %v2197 = vmax.f32 %v926, 0.0
  %v2198 = vmax.f32 %v1237, 0.0
  %v2199 = vmax.f32 %v1239, 0.0
  %v2200 = vmax.f32 %v1550, 0.0
  %v2201 = vmax.f32 %v1552, 0.0
  %v2202 = vmax.f32 %v1808, 0.0
  %v2203 = vmax.f32 %v1811, %v1825
  %v2204 = vmax.f32 %v1812, %v1826
  %v2205 = vmax.f32 %v1813, %v1827
  %v2206 = vmax.f32 %v1814, %v1828
  %v2207 = vmax.f32 %v1815, %v1829
  %v2208 = vmax.f32 %v1816, %v1830
  %v2209 = vmax.f32 %v1817, %v1831
  %v2210 = vmax.f32 %v1818, %v1832
  %v2211 = vmax.f32 %v1819, %v1833
  %v2212 = vmax.f32 %v1820, %v1834
  %v2213 = vmax.f32 %v1821, %v1835
  %v2214 = vmax.f32 %v1822, %v1836
  %v2215 = vmax.f32 %v1823, %v1837
  %v2216 = vmax.f32 %v1824, %v1838
  %v2217 = vmax.f32 %v1839, %v1853
  %v2218 = vmax.f32 %v1840, %v1854
  %v2219 = vmax.f32 %v1841, %v1855
  %v2220 = vmax.f32 %v1842, %v1856
  %v2221 = vmax.f32 %v1843, %v1857
  %v2222 = vmax.f32 %v1844, %v1858
  %v2223 = vmax.f32 %v1845, %v1859
  %v2224 = vmax.f32 %v1846, %v1860
  %v2225 = vmax.f32 %v1847, %v1861
  %v2226 = vmax.f32 %v1848, %v1862
  %v2227 = vmax.f32 %v1849, %v1863
  %v2228 = vmax.f32 %v1850, %v1864
  %v2229 = vmax.f32 %v1851, %v1865
  %v2230 = vmax.f32 %v1852, %v1866
  %v2231 = vmax.f32 %v1867, %v1881
  %v2232 = vmax.f32 %v1868, %v1882
  %v2233 = vmax.f32 %v1869, %v1883
  %v2234 = vmax.f32 %v1870, %v1884
  %v2235 = vmax.f32 %v1871, %v1885
  %v2236 = vmax.f32 %v1872, %v1886
  %v2237 = vmax.f32 %v1873, %v1887
  %v2238 = vmax.f32 %v1874, %v1888
  %v2239 = vmax.f32 %v1875, %v1889
  %v2240 = vmax.f32 %v1876, %v1890
  %v2241 = vmax.f32 %v1877, %v1891
  %v2242 = vmax.f32 %v1878, %v1892
  %v2243 = vmax.f32 %v1879, %v1893
  %v2244 = vmax.f32 %v1880, %v1894
  %v2245 = vmax.f32 %v1895, %v1909
  %v2246 = vmax.f32 %v1896, %v1910
  %v2247 = vmax.f32 %v1897, %v1911
  %v2248 = vmax.f32 %v1898, %v1912
  %v2249 = vmax.f32 %v1899, %v1913
  %v2250 = vmax.f32 %v1900, %v1914
  %v2251 = vmax.f32 %v1901, %v1915
  %v2252 = vmax.f32 %v1902, %v1916
  %v2253 = vmax.f32 %v1903, %v1917
  %v2254 = vmax.f32 %v1904, %v1918
  %v2255 = vmax.f32 %v1905, %v1919
  %v2256 = vmax.f32 %v1906, %v1920
  %v2257 = vmax.f32 %v1907, %v1921
  %v2258 = vmax.f32 %v1908, %v1922
  %v2259 = vmax.f32 %v1923, %v1937
  %v2260 = vmax.f32 %v1924, %v1938
  %v2261 = vmax.f32 %v1925, %v1939
  %v2262 = vmax.f32 %v1926, %v1940
  %v2263 = vmax.f32 %v1927, %v1941
  %v2264 = vmax.f32 %v1928, %v1942
  %v2265 = vmax.f32 %v1929, %v1943
  %v2266 = vmax.f32 %v1930, %v1944
  %v2267 = vmax.f32 %v1931, %v1945
  %v2268 = vmax.f32 %v1932, %v1946
  %v2269 = vmax.f32 %v1933, %v1947
  %v2270 = vmax.f32 %v1934, %v1948
  %v2271 = vmax.f32 %v1935, %v1949
  %v2272 = vmax.f32 %v1936, %v1950
  %v2273 = vmax.f32 %v1951, %v1965
  %v2274 = vmax.f32 %v1952, %v1966
  %v2275 = vmax.f32 %v1953, %v1967
  %v2276 = vmax.f32 %v1954, %v1968
  %v2277 = vmax.f32 %v1955, %v1969
  %v2278 = vmax.f32 %v1956, %v1970
  %v2279 = vmax.f32 %v1957, %v1971
  %v2280 = vmax.f32 %v1958, %v1972
  %v2281 = vmax.f32 %v1959, %v1973
  %v2282 = vmax.f32 %v1960, %v1974
  %v2283 = vmax.f32 %v1961, %v1975
  %v2284 = vmax.f32 %v1962, %v1976
  %v2285 = vmax.f32 %v1963, %v1977
  %v2286 = vmax.f32 %v1964, %v1978
  %v2287 = vmax.f32 %v1979, %v1993
  %v2288 = vmax.f32 %v1980, %v1994
  %v2289 = vmax.f32 %v1981, %v1995
  %v2290 = vmax.f32 %v1982, %v1996
  %v2291 = vmax.f32 %v1983, %v1997
  %v2292 = vmax.f32 %v1984, %v1998
  %v2293 = vmax.f32 %v1985, %v1999
  %v2294 = vmax.f32 %v1986, %v2000
  %v2295 = vmax.f32 %v1987, %v2001
  %v2296 = vmax.f32 %v1988, %v2002
  %v2297 = vmax.f32 %v1989, %v2003
  %v2298 = vmax.f32 %v1990, %v2004
  %v2299 = vmax.f32 %v1991, %v2005
  %v2300 = vmax.f32 %v1992, %v2006
  %v2301 = vmax.f32 %v2007, %v2021
  %v2302 = vmax.f32 %v2008, %v2022
  %v2303 = vmax.f32 %v2009, %v2023
  %v2304 = vmax.f32 %v2010, %v2024
  %v2305 = vmax.f32 %v2011, %v2025
  %v2306 = vmax.f32 %v2012, %v2026
  %v2307 = vmax.f32 %v2013, %v2027
  %v2308 = vmax.f32 %v2014, %v2028
  %v2309 = vmax.f32 %v2015, %v2029
  %v2310 = vmax.f32 %v2016, %v2030
  %v2311 = vmax.f32 %v2017, %v2031
  %v2312 = vmax.f32 %v2018, %v2032
  %v2313 = vmax.f32 %v2019, %v2033
  %v2314 = vmax.f32 %v2020, %v2034
  %v2315 = vmax.f32 %v2035, %v2049
  %v2316 = vmax.f32 %v2036, %v2050
  %v2317 = vmax.f32 %v2037, %v2051
  %v2318 = vmax.f32 %v2038, %v2052
  %v2319 = vmax.f32 %v2039, %v2053
  %v2320 = vmax.f32 %v2040, %v2054
  %v2321 = vmax.f32 %v2041, %v2055
  %v2322 = vmax.f32 %v2042, %v2056
  %v2323 = vmax.f32 %v2043, %v2057
  %v2324 = vmax.f32 %v2044, %v2058
  %v2325 = vmax.f32 %v2045, %v2059
  %v2326 = vmax.f32 %v2046, %v2060
  %v2327 = vmax.f32 %v2047, %v2061
  %v2328 = vmax.f32 %v2048, %v2062
  %v2329 = vmax.f32 %v2063, %v2077
  %v2330 = vmax.f32 %v2064, %v2078
  %v2331 = vmax.f32 %v2065, %v2079
  %v2332 = vmax.f32 %v2066, %v2080
  %v2333 = vmax.f32 %v2067, %v2081
  %v2334 = vmax.f32 %v2068, %v2082
  %v2335 = vmax.f32 %v2069, %v2083
  %v2336 = vmax.f32 %v2070, %v2084
  %v2337 = vmax.f32 %v2071, %v2085
  %v2338 = vmax.f32 %v2072, %v2086
  %v2339 = vmax.f32 %v2073, %v2087
  %v2340 = vmax.f32 %v2074, %v2088
  %v2341 = vmax.f32 %v2075, %v2089
  %v2342 = vmax.f32 %v2076, %v2090
  %v2343 = vmax.f32 %v2091, %v2105
  %v2344 = vmax.f32 %v2092, %v2106
  %v2345 = vmax.f32 %v2093, %v2107
  %v2346 = vmax.f32 %v2094, %v2108
  %v2347 = vmax.f32 %v2095, %v2109
  %v2348 = vmax.f32 %v2096, %v2110
  %v2349 = vmax.f32 %v2097, %v2111
  %v2350 = vmax.f32 %v2098, %v2112
  %v2351 = vmax.f32 %v2099, %v2113
  %v2352 = vmax.f32 %v2100, %v2114
  %v2353 = vmax.f32 %v2101, %v2115
  %v2354 = vmax.f32 %v2102, %v2116
  %v2355 = vmax.f32 %v2103, %v2117
  %v2356 = vmax.f32 %v2104, %v2118
  %v2357 = vmax.f32 %v2119, %v2133
  %v2358 = vmax.f32 %v2120, %v2134
  %v2359 = vmax.f32 %v2121, %v2135
  %v2360 = vmax.f32 %v2122, %v2136
  %v2361 = vmax.f32 %v2123, %v2137
  %v2362 = vmax.f32 %v2124, %v2138
  %v2363 = vmax.f32 %v2125, %v2139
  %v2364 = vmax.f32 %v2126, %v2140
  %v2365 = vmax.f32 %v2127, %v2141
  %v2366 = vmax.f32 %v2128, %v2142
  %v2367 = vmax.f32 %v2129, %v2143
  %v2368 = vmax.f32 %v2130, %v2144
  %v2369 = vmax.f32 %v2131, %v2145
  %v2370 = vmax.f32 %v2132, %v2146
  %v2371 = vmax.f32 %v2147, %v2161
  %v2372 = vmax.f32 %v2148, %v2162
  %v2373 = vmax.f32 %v2149, %v2163
  %v2374 = vmax.f32 %v2150, %v2164
  %v2375 = vmax.f32 %v2151, %v2165
  %v2376 = vmax.f32 %v2152, %v2166
  %v2377 = vmax.f32 %v2153, %v2167
  %v2378 = vmax.f32 %v2154, %v2168
  %v2379 = vmax.f32 %v2155, %v2169
  %v2380 = vmax.f32 %v2156, %v2170
  %v2381 = vmax.f32 %v2157, %v2171
  %v2382 = vmax.f32 %v2158, %v2172
  %v2383 = vmax.f32 %v2159, %v2173
  %v2384 = vmax.f32 %v2160, %v2174
  %v2385 = vmax.f32 %v2175, %v2189
  %v2386 = vmax.f32 %v2176, %v2190
  %v2387 = vmax.f32 %v2177, %v2191
  %v2388 = vmax.f32 %v2178, %v2192
  %v2389 = vmax.f32 %v2179, %v2193
  %v2390 = vmax.f32 %v2180, %v2194
  %v2391 = vmax.f32 %v2181, %v2195
  %v2392 = vmax.f32 %v2182, %v2196
  %v2393 = vmax.f32 %v2183, %v2197
  %v2394 = vmax.f32 %v2184, %v2198
  %v2395 = vmax.f32 %v2185, %v2199
  %v2396 = vmax.f32 %v2186, %v2200
  %v2397 = vmax.f32 %v2187, %v2201
  %v2398 = vmax.f32 %v2188, %v2202
  %2511 = vrot.lane.b32.xlu0 %v2206, 64
  %v2512 = vpop.permute.xlu0 %2511
  %2513 = vrot.lane.b32.xlu0 %v2207, 64
  %v2514 = vpop.permute.xlu0 %2513
  %2515 = vrot.lane.b32.xlu0 %v2208, 64
  %v2516 = vpop.permute.xlu0 %2515
  %2517 = vrot.lane.b32.xlu0 %v2209, 64
  %v2518 = vpop.permute.xlu0 %2517
  %2519 = vrot.lane.b32.xlu0 %v2213, 64
  %v2520 = vpop.permute.xlu0 %2519
  %2521 = vrot.lane.b32.xlu0 %v2214, 64
  %v2522 = vpop.permute.xlu0 %2521
  %2523 = vrot.lane.b32.xlu0 %v2215, 64
  %v2524 = vpop.permute.xlu0 %2523
  %2525 = vrot.lane.b32.xlu0 %v2216, 64
  %v2526 = vpop.permute.xlu0 %2525
  %2527 = vrot.lane.b32.xlu0 %v2220, 64
  %v2528 = vpop.permute.xlu0 %2527
  %2529 = vrot.lane.b32.xlu0 %v2221, 64
  %v2530 = vpop.permute.xlu0 %2529
  %2531 = vrot.lane.b32.xlu0 %v2222, 64
  %v2532 = vpop.permute.xlu0 %2531
  %2533 = vrot.lane.b32.xlu0 %v2223, 64
  %v2534 = vpop.permute.xlu0 %2533
  %2535 = vrot.lane.b32.xlu0 %v2227, 64
  %v2536 = vpop.permute.xlu0 %2535
  %2537 = vrot.lane.b32.xlu0 %v2228, 64
  %v2538 = vpop.permute.xlu0 %2537
  %2539 = vrot.lane.b32.xlu0 %v2229, 64
  %v2540 = vpop.permute.xlu0 %2539
  %2541 = vrot.lane.b32.xlu0 %v2230, 64
  %v2542 = vpop.permute.xlu0 %2541
  %2543 = vrot.lane.b32.xlu0 %v2234, 64
  %v2544 = vpop.permute.xlu0 %2543
  %2545 = vrot.lane.b32.xlu0 %v2235, 64
  %v2546 = vpop.permute.xlu0 %2545
  %2547 = vrot.lane.b32.xlu0 %v2236, 64
  %v2548 = vpop.permute.xlu0 %2547
  %2549 = vrot.lane.b32.xlu0 %v2237, 64
  %v2550 = vpop.permute.xlu0 %2549
  %2551 = vrot.lane.b32.xlu0 %v2241, 64
  %v2552 = vpop.permute.xlu0 %2551
  %2553 = vrot.lane.b32.xlu0 %v2242, 64
  %v2554 = vpop.permute.xlu0 %2553
  %2555 = vrot.lane.b32.xlu0 %v2243, 64
  %v2556 = vpop.permute.xlu0 %2555
  %2557 = vrot.lane.b32.xlu0 %v2244, 64
  %v2558 = vpop.permute.xlu0 %2557
  %2559 = vrot.lane.b32.xlu0 %v2248, 64
  %v2560 = vpop.permute.xlu0 %2559
  %2561 = vrot.lane.b32.xlu0 %v2249, 64
  %v2562 = vpop.permute.xlu0 %2561
  %2563 = vrot.lane.b32.xlu0 %v2250, 64
  %v2564 = vpop.permute.xlu0 %2563
  %2565 = vrot.lane.b32.xlu0 %v2251, 64
  %v2566 = vpop.permute.xlu0 %2565
  %2567 = vrot.lane.b32.xlu0 %v2255, 64
  %v2568 = vpop.permute.xlu0 %2567
  %2569 = vrot.lane.b32.xlu0 %v2256, 64
  %v2570 = vpop.permute.xlu0 %2569
  %2571 = vrot.lane.b32.xlu0 %v2257, 64
  %v2572 = vpop.permute.xlu0 %2571
  %2573 = vrot.lane.b32.xlu0 %v2258, 64
  %v2574 = vpop.permute.xlu0 %2573
  %2575 = vrot.lane.b32.xlu0 %v2262, 64
  %v2576 = vpop.permute.xlu0 %2575
  %2577 = vrot.lane.b32.xlu0 %v2263, 64
  %v2578 = vpop.permute.xlu0 %2577
  %2579 = vrot.lane.b32.xlu0 %v2264, 64
  %v2580 = vpop.permute.xlu0 %2579
  %2581 = vrot.lane.b32.xlu0 %v2265, 64
  %v2582 = vpop.permute.xlu0 %2581
  %2583 = vrot.lane.b32.xlu0 %v2269, 64
  %v2584 = vpop.permute.xlu0 %2583
  %2585 = vrot.lane.b32.xlu0 %v2270, 64
  %v2586 = vpop.permute.xlu0 %2585
  %2587 = vrot.lane.b32.xlu0 %v2271, 64
  %v2588 = vpop.permute.xlu0 %2587
  %2589 = vrot.lane.b32.xlu0 %v2272, 64
  %v2590 = vpop.permute.xlu0 %2589
  %2591 = vrot.lane.b32.xlu0 %v2276, 64
  %v2592 = vpop.permute.xlu0 %2591
  %2593 = vrot.lane.b32.xlu0 %v2277, 64
  %v2594 = vpop.permute.xlu0 %2593
  %2595 = vrot.lane.b32.xlu0 %v2278, 64
  %v2596 = vpop.permute.xlu0 %2595
  %2597 = vrot.lane.b32.xlu0 %v2279, 64
  %v2598 = vpop.permute.xlu0 %2597
  %2599 = vrot.lane.b32.xlu0 %v2283, 64
  %v2600 = vpop.permute.xlu0 %2599
  %2601 = vrot.lane.b32.xlu0 %v2284, 64
  %v2602 = vpop.permute.xlu0 %2601
  %2603 = vrot.lane.b32.xlu0 %v2285, 64
  %v2604 = vpop.permute.xlu0 %2603
  %2605 = vrot.lane.b32.xlu0 %v2286, 64
  %v2606 = vpop.permute.xlu0 %2605
  %2607 = vrot.lane.b32.xlu0 %v2290, 64
  %v2608 = vpop.permute.xlu0 %2607
  %2609 = vrot.lane.b32.xlu0 %v2291, 64
  %v2610 = vpop.permute.xlu0 %2609
  %2611 = vrot.lane.b32.xlu0 %v2292, 64
  %v2612 = vpop.permute.xlu0 %2611
  %2613 = vrot.lane.b32.xlu0 %v2293, 64
  %v2614 = vpop.permute.xlu0 %2613
  %2615 = vrot.lane.b32.xlu0 %v2297, 64
  %v2616 = vpop.permute.xlu0 %2615
  %2617 = vrot.lane.b32.xlu0 %v2298, 64
  %v2618 = vpop.permute.xlu0 %2617
  %2619 = vrot.lane.b32.xlu0 %v2299, 64
  %v2620 = vpop.permute.xlu0 %2619
  %2621 = vrot.lane.b32.xlu0 %v2300, 64
  %v2622 = vpop.permute.xlu0 %2621
  %2623 = vrot.lane.b32.xlu0 %v2304, 64
  %v2624 = vpop.permute.xlu0 %2623
  %2625 = vrot.lane.b32.xlu0 %v2305, 64
  %v2626 = vpop.permute.xlu0 %2625
  %2627 = vrot.lane.b32.xlu0 %v2306, 64
  %v2628 = vpop.permute.xlu0 %2627
  %2629 = vrot.lane.b32.xlu0 %v2307, 64
  %v2630 = vpop.permute.xlu0 %2629
  %2631 = vrot.lane.b32.xlu0 %v2311, 64
  %v2632 = vpop.permute.xlu0 %2631
  %2633 = vrot.lane.b32.xlu0 %v2312, 64
  %v2634 = vpop.permute.xlu0 %2633
  %2635 = vrot.lane.b32.xlu0 %v2313, 64
  %v2636 = vpop.permute.xlu0 %2635
  %2637 = vrot.lane.b32.xlu0 %v2314, 64
  %v2638 = vpop.permute.xlu0 %2637
  %2639 = vrot.lane.b32.xlu0 %v2318, 64
  %v2640 = vpop.permute.xlu0 %2639
  %2641 = vrot.lane.b32.xlu0 %v2319, 64
  %v2642 = vpop.permute.xlu0 %2641
  %2643 = vrot.lane.b32.xlu0 %v2320, 64
  %v2644 = vpop.permute.xlu0 %2643
  %2645 = vrot.lane.b32.xlu0 %v2321, 64
  %v2646 = vpop.permute.xlu0 %2645
  %2647 = vrot.lane.b32.xlu0 %v2325, 64
  %v2648 = vpop.permute.xlu0 %2647
  %2649 = vrot.lane.b32.xlu0 %v2326, 64
  %v2650 = vpop.permute.xlu0 %2649
  %2651 = vrot.lane.b32.xlu0 %v2327, 64
  %v2652 = vpop.permute.xlu0 %2651
  %2653 = vrot.lane.b32.xlu0 %v2328, 64
  %v2654 = vpop.permute.xlu0 %2653
  %2655 = vrot.lane.b32.xlu0 %v2332, 64
  %v2656 = vpop.permute.xlu0 %2655
  %2657 = vrot.lane.b32.xlu0 %v2333, 64
  %v2658 = vpop.permute.xlu0 %2657
  %2659 = vrot.lane.b32.xlu0 %v2334, 64
  %v2660 = vpop.permute.xlu0 %2659
  %2661 = vrot.lane.b32.xlu0 %v2335, 64
  %v2662 = vpop.permute.xlu0 %2661
  %2663 = vrot.lane.b32.xlu0 %v2339, 64
  %v2664 = vpop.permute.xlu0 %2663
  %2665 = vrot.lane.b32.xlu0 %v2340, 64
  %v2666 = vpop.permute.xlu0 %2665
  %2667 = vrot.lane.b32.xlu0 %v2341, 64
  %v2668 = vpop.permute.xlu0 %2667
  %2669 = vrot.lane.b32.xlu0 %v2342, 64
  %v2670 = vpop.permute.xlu0 %2669
  %2671 = vrot.lane.b32.xlu0 %v2346, 64
  %v2672 = vpop.permute.xlu0 %2671
  %2673 = vrot.lane.b32.xlu0 %v2347, 64
  %v2674 = vpop.permute.xlu0 %2673
  %2675 = vrot.lane.b32.xlu0 %v2348, 64
  %v2676 = vpop.permute.xlu0 %2675
  %2677 = vrot.lane.b32.xlu0 %v2349, 64
  %v2678 = vpop.permute.xlu0 %2677
  %2679 = vrot.lane.b32.xlu0 %v2353, 64
  %v2680 = vpop.permute.xlu0 %2679
  %2681 = vrot.lane.b32.xlu0 %v2354, 64
  %v2682 = vpop.permute.xlu0 %2681
  %2683 = vrot.lane.b32.xlu0 %v2355, 64
  %v2684 = vpop.permute.xlu0 %2683
  %2685 = vrot.lane.b32.xlu0 %v2356, 64
  %v2686 = vpop.permute.xlu0 %2685
  %2687 = vrot.lane.b32.xlu0 %v2360, 64
  %v2688 = vpop.permute.xlu0 %2687
  %2689 = vrot.lane.b32.xlu0 %v2361, 64
  %v2690 = vpop.permute.xlu0 %2689
  %2691 = vrot.lane.b32.xlu0 %v2362, 64
  %v2692 = vpop.permute.xlu0 %2691
  %2693 = vrot.lane.b32.xlu0 %v2363, 64
  %v2694 = vpop.permute.xlu0 %2693
  %2695 = vrot.lane.b32.xlu0 %v2367, 64
  %v2696 = vpop.permute.xlu0 %2695
  %2697 = vrot.lane.b32.xlu0 %v2368, 64
  %v2698 = vpop.permute.xlu0 %2697
  %2699 = vrot.lane.b32.xlu0 %v2369, 64
  %v2700 = vpop.permute.xlu0 %2699
  %2701 = vrot.lane.b32.xlu0 %v2370, 64
  %v2702 = vpop.permute.xlu0 %2701
  %2703 = vrot.lane.b32.xlu0 %v2374, 64
  %v2704 = vpop.permute.xlu0 %2703
  %2705 = vrot.lane.b32.xlu0 %v2375, 64
  %v2706 = vpop.permute.xlu0 %2705
  %2707 = vrot.lane.b32.xlu0 %v2376, 64
  %v2708 = vpop.permute.xlu0 %2707
  %2709 = vrot.lane.b32.xlu0 %v2377, 64
  %v2710 = vpop.permute.xlu0 %2709
  %2711 = vrot.lane.b32.xlu0 %v2381, 64
  %v2712 = vpop.permute.xlu0 %2711
  %2713 = vrot.lane.b32.xlu0 %v2382, 64
  %v2714 = vpop.permute.xlu0 %2713
  %2715 = vrot.lane.b32.xlu0 %v2383, 64
  %v2716 = vpop.permute.xlu0 %2715
  %2717 = vrot.lane.b32.xlu0 %v2384, 64
  %v2718 = vpop.permute.xlu0 %2717
  %2719 = vrot.lane.b32.xlu0 %v2388, 64
  %v2720 = vpop.permute.xlu0 %2719
  %2721 = vrot.lane.b32.xlu0 %v2389, 64
  %v2722 = vpop.permute.xlu0 %2721
  %2723 = vrot.lane.b32.xlu0 %v2390, 64
  %v2724 = vpop.permute.xlu0 %2723
  %2725 = vrot.lane.b32.xlu0 %v2391, 64
  %v2726 = vpop.permute.xlu0 %2725
  %2727 = vrot.lane.b32.xlu0 %v2395, 64
  %v2728 = vpop.permute.xlu0 %2727
  %2729 = vrot.lane.b32.xlu0 %v2396, 64
  %v2730 = vpop.permute.xlu0 %2729
  %2731 = vrot.lane.b32.xlu0 %v2397, 64
  %v2732 = vpop.permute.xlu0 %2731
  %2733 = vrot.lane.b32.xlu0 %v2398, 64
  %v2734 = vpop.permute.xlu0 %2733
  %vm2735 = vcmask 523264
  %v2736 = vsel %vm2735, %v2512, %v2514
  %v2737 = vsel %vm2735, %v2514, %v2516
  %v2738 = vsel %vm2735, %v2516, %v2518
  %v2739 = vsel %vm2735, %v2520, %v2522
  %v2740 = vsel %vm2735, %v2522, %v2524
  %v2741 = vsel %vm2735, %v2524, %v2526
  %v2742 = vsel %vm2735, %v2528, %v2530
  %v2743 = vsel %vm2735, %v2530, %v2532
  %v2744 = vsel %vm2735, %v2532, %v2534
  %v2745 = vsel %vm2735, %v2536, %v2538
  %v2746 = vsel %vm2735, %v2538, %v2540
  %v2747 = vsel %vm2735, %v2540, %v2542
  %v2748 = vsel %vm2735, %v2544, %v2546
  %v2749 = vsel %vm2735, %v2546, %v2548
  %v2750 = vsel %vm2735, %v2548, %v2550
  %v2751 = vsel %vm2735, %v2552, %v2554
  %v2752 = vsel %vm2735, %v2554, %v2556
  %v2753 = vsel %vm2735, %v2556, %v2558
  %v2754 = vsel %vm2735, %v2560, %v2562
  %v2755 = vsel %vm2735, %v2562, %v2564
  %v2756 = vsel %vm2735, %v2564, %v2566
  %v2757 = vsel %vm2735, %v2568, %v2570
  %v2758 = vsel %vm2735, %v2570, %v2572
  %v2759 = vsel %vm2735, %v2572, %v2574
  %v2760 = vsel %vm2735, %v2576, %v2578
  %v2761 = vsel %vm2735, %v2578, %v2580
  %v2762 = vsel %vm2735, %v2580, %v2582
  %v2763 = vsel %vm2735, %v2584, %v2586
  %v2764 = vsel %vm2735, %v2586, %v2588
  %v2765 = vsel %vm2735, %v2588, %v2590
  %v2766 = vsel %vm2735, %v2592, %v2594
  %v2767 = vsel %vm2735, %v2594, %v2596
  %v2768 = vsel %vm2735, %v2596, %v2598
  %v2769 = vsel %vm2735, %v2600, %v2602
  %v2770 = vsel %vm2735, %v2602, %v2604
  %v2771 = vsel %vm2735, %v2604, %v2606
  %v2772 = vsel %vm2735, %v2608, %v2610
  %v2773 = vsel %vm2735, %v2610, %v2612
  %v2774 = vsel %vm2735, %v2612, %v2614
  %v2775 = vsel %vm2735, %v2616, %v2618
  %v2776 = vsel %vm2735, %v2618, %v2620
  %v2777 = vsel %vm2735, %v2620, %v2622
  %v2778 = vsel %vm2735, %v2624, %v2626
  %v2779 = vsel %vm2735, %v2626, %v2628
  %v2780 = vsel %vm2735, %v2628, %v2630
  %v2781 = vsel %vm2735, %v2632, %v2634
  %v2782 = vsel %vm2735, %v2634, %v2636
  %v2783 = vsel %vm2735, %v2636, %v2638
  %v2784 = vsel %vm2735, %v2640, %v2642
  %v2785 = vsel %vm2735, %v2642, %v2644
  %v2786 = vsel %vm2735, %v2644, %v2646
  %v2787 = vsel %vm2735, %v2648, %v2650
  %v2788 = vsel %vm2735, %v2650, %v2652
  %v2789 = vsel %vm2735, %v2652, %v2654
  %v2790 = vsel %vm2735, %v2656, %v2658
  %v2791 = vsel %vm2735, %v2658, %v2660
  %v2792 = vsel %vm2735, %v2660, %v2662
  %v2793 = vsel %vm2735, %v2664, %v2666
  %v2794 = vsel %vm2735, %v2666, %v2668
  %v2795 = vsel %vm2735, %v2668, %v2670
  %v2796 = vsel %vm2735, %v2672, %v2674
  %v2797 = vsel %vm2735, %v2674, %v2676
  %v2798 = vsel %vm2735, %v2676, %v2678
  %v2799 = vsel %vm2735, %v2680, %v2682
  %v2800 = vsel %vm2735, %v2682, %v2684
  %v2801 = vsel %vm2735, %v2684, %v2686
  %v2802 = vsel %vm2735, %v2688, %v2690
  %v2803 = vsel %vm2735, %v2690, %v2692
  %v2804 = vsel %vm2735, %v2692, %v2694
  %v2805 = vsel %vm2735, %v2696, %v2698
  %v2806 = vsel %vm2735, %v2698, %v2700
  %v2807 = vsel %vm2735, %v2700, %v2702
  %v2808 = vsel %vm2735, %v2704, %v2706
  %v2809 = vsel %vm2735, %v2706, %v2708
  %v2810 = vsel %vm2735, %v2708, %v2710
  %v2811 = vsel %vm2735, %v2712, %v2714
  %v2812 = vsel %vm2735, %v2714, %v2716
  %v2813 = vsel %vm2735, %v2716, %v2718
  %v2814 = vsel %vm2735, %v2720, %v2722
  %v2815 = vsel %vm2735, %v2722, %v2724
  %v2816 = vsel %vm2735, %v2724, %v2726
  %v2817 = vsel %vm2735, %v2728, %v2730
  %v2818 = vsel %vm2735, %v2730, %v2732
  %v2819 = vsel %vm2735, %v2732, %v2734
  %v2932 = vmax.f32 %v2203, %v2736
  %v2933 = vmax.f32 %v2204, %v2737
  %v2934 = vmax.f32 %v2205, %v2738
  %v2935 = vmax.f32 %v2206, %v2518
  %v2936 = vmax.f32 %v2210, %v2739
  %v2937 = vmax.f32 %v2211, %v2740
  %v2938 = vmax.f32 %v2212, %v2741
  %v2939 = vmax.f32 %v2213, %v2526
  %v2940 = vmax.f32 %v2217, %v2742
  %v2941 = vmax.f32 %v2218, %v2743
  %v2942 = vmax.f32 %v2219, %v2744
  %v2943 = vmax.f32 %v2220, %v2534
  %v2944 = vmax.f32 %v2224, %v2745
  %v2945 = vmax.f32 %v2225, %v2746
  %v2946 = vmax.f32 %v2226, %v2747
  %v2947 = vmax.f32 %v2227, %v2542
  %v2948 = vmax.f32 %v2231, %v2748
  %v2949 = vmax.f32 %v2232, %v2749
  %v2950 = vmax.f32 %v2233, %v2750
  %v2951 = vmax.f32 %v2234, %v2550
  %v2952 = vmax.f32 %v2238, %v2751
  %v2953 = vmax.f32 %v2239, %v2752
  %v2954 = vmax.f32 %v2240, %v2753
  %v2955 = vmax.f32 %v2241, %v2558
  %v2956 = vmax.f32 %v2245, %v2754
  %v2957 = vmax.f32 %v2246, %v2755
  %v2958 = vmax.f32 %v2247, %v2756
  %v2959 = vmax.f32 %v2248, %v2566
  %v2960 = vmax.f32 %v2252, %v2757
  %v2961 = vmax.f32 %v2253, %v2758
  %v2962 = vmax.f32 %v2254, %v2759
  %v2963 = vmax.f32 %v2255, %v2574
  %v2964 = vmax.f32 %v2259, %v2760
  %v2965 = vmax.f32 %v2260, %v2761
  %v2966 = vmax.f32 %v2261, %v2762
  %v2967 = vmax.f32 %v2262, %v2582
  %v2968 = vmax.f32 %v2266, %v2763
  %v2969 = vmax.f32 %v2267, %v2764
  %v2970 = vmax.f32 %v2268, %v2765
  %v2971 = vmax.f32 %v2269, %v2590
  %v2972 = vmax.f32 %v2273, %v2766
  %v2973 = vmax.f32 %v2274, %v2767
  %v2974 = vmax.f32 %v2275, %v2768
  %v2975 = vmax.f32 %v2276, %v2598
  %v2976 = vmax.f32 %v2280, %v2769
  %v2977 = vmax.f32 %v2281, %v2770
  %v2978 = vmax.f32 %v2282, %v2771
  %v2979 = vmax.f32 %v2283, %v2606
  %v2980 = vmax.f32 %v2287, %v2772
  %v2981 = vmax.f32 %v2288, %v2773
  %v2982 = vmax.f32 %v2289, %v2774
  %v2983 = vmax.f32 %v2290, %v2614
  %v2984 = vmax.f32 %v2294, %v2775
  %v2985 = vmax.f32 %v2295, %v2776
  %v2986 = vmax.f32 %v2296, %v2777
  %v2987 = vmax.f32 %v2297, %v2622
  %v2988 = vmax.f32 %v2301, %v2778
  %v2989 = vmax.f32 %v2302, %v2779
  %v2990 = vmax.f32 %v2303, %v2780
  %v2991 = vmax.f32 %v2304, %v2630
  %v2992 = vmax.f32 %v2308, %v2781
  %v2993 = vmax.f32 %v2309, %v2782
  %v2994 = vmax.f32 %v2310, %v2783
  %v2995 = vmax.f32 %v2311, %v2638
  %v2996 = vmax.f32 %v2315, %v2784
  %v2997 = vmax.f32 %v2316, %v2785
  %v2998 = vmax.f32 %v2317, %v2786
  %v2999 = vmax.f32 %v2318, %v2646
  %v3000 = vmax.f32 %v2322, %v2787
  %v3001 = vmax.f32 %v2323, %v2788
  %v3002 = vmax.f32 %v2324, %v2789
  %v3003 = vmax.f32 %v2325, %v2654
  %v3004 = vmax.f32 %v2329, %v2790
  %v3005 = vmax.f32 %v2330, %v2791
  %v3006 = vmax.f32 %v2331, %v2792
  %v3007 = vmax.f32 %v2332, %v2662
  %v3008 = vmax.f32 %v2336, %v2793
  %v3009 = vmax.f32 %v2337, %v2794
  %v3010 = vmax.f32 %v2338, %v2795
  %v3011 = vmax.f32 %v2339, %v2670
  %v3012 = vmax.f32 %v2343, %v2796
  %v3013 = vmax.f32 %v2344, %v2797
  %v3014 = vmax.f32 %v2345, %v2798
  %v3015 = vmax.f32 %v2346, %v2678
  %v3016 = vmax.f32 %v2350, %v2799
  %v3017 = vmax.f32 %v2351, %v2800
  %v3018 = vmax.f32 %v2352, %v2801
  %v3019 = vmax.f32 %v2353, %v2686
  %v3020 = vmax.f32 %v2357, %v2802
  %v3021 = vmax.f32 %v2358, %v2803
  %v3022 = vmax.f32 %v2359, %v2804
  %v3023 = vmax.f32 %v2360, %v2694
  %v3024 = vmax.f32 %v2364, %v2805
  %v3025 = vmax.f32 %v2365, %v2806
  %v3026 = vmax.f32 %v2366, %v2807
  %v3027 = vmax.f32 %v2367, %v2702
  %v3028 = vmax.f32 %v2371, %v2808
  %v3029 = vmax.f32 %v2372, %v2809
  %v3030 = vmax.f32 %v2373, %v2810
  %v3031 = vmax.f32 %v2374, %v2710
  %v3032 = vmax.f32 %v2378, %v2811
  %v3033 = vmax.f32 %v2379, %v2812
  %v3034 = vmax.f32 %v2380, %v2813
  %v3035 = vmax.f32 %v2381, %v2718
  %v3036 = vmax.f32 %v2385, %v2814
  %v3037 = vmax.f32 %v2386, %v2815
  %v3038 = vmax.f32 %v2387, %v2816
  %v3039 = vmax.f32 %v2388, %v2726
  %v3040 = vmax.f32 %v2392, %v2817
  %v3041 = vmax.f32 %v2393, %v2818
  %v3042 = vmax.f32 %v2394, %v2819
  %v3043 = vmax.f32 %v2395, %v2734
  %v3044 = vpack.c.bf16 %v2936, %v2932
  %v3045 = vpack.c.bf16 %v2937, %v2933
  %v3046 = vpack.c.bf16 %v2938, %v2934
  %v3047 = vpack.c.bf16 %v2939, %v2935
  %v3048 = vpack.c.bf16 %v2944, %v2940
  %v3049 = vpack.c.bf16 %v2945, %v2941
  %v3050 = vpack.c.bf16 %v2946, %v2942
  %v3051 = vpack.c.bf16 %v2947, %v2943
  %v3052 = vpack.c.bf16 %v2952, %v2948
  %v3053 = vpack.c.bf16 %v2953, %v2949
  %v3054 = vpack.c.bf16 %v2954, %v2950
  %v3055 = vpack.c.bf16 %v2955, %v2951
  %v3056 = vpack.c.bf16 %v2960, %v2956
  %v3057 = vpack.c.bf16 %v2961, %v2957
  %v3058 = vpack.c.bf16 %v2962, %v2958
  %v3059 = vpack.c.bf16 %v2963, %v2959
  %v3060 = vpack.c.bf16 %v2968, %v2964
  %v3061 = vpack.c.bf16 %v2969, %v2965
  %v3062 = vpack.c.bf16 %v2970, %v2966
  %v3063 = vpack.c.bf16 %v2971, %v2967
  %v3064 = vpack.c.bf16 %v2976, %v2972
  %v3065 = vpack.c.bf16 %v2977, %v2973
  %v3066 = vpack.c.bf16 %v2978, %v2974
  %v3067 = vpack.c.bf16 %v2979, %v2975
  %v3068 = vpack.c.bf16 %v2984, %v2980
  %v3069 = vpack.c.bf16 %v2985, %v2981
  %v3070 = vpack.c.bf16 %v2986, %v2982
  %v3071 = vpack.c.bf16 %v2987, %v2983
  %v3072 = vpack.c.bf16 %v2992, %v2988
  %v3073 = vpack.c.bf16 %v2993, %v2989
  %v3074 = vpack.c.bf16 %v2994, %v2990
  %v3075 = vpack.c.bf16 %v2995, %v2991
  %v3076 = vpack.c.bf16 %v3000, %v2996
  %v3077 = vpack.c.bf16 %v3001, %v2997
  %v3078 = vpack.c.bf16 %v3002, %v2998
  %v3079 = vpack.c.bf16 %v3003, %v2999
  %v3080 = vpack.c.bf16 %v3008, %v3004
  %v3081 = vpack.c.bf16 %v3009, %v3005
  %v3082 = vpack.c.bf16 %v3010, %v3006
  %v3083 = vpack.c.bf16 %v3011, %v3007
  %v3084 = vpack.c.bf16 %v3016, %v3012
  %v3085 = vpack.c.bf16 %v3017, %v3013
  %v3086 = vpack.c.bf16 %v3018, %v3014
  %v3087 = vpack.c.bf16 %v3019, %v3015
  %v3088 = vpack.c.bf16 %v3024, %v3020
  %v3089 = vpack.c.bf16 %v3025, %v3021
  %v3090 = vpack.c.bf16 %v3026, %v3022
  %v3091 = vpack.c.bf16 %v3027, %v3023
  %v3092 = vpack.c.bf16 %v3032, %v3028
  %v3093 = vpack.c.bf16 %v3033, %v3029
  %v3094 = vpack.c.bf16 %v3034, %v3030
  %v3095 = vpack.c.bf16 %v3035, %v3031
  %v3096 = vpack.c.bf16 %v3040, %v3036
  %v3097 = vpack.c.bf16 %v3041, %v3037
  %v3098 = vpack.c.bf16 %v3042, %v3038
  %v3099 = vpack.c.bf16 %v3043, %v3039
  %v3100 = vld [vmem:[%s3] sm:$0xff]
  %v3101 = vld [vmem:[%s3 + $0x8] sm:$0xff]
  %v3102 = vld [vmem:[%s3 + $0x10] sm:$0xff]
  %v3103 = vld [vmem:[%s3 + $0x18] sm:$0xf]
  %v3104 = vld [vmem:[%s3 + $0x1c] sm:$0xff]
  %v3105 = vld [vmem:[%s3 + $0x24] sm:$0xff]
  %v3106 = vld [vmem:[%s3 + $0x2c] sm:$0xff]
  %v3107 = vld [vmem:[%s3 + $0x34] sm:$0xf]
  %v3108 = vld [vmem:[%s3 + $0x38] sm:$0xff]
  %v3109 = vld [vmem:[%s3 + $0x40] sm:$0xff]
  %v3110 = vld [vmem:[%s3 + $0x48] sm:$0xff]
  %v3111 = vld [vmem:[%s3 + $0x50] sm:$0xf]
  %v3112 = vld [vmem:[%s3 + $0x54] sm:$0xff]
  %v3113 = vld [vmem:[%s3 + $0x5c] sm:$0xff]
  %v3114 = vld [vmem:[%s3 + $0x64] sm:$0xff]
  %v3115 = vld [vmem:[%s3 + $0x6c] sm:$0xf]
  %v3116 = vld [vmem:[%s3 + $0x70] sm:$0xff]
  %v3117 = vld [vmem:[%s3 + $0x78] sm:$0xff]
  %v3118 = vld [vmem:[%s3 + $0x80] sm:$0xff]
  %v3119 = vld [vmem:[%s3 + $0x88] sm:$0xf]
  %v3120 = vld [vmem:[%s3 + $0x8c] sm:$0xff]
  %v3121 = vld [vmem:[%s3 + $0x94] sm:$0xff]
  %v3122 = vld [vmem:[%s3 + $0x9c] sm:$0xff]
  %v3123 = vld [vmem:[%s3 + $0xa4] sm:$0xf]
  %v3124 = vld [vmem:[%s3 + $0xa8] sm:$0xff]
  %v3125 = vld [vmem:[%s3 + $0xb0] sm:$0xff]
  %v3126 = vld [vmem:[%s3 + $0xb8] sm:$0xff]
  %v3127 = vld [vmem:[%s3 + $0xc0] sm:$0xf]
  %v3128 = vld [vmem:[%s3 + $0xc4] sm:$0xff]
  %v3129 = vld [vmem:[%s3 + $0xcc] sm:$0xff]
  %v3130 = vld [vmem:[%s3 + $0xd4] sm:$0xff]
  %v3131 = vld [vmem:[%s3 + $0xdc] sm:$0xf]
  %v3132 = vld [vmem:[%s3 + $0xe0] sm:$0xff]
  %v3133 = vld [vmem:[%s3 + $0xe8] sm:$0xff]
  %v3134 = vld [vmem:[%s3 + $0xf0] sm:$0xff]
  %v3135 = vld [vmem:[%s3 + $0xf8] sm:$0xf]
  %v3136 = vld [vmem:[%s3 + $0xfc] sm:$0xff]
  %v3137 = vld [vmem:[%s3 + $0x104] sm:$0xff]
  %v3138 = vld [vmem:[%s3 + $0x10c] sm:$0xff]
  %v3139 = vld [vmem:[%s3 + $0x114] sm:$0xf]
  %v3140 = vld [vmem:[%s3 + $0x118] sm:$0xff]
  %v3141 = vld [vmem:[%s3 + $0x120] sm:$0xff]
  %v3142 = vld [vmem:[%s3 + $0x128] sm:$0xff]
  %v3143 = vld [vmem:[%s3 + $0x130] sm:$0xf]
  %v3144 = vld [vmem:[%s3 + $0x134] sm:$0xff]
  %v3145 = vld [vmem:[%s3 + $0x13c] sm:$0xff]
  %v3146 = vld [vmem:[%s3 + $0x144] sm:$0xff]
  %v3147 = vld [vmem:[%s3 + $0x14c] sm:$0xf]
  %v3148 = vld [vmem:[%s3 + $0x150] sm:$0xff]
  %v3149 = vld [vmem:[%s3 + $0x158] sm:$0xff]
  %v3150 = vld [vmem:[%s3 + $0x160] sm:$0xff]
  %v3151 = vld [vmem:[%s3 + $0x168] sm:$0xf]
  %v3152 = vld [vmem:[%s3 + $0x16c] sm:$0xff]
  %v3153 = vld [vmem:[%s3 + $0x174] sm:$0xff]
  %v3154 = vld [vmem:[%s3 + $0x17c] sm:$0xff]
  %v3155 = vld [vmem:[%s3 + $0x184] sm:$0xf]
  %v3156 = vld [vmem:[%s3 + $0x188] sm:$0xff]
  %v3157 = vld [vmem:[%s3 + $0x190] sm:$0xff]
  %v3158 = vld [vmem:[%s3 + $0x198] sm:$0xff]
  %v3159 = vld [vmem:[%s3 + $0x1a0] sm:$0xf]
  %v3160 = vld [vmem:[%s3 + $0x1a4] sm:$0xff]
  %v3161 = vld [vmem:[%s3 + $0x1ac] sm:$0xff]
  %v3162 = vld [vmem:[%s3 + $0x1b4] sm:$0xff]
  %v3163 = vld [vmem:[%s3 + $0x1bc] sm:$0xf]
  %v3164 = vld [vmem:[%s3 + $0x1c0] sm:$0xff]
  %v3165 = vld [vmem:[%s3 + $0x1c8] sm:$0xff]
  %v3166 = vld [vmem:[%s3 + $0x1d0] sm:$0xff]
  %v3167 = vld [vmem:[%s3 + $0x1d8] sm:$0xf]
  %v3168 = vld [vmem:[%s3 + $0x1dc] sm:$0xff]
  %v3169 = vld [vmem:[%s3 + $0x1e4] sm:$0xff]
  %v3170 = vld [vmem:[%s3 + $0x1ec] sm:$0xff]
  %v3171 = vld [vmem:[%s3 + $0x1f4] sm:$0xf]
  %v3172 = vld [vmem:[%s3 + $0x1f8] sm:$0xff]
  %v3173 = vld [vmem:[%s3 + $0x200] sm:$0xff]
  %v3174 = vld [vmem:[%s3 + $0x208] sm:$0xff]
  %v3175 = vld [vmem:[%s3 + $0x210] sm:$0xf]
  %v3176 = vld [vmem:[%s3 + $0x214] sm:$0xff]
  %v3177 = vld [vmem:[%s3 + $0x21c] sm:$0xff]
  %v3178 = vld [vmem:[%s3 + $0x224] sm:$0xff]
  %v3179 = vld [vmem:[%s3 + $0x22c] sm:$0xf]
  %v3180 = vld [vmem:[%s3 + $0x230] sm:$0xff]
  %v3181 = vld [vmem:[%s3 + $0x238] sm:$0xff]
  %v3182 = vld [vmem:[%s3 + $0x240] sm:$0xff]
  %v3183 = vld [vmem:[%s3 + $0x248] sm:$0xf]
  %v3184 = vld [vmem:[%s3 + $0x24c] sm:$0xff]
  %v3185 = vld [vmem:[%s3 + $0x254] sm:$0xff]
  %v3186 = vld [vmem:[%s3 + $0x25c] sm:$0xff]
  %v3187 = vld [vmem:[%s3 + $0x264] sm:$0xf]
  %v3188 = vld [vmem:[%s3 + $0x268] sm:$0xff]
  %v3189 = vld [vmem:[%s3 + $0x270] sm:$0xff]
  %v3190 = vld [vmem:[%s3 + $0x278] sm:$0xff]
  %v3191 = vld [vmem:[%s3 + $0x280] sm:$0xf]
  %v3192 = vld [vmem:[%s3 + $0x284] sm:$0xff]
  %v3193 = vld [vmem:[%s3 + $0x28c] sm:$0xff]
  %v3194 = vld [vmem:[%s3 + $0x294] sm:$0xff]
  %v3195 = vld [vmem:[%s3 + $0x29c] sm:$0xf]
  %v3196 = vld [vmem:[%s3 + $0x2a0] sm:$0xff]
  %v3197 = vld [vmem:[%s3 + $0x2a8] sm:$0xff]
  %v3198 = vld [vmem:[%s3 + $0x2b0] sm:$0xff]
  %v3199 = vld [vmem:[%s3 + $0x2b8] sm:$0xf]
  %v3200 = vld [vmem:[%s3 + $0x2bc] sm:$0xff]
  %v3201 = vld [vmem:[%s3 + $0x2c4] sm:$0xff]
  %v3202 = vld [vmem:[%s3 + $0x2cc] sm:$0xff]
  %v3203 = vld [vmem:[%s3 + $0x2d4] sm:$0xf]
  %v3204 = vld [vmem:[%s3 + $0x2d8] sm:$0xff]
  %v3205 = vld [vmem:[%s3 + $0x2e0] sm:$0xff]
  %v3206 = vld [vmem:[%s3 + $0x2e8] sm:$0xff]
  %v3207 = vld [vmem:[%s3 + $0x2f0] sm:$0xf]
  %v3208 = vld [vmem:[%s3 + $0x2f4] sm:$0xff]
  %v3209 = vld [vmem:[%s3 + $0x2fc] sm:$0xff]
  %v3210 = vld [vmem:[%s3 + $0x304] sm:$0xff]
  %v3211 = vld [vmem:[%s3 + $0x30c] sm:$0xf]
  %v3212 = vld [vmem:[%s3 + $0x310] sm:$0xff]
  %v3213 = vld [vmem:[%s3 + $0x318] sm:$0xff]
  %v3214 = vld [vmem:[%s3 + $0x320] sm:$0xff]
  %v3215 = vld [vmem:[%s3 + $0x328] sm:$0xf]
  %v3216 = vld [vmem:[%s3 + $0x32c] sm:$0xff]
  %v3217 = vld [vmem:[%s3 + $0x334] sm:$0xff]
  %v3218 = vld [vmem:[%s3 + $0x33c] sm:$0xff]
  %v3219 = vld [vmem:[%s3 + $0x344] sm:$0xf]
  %v3220 = vld [vmem:[%s3 + $0x348] sm:$0xff]
  %v3221 = vld [vmem:[%s3 + $0x350] sm:$0xff]
  %v3222 = vld [vmem:[%s3 + $0x358] sm:$0xff]
  %v3223 = vld [vmem:[%s3 + $0x360] sm:$0xf]
  %v3224 = vld [vmem:[%s3 + $0x364] sm:$0xff]
  %v3225 = vld [vmem:[%s3 + $0x36c] sm:$0xff]
  %v3226 = vld [vmem:[%s3 + $0x374] sm:$0xff]
  %v3227 = vld [vmem:[%s3 + $0x37c] sm:$0xf]
  %v3228 = vld [vmem:[%s3 + $0x380] sm:$0xff]
  %v3229 = vld [vmem:[%s3 + $0x388] sm:$0xff]
  %v3230 = vld [vmem:[%s3 + $0x390] sm:$0xff]
  %v3231 = vld [vmem:[%s3 + $0x398] sm:$0xf]
  %v3232 = vld [vmem:[%s3 + $0x39c] sm:$0xff]
  %v3233 = vld [vmem:[%s3 + $0x3a4] sm:$0xff]
  %v3234 = vld [vmem:[%s3 + $0x3ac] sm:$0xff]
  %v3235 = vld [vmem:[%s3 + $0x3b4] sm:$0xf]
  %v3236 = vld [vmem:[%s3 + $0x3b8] sm:$0xff]
  %v3237 = vld [vmem:[%s3 + $0x3c0] sm:$0xff]
  %v3238 = vld [vmem:[%s3 + $0x3c8] sm:$0xff]
  %v3239 = vld [vmem:[%s3 + $0x3d0] sm:$0xf]
  %v3240 = vld [vmem:[%s3 + $0x3d4] sm:$0xff]
  %v3241 = vld [vmem:[%s3 + $0x3dc] sm:$0xff]
  %v3242 = vld [vmem:[%s3 + $0x3e4] sm:$0xff]
  %v3243 = vld [vmem:[%s3 + $0x3ec] sm:$0xf]
  %v3244 = vld [vmem:[%s3 + $0x3f0] sm:$0xff]
  %v3245 = vld [vmem:[%s3 + $0x3f8] sm:$0xff]
  %v3246 = vld [vmem:[%s3 + $0x400] sm:$0xff]
  %v3247 = vld [vmem:[%s3 + $0x408] sm:$0xf]
  %v3248 = vld [vmem:[%s3 + $0x40c] sm:$0xff]
  %v3249 = vld [vmem:[%s3 + $0x414] sm:$0xff]
  %v3250 = vld [vmem:[%s3 + $0x41c] sm:$0xff]
  %v3251 = vld [vmem:[%s3 + $0x424] sm:$0xf]
  %v3252 = vld [vmem:[%s3 + $0x428] sm:$0xff]
  %v3253 = vld [vmem:[%s3 + $0x430] sm:$0xff]
  %v3254 = vld [vmem:[%s3 + $0x438] sm:$0xff]
  %v3255 = vld [vmem:[%s3 + $0x440] sm:$0xf]
  %v3256 = vld [vmem:[%s3 + $0x444] sm:$0xff]
  %v3257 = vld [vmem:[%s3 + $0x44c] sm:$0xff]
  %v3258 = vld [vmem:[%s3 + $0x454] sm:$0xff]
  %v3259 = vld [vmem:[%s3 + $0x45c] sm:$0xf]
  %v3260 = vld [vmem:[%s3 + $0x460] sm:$0xff]
  %v3261 = vld [vmem:[%s3 + $0x468] sm:$0xff]
  %v3262 = vld [vmem:[%s3 + $0x470] sm:$0xff]
  %v3263 = vld [vmem:[%s3 + $0x478] sm:$0xf]
  %v3264 = vld [vmem:[%s3 + $0x47c] sm:$0xff]
  %v3265 = vld [vmem:[%s3 + $0x484] sm:$0xff]
  %v3266 = vld [vmem:[%s3 + $0x48c] sm:$0xff]
  %v3267 = vld [vmem:[%s3 + $0x494] sm:$0xf]
  %v3268 = vld [vmem:[%s3 + $0x498] sm:$0xff]
  %v3269 = vld [vmem:[%s3 + $0x4a0] sm:$0xff]
  %v3270 = vld [vmem:[%s3 + $0x4a8] sm:$0xff]
  %v3271 = vld [vmem:[%s3 + $0x4b0] sm:$0xf]
  %v3272 = vld [vmem:[%s3 + $0x4b4] sm:$0xff]
  %v3273 = vld [vmem:[%s3 + $0x4bc] sm:$0xff]
  %v3274 = vld [vmem:[%s3 + $0x4c4] sm:$0xff]
  %v3275 = vld [vmem:[%s3 + $0x4cc] sm:$0xf]
  %v3276 = vld [vmem:[%s3 + $0x4d0] sm:$0xff]
  %v3277 = vld [vmem:[%s3 + $0x4d8] sm:$0xff]
  %v3278 = vld [vmem:[%s3 + $0x4e0] sm:$0xff]
  %v3279 = vld [vmem:[%s3 + $0x4e8] sm:$0xf]
  %v3280 = vld [vmem:[%s3 + $0x4ec] sm:$0xff]
  %v3281 = vld [vmem:[%s3 + $0x4f4] sm:$0xff]
  %v3282 = vld [vmem:[%s3 + $0x4fc] sm:$0xff]
  %v3283 = vld [vmem:[%s3 + $0x504] sm:$0xf]
  %v3284 = vld [vmem:[%s3 + $0x508] sm:$0xff]
  %v3285 = vld [vmem:[%s3 + $0x510] sm:$0xff]
  %v3286 = vld [vmem:[%s3 + $0x518] sm:$0xff]
  %v3287 = vld [vmem:[%s3 + $0x520] sm:$0xf]
  %v3288 = vld [vmem:[%s3 + $0x524] sm:$0xff]
  %v3289 = vld [vmem:[%s3 + $0x52c] sm:$0xff]
  %v3290 = vld [vmem:[%s3 + $0x534] sm:$0xff]
  %v3291 = vld [vmem:[%s3 + $0x53c] sm:$0xf]
  %v3292 = vld [vmem:[%s3 + $0x540] sm:$0xff]
  %v3293 = vld [vmem:[%s3 + $0x548] sm:$0xff]
  %v3294 = vld [vmem:[%s3 + $0x550] sm:$0xff]
  %v3295 = vld [vmem:[%s3 + $0x558] sm:$0xf]
  %v3296 = vld [vmem:[%s3 + $0x55c] sm:$0xff]
  %v3297 = vld [vmem:[%s3 + $0x564] sm:$0xff]
  %v3298 = vld [vmem:[%s3 + $0x56c] sm:$0xff]
  %v3299 = vld [vmem:[%s3 + $0x574] sm:$0xf]
  %v3300 = vld [vmem:[%s3 + $0x578] sm:$0xff]
  %v3301 = vld [vmem:[%s3 + $0x580] sm:$0xff]
  %v3302 = vld [vmem:[%s3 + $0x588] sm:$0xff]
  %v3303 = vld [vmem:[%s3 + $0x590] sm:$0xf]
  %v3304 = vld [vmem:[%s3 + $0x594] sm:$0xff]
  %v3305 = vld [vmem:[%s3 + $0x59c] sm:$0xff]
  %v3306 = vld [vmem:[%s3 + $0x5a4] sm:$0xff]
  %v3307 = vld [vmem:[%s3 + $0x5ac] sm:$0xf]
  %v3308 = vld [vmem:[%s3 + $0x5b0] sm:$0xff]
  %v3309 = vld [vmem:[%s3 + $0x5b8] sm:$0xff]
  %v3310 = vld [vmem:[%s3 + $0x5c0] sm:$0xff]
  %v3311 = vld [vmem:[%s3 + $0x5c8] sm:$0xf]
  %v3312 = vld [vmem:[%s3 + $0x5cc] sm:$0xff]
  %v3313 = vld [vmem:[%s3 + $0x5d4] sm:$0xff]
  %v3314 = vld [vmem:[%s3 + $0x5dc] sm:$0xff]
  %v3315 = vld [vmem:[%s3 + $0x5e4] sm:$0xf]
  %v3316 = vld [vmem:[%s3 + $0x5e8] sm:$0xff]
  %v3317 = vld [vmem:[%s3 + $0x5f0] sm:$0xff]
  %v3318 = vld [vmem:[%s3 + $0x5f8] sm:$0xff]
  %v3319 = vld [vmem:[%s3 + $0x600] sm:$0xf]
  %v3320 = vld [vmem:[%s3 + $0x604] sm:$0xff]
  %v3321 = vld [vmem:[%s3 + $0x60c] sm:$0xff]
  %v3322 = vld [vmem:[%s3 + $0x614] sm:$0xff]
  %v3323 = vld [vmem:[%s3 + $0x61c] sm:$0xf]
  %s3324 = scalar_lea.vmem %s3, 1568
  %v3325 = vld [vmem:[%s3324] sm:$0xff]
  %v3326 = vld [vmem:[%s3324 + $0x8] sm:$0xff]
  %v3327 = vld [vmem:[%s3324 + $0x10] sm:$0xff]
  %v3328 = vld [vmem:[%s3324 + $0x18] sm:$0xf]
  %v3329 = vld [vmem:[%s3324 + $0x1c] sm:$0xff]
  %v3330 = vld [vmem:[%s3324 + $0x24] sm:$0xff]
  %v3331 = vld [vmem:[%s3324 + $0x2c] sm:$0xff]
  %v3332 = vld [vmem:[%s3324 + $0x34] sm:$0xf]
  %v3333 = vld [vmem:[%s3324 + $0x38] sm:$0xff]
  %v3334 = vld [vmem:[%s3324 + $0x40] sm:$0xff]
  %v3335 = vld [vmem:[%s3324 + $0x48] sm:$0xff]
  %v3336 = vld [vmem:[%s3324 + $0x50] sm:$0xf]
  %v3337 = vld [vmem:[%s3324 + $0x54] sm:$0xff]
  %v3338 = vld [vmem:[%s3324 + $0x5c] sm:$0xff]
  %v3339 = vld [vmem:[%s3324 + $0x64] sm:$0xff]
  %v3340 = vld [vmem:[%s3324 + $0x6c] sm:$0xf]
  %v3341 = vld [vmem:[%s3324 + $0x70] sm:$0xff]
  %v3342 = vld [vmem:[%s3324 + $0x78] sm:$0xff]
  %v3343 = vld [vmem:[%s3324 + $0x80] sm:$0xff]
  %v3344 = vld [vmem:[%s3324 + $0x88] sm:$0xf]
  %v3345 = vld [vmem:[%s3324 + $0x8c] sm:$0xff]
  %v3346 = vld [vmem:[%s3324 + $0x94] sm:$0xff]
  %v3347 = vld [vmem:[%s3324 + $0x9c] sm:$0xff]
  %v3348 = vld [vmem:[%s3324 + $0xa4] sm:$0xf]
  %v3349 = vld [vmem:[%s3324 + $0xa8] sm:$0xff]
  %v3350 = vld [vmem:[%s3324 + $0xb0] sm:$0xff]
  %v3351 = vld [vmem:[%s3324 + $0xb8] sm:$0xff]
  %v3352 = vld [vmem:[%s3324 + $0xc0] sm:$0xf]
  %v3353 = vld [vmem:[%s3324 + $0xc4] sm:$0xff]
  %v3354 = vld [vmem:[%s3324 + $0xcc] sm:$0xff]
  %v3355 = vld [vmem:[%s3324 + $0xd4] sm:$0xff]
  %v3356 = vld [vmem:[%s3324 + $0xdc] sm:$0xf]
  %v3357 = vld [vmem:[%s3324 + $0xe0] sm:$0xff]
  %v3358 = vld [vmem:[%s3324 + $0xe8] sm:$0xff]
  %v3359 = vld [vmem:[%s3324 + $0xf0] sm:$0xff]
  %v3360 = vld [vmem:[%s3324 + $0xf8] sm:$0xf]
  %v3361 = vld [vmem:[%s3324 + $0xfc] sm:$0xff]
  %v3362 = vld [vmem:[%s3324 + $0x104] sm:$0xff]
  %v3363 = vld [vmem:[%s3324 + $0x10c] sm:$0xff]
  %v3364 = vld [vmem:[%s3324 + $0x114] sm:$0xf]
  %v3365 = vld [vmem:[%s3324 + $0x118] sm:$0xff]
  %v3366 = vld [vmem:[%s3324 + $0x120] sm:$0xff]
  %v3367 = vld [vmem:[%s3324 + $0x128] sm:$0xff]
  %v3368 = vld [vmem:[%s3324 + $0x130] sm:$0xf]
  %v3369 = vld [vmem:[%s3324 + $0x134] sm:$0xff]
  %v3370 = vld [vmem:[%s3324 + $0x13c] sm:$0xff]
  %v3371 = vld [vmem:[%s3324 + $0x144] sm:$0xff]
  %v3372 = vld [vmem:[%s3324 + $0x14c] sm:$0xf]
  %v3373 = vld [vmem:[%s3324 + $0x150] sm:$0xff]
  %v3374 = vld [vmem:[%s3324 + $0x158] sm:$0xff]
  %v3375 = vld [vmem:[%s3324 + $0x160] sm:$0xff]
  %v3376 = vld [vmem:[%s3324 + $0x168] sm:$0xf]
  %v3377 = vld [vmem:[%s3324 + $0x16c] sm:$0xff]
  %v3378 = vld [vmem:[%s3324 + $0x174] sm:$0xff]
  %v3379 = vld [vmem:[%s3324 + $0x17c] sm:$0xff]
  %v3380 = vld [vmem:[%s3324 + $0x184] sm:$0xf]
  %v3381 = vld [vmem:[%s3324 + $0x188] sm:$0xff]
  %v3382 = vld [vmem:[%s3324 + $0x190] sm:$0xff]
  %v3383 = vld [vmem:[%s3324 + $0x198] sm:$0xff]
  %v3384 = vld [vmem:[%s3324 + $0x1a0] sm:$0xf]
  %v3385 = vld [vmem:[%s3324 + $0x1a4] sm:$0xff]
  %v3386 = vld [vmem:[%s3324 + $0x1ac] sm:$0xff]
  %v3387 = vld [vmem:[%s3324 + $0x1b4] sm:$0xff]
  %v3388 = vld [vmem:[%s3324 + $0x1bc] sm:$0xf]
  %v3389 = vld [vmem:[%s3324 + $0x1c0] sm:$0xff]
  %v3390 = vld [vmem:[%s3324 + $0x1c8] sm:$0xff]
  %v3391 = vld [vmem:[%s3324 + $0x1d0] sm:$0xff]
  %v3392 = vld [vmem:[%s3324 + $0x1d8] sm:$0xf]
  %v3393 = vld [vmem:[%s3324 + $0x1dc] sm:$0xff]
  %v3394 = vld [vmem:[%s3324 + $0x1e4] sm:$0xff]
  %v3395 = vld [vmem:[%s3324 + $0x1ec] sm:$0xff]
  %v3396 = vld [vmem:[%s3324 + $0x1f4] sm:$0xf]
  %v3397 = vld [vmem:[%s3324 + $0x1f8] sm:$0xff]
  %v3398 = vld [vmem:[%s3324 + $0x200] sm:$0xff]
  %v3399 = vld [vmem:[%s3324 + $0x208] sm:$0xff]
  %v3400 = vld [vmem:[%s3324 + $0x210] sm:$0xf]
  %v3401 = vld [vmem:[%s3324 + $0x214] sm:$0xff]
  %v3402 = vld [vmem:[%s3324 + $0x21c] sm:$0xff]
  %v3403 = vld [vmem:[%s3324 + $0x224] sm:$0xff]
  %v3404 = vld [vmem:[%s3324 + $0x22c] sm:$0xf]
  %v3405 = vld [vmem:[%s3324 + $0x230] sm:$0xff]
  %v3406 = vld [vmem:[%s3324 + $0x238] sm:$0xff]
  %v3407 = vld [vmem:[%s3324 + $0x240] sm:$0xff]
  %v3408 = vld [vmem:[%s3324 + $0x248] sm:$0xf]
  %v3409 = vld [vmem:[%s3324 + $0x24c] sm:$0xff]
  %v3410 = vld [vmem:[%s3324 + $0x254] sm:$0xff]
  %v3411 = vld [vmem:[%s3324 + $0x25c] sm:$0xff]
  %v3412 = vld [vmem:[%s3324 + $0x264] sm:$0xf]
  %v3413 = vld [vmem:[%s3324 + $0x268] sm:$0xff]
  %v3414 = vld [vmem:[%s3324 + $0x270] sm:$0xff]
  %v3415 = vld [vmem:[%s3324 + $0x278] sm:$0xff]
  %v3416 = vld [vmem:[%s3324 + $0x280] sm:$0xf]
  %v3417 = vld [vmem:[%s3324 + $0x284] sm:$0xff]
  %v3418 = vld [vmem:[%s3324 + $0x28c] sm:$0xff]
  %v3419 = vld [vmem:[%s3324 + $0x294] sm:$0xff]
  %v3420 = vld [vmem:[%s3324 + $0x29c] sm:$0xf]
  %v3421 = vld [vmem:[%s3324 + $0x2a0] sm:$0xff]
  %v3422 = vld [vmem:[%s3324 + $0x2a8] sm:$0xff]
  %v3423 = vld [vmem:[%s3324 + $0x2b0] sm:$0xff]
  %v3424 = vld [vmem:[%s3324 + $0x2b8] sm:$0xf]
  %v3425 = vld [vmem:[%s3324 + $0x2bc] sm:$0xff]
  %v3426 = vld [vmem:[%s3324 + $0x2c4] sm:$0xff]
  %v3427 = vld [vmem:[%s3324 + $0x2cc] sm:$0xff]
  %v3428 = vld [vmem:[%s3324 + $0x2d4] sm:$0xf]
  %v3429 = vld [vmem:[%s3324 + $0x2d8] sm:$0xff]
  %v3430 = vld [vmem:[%s3324 + $0x2e0] sm:$0xff]
  %v3431 = vld [vmem:[%s3324 + $0x2e8] sm:$0xff]
  %v3432 = vld [vmem:[%s3324 + $0x2f0] sm:$0xf]
  %v3433 = vld [vmem:[%s3324 + $0x2f4] sm:$0xff]
  %v3434 = vld [vmem:[%s3324 + $0x2fc] sm:$0xff]
  %v3435 = vld [vmem:[%s3324 + $0x304] sm:$0xff]
  %v3436 = vld [vmem:[%s3324 + $0x30c] sm:$0xf]
  %v3437 = vld [vmem:[%s3324 + $0x310] sm:$0xff]
  %v3438 = vld [vmem:[%s3324 + $0x318] sm:$0xff]
  %v3439 = vld [vmem:[%s3324 + $0x320] sm:$0xff]
  %v3440 = vld [vmem:[%s3324 + $0x328] sm:$0xf]
  %v3441 = vld [vmem:[%s3324 + $0x32c] sm:$0xff]
  %v3442 = vld [vmem:[%s3324 + $0x334] sm:$0xff]
  %v3443 = vld [vmem:[%s3324 + $0x33c] sm:$0xff]
  %v3444 = vld [vmem:[%s3324 + $0x344] sm:$0xf]
  %v3445 = vld [vmem:[%s3324 + $0x348] sm:$0xff]
  %v3446 = vld [vmem:[%s3324 + $0x350] sm:$0xff]
  %v3447 = vld [vmem:[%s3324 + $0x358] sm:$0xff]
  %v3448 = vld [vmem:[%s3324 + $0x360] sm:$0xf]
  %v3449 = vld [vmem:[%s3324 + $0x364] sm:$0xff]
  %v3450 = vld [vmem:[%s3324 + $0x36c] sm:$0xff]
  %v3451 = vld [vmem:[%s3324 + $0x374] sm:$0xff]
  %v3452 = vld [vmem:[%s3324 + $0x37c] sm:$0xf]
  %v3453 = vld [vmem:[%s3324 + $0x380] sm:$0xff]
  %v3454 = vld [vmem:[%s3324 + $0x388] sm:$0xff]
  %v3455 = vld [vmem:[%s3324 + $0x390] sm:$0xff]
  %v3456 = vld [vmem:[%s3324 + $0x398] sm:$0xf]
  %v3457 = vld [vmem:[%s3324 + $0x39c] sm:$0xff]
  %v3458 = vld [vmem:[%s3324 + $0x3a4] sm:$0xff]
  %v3459 = vld [vmem:[%s3324 + $0x3ac] sm:$0xff]
  %v3460 = vld [vmem:[%s3324 + $0x3b4] sm:$0xf]
  %v3461 = vld [vmem:[%s3324 + $0x3b8] sm:$0xff]
  %v3462 = vld [vmem:[%s3324 + $0x3c0] sm:$0xff]
  %v3463 = vld [vmem:[%s3324 + $0x3c8] sm:$0xff]
  %v3464 = vld [vmem:[%s3324 + $0x3d0] sm:$0xf]
  %v3465 = vld [vmem:[%s3324 + $0x3d4] sm:$0xff]
  %v3466 = vld [vmem:[%s3324 + $0x3dc] sm:$0xff]
  %v3467 = vld [vmem:[%s3324 + $0x3e4] sm:$0xff]
  %v3468 = vld [vmem:[%s3324 + $0x3ec] sm:$0xf]
  %v3469 = vld [vmem:[%s3324 + $0x3f0] sm:$0xff]
  %v3470 = vld [vmem:[%s3324 + $0x3f8] sm:$0xff]
  %v3471 = vld [vmem:[%s3324 + $0x400] sm:$0xff]
  %v3472 = vld [vmem:[%s3324 + $0x408] sm:$0xf]
  %v3473 = vld [vmem:[%s3324 + $0x40c] sm:$0xff]
  %v3474 = vld [vmem:[%s3324 + $0x414] sm:$0xff]
  %v3475 = vld [vmem:[%s3324 + $0x41c] sm:$0xff]
  %v3476 = vld [vmem:[%s3324 + $0x424] sm:$0xf]
  %v3477 = vld [vmem:[%s3324 + $0x428] sm:$0xff]
  %v3478 = vld [vmem:[%s3324 + $0x430] sm:$0xff]
  %v3479 = vld [vmem:[%s3324 + $0x438] sm:$0xff]
  %v3480 = vld [vmem:[%s3324 + $0x440] sm:$0xf]
  %v3481 = vld [vmem:[%s3324 + $0x444] sm:$0xff]
  %v3482 = vld [vmem:[%s3324 + $0x44c] sm:$0xff]
  %v3483 = vld [vmem:[%s3324 + $0x454] sm:$0xff]
  %v3484 = vld [vmem:[%s3324 + $0x45c] sm:$0xf]
  %v3485 = vld [vmem:[%s3324 + $0x460] sm:$0xff]
  %v3486 = vld [vmem:[%s3324 + $0x468] sm:$0xff]
  %v3487 = vld [vmem:[%s3324 + $0x470] sm:$0xff]
  %v3488 = vld [vmem:[%s3324 + $0x478] sm:$0xf]
  %v3489 = vld [vmem:[%s3324 + $0x47c] sm:$0xff]
  %v3490 = vld [vmem:[%s3324 + $0x484] sm:$0xff]
  %v3491 = vld [vmem:[%s3324 + $0x48c] sm:$0xff]
  %v3492 = vld [vmem:[%s3324 + $0x494] sm:$0xf]
  %v3493 = vld [vmem:[%s3324 + $0x498] sm:$0xff]
  %v3494 = vld [vmem:[%s3324 + $0x4a0] sm:$0xff]
  %v3495 = vld [vmem:[%s3324 + $0x4a8] sm:$0xff]
  %v3496 = vld [vmem:[%s3324 + $0x4b0] sm:$0xf]
  %v3497 = vld [vmem:[%s3324 + $0x4b4] sm:$0xff]
  %v3498 = vld [vmem:[%s3324 + $0x4bc] sm:$0xff]
  %v3499 = vld [vmem:[%s3324 + $0x4c4] sm:$0xff]
  %v3500 = vld [vmem:[%s3324 + $0x4cc] sm:$0xf]
  %v3501 = vld [vmem:[%s3324 + $0x4d0] sm:$0xff]
  %v3502 = vld [vmem:[%s3324 + $0x4d8] sm:$0xff]
  %v3503 = vld [vmem:[%s3324 + $0x4e0] sm:$0xff]
  %v3504 = vld [vmem:[%s3324 + $0x4e8] sm:$0xf]
  %v3505 = vld [vmem:[%s3324 + $0x4ec] sm:$0xff]
  %v3506 = vld [vmem:[%s3324 + $0x4f4] sm:$0xff]
  %v3507 = vld [vmem:[%s3324 + $0x4fc] sm:$0xff]
  %v3508 = vld [vmem:[%s3324 + $0x504] sm:$0xf]
  %v3509 = vld [vmem:[%s3324 + $0x508] sm:$0xff]
  %v3510 = vld [vmem:[%s3324 + $0x510] sm:$0xff]
  %v3511 = vld [vmem:[%s3324 + $0x518] sm:$0xff]
  %v3512 = vld [vmem:[%s3324 + $0x520] sm:$0xf]
  %v3513 = vld [vmem:[%s3324 + $0x524] sm:$0xff]
  %v3514 = vld [vmem:[%s3324 + $0x52c] sm:$0xff]
  %v3515 = vld [vmem:[%s3324 + $0x534] sm:$0xff]
  %v3516 = vld [vmem:[%s3324 + $0x53c] sm:$0xf]
  %v3517 = vld [vmem:[%s3324 + $0x540] sm:$0xff]
  %v3518 = vld [vmem:[%s3324 + $0x548] sm:$0xff]
  %v3519 = vld [vmem:[%s3324 + $0x550] sm:$0xff]
  %v3520 = vld [vmem:[%s3324 + $0x558] sm:$0xf]
  %v3521 = vld [vmem:[%s3324 + $0x55c] sm:$0xff]
  %v3522 = vld [vmem:[%s3324 + $0x564] sm:$0xff]
  %v3523 = vld [vmem:[%s3324 + $0x56c] sm:$0xff]
  %v3524 = vld [vmem:[%s3324 + $0x574] sm:$0xf]
  %v3525 = vld [vmem:[%s3324 + $0x578] sm:$0xff]
  %v3526 = vld [vmem:[%s3324 + $0x580] sm:$0xff]
  %v3527 = vld [vmem:[%s3324 + $0x588] sm:$0xff]
  %v3528 = vld [vmem:[%s3324 + $0x590] sm:$0xf]
  %v3529 = vld [vmem:[%s3324 + $0x594] sm:$0xff]
  %v3530 = vld [vmem:[%s3324 + $0x59c] sm:$0xff]
  %v3531 = vld [vmem:[%s3324 + $0x5a4] sm:$0xff]
  %v3532 = vld [vmem:[%s3324 + $0x5ac] sm:$0xf]
  %v3533 = vld [vmem:[%s3324 + $0x5b0] sm:$0xff]
  %v3534 = vld [vmem:[%s3324 + $0x5b8] sm:$0xff]
  %v3535 = vld [vmem:[%s3324 + $0x5c0] sm:$0xff]
  %v3536 = vld [vmem:[%s3324 + $0x5c8] sm:$0xf]
  %v3537 = vld [vmem:[%s3324 + $0x5cc] sm:$0xff]
  %v3538 = vld [vmem:[%s3324 + $0x5d4] sm:$0xff]
  %v3539 = vld [vmem:[%s3324 + $0x5dc] sm:$0xff]
  %v3540 = vld [vmem:[%s3324 + $0x5e4] sm:$0xf]
  %v3541 = vld [vmem:[%s3324 + $0x5e8] sm:$0xff]
  %v3542 = vld [vmem:[%s3324 + $0x5f0] sm:$0xff]
  %v3543 = vld [vmem:[%s3324 + $0x5f8] sm:$0xff]
  %v3544 = vld [vmem:[%s3324 + $0x600] sm:$0xf]
  %v3545 = vld [vmem:[%s3324 + $0x604] sm:$0xff]
  %v3546 = vld [vmem:[%s3324 + $0x60c] sm:$0xff]
  %v3547 = vld [vmem:[%s3324 + $0x614] sm:$0xff]
  %v3548 = vld [vmem:[%s3324 + $0x61c] sm:$0xf]
  %v3773 = vunpack.c.l.b16 %v3325
  %v3774 = vunpack.c.h.b16 %v3325
  %v3775 = vunpack.c.l.b16 %v3326
  %v3776 = vunpack.c.h.b16 %v3326
  %v3777 = vunpack.c.l.b16 %v3327
  %v3778 = vunpack.c.h.b16 %v3327
  %v3779 = vunpack.c.l.b16 %v3328
  %v3780 = vunpack.c.l.b16 %v3329
  %v3781 = vunpack.c.h.b16 %v3329
  %v3782 = vunpack.c.l.b16 %v3330
  %v3783 = vunpack.c.h.b16 %v3330
  %v3784 = vunpack.c.l.b16 %v3331
  %v3785 = vunpack.c.h.b16 %v3331
  %v3786 = vunpack.c.l.b16 %v3332
  %v3787 = vunpack.c.l.b16 %v3333
  %v3788 = vunpack.c.h.b16 %v3333
  %v3789 = vunpack.c.l.b16 %v3334
  %v3790 = vunpack.c.h.b16 %v3334
  %v3791 = vunpack.c.l.b16 %v3335
  %v3792 = vunpack.c.h.b16 %v3335
  %v3793 = vunpack.c.l.b16 %v3336
  %v3794 = vunpack.c.l.b16 %v3337
  %v3795 = vunpack.c.h.b16 %v3337
  %v3796 = vunpack.c.l.b16 %v3338
  %v3797 = vunpack.c.h.b16 %v3338
  %v3798 = vunpack.c.l.b16 %v3339
  %v3799 = vunpack.c.h.b16 %v3339
  %v3800 = vunpack.c.l.b16 %v3340
  %v3801 = vunpack.c.l.b16 %v3341
  %v3802 = vunpack.c.h.b16 %v3341
  %v3803 = vunpack.c.l.b16 %v3342
  %v3804 = vunpack.c.h.b16 %v3342
  %v3805 = vunpack.c.l.b16 %v3343
  %v3806 = vunpack.c.h.b16 %v3343
  %v3807 = vunpack.c.l.b16 %v3344
  %v3808 = vunpack.c.l.b16 %v3345
  %v3809 = vunpack.c.h.b16 %v3345
  %v3810 = vunpack.c.l.b16 %v3346
  %v3811 = vunpack.c.h.b16 %v3346
  %v3812 = vunpack.c.l.b16 %v3347
  %v3813 = vunpack.c.h.b16 %v3347
  %v3814 = vunpack.c.l.b16 %v3348
  %v3815 = vunpack.c.l.b16 %v3349
  %v3816 = vunpack.c.h.b16 %v3349
  %v3817 = vunpack.c.l.b16 %v3350
  %v3818 = vunpack.c.h.b16 %v3350
  %v3819 = vunpack.c.l.b16 %v3351
  %v3820 = vunpack.c.h.b16 %v3351
  %v3821 = vunpack.c.l.b16 %v3352
  %v3822 = vunpack.c.l.b16 %v3353
  %v3823 = vunpack.c.h.b16 %v3353
  %v3824 = vunpack.c.l.b16 %v3354
  %v3825 = vunpack.c.h.b16 %v3354
  %v3826 = vunpack.c.l.b16 %v3355
  %v3827 = vunpack.c.h.b16 %v3355
  %v3828 = vunpack.c.l.b16 %v3356
  %v3829 = vunpack.c.l.b16 %v3357
  %v3830 = vunpack.c.h.b16 %v3357
  %v3831 = vunpack.c.l.b16 %v3358
  %v3832 = vunpack.c.h.b16 %v3358
  %v3833 = vunpack.c.l.b16 %v3359
  %v3834 = vunpack.c.h.b16 %v3359
  %v3835 = vunpack.c.l.b16 %v3360
  %v3836 = vunpack.c.l.b16 %v3361
  %v3837 = vunpack.c.h.b16 %v3361
  %v3838 = vunpack.c.l.b16 %v3362
  %v3839 = vunpack.c.h.b16 %v3362
  %v3840 = vunpack.c.l.b16 %v3363
  %v3841 = vunpack.c.h.b16 %v3363
  %v3842 = vunpack.c.l.b16 %v3364
  %v3843 = vunpack.c.l.b16 %v3365
  %v3844 = vunpack.c.h.b16 %v3365
  %v3845 = vunpack.c.l.b16 %v3366
  %v3846 = vunpack.c.h.b16 %v3366
  %v3847 = vunpack.c.l.b16 %v3367
  %v3848 = vunpack.c.h.b16 %v3367
  %v3849 = vunpack.c.l.b16 %v3368
  %v3850 = vunpack.c.l.b16 %v3369
  %v3851 = vunpack.c.h.b16 %v3369
  %v3852 = vunpack.c.l.b16 %v3370
  %v3853 = vunpack.c.h.b16 %v3370
  %v3854 = vunpack.c.l.b16 %v3371
  %v3855 = vunpack.c.h.b16 %v3371
  %v3856 = vunpack.c.l.b16 %v3372
  %v3857 = vunpack.c.l.b16 %v3373
  %v3858 = vunpack.c.h.b16 %v3373
  %v3859 = vunpack.c.l.b16 %v3374
  %v3860 = vunpack.c.h.b16 %v3374
  %v3861 = vunpack.c.l.b16 %v3375
  %v3862 = vunpack.c.h.b16 %v3375
  %v3863 = vunpack.c.l.b16 %v3376
  %v3864 = vunpack.c.l.b16 %v3377
  %v3865 = vunpack.c.h.b16 %v3377
  %v3866 = vunpack.c.l.b16 %v3378
  %v3867 = vunpack.c.h.b16 %v3378
  %v3868 = vunpack.c.l.b16 %v3379
  %v3869 = vunpack.c.h.b16 %v3379
  %v3870 = vunpack.c.l.b16 %v3380
  %v3871 = vunpack.c.l.b16 %v3381
  %v3872 = vunpack.c.h.b16 %v3381
  %v3873 = vunpack.c.l.b16 %v3382
  %v3874 = vunpack.c.h.b16 %v3382
  %v3875 = vunpack.c.l.b16 %v3383
  %v3876 = vunpack.c.h.b16 %v3383
  %v3877 = vunpack.c.l.b16 %v3384
  %v3878 = vunpack.c.l.b16 %v3385
  %v3879 = vunpack.c.h.b16 %v3385
  %v3880 = vunpack.c.l.b16 %v3386
  %v3881 = vunpack.c.h.b16 %v3386
  %v3882 = vunpack.c.l.b16 %v3387
  %v3883 = vunpack.c.h.b16 %v3387
  %v3884 = vunpack.c.l.b16 %v3388
  %v3885 = vunpack.c.l.b16 %v3389
  %v3886 = vunpack.c.h.b16 %v3389
  %v3887 = vunpack.c.l.b16 %v3390
  %v3888 = vunpack.c.h.b16 %v3390
  %v3889 = vunpack.c.l.b16 %v3391
  %v3890 = vunpack.c.h.b16 %v3391
  %v3891 = vunpack.c.l.b16 %v3392
  %v3892 = vunpack.c.l.b16 %v3393
  %v3893 = vunpack.c.h.b16 %v3393
  %v3894 = vunpack.c.l.b16 %v3394
  %v3895 = vunpack.c.h.b16 %v3394
  %v3896 = vunpack.c.l.b16 %v3395
  %v3897 = vunpack.c.h.b16 %v3395
  %v3898 = vunpack.c.l.b16 %v3396
  %v3899 = vunpack.c.l.b16 %v3397
  %v3900 = vunpack.c.h.b16 %v3397
  %v3901 = vunpack.c.l.b16 %v3398
  %v3902 = vunpack.c.h.b16 %v3398
  %v3903 = vunpack.c.l.b16 %v3399
  %v3904 = vunpack.c.h.b16 %v3399
  %v3905 = vunpack.c.l.b16 %v3400
  %v3906 = vunpack.c.l.b16 %v3401
  %v3907 = vunpack.c.h.b16 %v3401
  %v3908 = vunpack.c.l.b16 %v3402
  %v3909 = vunpack.c.h.b16 %v3402
  %v3910 = vunpack.c.l.b16 %v3403
  %v3911 = vunpack.c.h.b16 %v3403
  %v3912 = vunpack.c.l.b16 %v3404
  %v3913 = vunpack.c.l.b16 %v3405
  %v3914 = vunpack.c.h.b16 %v3405
  %v3915 = vunpack.c.l.b16 %v3406
  %v3916 = vunpack.c.h.b16 %v3406
  %v3917 = vunpack.c.l.b16 %v3407
  %v3918 = vunpack.c.h.b16 %v3407
  %v3919 = vunpack.c.l.b16 %v3408
  %v3920 = vunpack.c.l.b16 %v3409
  %v3921 = vunpack.c.h.b16 %v3409
  %v3922 = vunpack.c.l.b16 %v3410
  %v3923 = vunpack.c.h.b16 %v3410
  %v3924 = vunpack.c.l.b16 %v3411
  %v3925 = vunpack.c.h.b16 %v3411
  %v3926 = vunpack.c.l.b16 %v3412
  %v3927 = vunpack.c.l.b16 %v3413
  %v3928 = vunpack.c.h.b16 %v3413
  %v3929 = vunpack.c.l.b16 %v3414
  %v3930 = vunpack.c.h.b16 %v3414
  %v3931 = vunpack.c.l.b16 %v3415
  %v3932 = vunpack.c.h.b16 %v3415
  %v3933 = vunpack.c.l.b16 %v3416
  %v3934 = vunpack.c.l.b16 %v3417
  %v3935 = vunpack.c.h.b16 %v3417
  %v3936 = vunpack.c.l.b16 %v3418
  %v3937 = vunpack.c.h.b16 %v3418
  %v3938 = vunpack.c.l.b16 %v3419
  %v3939 = vunpack.c.h.b16 %v3419
  %v3940 = vunpack.c.l.b16 %v3420
  %v3941 = vunpack.c.l.b16 %v3421
  %v3942 = vunpack.c.h.b16 %v3421
  %v3943 = vunpack.c.l.b16 %v3422
  %v3944 = vunpack.c.h.b16 %v3422
  %v3945 = vunpack.c.l.b16 %v3423
  %v3946 = vunpack.c.h.b16 %v3423
  %v3947 = vunpack.c.l.b16 %v3424
  %v3948 = vunpack.c.l.b16 %v3425
  %v3949 = vunpack.c.h.b16 %v3425
  %v3950 = vunpack.c.l.b16 %v3426
  %v3951 = vunpack.c.h.b16 %v3426
  %v3952 = vunpack.c.l.b16 %v3427
  %v3953 = vunpack.c.h.b16 %v3427
  %v3954 = vunpack.c.l.b16 %v3428
  %v3955 = vunpack.c.l.b16 %v3429
  %v3956 = vunpack.c.h.b16 %v3429
  %v3957 = vunpack.c.l.b16 %v3430
  %v3958 = vunpack.c.h.b16 %v3430
  %v3959 = vunpack.c.l.b16 %v3431
  %v3960 = vunpack.c.h.b16 %v3431
  %v3961 = vunpack.c.l.b16 %v3432
  %v3962 = vunpack.c.l.b16 %v3433
  %v3963 = vunpack.c.h.b16 %v3433
  %v3964 = vunpack.c.l.b16 %v3434
  %v3965 = vunpack.c.h.b16 %v3434
  %v3966 = vunpack.c.l.b16 %v3435
  %v3967 = vunpack.c.h.b16 %v3435
  %v3968 = vunpack.c.l.b16 %v3436
  %v3969 = vunpack.c.l.b16 %v3437
  %v3970 = vunpack.c.h.b16 %v3437
  %v3971 = vunpack.c.l.b16 %v3438
  %v3972 = vunpack.c.h.b16 %v3438
  %v3973 = vunpack.c.l.b16 %v3439
  %v3974 = vunpack.c.h.b16 %v3439
  %v3975 = vunpack.c.l.b16 %v3440
  %v3976 = vunpack.c.l.b16 %v3441
  %v3977 = vunpack.c.h.b16 %v3441
  %v3978 = vunpack.c.l.b16 %v3442
  %v3979 = vunpack.c.h.b16 %v3442
  %v3980 = vunpack.c.l.b16 %v3443
  %v3981 = vunpack.c.h.b16 %v3443
  %v3982 = vunpack.c.l.b16 %v3444
  %v3983 = vunpack.c.l.b16 %v3445
  %v3984 = vunpack.c.h.b16 %v3445
  %v3985 = vunpack.c.l.b16 %v3446
  %v3986 = vunpack.c.h.b16 %v3446
  %v3987 = vunpack.c.l.b16 %v3447
  %v3988 = vunpack.c.h.b16 %v3447
  %v3989 = vunpack.c.l.b16 %v3448
  %v3990 = vunpack.c.l.b16 %v3449
  %v3991 = vunpack.c.h.b16 %v3449
  %v3992 = vunpack.c.l.b16 %v3450
  %v3993 = vunpack.c.h.b16 %v3450
  %v3994 = vunpack.c.l.b16 %v3451
  %v3995 = vunpack.c.h.b16 %v3451
  %v3996 = vunpack.c.l.b16 %v3452
  %v3997 = vunpack.c.l.b16 %v3453
  %v3998 = vunpack.c.h.b16 %v3453
  %v3999 = vunpack.c.l.b16 %v3454
  %v4000 = vunpack.c.h.b16 %v3454
  %v4001 = vunpack.c.l.b16 %v3455
  %v4002 = vunpack.c.h.b16 %v3455
  %v4003 = vunpack.c.l.b16 %v3456
  %v4004 = vunpack.c.l.b16 %v3457
  %v4005 = vunpack.c.h.b16 %v3457
  %v4006 = vunpack.c.l.b16 %v3458
  %v4007 = vunpack.c.h.b16 %v3458
  %v4008 = vunpack.c.l.b16 %v3459
  %v4009 = vunpack.c.h.b16 %v3459
  %v4010 = vunpack.c.l.b16 %v3460
  %v4011 = vunpack.c.l.b16 %v3461
  %v4012 = vunpack.c.h.b16 %v3461
  %v4013 = vunpack.c.l.b16 %v3462
  %v4014 = vunpack.c.h.b16 %v3462
  %v4015 = vunpack.c.l.b16 %v3463
  %v4016 = vunpack.c.h.b16 %v3463
  %v4017 = vunpack.c.l.b16 %v3464
  %v4018 = vunpack.c.l.b16 %v3465
  %v4019 = vunpack.c.h.b16 %v3465
  %v4020 = vunpack.c.l.b16 %v3466
  %v4021 = vunpack.c.h.b16 %v3466
  %v4022 = vunpack.c.l.b16 %v3467
  %v4023 = vunpack.c.h.b16 %v3467
  %v4024 = vunpack.c.l.b16 %v3468
  %v4025 = vunpack.c.l.b16 %v3469
  %v4026 = vunpack.c.h.b16 %v3469
  %v4027 = vunpack.c.l.b16 %v3470
  %v4028 = vunpack.c.h.b16 %v3470
  %v4029 = vunpack.c.l.b16 %v3471
  %v4030 = vunpack.c.h.b16 %v3471
  %v4031 = vunpack.c.l.b16 %v3472
  %v4032 = vunpack.c.l.b16 %v3473
  %v4033 = vunpack.c.h.b16 %v3473
  %v4034 = vunpack.c.l.b16 %v3474
  %v4035 = vunpack.c.h.b16 %v3474
  %v4036 = vunpack.c.l.b16 %v3475
  %v4037 = vunpack.c.h.b16 %v3475
  %v4038 = vunpack.c.l.b16 %v3476
  %v4039 = vunpack.c.l.b16 %v3477
  %v4040 = vunpack.c.h.b16 %v3477
  %v4041 = vunpack.c.l.b16 %v3478
  %v4042 = vunpack.c.h.b16 %v3478
  %v4043 = vunpack.c.l.b16 %v3479
  %v4044 = vunpack.c.h.b16 %v3479
  %v4045 = vunpack.c.l.b16 %v3480
  %v4046 = vunpack.c.l.b16 %v3481
  %v4047 = vunpack.c.h.b16 %v3481
  %v4048 = vunpack.c.l.b16 %v3482
  %v4049 = vunpack.c.h.b16 %v3482
  %v4050 = vunpack.c.l.b16 %v3483
  %v4051 = vunpack.c.h.b16 %v3483
  %v4052 = vunpack.c.l.b16 %v3484
  %v4053 = vunpack.c.l.b16 %v3485
  %v4054 = vunpack.c.h.b16 %v3485
  %v4055 = vunpack.c.l.b16 %v3486
  %v4056 = vunpack.c.h.b16 %v3486
  %v4057 = vunpack.c.l.b16 %v3487
  %v4058 = vunpack.c.h.b16 %v3487
  %v4059 = vunpack.c.l.b16 %v3488
  %v4060 = vunpack.c.l.b16 %v3489
  %v4061 = vunpack.c.h.b16 %v3489
  %v4062 = vunpack.c.l.b16 %v3490
  %v4063 = vunpack.c.h.b16 %v3490
  %v4064 = vunpack.c.l.b16 %v3491
  %v4065 = vunpack.c.h.b16 %v3491
  %v4066 = vunpack.c.l.b16 %v3492
  %v4067 = vunpack.c.l.b16 %v3493
  %v4068 = vunpack.c.h.b16 %v3493
  %v4069 = vunpack.c.l.b16 %v3494
  %v4070 = vunpack.c.h.b16 %v3494
  %v4071 = vunpack.c.l.b16 %v3495
  %v4072 = vunpack.c.h.b16 %v3495
  %v4073 = vunpack.c.l.b16 %v3496
  %v4074 = vunpack.c.l.b16 %v3497
  %v4075 = vunpack.c.h.b16 %v3497
  %v4076 = vunpack.c.l.b16 %v3498
  %v4077 = vunpack.c.h.b16 %v3498
  %v4078 = vunpack.c.l.b16 %v3499
  %v4079 = vunpack.c.h.b16 %v3499
  %v4080 = vunpack.c.l.b16 %v3500
  %v4081 = vunpack.c.l.b16 %v3501
  %v4082 = vunpack.c.h.b16 %v3501
  %v4083 = vunpack.c.l.b16 %v3502
  %v4084 = vunpack.c.h.b16 %v3502
  %v4085 = vunpack.c.l.b16 %v3503
  %v4086 = vunpack.c.h.b16 %v3503
  %v4087 = vunpack.c.l.b16 %v3504
  %v4088 = vunpack.c.l.b16 %v3505
  %v4089 = vunpack.c.h.b16 %v3505
  %v4090 = vunpack.c.l.b16 %v3506
  %v4091 = vunpack.c.h.b16 %v3506
  %v4092 = vunpack.c.l.b16 %v3507
  %v4093 = vunpack.c.h.b16 %v3507
  %v4094 = vunpack.c.l.b16 %v3508
  %v4095 = vunpack.c.l.b16 %v3509
  %v4096 = vunpack.c.h.b16 %v3509
  %v4097 = vunpack.c.l.b16 %v3510
  %v4098 = vunpack.c.h.b16 %v3510
  %v4099 = vunpack.c.l.b16 %v3511
  %v4100 = vunpack.c.h.b16 %v3511
  %v4101 = vunpack.c.l.b16 %v3512
  %v4102 = vunpack.c.l.b16 %v3513
  %v4103 = vunpack.c.h.b16 %v3513
  %v4104 = vunpack.c.l.b16 %v3514
  %v4105 = vunpack.c.h.b16 %v3514
  %v4106 = vunpack.c.l.b16 %v3515
  %v4107 = vunpack.c.h.b16 %v3515
  %v4108 = vunpack.c.l.b16 %v3516
  %v4109 = vunpack.c.l.b16 %v3517
  %v4110 = vunpack.c.h.b16 %v3517
  %v4111 = vunpack.c.l.b16 %v3518
  %v4112 = vunpack.c.h.b16 %v3518
  %v4113 = vunpack.c.l.b16 %v3519
  %v4114 = vunpack.c.h.b16 %v3519
  %v4115 = vunpack.c.l.b16 %v3520
  %v4116 = vunpack.c.l.b16 %v3521
  %v4117 = vunpack.c.h.b16 %v3521
  %v4118 = vunpack.c.l.b16 %v3522
  %v4119 = vunpack.c.h.b16 %v3522
  %v4120 = vunpack.c.l.b16 %v3523
  %v4121 = vunpack.c.h.b16 %v3523
  %v4122 = vunpack.c.l.b16 %v3524
  %v4123 = vunpack.c.l.b16 %v3525
  %v4124 = vunpack.c.h.b16 %v3525
  %v4125 = vunpack.c.l.b16 %v3526
  %v4126 = vunpack.c.h.b16 %v3526
  %v4127 = vunpack.c.l.b16 %v3527
  %v4128 = vunpack.c.h.b16 %v3527
  %v4129 = vunpack.c.l.b16 %v3528
  %v4130 = vunpack.c.l.b16 %v3529
  %v4131 = vunpack.c.h.b16 %v3529
  %v4132 = vunpack.c.l.b16 %v3530
  %v4133 = vunpack.c.h.b16 %v3530
  %v4134 = vunpack.c.l.b16 %v3531
  %v4135 = vunpack.c.h.b16 %v3531
  %v4136 = vunpack.c.l.b16 %v3532
  %v4137 = vunpack.c.l.b16 %v3533
  %v4138 = vunpack.c.h.b16 %v3533
  %v4139 = vunpack.c.l.b16 %v3534
  %v4140 = vunpack.c.h.b16 %v3534
  %v4141 = vunpack.c.l.b16 %v3535
  %v4142 = vunpack.c.h.b16 %v3535
  %v4143 = vunpack.c.l.b16 %v3536
  %v4144 = vunpack.c.l.b16 %v3537
  %v4145 = vunpack.c.h.b16 %v3537
  %v4146 = vunpack.c.l.b16 %v3538
  %v4147 = vunpack.c.h.b16 %v3538
  %v4148 = vunpack.c.l.b16 %v3539
  %v4149 = vunpack.c.h.b16 %v3539
  %v4150 = vunpack.c.l.b16 %v3540
  %v4151 = vunpack.c.l.b16 %v3541
  %v4152 = vunpack.c.h.b16 %v3541
  %v4153 = vunpack.c.l.b16 %v3542
  %v4154 = vunpack.c.h.b16 %v3542
  %v4155 = vunpack.c.l.b16 %v3543
  %v4156 = vunpack.c.h.b16 %v3543
  %v4157 = vunpack.c.l.b16 %v3544
  %v4158 = vunpack.c.l.b16 %v3545
  %v4159 = vunpack.c.h.b16 %v3545
  %v4160 = vunpack.c.l.b16 %v3546
  %v4161 = vunpack.c.h.b16 %v3546
  %v4162 = vunpack.c.l.b16 %v3547
  %v4163 = vunpack.c.h.b16 %v3547
  %v4164 = vunpack.c.l.b16 %v3548
  %v4165 = vpack.c.b16 %v3780, %v3773
  %v4166 = vpack.c.b16 %v3781, %v3774
  %v4167 = vpack.c.b16 %v3782, %v3775
  %v4168 = vpack.c.b16 %v3783, %v3776
  %v4169 = vpack.c.b16 %v3784, %v3777
  %v4170 = vpack.c.b16 %v3785, %v3778
  %v4171 = vpack.c.b16 %v3786, %v3779
  %v4172 = vpack.c.b16 %v3794, %v3787
  %v4173 = vpack.c.b16 %v3795, %v3788
  %v4174 = vpack.c.b16 %v3796, %v3789
  %v4175 = vpack.c.b16 %v3797, %v3790
  %v4176 = vpack.c.b16 %v3798, %v3791
  %v4177 = vpack.c.b16 %v3799, %v3792
  %v4178 = vpack.c.b16 %v3800, %v3793
  %v4179 = vpack.c.b16 %v3808, %v3801
  %v4180 = vpack.c.b16 %v3809, %v3802
  %v4181 = vpack.c.b16 %v3810, %v3803
  %v4182 = vpack.c.b16 %v3811, %v3804
  %v4183 = vpack.c.b16 %v3812, %v3805
  %v4184 = vpack.c.b16 %v3813, %v3806
  %v4185 = vpack.c.b16 %v3814, %v3807
  %v4186 = vpack.c.b16 %v3822, %v3815
  %v4187 = vpack.c.b16 %v3823, %v3816
  %v4188 = vpack.c.b16 %v3824, %v3817
  %v4189 = vpack.c.b16 %v3825, %v3818
  %v4190 = vpack.c.b16 %v3826, %v3819
  %v4191 = vpack.c.b16 %v3827, %v3820
  %v4192 = vpack.c.b16 %v3828, %v3821
  %v4193 = vpack.c.b16 %v3836, %v3829
  %v4194 = vpack.c.b16 %v3837, %v3830
  %v4195 = vpack.c.b16 %v3838, %v3831
  %v4196 = vpack.c.b16 %v3839, %v3832
  %v4197 = vpack.c.b16 %v3840, %v3833
  %v4198 = vpack.c.b16 %v3841, %v3834
  %v4199 = vpack.c.b16 %v3842, %v3835
  %v4200 = vpack.c.b16 %v3850, %v3843
  %v4201 = vpack.c.b16 %v3851, %v3844
  %v4202 = vpack.c.b16 %v3852, %v3845
  %v4203 = vpack.c.b16 %v3853, %v3846
  %v4204 = vpack.c.b16 %v3854, %v3847
  %v4205 = vpack.c.b16 %v3855, %v3848
  %v4206 = vpack.c.b16 %v3856, %v3849
  %v4207 = vpack.c.b16 %v3864, %v3857
  %v4208 = vpack.c.b16 %v3865, %v3858
  %v4209 = vpack.c.b16 %v3866, %v3859
  %v4210 = vpack.c.b16 %v3867, %v3860
  %v4211 = vpack.c.b16 %v3868, %v3861
  %v4212 = vpack.c.b16 %v3869, %v3862
  %v4213 = vpack.c.b16 %v3870, %v3863
  %v4214 = vpack.c.b16 %v3878, %v3871
  %v4215 = vpack.c.b16 %v3879, %v3872
  %v4216 = vpack.c.b16 %v3880, %v3873
  %v4217 = vpack.c.b16 %v3881, %v3874
  %v4218 = vpack.c.b16 %v3882, %v3875
  %v4219 = vpack.c.b16 %v3883, %v3876
  %v4220 = vpack.c.b16 %v3884, %v3877
  %v4221 = vpack.c.b16 %v3892, %v3885
  %v4222 = vpack.c.b16 %v3893, %v3886
  %v4223 = vpack.c.b16 %v3894, %v3887
  %v4224 = vpack.c.b16 %v3895, %v3888
  %v4225 = vpack.c.b16 %v3896, %v3889
  %v4226 = vpack.c.b16 %v3897, %v3890
  %v4227 = vpack.c.b16 %v3898, %v3891
  %v4228 = vpack.c.b16 %v3906, %v3899
  %v4229 = vpack.c.b16 %v3907, %v3900
  %v4230 = vpack.c.b16 %v3908, %v3901
  %v4231 = vpack.c.b16 %v3909, %v3902
  %v4232 = vpack.c.b16 %v3910, %v3903
  %v4233 = vpack.c.b16 %v3911, %v3904
  %v4234 = vpack.c.b16 %v3912, %v3905
  %v4235 = vpack.c.b16 %v3920, %v3913
  %v4236 = vpack.c.b16 %v3921, %v3914
  %v4237 = vpack.c.b16 %v3922, %v3915
  %v4238 = vpack.c.b16 %v3923, %v3916
  %v4239 = vpack.c.b16 %v3924, %v3917
  %v4240 = vpack.c.b16 %v3925, %v3918
  %v4241 = vpack.c.b16 %v3926, %v3919
  %v4242 = vpack.c.b16 %v3934, %v3927
  %v4243 = vpack.c.b16 %v3935, %v3928
  %v4244 = vpack.c.b16 %v3936, %v3929
  %v4245 = vpack.c.b16 %v3937, %v3930
  %v4246 = vpack.c.b16 %v3938, %v3931
  %v4247 = vpack.c.b16 %v3939, %v3932
  %v4248 = vpack.c.b16 %v3940, %v3933
  %v4249 = vpack.c.b16 %v3948, %v3941
  %v4250 = vpack.c.b16 %v3949, %v3942
  %v4251 = vpack.c.b16 %v3950, %v3943
  %v4252 = vpack.c.b16 %v3951, %v3944
  %v4253 = vpack.c.b16 %v3952, %v3945
  %v4254 = vpack.c.b16 %v3953, %v3946
  %v4255 = vpack.c.b16 %v3954, %v3947
  %v4256 = vpack.c.b16 %v3962, %v3955
  %v4257 = vpack.c.b16 %v3963, %v3956
  %v4258 = vpack.c.b16 %v3964, %v3957
  %v4259 = vpack.c.b16 %v3965, %v3958
  %v4260 = vpack.c.b16 %v3966, %v3959
  %v4261 = vpack.c.b16 %v3967, %v3960
  %v4262 = vpack.c.b16 %v3968, %v3961
  %v4263 = vpack.c.b16 %v3976, %v3969
  %v4264 = vpack.c.b16 %v3977, %v3970
  %v4265 = vpack.c.b16 %v3978, %v3971
  %v4266 = vpack.c.b16 %v3979, %v3972
  %v4267 = vpack.c.b16 %v3980, %v3973
  %v4268 = vpack.c.b16 %v3981, %v3974
  %v4269 = vpack.c.b16 %v3982, %v3975
  %v4270 = vpack.c.b16 %v3990, %v3983
  %v4271 = vpack.c.b16 %v3991, %v3984
  %v4272 = vpack.c.b16 %v3992, %v3985
  %v4273 = vpack.c.b16 %v3993, %v3986
  %v4274 = vpack.c.b16 %v3994, %v3987
  %v4275 = vpack.c.b16 %v3995, %v3988
  %v4276 = vpack.c.b16 %v3996, %v3989
  %v4277 = vpack.c.b16 %v4004, %v3997
  %v4278 = vpack.c.b16 %v4005, %v3998
  %v4279 = vpack.c.b16 %v4006, %v3999
  %v4280 = vpack.c.b16 %v4007, %v4000
  %v4281 = vpack.c.b16 %v4008, %v4001
  %v4282 = vpack.c.b16 %v4009, %v4002
  %v4283 = vpack.c.b16 %v4010, %v4003
  %v4284 = vpack.c.b16 %v4018, %v4011
  %v4285 = vpack.c.b16 %v4019, %v4012
  %v4286 = vpack.c.b16 %v4020, %v4013
  %v4287 = vpack.c.b16 %v4021, %v4014
  %v4288 = vpack.c.b16 %v4022, %v4015
  %v4289 = vpack.c.b16 %v4023, %v4016
  %v4290 = vpack.c.b16 %v4024, %v4017
  %v4291 = vpack.c.b16 %v4032, %v4025
  %v4292 = vpack.c.b16 %v4033, %v4026
  %v4293 = vpack.c.b16 %v4034, %v4027
  %v4294 = vpack.c.b16 %v4035, %v4028
  %v4295 = vpack.c.b16 %v4036, %v4029
  %v4296 = vpack.c.b16 %v4037, %v4030
  %v4297 = vpack.c.b16 %v4038, %v4031
  %v4298 = vpack.c.b16 %v4046, %v4039
  %v4299 = vpack.c.b16 %v4047, %v4040
  %v4300 = vpack.c.b16 %v4048, %v4041
  %v4301 = vpack.c.b16 %v4049, %v4042
  %v4302 = vpack.c.b16 %v4050, %v4043
  %v4303 = vpack.c.b16 %v4051, %v4044
  %v4304 = vpack.c.b16 %v4052, %v4045
  %v4305 = vpack.c.b16 %v4060, %v4053
  %v4306 = vpack.c.b16 %v4061, %v4054
  %v4307 = vpack.c.b16 %v4062, %v4055
  %v4308 = vpack.c.b16 %v4063, %v4056
  %v4309 = vpack.c.b16 %v4064, %v4057
  %v4310 = vpack.c.b16 %v4065, %v4058
  %v4311 = vpack.c.b16 %v4066, %v4059
  %v4312 = vpack.c.b16 %v4074, %v4067
  %v4313 = vpack.c.b16 %v4075, %v4068
  %v4314 = vpack.c.b16 %v4076, %v4069
  %v4315 = vpack.c.b16 %v4077, %v4070
  %v4316 = vpack.c.b16 %v4078, %v4071
  %v4317 = vpack.c.b16 %v4079, %v4072
  %v4318 = vpack.c.b16 %v4080, %v4073
  %v4319 = vpack.c.b16 %v4088, %v4081
  %v4320 = vpack.c.b16 %v4089, %v4082
  %v4321 = vpack.c.b16 %v4090, %v4083
  %v4322 = vpack.c.b16 %v4091, %v4084
  %v4323 = vpack.c.b16 %v4092, %v4085
  %v4324 = vpack.c.b16 %v4093, %v4086
  %v4325 = vpack.c.b16 %v4094, %v4087
  %v4326 = vpack.c.b16 %v4102, %v4095
  %v4327 = vpack.c.b16 %v4103, %v4096
  %v4328 = vpack.c.b16 %v4104, %v4097
  %v4329 = vpack.c.b16 %v4105, %v4098
  %v4330 = vpack.c.b16 %v4106, %v4099
  %v4331 = vpack.c.b16 %v4107, %v4100
  %v4332 = vpack.c.b16 %v4108, %v4101
  %v4333 = vpack.c.b16 %v4116, %v4109
  %v4334 = vpack.c.b16 %v4117, %v4110
  %v4335 = vpack.c.b16 %v4118, %v4111
  %v4336 = vpack.c.b16 %v4119, %v4112
  %v4337 = vpack.c.b16 %v4120, %v4113
  %v4338 = vpack.c.b16 %v4121, %v4114
  %v4339 = vpack.c.b16 %v4122, %v4115
  %v4340 = vpack.c.b16 %v4130, %v4123
  %v4341 = vpack.c.b16 %v4131, %v4124
  %v4342 = vpack.c.b16 %v4132, %v4125
  %v4343 = vpack.c.b16 %v4133, %v4126
  %v4344 = vpack.c.b16 %v4134, %v4127
  %v4345 = vpack.c.b16 %v4135, %v4128
  %v4346 = vpack.c.b16 %v4136, %v4129
  %v4347 = vpack.c.b16 %v4144, %v4137
  %v4348 = vpack.c.b16 %v4145, %v4138
  %v4349 = vpack.c.b16 %v4146, %v4139
  %v4350 = vpack.c.b16 %v4147, %v4140
  %v4351 = vpack.c.b16 %v4148, %v4141
  %v4352 = vpack.c.b16 %v4149, %v4142
  %v4353 = vpack.c.b16 %v4150, %v4143
  %v4354 = vpack.c.b16 %v4158, %v4151
  %v4355 = vpack.c.b16 %v4159, %v4152
  %v4356 = vpack.c.b16 %v4160, %v4153
  %v4357 = vpack.c.b16 %v4161, %v4154
  %v4358 = vpack.c.b16 %v4162, %v4155
  %v4359 = vpack.c.b16 %v4163, %v4156
  %v4360 = vpack.c.b16 %v4164, %v4157
  %v4558 = vsel %vm2735, %v3047, 0
  %v4561 = vsel %vm2735, %v3051, 0
  %v4564 = vsel %vm2735, %v3055, 0
  %v4567 = vsel %vm2735, %v3059, 0
  %v4570 = vsel %vm2735, %v3063, 0
  %v4573 = vsel %vm2735, %v3067, 0
  %v4576 = vsel %vm2735, %v3071, 0
  %v4579 = vsel %vm2735, %v3075, 0
  %v4582 = vsel %vm2735, %v3079, 0
  %v4585 = vsel %vm2735, %v3083, 0
  %v4588 = vsel %vm2735, %v3087, 0
  %v4591 = vsel %vm2735, %v3091, 0
  %v4594 = vsel %vm2735, %v3095, 0
  %v4597 = vsel %vm2735, %v3099, 0
  %4599 = vmatprep.subr.bf16.mxu0 %v4166
  %4600 = vmatpush1.bf16.msra.mxu0 %v4165
  %4601 = vmatprep.subr.bf16.mxu0 %v4173
  %4602 = vmatpush1.bf16.msra.mxu0 %v4172
  %4603 = vmatprep.subr.bf16.mxu0 %v4180
  %4604 = vmatpush1.bf16.msra.mxu0 %v4179
  %4605 = vmatprep.subr.bf16.mxu0 %v4187
  %4606 = vmatpush1.bf16.msra.mxu0 %v4186
  %4607 = vmatprep.subr.bf16.mxu0 %v4194
  %4608 = vmatpush1.bf16.msra.mxu0 %v4193
  %4609 = vmatprep.subr.bf16.mxu0 %v4201
  %4610 = vmatpush1.bf16.msra.mxu0 %v4200
  %4611 = vmatprep.subr.bf16.mxu0 %v4208
  %4612 = vmatpush1.bf16.msra.mxu0 %v4207
  %4613 = vmatprep.subr.bf16.mxu0 %v4215
  %4614 = vmatpush1.bf16.msra.mxu0 %v4214
  %4615 = vmatprep.subr.bf16.mxu0 %v4222
  %4616 = vmatpush1.bf16.msra.mxu0 %v4221
  %4617 = vmatprep.subr.bf16.mxu0 %v4229
  %4618 = vmatpush1.bf16.msra.mxu0 %v4228
  %4619 = vmatprep.subr.bf16.mxu0 %v4236
  %4620 = vmatpush1.bf16.msra.mxu0 %v4235
  %4621 = vmatprep.subr.bf16.mxu0 %v4243
  %4622 = vmatpush1.bf16.msra.mxu0 %v4242
  %4623 = vmatprep.subr.bf16.mxu0 %v4250
  %4624 = vmatpush1.bf16.msra.mxu0 %v4249
  %4625 = vmatprep.subr.bf16.mxu0 %v4257
  %4626 = vmatpush1.bf16.msra.mxu0 %v4256
  %4627 = vmatprep.subr.bf16.mxu0 %v4264
  %4628 = vmatpush1.bf16.msra.mxu0 %v4263
  %4629 = vmatprep.subr.bf16.mxu0 %v4271
  %4630 = vmatpush1.bf16.msra.mxu0 %v4270
  %4631 = vmatprep.mubr.bf16.mxu0 %v3045
  %4632 = vmatmul.mubr.bf16.gmra.mrb[0].mxu0 %v3044
  %v4633 = vpop.f32.mrb[0].mxu0
  %v4634 = vadd.f32 0.0, %v4633
  %v4635 = vpop.f32.mrb[0].mxu0
  %v4636 = vadd.f32 0.0, %v4635
  %v4637 = vpop.f32.mrb[0].mxu0
  %v4638 = vadd.f32 0.0, %v4637
  %v4639 = vpop.f32.mrb[0].mxu0
  %v4640 = vadd.f32 0.0, %v4639
  %4641 = vmatprep.mubr.bf16.mxu0 %v3049
  %4642 = vmatmul.mubr.bf16.gmra.mrb[0].mxu0 %v3048
  %v4643 = vpop.f32.mrb[0].mxu0
  %v4644 = vadd.f32 0.0, %v4643
  %v4645 = vpop.f32.mrb[0].mxu0
  %v4646 = vadd.f32 0.0, %v4645
  %v4647 = vpop.f32.mrb[0].mxu0
  %v4648 = vadd.f32 0.0, %v4647
  %v4649 = vpop.f32.mrb[0].mxu0
  %v4650 = vadd.f32 0.0, %v4649
  %4651 = vmatprep.mubr.bf16.mxu0 %v3053
  %4652 = vmatmul.mubr.bf16.gmra.mrb[0].mxu0 %v3052
  %v4653 = vpop.f32.mrb[0].mxu0
  %v4654 = vadd.f32 0.0, %v4653
  %v4655 = vpop.f32.mrb[0].mxu0
  %v4656 = vadd.f32 0.0, %v4655
  %v4657 = vpop.f32.mrb[0].mxu0
  %v4658 = vadd.f32 0.0, %v4657
  %v4659 = vpop.f32.mrb[0].mxu0
  %v4660 = vadd.f32 0.0, %v4659
  %4661 = vmatprep.mubr.bf16.mxu0 %v3057
  %4662 = vmatmul.mubr.bf16.gmra.mrb[0].mxu0 %v3056
  %v4663 = vpop.f32.mrb[0].mxu0
  %v4664 = vadd.f32 0.0, %v4663
  %v4665 = vpop.f32.mrb[0].mxu0
  %v4666 = vadd.f32 0.0, %v4665
  %v4667 = vpop.f32.mrb[0].mxu0
  %v4668 = vadd.f32 0.0, %v4667
  %v4669 = vpop.f32.mrb[0].mxu0
  %v4670 = vadd.f32 0.0, %v4669
  %4671 = vmatprep.mubr.bf16.mxu0 %v3061
  %4672 = vmatmul.mubr.bf16.gmra.mrb[0].mxu0 %v3060
  %v4673 = vpop.f32.mrb[0].mxu0
  %v4674 = vadd.f32 0.0, %v4673
  %v4675 = vpop.f32.mrb[0].mxu0
  %v4676 = vadd.f32 0.0, %v4675
  %v4677 = vpop.f32.mrb[0].mxu0
  %v4678 = vadd.f32 0.0, %v4677
  %v4679 = vpop.f32.mrb[0].mxu0
  %v4680 = vadd.f32 0.0, %v4679
  %4681 = vmatprep.mubr.bf16.mxu0 %v3065
  %4682 = vmatmul.mubr.bf16.gmra.mrb[0].mxu0 %v3064
  %v4683 = vpop.f32.mrb[0].mxu0
  %v4684 = vadd.f32 0.0, %v4683
  %v4685 = vpop.f32.mrb[0].mxu0
  %v4686 = vadd.f32 0.0, %v4685
  %v4687 = vpop.f32.mrb[0].mxu0
  %v4688 = vadd.f32 0.0, %v4687
  %v4689 = vpop.f32.mrb[0].mxu0
  %v4690 = vadd.f32 0.0, %v4689
  %4691 = vmatprep.mubr.bf16.mxu0 %v3069
  %4692 = vmatmul.mubr.bf16.gmra.mrb[0].mxu0 %v3068
  %v4693 = vpop.f32.mrb[0].mxu0
  %v4694 = vadd.f32 0.0, %v4693
  %v4695 = vpop.f32.mrb[0].mxu0
  %v4696 = vadd.f32 0.0, %v4695
  %v4697 = vpop.f32.mrb[0].mxu0
  %v4698 = vadd.f32 0.0, %v4697
  %v4699 = vpop.f32.mrb[0].mxu0
  %v4700 = vadd.f32 0.0, %v4699
  %4701 = vmatprep.mubr.bf16.mxu0 %v3073
  %4702 = vmatmul.mubr.bf16.gmra.mrb[0].mxu0 %v3072
  %v4703 = vpop.f32.mrb[0].mxu0
  %v4704 = vadd.f32 0.0, %v4703
  %v4705 = vpop.f32.mrb[0].mxu0
  %v4706 = vadd.f32 0.0, %v4705
  %v4707 = vpop.f32.mrb[0].mxu0
  %v4708 = vadd.f32 0.0, %v4707
  %v4709 = vpop.f32.mrb[0].mxu0
  %v4710 = vadd.f32 0.0, %v4709
  %4711 = vmatprep.mubr.bf16.mxu0 %v3077
  %4712 = vmatmul.mubr.bf16.gmra.mrb[0].mxu0 %v3076
  %v4713 = vpop.f32.mrb[0].mxu0
  %v4714 = vadd.f32 0.0, %v4713
  %v4715 = vpop.f32.mrb[0].mxu0
  %v4716 = vadd.f32 0.0, %v4715
  %v4717 = vpop.f32.mrb[0].mxu0
  %v4718 = vadd.f32 0.0, %v4717
  %v4719 = vpop.f32.mrb[0].mxu0
  %v4720 = vadd.f32 0.0, %v4719
  %4721 = vmatprep.mubr.bf16.mxu0 %v3081
  %4722 = vmatmul.mubr.bf16.gmra.mrb[0].mxu0 %v3080
  %v4723 = vpop.f32.mrb[0].mxu0
  %v4724 = vadd.f32 0.0, %v4723
  %v4725 = vpop.f32.mrb[0].mxu0
  %v4726 = vadd.f32 0.0, %v4725
  %v4727 = vpop.f32.mrb[0].mxu0
  %v4728 = vadd.f32 0.0, %v4727
  %v4729 = vpop.f32.mrb[0].mxu0
  %v4730 = vadd.f32 0.0, %v4729
  %4731 = vmatprep.mubr.bf16.mxu0 %v3085
  %4732 = vmatmul.mubr.bf16.gmra.mrb[0].mxu0 %v3084
  %v4733 = vpop.f32.mrb[0].mxu0
  %v4734 = vadd.f32 0.0, %v4733
  %v4735 = vpop.f32.mrb[0].mxu0
  %v4736 = vadd.f32 0.0, %v4735
  %v4737 = vpop.f32.mrb[0].mxu0
  %v4738 = vadd.f32 0.0, %v4737
  %v4739 = vpop.f32.mrb[0].mxu0
  %v4740 = vadd.f32 0.0, %v4739
  %4741 = vmatprep.mubr.bf16.mxu0 %v3089
  %4742 = vmatmul.mubr.bf16.gmra.mrb[0].mxu0 %v3088
  %v4743 = vpop.f32.mrb[0].mxu0
  %v4744 = vadd.f32 0.0, %v4743
  %v4745 = vpop.f32.mrb[0].mxu0
  %v4746 = vadd.f32 0.0, %v4745
  %v4747 = vpop.f32.mrb[0].mxu0
  %v4748 = vadd.f32 0.0, %v4747
  %v4749 = vpop.f32.mrb[0].mxu0
  %v4750 = vadd.f32 0.0, %v4749
  %4751 = vmatprep.mubr.bf16.mxu0 %v3093
  %4752 = vmatmul.mubr.bf16.gmra.mrb[0].mxu0 %v3092
  %v4753 = vpop.f32.mrb[0].mxu0
  %v4754 = vadd.f32 0.0, %v4753
  %v4755 = vpop.f32.mrb[0].mxu0
  %v4756 = vadd.f32 0.0, %v4755
  %v4757 = vpop.f32.mrb[0].mxu0
  %v4758 = vadd.f32 0.0, %v4757
  %v4759 = vpop.f32.mrb[0].mxu0
  %v4760 = vadd.f32 0.0, %v4759
  %4761 = vmatprep.mubr.bf16.mxu0 %v3097
  %4762 = vmatmul.mubr.bf16.gmra.mrb[0].mxu0 %v3096
  %v4763 = vpop.f32.mrb[0].mxu0
  %v4764 = vadd.f32 0.0, %v4763
  %v4765 = vpop.f32.mrb[0].mxu0
  %v4766 = vadd.f32 0.0, %v4765
  %v4767 = vpop.f32.mrb[0].mxu0
  %v4768 = vadd.f32 0.0, %v4767
  %v4769 = vpop.f32.mrb[0].mxu0
  %v4770 = vadd.f32 0.0, %v4769
  %4771 = vdwg.mxu0
  %4772 = vmatprep.subr.bf16.mxu0 %v4278
  %4773 = vmatpush1.bf16.msra.mxu0 %v4277
  %4774 = vmatprep.subr.bf16.mxu0 %v4285
  %4775 = vmatpush1.bf16.msra.mxu0 %v4284
  %4776 = vmatprep.subr.bf16.mxu0 %v4292
  %4777 = vmatpush1.bf16.msra.mxu0 %v4291
  %4778 = vmatprep.subr.bf16.mxu0 %v4299
  %4779 = vmatpush1.bf16.msra.mxu0 %v4298
  %4780 = vmatprep.subr.bf16.mxu0 %v4306
  %4781 = vmatpush1.bf16.msra.mxu0 %v4305
  %4782 = vmatprep.subr.bf16.mxu0 %v4313
  %4783 = vmatpush1.bf16.msra.mxu0 %v4312
  %4784 = vmatprep.subr.bf16.mxu0 %v4320
  %4785 = vmatpush1.bf16.msra.mxu0 %v4319
  %4786 = vmatprep.subr.bf16.mxu0 %v4327
  %4787 = vmatpush1.bf16.msra.mxu0 %v4326
  %4788 = vmatprep.subr.bf16.mxu0 %v4334
  %4789 = vmatpush1.bf16.msra.mxu0 %v4333
  %4790 = vmatprep.subr.bf16.mxu0 %v4341
  %4791 = vmatpush1.bf16.msra.mxu0 %v4340
  %4792 = vmatprep.subr.bf16.mxu0 %v4348
  %4793 = vmatpush1.bf16.msra.mxu0 %v4347
  %4794 = vmatprep.subr.bf16.mxu0 %v4355
  %4795 = vmatpush1.bf16.msra.mxu0 %v4354
  %4796 = vmatprep.subr.bf16.mxu0 0
  %4797 = vmatpush1.bf16.msra.mxu0 0
  %4798 = vmatprep.subr.bf16.mxu0 0
  %4799 = vmatpush1.bf16.msra.mxu0 0
  %4800 = vmatprep.subr.bf16.mxu0 0
  %4801 = vmatpush1.bf16.msra.mxu0 0
  %4802 = vmatprep.subr.bf16.mxu0 0
  %4803 = vmatpush1.bf16.msra.mxu0 0
  %4804 = vmatprep.mubr.bf16.mxu0 %v4558
  %4805 = vmatmul.mubr.bf16.gmra.mrb[0].mxu0 %v3046
  %v4806 = vpop.f32.mrb[0].mxu0
  %v4807 = vadd.f32 %v4634, %v4806
  %v4808 = vpop.f32.mrb[0].mxu0
  %v4809 = vadd.f32 %v4636, %v4808
  %v4810 = vpop.f32.mrb[0].mxu0
  %v4811 = vadd.f32 %v4638, %v4810
  %v4812 = vpop.f32.mrb[0].mxu0
  %v4813 = vadd.f32 %v4640, %v4812
  %4814 = vmatprep.mubr.bf16.mxu0 %v4561
  %4815 = vmatmul.mubr.bf16.gmra.mrb[0].mxu0 %v3050
  %v4816 = vpop.f32.mrb[0].mxu0
  %v4817 = vadd.f32 %v4644, %v4816
  %v4818 = vpop.f32.mrb[0].mxu0
  %v4819 = vadd.f32 %v4646, %v4818
  %v4820 = vpop.f32.mrb[0].mxu0
  %v4821 = vadd.f32 %v4648, %v4820
  %v4822 = vpop.f32.mrb[0].mxu0
  %v4823 = vadd.f32 %v4650, %v4822
  %4824 = vmatprep.mubr.bf16.mxu0 %v4564
  %4825 = vmatmul.mubr.bf16.gmra.mrb[0].mxu0 %v3054
  %v4826 = vpop.f32.mrb[0].mxu0
  %v4827 = vadd.f32 %v4654, %v4826
  %v4828 = vpop.f32.mrb[0].mxu0
  %v4829 = vadd.f32 %v4656, %v4828
  %v4830 = vpop.f32.mrb[0].mxu0
  %v4831 = vadd.f32 %v4658, %v4830
  %v4832 = vpop.f32.mrb[0].mxu0
  %v4833 = vadd.f32 %v4660, %v4832
  %4834 = vmatprep.mubr.bf16.mxu0 %v4567
  %4835 = vmatmul.mubr.bf16.gmra.mrb[0].mxu0 %v3058
  %v4836 = vpop.f32.mrb[0].mxu0
  %v4837 = vadd.f32 %v4664, %v4836
  %v4838 = vpop.f32.mrb[0].mxu0
  %v4839 = vadd.f32 %v4666, %v4838
  %v4840 = vpop.f32.mrb[0].mxu0
  %v4841 = vadd.f32 %v4668, %v4840
  %v4842 = vpop.f32.mrb[0].mxu0
  %v4843 = vadd.f32 %v4670, %v4842
  %4844 = vmatprep.mubr.bf16.mxu0 %v4570
  %4845 = vmatmul.mubr.bf16.gmra.mrb[0].mxu0 %v3062
  %v4846 = vpop.f32.mrb[0].mxu0
  %v4847 = vadd.f32 %v4674, %v4846
  %v4848 = vpop.f32.mrb[0].mxu0
  %v4849 = vadd.f32 %v4676, %v4848
  %v4850 = vpop.f32.mrb[0].mxu0
  %v4851 = vadd.f32 %v4678, %v4850
  %v4852 = vpop.f32.mrb[0].mxu0
  %v4853 = vadd.f32 %v4680, %v4852
  %4854 = vmatprep.mubr.bf16.mxu0 %v4573
  %4855 = vmatmul.mubr.bf16.gmra.mrb[0].mxu0 %v3066
  %v4856 = vpop.f32.mrb[0].mxu0
  %v4857 = vadd.f32 %v4684, %v4856
  %v4858 = vpop.f32.mrb[0].mxu0
  %v4859 = vadd.f32 %v4686, %v4858
  %v4860 = vpop.f32.mrb[0].mxu0
  %v4861 = vadd.f32 %v4688, %v4860
  %v4862 = vpop.f32.mrb[0].mxu0
  %v4863 = vadd.f32 %v4690, %v4862
  %4864 = vmatprep.mubr.bf16.mxu0 %v4576
  %4865 = vmatmul.mubr.bf16.gmra.mrb[0].mxu0 %v3070
  %v4866 = vpop.f32.mrb[0].mxu0
  %v4867 = vadd.f32 %v4694, %v4866
  %v4868 = vpop.f32.mrb[0].mxu0
  %v4869 = vadd.f32 %v4696, %v4868
  %v4870 = vpop.f32.mrb[0].mxu0
  %v4871 = vadd.f32 %v4698, %v4870
  %v4872 = vpop.f32.mrb[0].mxu0
  %v4873 = vadd.f32 %v4700, %v4872
  %4874 = vmatprep.mubr.bf16.mxu0 %v4579
  %4875 = vmatmul.mubr.bf16.gmra.mrb[0].mxu0 %v3074
  %v4876 = vpop.f32.mrb[0].mxu0
  %v4877 = vadd.f32 %v4704, %v4876
  %v4878 = vpop.f32.mrb[0].mxu0
  %v4879 = vadd.f32 %v4706, %v4878
  %v4880 = vpop.f32.mrb[0].mxu0
  %v4881 = vadd.f32 %v4708, %v4880
  %v4882 = vpop.f32.mrb[0].mxu0
  %v4883 = vadd.f32 %v4710, %v4882
  %4884 = vmatprep.mubr.bf16.mxu0 %v4582
  %4885 = vmatmul.mubr.bf16.gmra.mrb[0].mxu0 %v3078
  %v4886 = vpop.f32.mrb[0].mxu0
  %v4887 = vadd.f32 %v4714, %v4886
  %v4888 = vpop.f32.mrb[0].mxu0
  %v4889 = vadd.f32 %v4716, %v4888
  %v4890 = vpop.f32.mrb[0].mxu0
  %v4891 = vadd.f32 %v4718, %v4890
  %v4892 = vpop.f32.mrb[0].mxu0
  %v4893 = vadd.f32 %v4720, %v4892
  %4894 = vmatprep.mubr.bf16.mxu0 %v4585
  %4895 = vmatmul.mubr.bf16.gmra.mrb[0].mxu0 %v3082
  %v4896 = vpop.f32.mrb[0].mxu0
  %v4897 = vadd.f32 %v4724, %v4896
  %v4898 = vpop.f32.mrb[0].mxu0
  %v4899 = vadd.f32 %v4726, %v4898
  %v4900 = vpop.f32.mrb[0].mxu0
  %v4901 = vadd.f32 %v4728, %v4900
  %v4902 = vpop.f32.mrb[0].mxu0
  %v4903 = vadd.f32 %v4730, %v4902
  %4904 = vmatprep.mubr.bf16.mxu0 %v4588
  %4905 = vmatmul.mubr.bf16.gmra.mrb[0].mxu0 %v3086
  %v4906 = vpop.f32.mrb[0].mxu0
  %v4907 = vadd.f32 %v4734, %v4906
  %v4908 = vpop.f32.mrb[0].mxu0
  %v4909 = vadd.f32 %v4736, %v4908
  %v4910 = vpop.f32.mrb[0].mxu0
  %v4911 = vadd.f32 %v4738, %v4910
  %v4912 = vpop.f32.mrb[0].mxu0
  %v4913 = vadd.f32 %v4740, %v4912
  %4914 = vmatprep.mubr.bf16.mxu0 %v4591
  %4915 = vmatmul.mubr.bf16.gmra.mrb[0].mxu0 %v3090
  %v4916 = vpop.f32.mrb[0].mxu0
  %v4917 = vadd.f32 %v4744, %v4916
  %v4918 = vpop.f32.mrb[0].mxu0
  %v4919 = vadd.f32 %v4746, %v4918
  %v4920 = vpop.f32.mrb[0].mxu0
  %v4921 = vadd.f32 %v4748, %v4920
  %v4922 = vpop.f32.mrb[0].mxu0
  %v4923 = vadd.f32 %v4750, %v4922
  %4924 = vmatprep.mubr.bf16.mxu0 %v4594
  %4925 = vmatmul.mubr.bf16.gmra.mrb[0].mxu0 %v3094
  %v4926 = vpop.f32.mrb[0].mxu0
  %v4927 = vadd.f32 %v4754, %v4926
  %v4928 = vpop.f32.mrb[0].mxu0
  %v4929 = vadd.f32 %v4756, %v4928
  %v4930 = vpop.f32.mrb[0].mxu0
  %v4931 = vadd.f32 %v4758, %v4930
  %v4932 = vpop.f32.mrb[0].mxu0
  %v4933 = vadd.f32 %v4760, %v4932
  %4934 = vmatprep.mubr.bf16.mxu0 %v4597
  %4935 = vmatmul.mubr.bf16.gmra.mrb[0].mxu0 %v3098
  %v4936 = vpop.f32.mrb[0].mxu0
  %v4937 = vadd.f32 %v4764, %v4936
  %v4938 = vpop.f32.mrb[0].mxu0
  %v4939 = vadd.f32 %v4766, %v4938
  %v4940 = vpop.f32.mrb[0].mxu0
  %v4941 = vadd.f32 %v4768, %v4940
  %v4942 = vpop.f32.mrb[0].mxu0
  %v4943 = vadd.f32 %v4770, %v4942
  %4944 = vdwg.mxu0
  %4945 = vmatprep.subr.bf16.mxu0 %v4168
  %4946 = vmatpush1.bf16.msra.mxu0 %v4167
  %4947 = vmatprep.subr.bf16.mxu0 %v4175
  %4948 = vmatpush1.bf16.msra.mxu0 %v4174
  %4949 = vmatprep.subr.bf16.mxu0 %v4182
  %4950 = vmatpush1.bf16.msra.mxu0 %v4181
  %4951 = vmatprep.subr.bf16.mxu0 %v4189
  %4952 = vmatpush1.bf16.msra.mxu0 %v4188
  %4953 = vmatprep.subr.bf16.mxu0 %v4196
  %4954 = vmatpush1.bf16.msra.mxu0 %v4195
  %4955 = vmatprep.subr.bf16.mxu0 %v4203
  %4956 = vmatpush1.bf16.msra.mxu0 %v4202
  %4957 = vmatprep.subr.bf16.mxu0 %v4210
  %4958 = vmatpush1.bf16.msra.mxu0 %v4209
  %4959 = vmatprep.subr.bf16.mxu0 %v4217
  %4960 = vmatpush1.bf16.msra.mxu0 %v4216
  %4961 = vmatprep.subr.bf16.mxu0 %v4224
  %4962 = vmatpush1.bf16.msra.mxu0 %v4223
  %4963 = vmatprep.subr.bf16.mxu0 %v4231
  %4964 = vmatpush1.bf16.msra.mxu0 %v4230
  %4965 = vmatprep.subr.bf16.mxu0 %v4238
  %4966 = vmatpush1.bf16.msra.mxu0 %v4237
  %4967 = vmatprep.subr.bf16.mxu0 %v4245
  %4968 = vmatpush1.bf16.msra.mxu0 %v4244
  %4969 = vmatprep.subr.bf16.mxu0 %v4252
  %4970 = vmatpush1.bf16.msra.mxu0 %v4251
  %4971 = vmatprep.subr.bf16.mxu0 %v4259
  %4972 = vmatpush1.bf16.msra.mxu0 %v4258
  %4973 = vmatprep.subr.bf16.mxu0 %v4266
  %4974 = vmatpush1.bf16.msra.mxu0 %v4265
  %4975 = vmatprep.subr.bf16.mxu0 %v4273
  %4976 = vmatpush1.bf16.msra.mxu0 %v4272
  %4977 = vmatprep.mubr.bf16.mxu0 %v3045
  %4978 = vmatmul.mubr.bf16.gmra.mrb[0].mxu0 %v3044
  %v4979 = vpop.f32.mrb[0].mxu0
  %v4980 = vadd.f32 0.0, %v4979
  %v4981 = vpop.f32.mrb[0].mxu0
  %v4982 = vadd.f32 0.0, %v4981
  %v4983 = vpop.f32.mrb[0].mxu0
  %v4984 = vadd.f32 0.0, %v4983
  %v4985 = vpop.f32.mrb[0].mxu0
  %v4986 = vadd.f32 0.0, %v4985
  %4987 = vmatprep.mubr.bf16.mxu0 %v3049
  %4988 = vmatmul.mubr.bf16.gmra.mrb[0].mxu0 %v3048
  %v4989 = vpop.f32.mrb[0].mxu0
  %v4990 = vadd.f32 0.0, %v4989
  %v4991 = vpop.f32.mrb[0].mxu0
  %v4992 = vadd.f32 0.0, %v4991
  %v4993 = vpop.f32.mrb[0].mxu0
  %v4994 = vadd.f32 0.0, %v4993
  %v4995 = vpop.f32.mrb[0].mxu0
  %v4996 = vadd.f32 0.0, %v4995
  %4997 = vmatprep.mubr.bf16.mxu0 %v3053
  %4998 = vmatmul.mubr.bf16.gmra.mrb[0].mxu0 %v3052
  %v4999 = vpop.f32.mrb[0].mxu0
  %v5000 = vadd.f32 0.0, %v4999
  %v5001 = vpop.f32.mrb[0].mxu0
  %v5002 = vadd.f32 0.0, %v5001
  %v5003 = vpop.f32.mrb[0].mxu0
  %v5004 = vadd.f32 0.0, %v5003
  %v5005 = vpop.f32.mrb[0].mxu0
  %v5006 = vadd.f32 0.0, %v5005
  %5007 = vmatprep.mubr.bf16.mxu0 %v3057
  %5008 = vmatmul.mubr.bf16.gmra.mrb[0].mxu0 %v3056
  %v5009 = vpop.f32.mrb[0].mxu0
  %v5010 = vadd.f32 0.0, %v5009
  %v5011 = vpop.f32.mrb[0].mxu0
  %v5012 = vadd.f32 0.0, %v5011
  %v5013 = vpop.f32.mrb[0].mxu0
  %v5014 = vadd.f32 0.0, %v5013
  %v5015 = vpop.f32.mrb[0].mxu0
  %v5016 = vadd.f32 0.0, %v5015
  %5017 = vmatprep.mubr.bf16.mxu0 %v3061
  %5018 = vmatmul.mubr.bf16.gmra.mrb[0].mxu0 %v3060
  %v5019 = vpop.f32.mrb[0].mxu0
  %v5020 = vadd.f32 0.0, %v5019
  %v5021 = vpop.f32.mrb[0].mxu0
  %v5022 = vadd.f32 0.0, %v5021
  %v5023 = vpop.f32.mrb[0].mxu0
  %v5024 = vadd.f32 0.0, %v5023
  %v5025 = vpop.f32.mrb[0].mxu0
  %v5026 = vadd.f32 0.0, %v5025
  %5027 = vmatprep.mubr.bf16.mxu0 %v3065
  %5028 = vmatmul.mubr.bf16.gmra.mrb[0].mxu0 %v3064
  %v5029 = vpop.f32.mrb[0].mxu0
  %v5030 = vadd.f32 0.0, %v5029
  %v5031 = vpop.f32.mrb[0].mxu0
  %v5032 = vadd.f32 0.0, %v5031
  %v5033 = vpop.f32.mrb[0].mxu0
  %v5034 = vadd.f32 0.0, %v5033
  %v5035 = vpop.f32.mrb[0].mxu0
  %v5036 = vadd.f32 0.0, %v5035
  %5037 = vmatprep.mubr.bf16.mxu0 %v3069
  %5038 = vmatmul.mubr.bf16.gmra.mrb[0].mxu0 %v3068
  %v5039 = vpop.f32.mrb[0].mxu0
  %v5040 = vadd.f32 0.0, %v5039
  %v5041 = vpop.f32.mrb[0].mxu0
  %v5042 = vadd.f32 0.0, %v5041
  %v5043 = vpop.f32.mrb[0].mxu0
  %v5044 = vadd.f32 0.0, %v5043
  %v5045 = vpop.f32.mrb[0].mxu0
  %v5046 = vadd.f32 0.0, %v5045
  %5047 = vmatprep.mubr.bf16.mxu0 %v3073
  %5048 = vmatmul.mubr.bf16.gmra.mrb[0].mxu0 %v3072
  %v5049 = vpop.f32.mrb[0].mxu0
  %v5050 = vadd.f32 0.0, %v5049
  %v5051 = vpop.f32.mrb[0].mxu0
  %v5052 = vadd.f32 0.0, %v5051
  %v5053 = vpop.f32.mrb[0].mxu0
  %v5054 = vadd.f32 0.0, %v5053
  %v5055 = vpop.f32.mrb[0].mxu0
  %v5056 = vadd.f32 0.0, %v5055
  %5057 = vmatprep.mubr.bf16.mxu0 %v3077
  %5058 = vmatmul.mubr.bf16.gmra.mrb[0].mxu0 %v3076
  %v5059 = vpop.f32.mrb[0].mxu0
  %v5060 = vadd.f32 0.0, %v5059
  %v5061 = vpop.f32.mrb[0].mxu0
  %v5062 = vadd.f32 0.0, %v5061
  %v5063 = vpop.f32.mrb[0].mxu0
  %v5064 = vadd.f32 0.0, %v5063
  %v5065 = vpop.f32.mrb[0].mxu0
  %v5066 = vadd.f32 0.0, %v5065
  %5067 = vmatprep.mubr.bf16.mxu0 %v3081
  %5068 = vmatmul.mubr.bf16.gmra.mrb[0].mxu0 %v3080
  %v5069 = vpop.f32.mrb[0].mxu0
  %v5070 = vadd.f32 0.0, %v5069
  %v5071 = vpop.f32.mrb[0].mxu0
  %v5072 = vadd.f32 0.0, %v5071
  %v5073 = vpop.f32.mrb[0].mxu0
  %v5074 = vadd.f32 0.0, %v5073
  %v5075 = vpop.f32.mrb[0].mxu0
  %v5076 = vadd.f32 0.0, %v5075
  %5077 = vmatprep.mubr.bf16.mxu0 %v3085
  %5078 = vmatmul.mubr.bf16.gmra.mrb[0].mxu0 %v3084
  %v5079 = vpop.f32.mrb[0].mxu0
  %v5080 = vadd.f32 0.0, %v5079
  %v5081 = vpop.f32.mrb[0].mxu0
  %v5082 = vadd.f32 0.0, %v5081
  %v5083 = vpop.f32.mrb[0].mxu0
  %v5084 = vadd.f32 0.0, %v5083
  %v5085 = vpop.f32.mrb[0].mxu0
  %v5086 = vadd.f32 0.0, %v5085
  %5087 = vmatprep.mubr.bf16.mxu0 %v3089
  %5088 = vmatmul.mubr.bf16.gmra.mrb[0].mxu0 %v3088
  %v5089 = vpop.f32.mrb[0].mxu0
  %v5090 = vadd.f32 0.0, %v5089
  %v5091 = vpop.f32.mrb[0].mxu0
  %v5092 = vadd.f32 0.0, %v5091
  %v5093 = vpop.f32.mrb[0].mxu0
  %v5094 = vadd.f32 0.0, %v5093
  %v5095 = vpop.f32.mrb[0].mxu0
  %v5096 = vadd.f32 0.0, %v5095
  %5097 = vmatprep.mubr.bf16.mxu0 %v3093
  %5098 = vmatmul.mubr.bf16.gmra.mrb[0].mxu0 %v3092
  %v5099 = vpop.f32.mrb[0].mxu0
  %v5100 = vadd.f32 0.0, %v5099
  %v5101 = vpop.f32.mrb[0].mxu0
  %v5102 = vadd.f32 0.0, %v5101
  %v5103 = vpop.f32.mrb[0].mxu0
  %v5104 = vadd.f32 0.0, %v5103
  %v5105 = vpop.f32.mrb[0].mxu0
  %v5106 = vadd.f32 0.0, %v5105
  %5107 = vmatprep.mubr.bf16.mxu0 %v3097
  %5108 = vmatmul.mubr.bf16.gmra.mrb[0].mxu0 %v3096
  %v5109 = vpop.f32.mrb[0].mxu0
  %v5110 = vadd.f32 0.0, %v5109
  %v5111 = vpop.f32.mrb[0].mxu0
  %v5112 = vadd.f32 0.0, %v5111
  %v5113 = vpop.f32.mrb[0].mxu0
  %v5114 = vadd.f32 0.0, %v5113
  %v5115 = vpop.f32.mrb[0].mxu0
  %v5116 = vadd.f32 0.0, %v5115
  %5117 = vdwg.mxu0
  %5118 = vmatprep.subr.bf16.mxu0 %v4280
  %5119 = vmatpush1.bf16.msra.mxu0 %v4279
  %5120 = vmatprep.subr.bf16.mxu0 %v4287
  %5121 = vmatpush1.bf16.msra.mxu0 %v4286
  %5122 = vmatprep.subr.bf16.mxu0 %v4294
  %5123 = vmatpush1.bf16.msra.mxu0 %v4293
  %5124 = vmatprep.subr.bf16.mxu0 %v4301
  %5125 = vmatpush1.bf16.msra.mxu0 %v4300
  %5126 = vmatprep.subr.bf16.mxu0 %v4308
  %5127 = vmatpush1.bf16.msra.mxu0 %v4307
  %5128 = vmatprep.subr.bf16.mxu0 %v4315
  %5129 = vmatpush1.bf16.msra.mxu0 %v4314
  %5130 = vmatprep.subr.bf16.mxu0 %v4322
  %5131 = vmatpush1.bf16.msra.mxu0 %v4321
  %5132 = vmatprep.subr.bf16.mxu0 %v4329
  %5133 = vmatpush1.bf16.msra.mxu0 %v4328
  %5134 = vmatprep.subr.bf16.mxu0 %v4336
  %5135 = vmatpush1.bf16.msra.mxu0 %v4335
  %5136 = vmatprep.subr.bf16.mxu0 %v4343
  %5137 = vmatpush1.bf16.msra.mxu0 %v4342
  %5138 = vmatprep.subr.bf16.mxu0 %v4350
  %5139 = vmatpush1.bf16.msra.mxu0 %v4349
  %5140 = vmatprep.subr.bf16.mxu0 %v4357
  %5141 = vmatpush1.bf16.msra.mxu0 %v4356
  %5142 = vmatprep.subr.bf16.mxu0 0
  %5143 = vmatpush1.bf16.msra.mxu0 0
  %5144 = vmatprep.subr.bf16.mxu0 0
  %5145 = vmatpush1.bf16.msra.mxu0 0
  %5146 = vmatprep.subr.bf16.mxu0 0
  %5147 = vmatpush1.bf16.msra.mxu0 0
  %5148 = vmatprep.subr.bf16.mxu0 0
  %5149 = vmatpush1.bf16.msra.mxu0 0
  %5150 = vmatprep.mubr.bf16.mxu0 %v4558
  %5151 = vmatmul.mubr.bf16.gmra.mrb[0].mxu0 %v3046
  %v5152 = vpop.f32.mrb[0].mxu0
  %v5153 = vadd.f32 %v4980, %v5152
  %v5154 = vpop.f32.mrb[0].mxu0
  %v5155 = vadd.f32 %v4982, %v5154
  %v5156 = vpop.f32.mrb[0].mxu0
  %v5157 = vadd.f32 %v4984, %v5156
  %v5158 = vpop.f32.mrb[0].mxu0
  %v5159 = vadd.f32 %v4986, %v5158
  %5160 = vmatprep.mubr.bf16.mxu0 %v4561
  %5161 = vmatmul.mubr.bf16.gmra.mrb[0].mxu0 %v3050
  %v5162 = vpop.f32.mrb[0].mxu0
  %v5163 = vadd.f32 %v4990, %v5162
  %v5164 = vpop.f32.mrb[0].mxu0
  %v5165 = vadd.f32 %v4992, %v5164
  %v5166 = vpop.f32.mrb[0].mxu0
  %v5167 = vadd.f32 %v4994, %v5166
  %v5168 = vpop.f32.mrb[0].mxu0
  %v5169 = vadd.f32 %v4996, %v5168
  %5170 = vmatprep.mubr.bf16.mxu0 %v4564
  %5171 = vmatmul.mubr.bf16.gmra.mrb[0].mxu0 %v3054
  %v5172 = vpop.f32.mrb[0].mxu0
  %v5173 = vadd.f32 %v5000, %v5172
  %v5174 = vpop.f32.mrb[0].mxu0
  %v5175 = vadd.f32 %v5002, %v5174
  %v5176 = vpop.f32.mrb[0].mxu0
  %v5177 = vadd.f32 %v5004, %v5176
  %v5178 = vpop.f32.mrb[0].mxu0
  %v5179 = vadd.f32 %v5006, %v5178
  %5180 = vmatprep.mubr.bf16.mxu0 %v4567
  %5181 = vmatmul.mubr.bf16.gmra.mrb[0].mxu0 %v3058
  %v5182 = vpop.f32.mrb[0].mxu0
  %v5183 = vadd.f32 %v5010, %v5182
  %v5184 = vpop.f32.mrb[0].mxu0
  %v5185 = vadd.f32 %v5012, %v5184
  %v5186 = vpop.f32.mrb[0].mxu0
  %v5187 = vadd.f32 %v5014, %v5186
  %v5188 = vpop.f32.mrb[0].mxu0
  %v5189 = vadd.f32 %v5016, %v5188
  %5190 = vmatprep.mubr.bf16.mxu0 %v4570
  %5191 = vmatmul.mubr.bf16.gmra.mrb[0].mxu0 %v3062
  %v5192 = vpop.f32.mrb[0].mxu0
  %v5193 = vadd.f32 %v5020, %v5192
  %v5194 = vpop.f32.mrb[0].mxu0
  %v5195 = vadd.f32 %v5022, %v5194
  %v5196 = vpop.f32.mrb[0].mxu0
  %v5197 = vadd.f32 %v5024, %v5196
  %v5198 = vpop.f32.mrb[0].mxu0
  %v5199 = vadd.f32 %v5026, %v5198
  %5200 = vmatprep.mubr.bf16.mxu0 %v4573
  %5201 = vmatmul.mubr.bf16.gmra.mrb[0].mxu0 %v3066
  %v5202 = vpop.f32.mrb[0].mxu0
  %v5203 = vadd.f32 %v5030, %v5202
  %v5204 = vpop.f32.mrb[0].mxu0
  %v5205 = vadd.f32 %v5032, %v5204
  %v5206 = vpop.f32.mrb[0].mxu0
  %v5207 = vadd.f32 %v5034, %v5206
  %v5208 = vpop.f32.mrb[0].mxu0
  %v5209 = vadd.f32 %v5036, %v5208
  %5210 = vmatprep.mubr.bf16.mxu0 %v4576
  %5211 = vmatmul.mubr.bf16.gmra.mrb[0].mxu0 %v3070
  %v5212 = vpop.f32.mrb[0].mxu0
  %v5213 = vadd.f32 %v5040, %v5212
  %v5214 = vpop.f32.mrb[0].mxu0
  %v5215 = vadd.f32 %v5042, %v5214
  %v5216 = vpop.f32.mrb[0].mxu0
  %v5217 = vadd.f32 %v5044, %v5216
  %v5218 = vpop.f32.mrb[0].mxu0
  %v5219 = vadd.f32 %v5046, %v5218
  %5220 = vmatprep.mubr.bf16.mxu0 %v4579
  %5221 = vmatmul.mubr.bf16.gmra.mrb[0].mxu0 %v3074
  %v5222 = vpop.f32.mrb[0].mxu0
  %v5223 = vadd.f32 %v5050, %v5222
  %v5224 = vpop.f32.mrb[0].mxu0
  %v5225 = vadd.f32 %v5052, %v5224
  %v5226 = vpop.f32.mrb[0].mxu0
  %v5227 = vadd.f32 %v5054, %v5226
  %v5228 = vpop.f32.mrb[0].mxu0
  %v5229 = vadd.f32 %v5056, %v5228
  %5230 = vmatprep.mubr.bf16.mxu0 %v4582
  %5231 = vmatmul.mubr.bf16.gmra.mrb[0].mxu0 %v3078
  %v5232 = vpop.f32.mrb[0].mxu0
  %v5233 = vadd.f32 %v5060, %v5232
  %v5234 = vpop.f32.mrb[0].mxu0
  %v5235 = vadd.f32 %v5062, %v5234
  %v5236 = vpop.f32.mrb[0].mxu0
  %v5237 = vadd.f32 %v5064, %v5236
  %v5238 = vpop.f32.mrb[0].mxu0
  %v5239 = vadd.f32 %v5066, %v5238
  %5240 = vmatprep.mubr.bf16.mxu0 %v4585
  %5241 = vmatmul.mubr.bf16.gmra.mrb[0].mxu0 %v3082
  %v5242 = vpop.f32.mrb[0].mxu0
  %v5243 = vadd.f32 %v5070, %v5242
  %v5244 = vpop.f32.mrb[0].mxu0
  %v5245 = vadd.f32 %v5072, %v5244
  %v5246 = vpop.f32.mrb[0].mxu0
  %v5247 = vadd.f32 %v5074, %v5246
  %v5248 = vpop.f32.mrb[0].mxu0
  %v5249 = vadd.f32 %v5076, %v5248
  %5250 = vmatprep.mubr.bf16.mxu0 %v4588
  %5251 = vmatmul.mubr.bf16.gmra.mrb[0].mxu0 %v3086
  %v5252 = vpop.f32.mrb[0].mxu0
  %v5253 = vadd.f32 %v5080, %v5252
  %v5254 = vpop.f32.mrb[0].mxu0
  %v5255 = vadd.f32 %v5082, %v5254
  %v5256 = vpop.f32.mrb[0].mxu0
  %v5257 = vadd.f32 %v5084, %v5256
  %v5258 = vpop.f32.mrb[0].mxu0
  %v5259 = vadd.f32 %v5086, %v5258
  %5260 = vmatprep.mubr.bf16.mxu0 %v4591
  %5261 = vmatmul.mubr.bf16.gmra.mrb[0].mxu0 %v3090
  %v5262 = vpop.f32.mrb[0].mxu0
  %v5263 = vadd.f32 %v5090, %v5262
  %v5264 = vpop.f32.mrb[0].mxu0
  %v5265 = vadd.f32 %v5092, %v5264
  %v5266 = vpop.f32.mrb[0].mxu0
  %v5267 = vadd.f32 %v5094, %v5266
  %v5268 = vpop.f32.mrb[0].mxu0
  %v5269 = vadd.f32 %v5096, %v5268
  %5270 = vmatprep.mubr.bf16.mxu0 %v4594
  %5271 = vmatmul.mubr.bf16.gmra.mrb[0].mxu0 %v3094
  %v5272 = vpop.f32.mrb[0].mxu0
  %v5273 = vadd.f32 %v5100, %v5272
  %v5274 = vpop.f32.mrb[0].mxu0
  %v5275 = vadd.f32 %v5102, %v5274
  %v5276 = vpop.f32.mrb[0].mxu0
  %v5277 = vadd.f32 %v5104, %v5276
  %v5278 = vpop.f32.mrb[0].mxu0
  %v5279 = vadd.f32 %v5106, %v5278
  %5280 = vmatprep.mubr.bf16.mxu0 %v4597
  %5281 = vmatmul.mubr.bf16.gmra.mrb[0].mxu0 %v3098
  %v5282 = vpop.f32.mrb[0].mxu0
  %v5283 = vadd.f32 %v5110, %v5282
  %v5284 = vpop.f32.mrb[0].mxu0
  %v5285 = vadd.f32 %v5112, %v5284
  %v5286 = vpop.f32.mrb[0].mxu0
  %v5287 = vadd.f32 %v5114, %v5286
  %v5288 = vpop.f32.mrb[0].mxu0
  %v5289 = vadd.f32 %v5116, %v5288
  %5290 = vdwg.mxu0
  %5291 = vmatprep.subr.bf16.mxu0 %v4170
  %5292 = vmatpush1.bf16.msra.mxu0 %v4169
  %5293 = vmatprep.subr.bf16.mxu0 %v4177
  %5294 = vmatpush1.bf16.msra.mxu0 %v4176
  %5295 = vmatprep.subr.bf16.mxu0 %v4184
  %5296 = vmatpush1.bf16.msra.mxu0 %v4183
  %5297 = vmatprep.subr.bf16.mxu0 %v4191
  %5298 = vmatpush1.bf16.msra.mxu0 %v4190
  %5299 = vmatprep.subr.bf16.mxu0 %v4198
  %5300 = vmatpush1.bf16.msra.mxu0 %v4197
  %5301 = vmatprep.subr.bf16.mxu0 %v4205
  %5302 = vmatpush1.bf16.msra.mxu0 %v4204
  %5303 = vmatprep.subr.bf16.mxu0 %v4212
  %5304 = vmatpush1.bf16.msra.mxu0 %v4211
  %5305 = vmatprep.subr.bf16.mxu0 %v4219
  %5306 = vmatpush1.bf16.msra.mxu0 %v4218
  %5307 = vmatprep.subr.bf16.mxu0 %v4226
  %5308 = vmatpush1.bf16.msra.mxu0 %v4225
  %5309 = vmatprep.subr.bf16.mxu0 %v4233
  %5310 = vmatpush1.bf16.msra.mxu0 %v4232
  %5311 = vmatprep.subr.bf16.mxu0 %v4240
  %5312 = vmatpush1.bf16.msra.mxu0 %v4239
  %5313 = vmatprep.subr.bf16.mxu0 %v4247
  %5314 = vmatpush1.bf16.msra.mxu0 %v4246
  %5315 = vmatprep.subr.bf16.mxu0 %v4254
  %5316 = vmatpush1.bf16.msra.mxu0 %v4253
  %5317 = vmatprep.subr.bf16.mxu0 %v4261
  %5318 = vmatpush1.bf16.msra.mxu0 %v4260
  %5319 = vmatprep.subr.bf16.mxu0 %v4268
  %5320 = vmatpush1.bf16.msra.mxu0 %v4267
  %5321 = vmatprep.subr.bf16.mxu0 %v4275
  %5322 = vmatpush1.bf16.msra.mxu0 %v4274
  %5323 = vmatprep.mubr.bf16.mxu0 %v3045
  %5324 = vmatmul.mubr.bf16.gmra.mrb[0].mxu0 %v3044
  %v5325 = vpop.f32.mrb[0].mxu0
  %v5326 = vadd.f32 0.0, %v5325
  %v5327 = vpop.f32.mrb[0].mxu0
  %v5328 = vadd.f32 0.0, %v5327
  %v5329 = vpop.f32.mrb[0].mxu0
  %v5330 = vadd.f32 0.0, %v5329
  %v5331 = vpop.f32.mrb[0].mxu0
  %v5332 = vadd.f32 0.0, %v5331
  %5333 = vmatprep.mubr.bf16.mxu0 %v3049
  %5334 = vmatmul.mubr.bf16.gmra.mrb[0].mxu0 %v3048
  %v5335 = vpop.f32.mrb[0].mxu0
  %v5336 = vadd.f32 0.0, %v5335
  %v5337 = vpop.f32.mrb[0].mxu0
  %v5338 = vadd.f32 0.0, %v5337
  %v5339 = vpop.f32.mrb[0].mxu0
  %v5340 = vadd.f32 0.0, %v5339
  %v5341 = vpop.f32.mrb[0].mxu0
  %v5342 = vadd.f32 0.0, %v5341
  %5343 = vmatprep.mubr.bf16.mxu0 %v3053
  %5344 = vmatmul.mubr.bf16.gmra.mrb[0].mxu0 %v3052
  %v5345 = vpop.f32.mrb[0].mxu0
  %v5346 = vadd.f32 0.0, %v5345
  %v5347 = vpop.f32.mrb[0].mxu0
  %v5348 = vadd.f32 0.0, %v5347
  %v5349 = vpop.f32.mrb[0].mxu0
  %v5350 = vadd.f32 0.0, %v5349
  %v5351 = vpop.f32.mrb[0].mxu0
  %v5352 = vadd.f32 0.0, %v5351
  %5353 = vmatprep.mubr.bf16.mxu0 %v3057
  %5354 = vmatmul.mubr.bf16.gmra.mrb[0].mxu0 %v3056
  %v5355 = vpop.f32.mrb[0].mxu0
  %v5356 = vadd.f32 0.0, %v5355
  %v5357 = vpop.f32.mrb[0].mxu0
  %v5358 = vadd.f32 0.0, %v5357
  %v5359 = vpop.f32.mrb[0].mxu0
  %v5360 = vadd.f32 0.0, %v5359
  %v5361 = vpop.f32.mrb[0].mxu0
  %v5362 = vadd.f32 0.0, %v5361
  %5363 = vmatprep.mubr.bf16.mxu0 %v3061
  %5364 = vmatmul.mubr.bf16.gmra.mrb[0].mxu0 %v3060
  %v5365 = vpop.f32.mrb[0].mxu0
  %v5366 = vadd.f32 0.0, %v5365
  %v5367 = vpop.f32.mrb[0].mxu0
  %v5368 = vadd.f32 0.0, %v5367
  %v5369 = vpop.f32.mrb[0].mxu0
  %v5370 = vadd.f32 0.0, %v5369
  %v5371 = vpop.f32.mrb[0].mxu0
  %v5372 = vadd.f32 0.0, %v5371
  %5373 = vmatprep.mubr.bf16.mxu0 %v3065
  %5374 = vmatmul.mubr.bf16.gmra.mrb[0].mxu0 %v3064
  %v5375 = vpop.f32.mrb[0].mxu0
  %v5376 = vadd.f32 0.0, %v5375
  %v5377 = vpop.f32.mrb[0].mxu0
  %v5378 = vadd.f32 0.0, %v5377
  %v5379 = vpop.f32.mrb[0].mxu0
  %v5380 = vadd.f32 0.0, %v5379
  %v5381 = vpop.f32.mrb[0].mxu0
  %v5382 = vadd.f32 0.0, %v5381
  %5383 = vmatprep.mubr.bf16.mxu0 %v3069
  %5384 = vmatmul.mubr.bf16.gmra.mrb[0].mxu0 %v3068
  %v5385 = vpop.f32.mrb[0].mxu0
  %v5386 = vadd.f32 0.0, %v5385
  %v5387 = vpop.f32.mrb[0].mxu0
  %v5388 = vadd.f32 0.0, %v5387
  %v5389 = vpop.f32.mrb[0].mxu0
  %v5390 = vadd.f32 0.0, %v5389
  %v5391 = vpop.f32.mrb[0].mxu0
  %v5392 = vadd.f32 0.0, %v5391
  %5393 = vmatprep.mubr.bf16.mxu0 %v3073
  %5394 = vmatmul.mubr.bf16.gmra.mrb[0].mxu0 %v3072
  %v5395 = vpop.f32.mrb[0].mxu0
  %v5396 = vadd.f32 0.0, %v5395
  %v5397 = vpop.f32.mrb[0].mxu0
  %v5398 = vadd.f32 0.0, %v5397
  %v5399 = vpop.f32.mrb[0].mxu0
  %v5400 = vadd.f32 0.0, %v5399
  %v5401 = vpop.f32.mrb[0].mxu0
  %v5402 = vadd.f32 0.0, %v5401
  %5403 = vmatprep.mubr.bf16.mxu0 %v3077
  %5404 = vmatmul.mubr.bf16.gmra.mrb[0].mxu0 %v3076
  %v5405 = vpop.f32.mrb[0].mxu0
  %v5406 = vadd.f32 0.0, %v5405
  %v5407 = vpop.f32.mrb[0].mxu0
  %v5408 = vadd.f32 0.0, %v5407
  %v5409 = vpop.f32.mrb[0].mxu0
  %v5410 = vadd.f32 0.0, %v5409
  %v5411 = vpop.f32.mrb[0].mxu0
  %v5412 = vadd.f32 0.0, %v5411
  %5413 = vmatprep.mubr.bf16.mxu0 %v3081
  %5414 = vmatmul.mubr.bf16.gmra.mrb[0].mxu0 %v3080
  %v5415 = vpop.f32.mrb[0].mxu0
  %v5416 = vadd.f32 0.0, %v5415
  %v5417 = vpop.f32.mrb[0].mxu0
  %v5418 = vadd.f32 0.0, %v5417
  %v5419 = vpop.f32.mrb[0].mxu0
  %v5420 = vadd.f32 0.0, %v5419
  %v5421 = vpop.f32.mrb[0].mxu0
  %v5422 = vadd.f32 0.0, %v5421
  %5423 = vmatprep.mubr.bf16.mxu0 %v3085
  %5424 = vmatmul.mubr.bf16.gmra.mrb[0].mxu0 %v3084
  %v5425 = vpop.f32.mrb[0].mxu0
  %v5426 = vadd.f32 0.0, %v5425
  %v5427 = vpop.f32.mrb[0].mxu0
  %v5428 = vadd.f32 0.0, %v5427
  %v5429 = vpop.f32.mrb[0].mxu0
  %v5430 = vadd.f32 0.0, %v5429
  %v5431 = vpop.f32.mrb[0].mxu0
  %v5432 = vadd.f32 0.0, %v5431
  %5433 = vmatprep.mubr.bf16.mxu0 %v3089
  %5434 = vmatmul.mubr.bf16.gmra.mrb[0].mxu0 %v3088
  %v5435 = vpop.f32.mrb[0].mxu0
  %v5436 = vadd.f32 0.0, %v5435
  %v5437 = vpop.f32.mrb[0].mxu0
  %v5438 = vadd.f32 0.0, %v5437
  %v5439 = vpop.f32.mrb[0].mxu0
  %v5440 = vadd.f32 0.0, %v5439
  %v5441 = vpop.f32.mrb[0].mxu0
  %v5442 = vadd.f32 0.0, %v5441
  %5443 = vmatprep.mubr.bf16.mxu0 %v3093
  %5444 = vmatmul.mubr.bf16.gmra.mrb[0].mxu0 %v3092
  %v5445 = vpop.f32.mrb[0].mxu0
  %v5446 = vadd.f32 0.0, %v5445
  %v5447 = vpop.f32.mrb[0].mxu0
  %v5448 = vadd.f32 0.0, %v5447
  %v5449 = vpop.f32.mrb[0].mxu0
  %v5450 = vadd.f32 0.0, %v5449
  %v5451 = vpop.f32.mrb[0].mxu0
  %v5452 = vadd.f32 0.0, %v5451
  %5453 = vmatprep.mubr.bf16.mxu0 %v3097
  %5454 = vmatmul.mubr.bf16.gmra.mrb[0].mxu0 %v3096
  %v5455 = vpop.f32.mrb[0].mxu0
  %v5456 = vadd.f32 0.0, %v5455
  %v5457 = vpop.f32.mrb[0].mxu0
  %v5458 = vadd.f32 0.0, %v5457
  %v5459 = vpop.f32.mrb[0].mxu0
  %v5460 = vadd.f32 0.0, %v5459
  %v5461 = vpop.f32.mrb[0].mxu0
  %v5462 = vadd.f32 0.0, %v5461
  %5463 = vdwg.mxu0
  %5464 = vmatprep.subr.bf16.mxu0 %v4282
  %5465 = vmatpush1.bf16.msra.mxu0 %v4281
  %5466 = vmatprep.subr.bf16.mxu0 %v4289
  %5467 = vmatpush1.bf16.msra.mxu0 %v4288
  %5468 = vmatprep.subr.bf16.mxu0 %v4296
  %5469 = vmatpush1.bf16.msra.mxu0 %v4295
  %5470 = vmatprep.subr.bf16.mxu0 %v4303
  %5471 = vmatpush1.bf16.msra.mxu0 %v4302
  %5472 = vmatprep.subr.bf16.mxu0 %v4310
  %5473 = vmatpush1.bf16.msra.mxu0 %v4309
  %5474 = vmatprep.subr.bf16.mxu0 %v4317
  %5475 = vmatpush1.bf16.msra.mxu0 %v4316
  %5476 = vmatprep.subr.bf16.mxu0 %v4324
  %5477 = vmatpush1.bf16.msra.mxu0 %v4323
  %5478 = vmatprep.subr.bf16.mxu0 %v4331
  %5479 = vmatpush1.bf16.msra.mxu0 %v4330
  %5480 = vmatprep.subr.bf16.mxu0 %v4338
  %5481 = vmatpush1.bf16.msra.mxu0 %v4337
  %5482 = vmatprep.subr.bf16.mxu0 %v4345
  %5483 = vmatpush1.bf16.msra.mxu0 %v4344
  %5484 = vmatprep.subr.bf16.mxu0 %v4352
  %5485 = vmatpush1.bf16.msra.mxu0 %v4351
  %5486 = vmatprep.subr.bf16.mxu0 %v4359
  %5487 = vmatpush1.bf16.msra.mxu0 %v4358
  %5488 = vmatprep.subr.bf16.mxu0 0
  %5489 = vmatpush1.bf16.msra.mxu0 0
  %5490 = vmatprep.subr.bf16.mxu0 0
  %5491 = vmatpush1.bf16.msra.mxu0 0
  %5492 = vmatprep.subr.bf16.mxu0 0
  %5493 = vmatpush1.bf16.msra.mxu0 0
  %5494 = vmatprep.subr.bf16.mxu0 0
  %5495 = vmatpush1.bf16.msra.mxu0 0
  %5496 = vmatprep.mubr.bf16.mxu0 %v4558
  %5497 = vmatmul.mubr.bf16.gmra.mrb[0].mxu0 %v3046
  %v5498 = vpop.f32.mrb[0].mxu0
  %v5499 = vadd.f32 %v5326, %v5498
  %v5500 = vpop.f32.mrb[0].mxu0
  %v5501 = vadd.f32 %v5328, %v5500
  %v5502 = vpop.f32.mrb[0].mxu0
  %v5503 = vadd.f32 %v5330, %v5502
  %v5504 = vpop.f32.mrb[0].mxu0
  %v5505 = vadd.f32 %v5332, %v5504
  %5506 = vmatprep.mubr.bf16.mxu0 %v4561
  %5507 = vmatmul.mubr.bf16.gmra.mrb[0].mxu0 %v3050
  %v5508 = vpop.f32.mrb[0].mxu0
  %v5509 = vadd.f32 %v5336, %v5508
  %v5510 = vpop.f32.mrb[0].mxu0
  %v5511 = vadd.f32 %v5338, %v5510
  %v5512 = vpop.f32.mrb[0].mxu0
  %v5513 = vadd.f32 %v5340, %v5512
  %v5514 = vpop.f32.mrb[0].mxu0
  %v5515 = vadd.f32 %v5342, %v5514
  %5516 = vmatprep.mubr.bf16.mxu0 %v4564
  %5517 = vmatmul.mubr.bf16.gmra.mrb[0].mxu0 %v3054
  %v5518 = vpop.f32.mrb[0].mxu0
  %v5519 = vadd.f32 %v5346, %v5518
  %v5520 = vpop.f32.mrb[0].mxu0
  %v5521 = vadd.f32 %v5348, %v5520
  %v5522 = vpop.f32.mrb[0].mxu0
  %v5523 = vadd.f32 %v5350, %v5522
  %v5524 = vpop.f32.mrb[0].mxu0
  %v5525 = vadd.f32 %v5352, %v5524
  %5526 = vmatprep.mubr.bf16.mxu0 %v4567
  %5527 = vmatmul.mubr.bf16.gmra.mrb[0].mxu0 %v3058
  %v5528 = vpop.f32.mrb[0].mxu0
  %v5529 = vadd.f32 %v5356, %v5528
  %v5530 = vpop.f32.mrb[0].mxu0
  %v5531 = vadd.f32 %v5358, %v5530
  %v5532 = vpop.f32.mrb[0].mxu0
  %v5533 = vadd.f32 %v5360, %v5532
  %v5534 = vpop.f32.mrb[0].mxu0
  %v5535 = vadd.f32 %v5362, %v5534
  %5536 = vmatprep.mubr.bf16.mxu0 %v4570
  %5537 = vmatmul.mubr.bf16.gmra.mrb[0].mxu0 %v3062
  %v5538 = vpop.f32.mrb[0].mxu0
  %v5539 = vadd.f32 %v5366, %v5538
  %v5540 = vpop.f32.mrb[0].mxu0
  %v5541 = vadd.f32 %v5368, %v5540
  %v5542 = vpop.f32.mrb[0].mxu0
  %v5543 = vadd.f32 %v5370, %v5542
  %v5544 = vpop.f32.mrb[0].mxu0
  %v5545 = vadd.f32 %v5372, %v5544
  %5546 = vmatprep.mubr.bf16.mxu0 %v4573
  %5547 = vmatmul.mubr.bf16.gmra.mrb[0].mxu0 %v3066
  %v5548 = vpop.f32.mrb[0].mxu0
  %v5549 = vadd.f32 %v5376, %v5548
  %v5550 = vpop.f32.mrb[0].mxu0
  %v5551 = vadd.f32 %v5378, %v5550
  %v5552 = vpop.f32.mrb[0].mxu0
  %v5553 = vadd.f32 %v5380, %v5552
  %v5554 = vpop.f32.mrb[0].mxu0
  %v5555 = vadd.f32 %v5382, %v5554
  %5556 = vmatprep.mubr.bf16.mxu0 %v4576
  %5557 = vmatmul.mubr.bf16.gmra.mrb[0].mxu0 %v3070
  %v5558 = vpop.f32.mrb[0].mxu0
  %v5559 = vadd.f32 %v5386, %v5558
  %v5560 = vpop.f32.mrb[0].mxu0
  %v5561 = vadd.f32 %v5388, %v5560
  %v5562 = vpop.f32.mrb[0].mxu0
  %v5563 = vadd.f32 %v5390, %v5562
  %v5564 = vpop.f32.mrb[0].mxu0
  %v5565 = vadd.f32 %v5392, %v5564
  %5566 = vmatprep.mubr.bf16.mxu0 %v4579
  %5567 = vmatmul.mubr.bf16.gmra.mrb[0].mxu0 %v3074
  %v5568 = vpop.f32.mrb[0].mxu0
  %v5569 = vadd.f32 %v5396, %v5568
  %v5570 = vpop.f32.mrb[0].mxu0
  %v5571 = vadd.f32 %v5398, %v5570
  %v5572 = vpop.f32.mrb[0].mxu0
  %v5573 = vadd.f32 %v5400, %v5572
  %v5574 = vpop.f32.mrb[0].mxu0
  %v5575 = vadd.f32 %v5402, %v5574
  %5576 = vmatprep.mubr.bf16.mxu0 %v4582
  %5577 = vmatmul.mubr.bf16.gmra.mrb[0].mxu0 %v3078
  %v5578 = vpop.f32.mrb[0].mxu0
  %v5579 = vadd.f32 %v5406, %v5578
  %v5580 = vpop.f32.mrb[0].mxu0
  %v5581 = vadd.f32 %v5408, %v5580
  %v5582 = vpop.f32.mrb[0].mxu0
  %v5583 = vadd.f32 %v5410, %v5582
  %v5584 = vpop.f32.mrb[0].mxu0
  %v5585 = vadd.f32 %v5412, %v5584
  %5586 = vmatprep.mubr.bf16.mxu0 %v4585
  %5587 = vmatmul.mubr.bf16.gmra.mrb[0].mxu0 %v3082
  %v5588 = vpop.f32.mrb[0].mxu0
  %v5589 = vadd.f32 %v5416, %v5588
  %v5590 = vpop.f32.mrb[0].mxu0
  %v5591 = vadd.f32 %v5418, %v5590
  %v5592 = vpop.f32.mrb[0].mxu0
  %v5593 = vadd.f32 %v5420, %v5592
  %v5594 = vpop.f32.mrb[0].mxu0
  %v5595 = vadd.f32 %v5422, %v5594
  %5596 = vmatprep.mubr.bf16.mxu0 %v4588
  %5597 = vmatmul.mubr.bf16.gmra.mrb[0].mxu0 %v3086
  %v5598 = vpop.f32.mrb[0].mxu0
  %v5599 = vadd.f32 %v5426, %v5598
  %v5600 = vpop.f32.mrb[0].mxu0
  %v5601 = vadd.f32 %v5428, %v5600
  %v5602 = vpop.f32.mrb[0].mxu0
  %v5603 = vadd.f32 %v5430, %v5602
  %v5604 = vpop.f32.mrb[0].mxu0
  %v5605 = vadd.f32 %v5432, %v5604
  %5606 = vmatprep.mubr.bf16.mxu0 %v4591
  %5607 = vmatmul.mubr.bf16.gmra.mrb[0].mxu0 %v3090
  %v5608 = vpop.f32.mrb[0].mxu0
  %v5609 = vadd.f32 %v5436, %v5608
  %v5610 = vpop.f32.mrb[0].mxu0
  %v5611 = vadd.f32 %v5438, %v5610
  %v5612 = vpop.f32.mrb[0].mxu0
  %v5613 = vadd.f32 %v5440, %v5612
  %v5614 = vpop.f32.mrb[0].mxu0
  %v5615 = vadd.f32 %v5442, %v5614
  %5616 = vmatprep.mubr.bf16.mxu0 %v4594
  %5617 = vmatmul.mubr.bf16.gmra.mrb[0].mxu0 %v3094
  %v5618 = vpop.f32.mrb[0].mxu0
  %v5619 = vadd.f32 %v5446, %v5618
  %v5620 = vpop.f32.mrb[0].mxu0
  %v5621 = vadd.f32 %v5448, %v5620
  %v5622 = vpop.f32.mrb[0].mxu0
  %v5623 = vadd.f32 %v5450, %v5622
  %v5624 = vpop.f32.mrb[0].mxu0
  %v5625 = vadd.f32 %v5452, %v5624
  %5626 = vmatprep.mubr.bf16.mxu0 %v4597
  %5627 = vmatmul.mubr.bf16.gmra.mrb[0].mxu0 %v3098
  %v5628 = vpop.f32.mrb[0].mxu0
  %v5629 = vadd.f32 %v5456, %v5628
  %v5630 = vpop.f32.mrb[0].mxu0
  %v5631 = vadd.f32 %v5458, %v5630
  %v5632 = vpop.f32.mrb[0].mxu0
  %v5633 = vadd.f32 %v5460, %v5632
  %v5634 = vpop.f32.mrb[0].mxu0
  %v5635 = vadd.f32 %v5462, %v5634
  %5636 = vdwg.mxu0
  %5637 = vmatprep.subr.bf16.mxu0 0
  %5638 = vmatpush1.bf16.msra.mxu0 %v4171
  %5639 = vmatprep.subr.bf16.mxu0 0
  %5640 = vmatpush1.bf16.msra.mxu0 %v4178
  %5641 = vmatprep.subr.bf16.mxu0 0
  %5642 = vmatpush1.bf16.msra.mxu0 %v4185
  %5643 = vmatprep.subr.bf16.mxu0 0
  %5644 = vmatpush1.bf16.msra.mxu0 %v4192
  %5645 = vmatprep.subr.bf16.mxu0 0
  %5646 = vmatpush1.bf16.msra.mxu0 %v4199
  %5647 = vmatprep.subr.bf16.mxu0 0
  %5648 = vmatpush1.bf16.msra.mxu0 %v4206
  %5649 = vmatprep.subr.bf16.mxu0 0
  %5650 = vmatpush1.bf16.msra.mxu0 %v4213
  %5651 = vmatprep.subr.bf16.mxu0 0
  %5652 = vmatpush1.bf16.msra.mxu0 %v4220
  %5653 = vmatprep.subr.bf16.mxu0 0
  %5654 = vmatpush1.bf16.msra.mxu0 %v4227
  %5655 = vmatprep.subr.bf16.mxu0 0
  %5656 = vmatpush1.bf16.msra.mxu0 %v4234
  %5657 = vmatprep.subr.bf16.mxu0 0
  %5658 = vmatpush1.bf16.msra.mxu0 %v4241
  %5659 = vmatprep.subr.bf16.mxu0 0
  %5660 = vmatpush1.bf16.msra.mxu0 %v4248
  %5661 = vmatprep.subr.bf16.mxu0 0
  %5662 = vmatpush1.bf16.msra.mxu0 %v4255
  %5663 = vmatprep.subr.bf16.mxu0 0
  %5664 = vmatpush1.bf16.msra.mxu0 %v4262
  %5665 = vmatprep.subr.bf16.mxu0 0
  %5666 = vmatpush1.bf16.msra.mxu0 %v4269
  %5667 = vmatprep.subr.bf16.mxu0 0
  %5668 = vmatpush1.bf16.msra.mxu0 %v4276
  %5669 = vmatprep.mubr.bf16.mxu0 %v3045
  %5670 = vmatmul.mubr.bf16.gmra.mrb[0].mxu0 %v3044
  %v5671 = vpop.f32.mrb[0].mxu0
  %v5672 = vadd.f32 0.0, %v5671
  %v5673 = vpop.f32.mrb[0].mxu0
  %v5674 = vpop.f32.mrb[0].mxu0
  %v5675 = vadd.f32 0.0, %v5674
  %v5676 = vpop.f32.mrb[0].mxu0
  %5677 = vmatprep.mubr.bf16.mxu0 %v3049
  %5678 = vmatmul.mubr.bf16.gmra.mrb[0].mxu0 %v3048
  %v5679 = vpop.f32.mrb[0].mxu0
  %v5680 = vadd.f32 0.0, %v5679
  %v5681 = vpop.f32.mrb[0].mxu0
  %v5682 = vpop.f32.mrb[0].mxu0
  %v5683 = vadd.f32 0.0, %v5682
  %v5684 = vpop.f32.mrb[0].mxu0
  %5685 = vmatprep.mubr.bf16.mxu0 %v3053
  %5686 = vmatmul.mubr.bf16.gmra.mrb[0].mxu0 %v3052
  %v5687 = vpop.f32.mrb[0].mxu0
  %v5688 = vadd.f32 0.0, %v5687
  %v5689 = vpop.f32.mrb[0].mxu0
  %v5690 = vpop.f32.mrb[0].mxu0
  %v5691 = vadd.f32 0.0, %v5690
  %v5692 = vpop.f32.mrb[0].mxu0
  %5693 = vmatprep.mubr.bf16.mxu0 %v3057
  %5694 = vmatmul.mubr.bf16.gmra.mrb[0].mxu0 %v3056
  %v5695 = vpop.f32.mrb[0].mxu0
  %v5696 = vadd.f32 0.0, %v5695
  %v5697 = vpop.f32.mrb[0].mxu0
  %v5698 = vpop.f32.mrb[0].mxu0
  %v5699 = vadd.f32 0.0, %v5698
  %v5700 = vpop.f32.mrb[0].mxu0
  %5701 = vmatprep.mubr.bf16.mxu0 %v3061
  %5702 = vmatmul.mubr.bf16.gmra.mrb[0].mxu0 %v3060
  %v5703 = vpop.f32.mrb[0].mxu0
  %v5704 = vadd.f32 0.0, %v5703
  %v5705 = vpop.f32.mrb[0].mxu0
  %v5706 = vpop.f32.mrb[0].mxu0
  %v5707 = vadd.f32 0.0, %v5706
  %v5708 = vpop.f32.mrb[0].mxu0
  %5709 = vmatprep.mubr.bf16.mxu0 %v3065
  %5710 = vmatmul.mubr.bf16.gmra.mrb[0].mxu0 %v3064
  %v5711 = vpop.f32.mrb[0].mxu0
  %v5712 = vadd.f32 0.0, %v5711
  %v5713 = vpop.f32.mrb[0].mxu0
  %v5714 = vpop.f32.mrb[0].mxu0
  %v5715 = vadd.f32 0.0, %v5714
  %v5716 = vpop.f32.mrb[0].mxu0
  %5717 = vmatprep.mubr.bf16.mxu0 %v3069
  %5718 = vmatmul.mubr.bf16.gmra.mrb[0].mxu0 %v3068
  %v5719 = vpop.f32.mrb[0].mxu0
  %v5720 = vadd.f32 0.0, %v5719
  %v5721 = vpop.f32.mrb[0].mxu0
  %v5722 = vpop.f32.mrb[0].mxu0
  %v5723 = vadd.f32 0.0, %v5722
  %v5724 = vpop.f32.mrb[0].mxu0
  %5725 = vmatprep.mubr.bf16.mxu0 %v3073
  %5726 = vmatmul.mubr.bf16.gmra.mrb[0].mxu0 %v3072
  %v5727 = vpop.f32.mrb[0].mxu0
  %v5728 = vadd.f32 0.0, %v5727
  %v5729 = vpop.f32.mrb[0].mxu0
  %v5730 = vpop.f32.mrb[0].mxu0
  %v5731 = vadd.f32 0.0, %v5730
  %v5732 = vpop.f32.mrb[0].mxu0
  %5733 = vmatprep.mubr.bf16.mxu0 %v3077
  %5734 = vmatmul.mubr.bf16.gmra.mrb[0].mxu0 %v3076
  %v5735 = vpop.f32.mrb[0].mxu0
  %v5736 = vadd.f32 0.0, %v5735
  %v5737 = vpop.f32.mrb[0].mxu0
  %v5738 = vpop.f32.mrb[0].mxu0
  %v5739 = vadd.f32 0.0, %v5738
  %v5740 = vpop.f32.mrb[0].mxu0
  %5741 = vmatprep.mubr.bf16.mxu0 %v3081
  %5742 = vmatmul.mubr.bf16.gmra.mrb[0].mxu0 %v3080
  %v5743 = vpop.f32.mrb[0].mxu0
  %v5744 = vadd.f32 0.0, %v5743
  %v5745 = vpop.f32.mrb[0].mxu0
  %v5746 = vpop.f32.mrb[0].mxu0
  %v5747 = vadd.f32 0.0, %v5746
  %v5748 = vpop.f32.mrb[0].mxu0
  %5749 = vmatprep.mubr.bf16.mxu0 %v3085
  %5750 = vmatmul.mubr.bf16.gmra.mrb[0].mxu0 %v3084
  %v5751 = vpop.f32.mrb[0].mxu0
  %v5752 = vadd.f32 0.0, %v5751
  %v5753 = vpop.f32.mrb[0].mxu0
  %v5754 = vpop.f32.mrb[0].mxu0
  %v5755 = vadd.f32 0.0, %v5754
  %v5756 = vpop.f32.mrb[0].mxu0
  %5757 = vmatprep.mubr.bf16.mxu0 %v3089
  %5758 = vmatmul.mubr.bf16.gmra.mrb[0].mxu0 %v3088
  %v5759 = vpop.f32.mrb[0].mxu0
  %v5760 = vadd.f32 0.0, %v5759
  %v5761 = vpop.f32.mrb[0].mxu0
  %v5762 = vpop.f32.mrb[0].mxu0
  %v5763 = vadd.f32 0.0, %v5762
  %v5764 = vpop.f32.mrb[0].mxu0
  %5765 = vmatprep.mubr.bf16.mxu0 %v3093
  %5766 = vmatmul.mubr.bf16.gmra.mrb[0].mxu0 %v3092
  %v5767 = vpop.f32.mrb[0].mxu0
  %v5768 = vadd.f32 0.0, %v5767
  %v5769 = vpop.f32.mrb[0].mxu0
  %v5770 = vpop.f32.mrb[0].mxu0
  %v5771 = vadd.f32 0.0, %v5770
  %v5772 = vpop.f32.mrb[0].mxu0
  %5773 = vmatprep.mubr.bf16.mxu0 %v3097
  %5774 = vmatmul.mubr.bf16.gmra.mrb[0].mxu0 %v3096
  %v5775 = vpop.f32.mrb[0].mxu0
  %v5776 = vadd.f32 0.0, %v5775
  %v5777 = vpop.f32.mrb[0].mxu0
  %v5778 = vpop.f32.mrb[0].mxu0
  %v5779 = vadd.f32 0.0, %v5778
  %v5780 = vpop.f32.mrb[0].mxu0
  %5781 = vdwg.mxu0
  %5782 = vmatprep.subr.bf16.mxu0 0
  %5783 = vmatpush1.bf16.msra.mxu0 %v4283
  %5784 = vmatprep.subr.bf16.mxu0 0
  %5785 = vmatpush1.bf16.msra.mxu0 %v4290
  %5786 = vmatprep.subr.bf16.mxu0 0
  %5787 = vmatpush1.bf16.msra.mxu0 %v4297
  %5788 = vmatprep.subr.bf16.mxu0 0
  %5789 = vmatpush1.bf16.msra.mxu0 %v4304
  %5790 = vmatprep.subr.bf16.mxu0 0
  %5791 = vmatpush1.bf16.msra.mxu0 %v4311
  %5792 = vmatprep.subr.bf16.mxu0 0
  %5793 = vmatpush1.bf16.msra.mxu0 %v4318
  %5794 = vmatprep.subr.bf16.mxu0 0
  %5795 = vmatpush1.bf16.msra.mxu0 %v4325
  %5796 = vmatprep.subr.bf16.mxu0 0
  %5797 = vmatpush1.bf16.msra.mxu0 %v4332
  %5798 = vmatprep.subr.bf16.mxu0 0
  %5799 = vmatpush1.bf16.msra.mxu0 %v4339
  %5800 = vmatprep.subr.bf16.mxu0 0
  %5801 = vmatpush1.bf16.msra.mxu0 %v4346
  %5802 = vmatprep.subr.bf16.mxu0 0
  %5803 = vmatpush1.bf16.msra.mxu0 %v4353
  %5804 = vmatprep.subr.bf16.mxu0 0
  %5805 = vmatpush1.bf16.msra.mxu0 %v4360
  %5806 = vmatprep.subr.bf16.mxu0 0
  %5807 = vmatpush1.bf16.msra.mxu0 0
  %5808 = vmatprep.subr.bf16.mxu0 0
  %5809 = vmatpush1.bf16.msra.mxu0 0
  %5810 = vmatprep.subr.bf16.mxu0 0
  %5811 = vmatpush1.bf16.msra.mxu0 0
  %5812 = vmatprep.subr.bf16.mxu0 0
  %5813 = vmatpush1.bf16.msra.mxu0 0
  %5814 = vmatprep.mubr.bf16.mxu0 %v4558
  %5815 = vmatmul.mubr.bf16.gmra.mrb[0].mxu0 %v3046
  %v5816 = vpop.f32.mrb[0].mxu0
  %v5817 = vadd.f32 %v5672, %v5816
  %v5818 = vpop.f32.mrb[0].mxu0
  %v5819 = vpop.f32.mrb[0].mxu0
  %v5820 = vadd.f32 %v5675, %v5819
  %v5821 = vpop.f32.mrb[0].mxu0
  %5822 = vmatprep.mubr.bf16.mxu0 %v4561
  %5823 = vmatmul.mubr.bf16.gmra.mrb[0].mxu0 %v3050
  %v5824 = vpop.f32.mrb[0].mxu0
  %v5825 = vadd.f32 %v5680, %v5824
  %v5826 = vpop.f32.mrb[0].mxu0
  %v5827 = vpop.f32.mrb[0].mxu0
  %v5828 = vadd.f32 %v5683, %v5827
  %v5829 = vpop.f32.mrb[0].mxu0
  %5830 = vmatprep.mubr.bf16.mxu0 %v4564
  %5831 = vmatmul.mubr.bf16.gmra.mrb[0].mxu0 %v3054
  %v5832 = vpop.f32.mrb[0].mxu0
  %v5833 = vadd.f32 %v5688, %v5832
  %v5834 = vpop.f32.mrb[0].mxu0
  %v5835 = vpop.f32.mrb[0].mxu0
  %v5836 = vadd.f32 %v5691, %v5835
  %v5837 = vpop.f32.mrb[0].mxu0
  %5838 = vmatprep.mubr.bf16.mxu0 %v4567
  %5839 = vmatmul.mubr.bf16.gmra.mrb[0].mxu0 %v3058
  %v5840 = vpop.f32.mrb[0].mxu0
  %v5841 = vadd.f32 %v5696, %v5840
  %v5842 = vpop.f32.mrb[0].mxu0
  %v5843 = vpop.f32.mrb[0].mxu0
  %v5844 = vadd.f32 %v5699, %v5843
  %v5845 = vpop.f32.mrb[0].mxu0
  %5846 = vmatprep.mubr.bf16.mxu0 %v4570
  %5847 = vmatmul.mubr.bf16.gmra.mrb[0].mxu0 %v3062
  %v5848 = vpop.f32.mrb[0].mxu0
  %v5849 = vadd.f32 %v5704, %v5848
  %v5850 = vpop.f32.mrb[0].mxu0
  %v5851 = vpop.f32.mrb[0].mxu0
  %v5852 = vadd.f32 %v5707, %v5851
  %v5853 = vpop.f32.mrb[0].mxu0
  %5854 = vmatprep.mubr.bf16.mxu0 %v4573
  %5855 = vmatmul.mubr.bf16.gmra.mrb[0].mxu0 %v3066
  %v5856 = vpop.f32.mrb[0].mxu0
  %v5857 = vadd.f32 %v5712, %v5856
  %v5858 = vpop.f32.mrb[0].mxu0
  %v5859 = vpop.f32.mrb[0].mxu0
  %v5860 = vadd.f32 %v5715, %v5859
  %v5861 = vpop.f32.mrb[0].mxu0
  %5862 = vmatprep.mubr.bf16.mxu0 %v4576
  %5863 = vmatmul.mubr.bf16.gmra.mrb[0].mxu0 %v3070
  %v5864 = vpop.f32.mrb[0].mxu0
  %v5865 = vadd.f32 %v5720, %v5864
  %v5866 = vpop.f32.mrb[0].mxu0
  %v5867 = vpop.f32.mrb[0].mxu0
  %v5868 = vadd.f32 %v5723, %v5867
  %v5869 = vpop.f32.mrb[0].mxu0
  %5870 = vmatprep.mubr.bf16.mxu0 %v4579
  %5871 = vmatmul.mubr.bf16.gmra.mrb[0].mxu0 %v3074
  %v5872 = vpop.f32.mrb[0].mxu0
  %v5873 = vadd.f32 %v5728, %v5872
  %v5874 = vpop.f32.mrb[0].mxu0
  %v5875 = vpop.f32.mrb[0].mxu0
  %v5876 = vadd.f32 %v5731, %v5875
  %v5877 = vpop.f32.mrb[0].mxu0
  %5878 = vmatprep.mubr.bf16.mxu0 %v4582
  %5879 = vmatmul.mubr.bf16.gmra.mrb[0].mxu0 %v3078
  %v5880 = vpop.f32.mrb[0].mxu0
  %v5881 = vadd.f32 %v5736, %v5880
  %v5882 = vpop.f32.mrb[0].mxu0
  %v5883 = vpop.f32.mrb[0].mxu0
  %v5884 = vadd.f32 %v5739, %v5883
  %v5885 = vpop.f32.mrb[0].mxu0
  %5886 = vmatprep.mubr.bf16.mxu0 %v4585
  %5887 = vmatmul.mubr.bf16.gmra.mrb[0].mxu0 %v3082
  %v5888 = vpop.f32.mrb[0].mxu0
  %v5889 = vadd.f32 %v5744, %v5888
  %v5890 = vpop.f32.mrb[0].mxu0
  %v5891 = vpop.f32.mrb[0].mxu0
  %v5892 = vadd.f32 %v5747, %v5891
  %v5893 = vpop.f32.mrb[0].mxu0
  %5894 = vmatprep.mubr.bf16.mxu0 %v4588
  %5895 = vmatmul.mubr.bf16.gmra.mrb[0].mxu0 %v3086
  %v5896 = vpop.f32.mrb[0].mxu0
  %v5897 = vadd.f32 %v5752, %v5896
  %v5898 = vpop.f32.mrb[0].mxu0
  %v5899 = vpop.f32.mrb[0].mxu0
  %v5900 = vadd.f32 %v5755, %v5899
  %v5901 = vpop.f32.mrb[0].mxu0
  %5902 = vmatprep.mubr.bf16.mxu0 %v4591
  %5903 = vmatmul.mubr.bf16.gmra.mrb[0].mxu0 %v3090
  %v5904 = vpop.f32.mrb[0].mxu0
  %v5905 = vadd.f32 %v5760, %v5904
  %v5906 = vpop.f32.mrb[0].mxu0
  %v5907 = vpop.f32.mrb[0].mxu0
  %v5908 = vadd.f32 %v5763, %v5907
  %v5909 = vpop.f32.mrb[0].mxu0
  %5910 = vmatprep.mubr.bf16.mxu0 %v4594
  %5911 = vmatmul.mubr.bf16.gmra.mrb[0].mxu0 %v3094
  %v5912 = vpop.f32.mrb[0].mxu0
  %v5913 = vadd.f32 %v5768, %v5912
  %v5914 = vpop.f32.mrb[0].mxu0
  %v5915 = vpop.f32.mrb[0].mxu0
  %v5916 = vadd.f32 %v5771, %v5915
  %v5917 = vpop.f32.mrb[0].mxu0
  %5918 = vmatprep.mubr.bf16.mxu0 %v4597
  %5919 = vmatmul.mubr.bf16.gmra.mrb[0].mxu0 %v3098
  %v5920 = vpop.f32.mrb[0].mxu0
  %v5921 = vadd.f32 %v5776, %v5920
  %v5922 = vpop.f32.mrb[0].mxu0
  %v5923 = vpop.f32.mrb[0].mxu0
  %v5924 = vadd.f32 %v5779, %v5923
  %v5925 = vpop.f32.mrb[0].mxu0
  %5926 = vdwg.mxu0
  %v6151 = vunpack.c.l.b16 %v3100
  %v6152 = vunpack.c.h.b16 %v3100
  %v6153 = vunpack.c.l.b16 %v3101
  %v6154 = vunpack.c.h.b16 %v3101
  %v6155 = vunpack.c.l.b16 %v3102
  %v6156 = vunpack.c.h.b16 %v3102
  %v6157 = vunpack.c.l.b16 %v3103
  %v6158 = vunpack.c.l.b16 %v3104
  %v6159 = vunpack.c.h.b16 %v3104
  %v6160 = vunpack.c.l.b16 %v3105
  %v6161 = vunpack.c.h.b16 %v3105
  %v6162 = vunpack.c.l.b16 %v3106
  %v6163 = vunpack.c.h.b16 %v3106
  %v6164 = vunpack.c.l.b16 %v3107
  %v6165 = vunpack.c.l.b16 %v3108
  %v6166 = vunpack.c.h.b16 %v3108
  %v6167 = vunpack.c.l.b16 %v3109
  %v6168 = vunpack.c.h.b16 %v3109
  %v6169 = vunpack.c.l.b16 %v3110
  %v6170 = vunpack.c.h.b16 %v3110
  %v6171 = vunpack.c.l.b16 %v3111
  %v6172 = vunpack.c.l.b16 %v3112
  %v6173 = vunpack.c.h.b16 %v3112
  %v6174 = vunpack.c.l.b16 %v3113
  %v6175 = vunpack.c.h.b16 %v3113
  %v6176 = vunpack.c.l.b16 %v3114
  %v6177 = vunpack.c.h.b16 %v3114
  %v6178 = vunpack.c.l.b16 %v3115
  %v6179 = vunpack.c.l.b16 %v3116
  %v6180 = vunpack.c.h.b16 %v3116
  %v6181 = vunpack.c.l.b16 %v3117
  %v6182 = vunpack.c.h.b16 %v3117
  %v6183 = vunpack.c.l.b16 %v3118
  %v6184 = vunpack.c.h.b16 %v3118
  %v6185 = vunpack.c.l.b16 %v3119
  %v6186 = vunpack.c.l.b16 %v3120
  %v6187 = vunpack.c.h.b16 %v3120
  %v6188 = vunpack.c.l.b16 %v3121
  %v6189 = vunpack.c.h.b16 %v3121
  %v6190 = vunpack.c.l.b16 %v3122
  %v6191 = vunpack.c.h.b16 %v3122
  %v6192 = vunpack.c.l.b16 %v3123
  %v6193 = vunpack.c.l.b16 %v3124
  %v6194 = vunpack.c.h.b16 %v3124
  %v6195 = vunpack.c.l.b16 %v3125
  %v6196 = vunpack.c.h.b16 %v3125
  %v6197 = vunpack.c.l.b16 %v3126
  %v6198 = vunpack.c.h.b16 %v3126
  %v6199 = vunpack.c.l.b16 %v3127
  %v6200 = vunpack.c.l.b16 %v3128
  %v6201 = vunpack.c.h.b16 %v3128
  %v6202 = vunpack.c.l.b16 %v3129
  %v6203 = vunpack.c.h.b16 %v3129
  %v6204 = vunpack.c.l.b16 %v3130
  %v6205 = vunpack.c.h.b16 %v3130
  %v6206 = vunpack.c.l.b16 %v3131
  %v6207 = vunpack.c.l.b16 %v3132
  %v6208 = vunpack.c.h.b16 %v3132
  %v6209 = vunpack.c.l.b16 %v3133
  %v6210 = vunpack.c.h.b16 %v3133
  %v6211 = vunpack.c.l.b16 %v3134
  %v6212 = vunpack.c.h.b16 %v3134
  %v6213 = vunpack.c.l.b16 %v3135
  %v6214 = vunpack.c.l.b16 %v3136
  %v6215 = vunpack.c.h.b16 %v3136
  %v6216 = vunpack.c.l.b16 %v3137
  %v6217 = vunpack.c.h.b16 %v3137
  %v6218 = vunpack.c.l.b16 %v3138
  %v6219 = vunpack.c.h.b16 %v3138
  %v6220 = vunpack.c.l.b16 %v3139
  %v6221 = vunpack.c.l.b16 %v3140
  %v6222 = vunpack.c.h.b16 %v3140
  %v6223 = vunpack.c.l.b16 %v3141
  %v6224 = vunpack.c.h.b16 %v3141
  %v6225 = vunpack.c.l.b16 %v3142
  %v6226 = vunpack.c.h.b16 %v3142
  %v6227 = vunpack.c.l.b16 %v3143
  %v6228 = vunpack.c.l.b16 %v3144
  %v6229 = vunpack.c.h.b16 %v3144
  %v6230 = vunpack.c.l.b16 %v3145
  %v6231 = vunpack.c.h.b16 %v3145
  %v6232 = vunpack.c.l.b16 %v3146
  %v6233 = vunpack.c.h.b16 %v3146
  %v6234 = vunpack.c.l.b16 %v3147
  %v6235 = vunpack.c.l.b16 %v3148
  %v6236 = vunpack.c.h.b16 %v3148
  %v6237 = vunpack.c.l.b16 %v3149
  %v6238 = vunpack.c.h.b16 %v3149
  %v6239 = vunpack.c.l.b16 %v3150
  %v6240 = vunpack.c.h.b16 %v3150
  %v6241 = vunpack.c.l.b16 %v3151
  %v6242 = vunpack.c.l.b16 %v3152
  %v6243 = vunpack.c.h.b16 %v3152
  %v6244 = vunpack.c.l.b16 %v3153
  %v6245 = vunpack.c.h.b16 %v3153
  %v6246 = vunpack.c.l.b16 %v3154
  %v6247 = vunpack.c.h.b16 %v3154
  %v6248 = vunpack.c.l.b16 %v3155
  %v6249 = vunpack.c.l.b16 %v3156
  %v6250 = vunpack.c.h.b16 %v3156
  %v6251 = vunpack.c.l.b16 %v3157
  %v6252 = vunpack.c.h.b16 %v3157
  %v6253 = vunpack.c.l.b16 %v3158
  %v6254 = vunpack.c.h.b16 %v3158
  %v6255 = vunpack.c.l.b16 %v3159
  %v6256 = vunpack.c.l.b16 %v3160
  %v6257 = vunpack.c.h.b16 %v3160
  %v6258 = vunpack.c.l.b16 %v3161
  %v6259 = vunpack.c.h.b16 %v3161
  %v6260 = vunpack.c.l.b16 %v3162
  %v6261 = vunpack.c.h.b16 %v3162
  %v6262 = vunpack.c.l.b16 %v3163
  %v6263 = vunpack.c.l.b16 %v3164
  %v6264 = vunpack.c.h.b16 %v3164
  %v6265 = vunpack.c.l.b16 %v3165
  %v6266 = vunpack.c.h.b16 %v3165
  %v6267 = vunpack.c.l.b16 %v3166
  %v6268 = vunpack.c.h.b16 %v3166
  %v6269 = vunpack.c.l.b16 %v3167
  %v6270 = vunpack.c.l.b16 %v3168
  %v6271 = vunpack.c.h.b16 %v3168
  %v6272 = vunpack.c.l.b16 %v3169
  %v6273 = vunpack.c.h.b16 %v3169
  %v6274 = vunpack.c.l.b16 %v3170
  %v6275 = vunpack.c.h.b16 %v3170
  %v6276 = vunpack.c.l.b16 %v3171
  %v6277 = vunpack.c.l.b16 %v3172
  %v6278 = vunpack.c.h.b16 %v3172
  %v6279 = vunpack.c.l.b16 %v3173
  %v6280 = vunpack.c.h.b16 %v3173
  %v6281 = vunpack.c.l.b16 %v3174
  %v6282 = vunpack.c.h.b16 %v3174
  %v6283 = vunpack.c.l.b16 %v3175
  %v6284 = vunpack.c.l.b16 %v3176
  %v6285 = vunpack.c.h.b16 %v3176
  %v6286 = vunpack.c.l.b16 %v3177
  %v6287 = vunpack.c.h.b16 %v3177
  %v6288 = vunpack.c.l.b16 %v3178
  %v6289 = vunpack.c.h.b16 %v3178
  %v6290 = vunpack.c.l.b16 %v3179
  %v6291 = vunpack.c.l.b16 %v3180
  %v6292 = vunpack.c.h.b16 %v3180
  %v6293 = vunpack.c.l.b16 %v3181
  %v6294 = vunpack.c.h.b16 %v3181
  %v6295 = vunpack.c.l.b16 %v3182
  %v6296 = vunpack.c.h.b16 %v3182
  %v6297 = vunpack.c.l.b16 %v3183
  %v6298 = vunpack.c.l.b16 %v3184
  %v6299 = vunpack.c.h.b16 %v3184
  %v6300 = vunpack.c.l.b16 %v3185
  %v6301 = vunpack.c.h.b16 %v3185
  %v6302 = vunpack.c.l.b16 %v3186
  %v6303 = vunpack.c.h.b16 %v3186
  %v6304 = vunpack.c.l.b16 %v3187
  %v6305 = vunpack.c.l.b16 %v3188
  %v6306 = vunpack.c.h.b16 %v3188
  %v6307 = vunpack.c.l.b16 %v3189
  %v6308 = vunpack.c.h.b16 %v3189
  %v6309 = vunpack.c.l.b16 %v3190
  %v6310 = vunpack.c.h.b16 %v3190
  %v6311 = vunpack.c.l.b16 %v3191
  %v6312 = vunpack.c.l.b16 %v3192
  %v6313 = vunpack.c.h.b16 %v3192
  %v6314 = vunpack.c.l.b16 %v3193
  %v6315 = vunpack.c.h.b16 %v3193
  %v6316 = vunpack.c.l.b16 %v3194
  %v6317 = vunpack.c.h.b16 %v3194
  %v6318 = vunpack.c.l.b16 %v3195
  %v6319 = vunpack.c.l.b16 %v3196
  %v6320 = vunpack.c.h.b16 %v3196
  %v6321 = vunpack.c.l.b16 %v3197
  %v6322 = vunpack.c.h.b16 %v3197
  %v6323 = vunpack.c.l.b16 %v3198
  %v6324 = vunpack.c.h.b16 %v3198
  %v6325 = vunpack.c.l.b16 %v3199
  %v6326 = vunpack.c.l.b16 %v3200
  %v6327 = vunpack.c.h.b16 %v3200
  %v6328 = vunpack.c.l.b16 %v3201
  %v6329 = vunpack.c.h.b16 %v3201
  %v6330 = vunpack.c.l.b16 %v3202
  %v6331 = vunpack.c.h.b16 %v3202
  %v6332 = vunpack.c.l.b16 %v3203
  %v6333 = vunpack.c.l.b16 %v3204
  %v6334 = vunpack.c.h.b16 %v3204
  %v6335 = vunpack.c.l.b16 %v3205
  %v6336 = vunpack.c.h.b16 %v3205
  %v6337 = vunpack.c.l.b16 %v3206
  %v6338 = vunpack.c.h.b16 %v3206
  %v6339 = vunpack.c.l.b16 %v3207
  %v6340 = vunpack.c.l.b16 %v3208
  %v6341 = vunpack.c.h.b16 %v3208
  %v6342 = vunpack.c.l.b16 %v3209
  %v6343 = vunpack.c.h.b16 %v3209
  %v6344 = vunpack.c.l.b16 %v3210
  %v6345 = vunpack.c.h.b16 %v3210
  %v6346 = vunpack.c.l.b16 %v3211
  %v6347 = vunpack.c.l.b16 %v3212
  %v6348 = vunpack.c.h.b16 %v3212
  %v6349 = vunpack.c.l.b16 %v3213
  %v6350 = vunpack.c.h.b16 %v3213
  %v6351 = vunpack.c.l.b16 %v3214
  %v6352 = vunpack.c.h.b16 %v3214
  %v6353 = vunpack.c.l.b16 %v3215
  %v6354 = vunpack.c.l.b16 %v3216
  %v6355 = vunpack.c.h.b16 %v3216
  %v6356 = vunpack.c.l.b16 %v3217
  %v6357 = vunpack.c.h.b16 %v3217
  %v6358 = vunpack.c.l.b16 %v3218
  %v6359 = vunpack.c.h.b16 %v3218
  %v6360 = vunpack.c.l.b16 %v3219
  %v6361 = vunpack.c.l.b16 %v3220
  %v6362 = vunpack.c.h.b16 %v3220
  %v6363 = vunpack.c.l.b16 %v3221
  %v6364 = vunpack.c.h.b16 %v3221
  %v6365 = vunpack.c.l.b16 %v3222
  %v6366 = vunpack.c.h.b16 %v3222
  %v6367 = vunpack.c.l.b16 %v3223
  %v6368 = vunpack.c.l.b16 %v3224
  %v6369 = vunpack.c.h.b16 %v3224
  %v6370 = vunpack.c.l.b16 %v3225
  %v6371 = vunpack.c.h.b16 %v3225
  %v6372 = vunpack.c.l.b16 %v3226
  %v6373 = vunpack.c.h.b16 %v3226
  %v6374 = vunpack.c.l.b16 %v3227
  %v6375 = vunpack.c.l.b16 %v3228
  %v6376 = vunpack.c.h.b16 %v3228
  %v6377 = vunpack.c.l.b16 %v3229
  %v6378 = vunpack.c.h.b16 %v3229
  %v6379 = vunpack.c.l.b16 %v3230
  %v6380 = vunpack.c.h.b16 %v3230
  %v6381 = vunpack.c.l.b16 %v3231
  %v6382 = vunpack.c.l.b16 %v3232
  %v6383 = vunpack.c.h.b16 %v3232
  %v6384 = vunpack.c.l.b16 %v3233
  %v6385 = vunpack.c.h.b16 %v3233
  %v6386 = vunpack.c.l.b16 %v3234
  %v6387 = vunpack.c.h.b16 %v3234
  %v6388 = vunpack.c.l.b16 %v3235
  %v6389 = vunpack.c.l.b16 %v3236
  %v6390 = vunpack.c.h.b16 %v3236
  %v6391 = vunpack.c.l.b16 %v3237
  %v6392 = vunpack.c.h.b16 %v3237
  %v6393 = vunpack.c.l.b16 %v3238
  %v6394 = vunpack.c.h.b16 %v3238
  %v6395 = vunpack.c.l.b16 %v3239
  %v6396 = vunpack.c.l.b16 %v3240
  %v6397 = vunpack.c.h.b16 %v3240
  %v6398 = vunpack.c.l.b16 %v3241
  %v6399 = vunpack.c.h.b16 %v3241
  %v6400 = vunpack.c.l.b16 %v3242
  %v6401 = vunpack.c.h.b16 %v3242
  %v6402 = vunpack.c.l.b16 %v3243
  %v6403 = vunpack.c.l.b16 %v3244
  %v6404 = vunpack.c.h.b16 %v3244
  %v6405 = vunpack.c.l.b16 %v3245
  %v6406 = vunpack.c.h.b16 %v3245
  %v6407 = vunpack.c.l.b16 %v3246
  %v6408 = vunpack.c.h.b16 %v3246
  %v6409 = vunpack.c.l.b16 %v3247
  %v6410 = vunpack.c.l.b16 %v3248
  %v6411 = vunpack.c.h.b16 %v3248
  %v6412 = vunpack.c.l.b16 %v3249
  %v6413 = vunpack.c.h.b16 %v3249
  %v6414 = vunpack.c.l.b16 %v3250
  %v6415 = vunpack.c.h.b16 %v3250
  %v6416 = vunpack.c.l.b16 %v3251
  %v6417 = vunpack.c.l.b16 %v3252
  %v6418 = vunpack.c.h.b16 %v3252
  %v6419 = vunpack.c.l.b16 %v3253
  %v6420 = vunpack.c.h.b16 %v3253
  %v6421 = vunpack.c.l.b16 %v3254
  %v6422 = vunpack.c.h.b16 %v3254
  %v6423 = vunpack.c.l.b16 %v3255
  %v6424 = vunpack.c.l.b16 %v3256
  %v6425 = vunpack.c.h.b16 %v3256
  %v6426 = vunpack.c.l.b16 %v3257
  %v6427 = vunpack.c.h.b16 %v3257
  %v6428 = vunpack.c.l.b16 %v3258
  %v6429 = vunpack.c.h.b16 %v3258
  %v6430 = vunpack.c.l.b16 %v3259
  %v6431 = vunpack.c.l.b16 %v3260
  %v6432 = vunpack.c.h.b16 %v3260
  %v6433 = vunpack.c.l.b16 %v3261
  %v6434 = vunpack.c.h.b16 %v3261
  %v6435 = vunpack.c.l.b16 %v3262
  %v6436 = vunpack.c.h.b16 %v3262
  %v6437 = vunpack.c.l.b16 %v3263
  %v6438 = vunpack.c.l.b16 %v3264
  %v6439 = vunpack.c.h.b16 %v3264
  %v6440 = vunpack.c.l.b16 %v3265
  %v6441 = vunpack.c.h.b16 %v3265
  %v6442 = vunpack.c.l.b16 %v3266
  %v6443 = vunpack.c.h.b16 %v3266
  %v6444 = vunpack.c.l.b16 %v3267
  %v6445 = vunpack.c.l.b16 %v3268
  %v6446 = vunpack.c.h.b16 %v3268
  %v6447 = vunpack.c.l.b16 %v3269
  %v6448 = vunpack.c.h.b16 %v3269
  %v6449 = vunpack.c.l.b16 %v3270
  %v6450 = vunpack.c.h.b16 %v3270
  %v6451 = vunpack.c.l.b16 %v3271
  %v6452 = vunpack.c.l.b16 %v3272
  %v6453 = vunpack.c.h.b16 %v3272
  %v6454 = vunpack.c.l.b16 %v3273
  %v6455 = vunpack.c.h.b16 %v3273
  %v6456 = vunpack.c.l.b16 %v3274
  %v6457 = vunpack.c.h.b16 %v3274
  %v6458 = vunpack.c.l.b16 %v3275
  %v6459 = vunpack.c.l.b16 %v3276
  %v6460 = vunpack.c.h.b16 %v3276
  %v6461 = vunpack.c.l.b16 %v3277
  %v6462 = vunpack.c.h.b16 %v3277
  %v6463 = vunpack.c.l.b16 %v3278
  %v6464 = vunpack.c.h.b16 %v3278
  %v6465 = vunpack.c.l.b16 %v3279
  %v6466 = vunpack.c.l.b16 %v3280
  %v6467 = vunpack.c.h.b16 %v3280
  %v6468 = vunpack.c.l.b16 %v3281
  %v6469 = vunpack.c.h.b16 %v3281
  %v6470 = vunpack.c.l.b16 %v3282
  %v6471 = vunpack.c.h.b16 %v3282
  %v6472 = vunpack.c.l.b16 %v3283
  %v6473 = vunpack.c.l.b16 %v3284
  %v6474 = vunpack.c.h.b16 %v3284
  %v6475 = vunpack.c.l.b16 %v3285
  %v6476 = vunpack.c.h.b16 %v3285
  %v6477 = vunpack.c.l.b16 %v3286
  %v6478 = vunpack.c.h.b16 %v3286
  %v6479 = vunpack.c.l.b16 %v3287
  %v6480 = vunpack.c.l.b16 %v3288
  %v6481 = vunpack.c.h.b16 %v3288
  %v6482 = vunpack.c.l.b16 %v3289
  %v6483 = vunpack.c.h.b16 %v3289
  %v6484 = vunpack.c.l.b16 %v3290
  %v6485 = vunpack.c.h.b16 %v3290
  %v6486 = vunpack.c.l.b16 %v3291
  %v6487 = vunpack.c.l.b16 %v3292
  %v6488 = vunpack.c.h.b16 %v3292
  %v6489 = vunpack.c.l.b16 %v3293
  %v6490 = vunpack.c.h.b16 %v3293
  %v6491 = vunpack.c.l.b16 %v3294
  %v6492 = vunpack.c.h.b16 %v3294
  %v6493 = vunpack.c.l.b16 %v3295
  %v6494 = vunpack.c.l.b16 %v3296
  %v6495 = vunpack.c.h.b16 %v3296
  %v6496 = vunpack.c.l.b16 %v3297
  %v6497 = vunpack.c.h.b16 %v3297
  %v6498 = vunpack.c.l.b16 %v3298
  %v6499 = vunpack.c.h.b16 %v3298
  %v6500 = vunpack.c.l.b16 %v3299
  %v6501 = vunpack.c.l.b16 %v3300
  %v6502 = vunpack.c.h.b16 %v3300
  %v6503 = vunpack.c.l.b16 %v3301
  %v6504 = vunpack.c.h.b16 %v3301
  %v6505 = vunpack.c.l.b16 %v3302
  %v6506 = vunpack.c.h.b16 %v3302
  %v6507 = vunpack.c.l.b16 %v3303
  %v6508 = vunpack.c.l.b16 %v3304
  %v6509 = vunpack.c.h.b16 %v3304
  %v6510 = vunpack.c.l.b16 %v3305
  %v6511 = vunpack.c.h.b16 %v3305
  %v6512 = vunpack.c.l.b16 %v3306
  %v6513 = vunpack.c.h.b16 %v3306
  %v6514 = vunpack.c.l.b16 %v3307
  %v6515 = vunpack.c.l.b16 %v3308
  %v6516 = vunpack.c.h.b16 %v3308
  %v6517 = vunpack.c.l.b16 %v3309
  %v6518 = vunpack.c.h.b16 %v3309
  %v6519 = vunpack.c.l.b16 %v3310
  %v6520 = vunpack.c.h.b16 %v3310
  %v6521 = vunpack.c.l.b16 %v3311
  %v6522 = vunpack.c.l.b16 %v3312
  %v6523 = vunpack.c.h.b16 %v3312
  %v6524 = vunpack.c.l.b16 %v3313
  %v6525 = vunpack.c.h.b16 %v3313
  %v6526 = vunpack.c.l.b16 %v3314
  %v6527 = vunpack.c.h.b16 %v3314
  %v6528 = vunpack.c.l.b16 %v3315
  %v6529 = vunpack.c.l.b16 %v3316
  %v6530 = vunpack.c.h.b16 %v3316
  %v6531 = vunpack.c.l.b16 %v3317
  %v6532 = vunpack.c.h.b16 %v3317
  %v6533 = vunpack.c.l.b16 %v3318
  %v6534 = vunpack.c.h.b16 %v3318
  %v6535 = vunpack.c.l.b16 %v3319
  %v6536 = vunpack.c.l.b16 %v3320
  %v6537 = vunpack.c.h.b16 %v3320
  %v6538 = vunpack.c.l.b16 %v3321
  %v6539 = vunpack.c.h.b16 %v3321
  %v6540 = vunpack.c.l.b16 %v3322
  %v6541 = vunpack.c.h.b16 %v3322
  %v6542 = vunpack.c.l.b16 %v3323
  %v6543 = vpack.c.b16 %v6158, %v6151
  %v6544 = vpack.c.b16 %v6159, %v6152
  %v6545 = vpack.c.b16 %v6160, %v6153
  %v6546 = vpack.c.b16 %v6161, %v6154
  %v6547 = vpack.c.b16 %v6162, %v6155
  %v6548 = vpack.c.b16 %v6163, %v6156
  %v6549 = vpack.c.b16 %v6164, %v6157
  %v6550 = vpack.c.b16 %v6172, %v6165
  %v6551 = vpack.c.b16 %v6173, %v6166
  %v6552 = vpack.c.b16 %v6174, %v6167
  %v6553 = vpack.c.b16 %v6175, %v6168
  %v6554 = vpack.c.b16 %v6176, %v6169
  %v6555 = vpack.c.b16 %v6177, %v6170
  %v6556 = vpack.c.b16 %v6178, %v6171
  %v6557 = vpack.c.b16 %v6186, %v6179
  %v6558 = vpack.c.b16 %v6187, %v6180
  %v6559 = vpack.c.b16 %v6188, %v6181
  %v6560 = vpack.c.b16 %v6189, %v6182
  %v6561 = vpack.c.b16 %v6190, %v6183
  %v6562 = vpack.c.b16 %v6191, %v6184
  %v6563 = vpack.c.b16 %v6192, %v6185
  %v6564 = vpack.c.b16 %v6200, %v6193
  %v6565 = vpack.c.b16 %v6201, %v6194
  %v6566 = vpack.c.b16 %v6202, %v6195
  %v6567 = vpack.c.b16 %v6203, %v6196
  %v6568 = vpack.c.b16 %v6204, %v6197
  %v6569 = vpack.c.b16 %v6205, %v6198
  %v6570 = vpack.c.b16 %v6206, %v6199
  %v6571 = vpack.c.b16 %v6214, %v6207
  %v6572 = vpack.c.b16 %v6215, %v6208
  %v6573 = vpack.c.b16 %v6216, %v6209
  %v6574 = vpack.c.b16 %v6217, %v6210
  %v6575 = vpack.c.b16 %v6218, %v6211
  %v6576 = vpack.c.b16 %v6219, %v6212
  %v6577 = vpack.c.b16 %v6220, %v6213
  %v6578 = vpack.c.b16 %v6228, %v6221
  %v6579 = vpack.c.b16 %v6229, %v6222
  %v6580 = vpack.c.b16 %v6230, %v6223
  %v6581 = vpack.c.b16 %v6231, %v6224
  %v6582 = vpack.c.b16 %v6232, %v6225
  %v6583 = vpack.c.b16 %v6233, %v6226
  %v6584 = vpack.c.b16 %v6234, %v6227
  %v6585 = vpack.c.b16 %v6242, %v6235
  %v6586 = vpack.c.b16 %v6243, %v6236
  %v6587 = vpack.c.b16 %v6244, %v6237
  %v6588 = vpack.c.b16 %v6245, %v6238
  %v6589 = vpack.c.b16 %v6246, %v6239
  %v6590 = vpack.c.b16 %v6247, %v6240
  %v6591 = vpack.c.b16 %v6248, %v6241
  %v6592 = vpack.c.b16 %v6256, %v6249
  %v6593 = vpack.c.b16 %v6257, %v6250
  %v6594 = vpack.c.b16 %v6258, %v6251
  %v6595 = vpack.c.b16 %v6259, %v6252
  %v6596 = vpack.c.b16 %v6260, %v6253
  %v6597 = vpack.c.b16 %v6261, %v6254
  %v6598 = vpack.c.b16 %v6262, %v6255
  %v6599 = vpack.c.b16 %v6270, %v6263
  %v6600 = vpack.c.b16 %v6271, %v6264
  %v6601 = vpack.c.b16 %v6272, %v6265
  %v6602 = vpack.c.b16 %v6273, %v6266
  %v6603 = vpack.c.b16 %v6274, %v6267
  %v6604 = vpack.c.b16 %v6275, %v6268
  %v6605 = vpack.c.b16 %v6276, %v6269
  %v6606 = vpack.c.b16 %v6284, %v6277
  %v6607 = vpack.c.b16 %v6285, %v6278
  %v6608 = vpack.c.b16 %v6286, %v6279
  %v6609 = vpack.c.b16 %v6287, %v6280
  %v6610 = vpack.c.b16 %v6288, %v6281
  %v6611 = vpack.c.b16 %v6289, %v6282
  %v6612 = vpack.c.b16 %v6290, %v6283
  %v6613 = vpack.c.b16 %v6298, %v6291
  %v6614 = vpack.c.b16 %v6299, %v6292
  %v6615 = vpack.c.b16 %v6300, %v6293
  %v6616 = vpack.c.b16 %v6301, %v6294
  %v6617 = vpack.c.b16 %v6302, %v6295
  %v6618 = vpack.c.b16 %v6303, %v6296
  %v6619 = vpack.c.b16 %v6304, %v6297
  %v6620 = vpack.c.b16 %v6312, %v6305
  %v6621 = vpack.c.b16 %v6313, %v6306
  %v6622 = vpack.c.b16 %v6314, %v6307
  %v6623 = vpack.c.b16 %v6315, %v6308
  %v6624 = vpack.c.b16 %v6316, %v6309
  %v6625 = vpack.c.b16 %v6317, %v6310
  %v6626 = vpack.c.b16 %v6318, %v6311
  %v6627 = vpack.c.b16 %v6326, %v6319
  %v6628 = vpack.c.b16 %v6327, %v6320
  %v6629 = vpack.c.b16 %v6328, %v6321
  %v6630 = vpack.c.b16 %v6329, %v6322
  %v6631 = vpack.c.b16 %v6330, %v6323
  %v6632 = vpack.c.b16 %v6331, %v6324
  %v6633 = vpack.c.b16 %v6332, %v6325
  %v6634 = vpack.c.b16 %v6340, %v6333
  %v6635 = vpack.c.b16 %v6341, %v6334
  %v6636 = vpack.c.b16 %v6342, %v6335
  %v6637 = vpack.c.b16 %v6343, %v6336
  %v6638 = vpack.c.b16 %v6344, %v6337
  %v6639 = vpack.c.b16 %v6345, %v6338
  %v6640 = vpack.c.b16 %v6346, %v6339
  %v6641 = vpack.c.b16 %v6354, %v6347
  %v6642 = vpack.c.b16 %v6355, %v6348
  %v6643 = vpack.c.b16 %v6356, %v6349
  %v6644 = vpack.c.b16 %v6357, %v6350
  %v6645 = vpack.c.b16 %v6358, %v6351
  %v6646 = vpack.c.b16 %v6359, %v6352
  %v6647 = vpack.c.b16 %v6360, %v6353
  %v6648 = vpack.c.b16 %v6368, %v6361
  %v6649 = vpack.c.b16 %v6369, %v6362
  %v6650 = vpack.c.b16 %v6370, %v6363
  %v6651 = vpack.c.b16 %v6371, %v6364
  %v6652 = vpack.c.b16 %v6372, %v6365
  %v6653 = vpack.c.b16 %v6373, %v6366
  %v6654 = vpack.c.b16 %v6374, %v6367
  %v6655 = vpack.c.b16 %v6382, %v6375
  %v6656 = vpack.c.b16 %v6383, %v6376
  %v6657 = vpack.c.b16 %v6384, %v6377
  %v6658 = vpack.c.b16 %v6385, %v6378
  %v6659 = vpack.c.b16 %v6386, %v6379
  %v6660 = vpack.c.b16 %v6387, %v6380
  %v6661 = vpack.c.b16 %v6388, %v6381
  %v6662 = vpack.c.b16 %v6396, %v6389
  %v6663 = vpack.c.b16 %v6397, %v6390
  %v6664 = vpack.c.b16 %v6398, %v6391
  %v6665 = vpack.c.b16 %v6399, %v6392
  %v6666 = vpack.c.b16 %v6400, %v6393
  %v6667 = vpack.c.b16 %v6401, %v6394
  %v6668 = vpack.c.b16 %v6402, %v6395
  %v6669 = vpack.c.b16 %v6410, %v6403
  %v6670 = vpack.c.b16 %v6411, %v6404
  %v6671 = vpack.c.b16 %v6412, %v6405
  %v6672 = vpack.c.b16 %v6413, %v6406
  %v6673 = vpack.c.b16 %v6414, %v6407
  %v6674 = vpack.c.b16 %v6415, %v6408
  %v6675 = vpack.c.b16 %v6416, %v6409
  %v6676 = vpack.c.b16 %v6424, %v6417
  %v6677 = vpack.c.b16 %v6425, %v6418
  %v6678 = vpack.c.b16 %v6426, %v6419
  %v6679 = vpack.c.b16 %v6427, %v6420
  %v6680 = vpack.c.b16 %v6428, %v6421
  %v6681 = vpack.c.b16 %v6429, %v6422
  %v6682 = vpack.c.b16 %v6430, %v6423
  %v6683 = vpack.c.b16 %v6438, %v6431
  %v6684 = vpack.c.b16 %v6439, %v6432
  %v6685 = vpack.c.b16 %v6440, %v6433
  %v6686 = vpack.c.b16 %v6441, %v6434
  %v6687 = vpack.c.b16 %v6442, %v6435
  %v6688 = vpack.c.b16 %v6443, %v6436
  %v6689 = vpack.c.b16 %v6444, %v6437
  %v6690 = vpack.c.b16 %v6452, %v6445
  %v6691 = vpack.c.b16 %v6453, %v6446
  %v6692 = vpack.c.b16 %v6454, %v6447
  %v6693 = vpack.c.b16 %v6455, %v6448
  %v6694 = vpack.c.b16 %v6456, %v6449
  %v6695 = vpack.c.b16 %v6457, %v6450
  %v6696 = vpack.c.b16 %v6458, %v6451
  %v6697 = vpack.c.b16 %v6466, %v6459
  %v6698 = vpack.c.b16 %v6467, %v6460
  %v6699 = vpack.c.b16 %v6468, %v6461
  %v6700 = vpack.c.b16 %v6469, %v6462
  %v6701 = vpack.c.b16 %v6470, %v6463
  %v6702 = vpack.c.b16 %v6471, %v6464
  %v6703 = vpack.c.b16 %v6472, %v6465
  %v6704 = vpack.c.b16 %v6480, %v6473
  %v6705 = vpack.c.b16 %v6481, %v6474
  %v6706 = vpack.c.b16 %v6482, %v6475
  %v6707 = vpack.c.b16 %v6483, %v6476
  %v6708 = vpack.c.b16 %v6484, %v6477
  %v6709 = vpack.c.b16 %v6485, %v6478
  %v6710 = vpack.c.b16 %v6486, %v6479
  %v6711 = vpack.c.b16 %v6494, %v6487
  %v6712 = vpack.c.b16 %v6495, %v6488
  %v6713 = vpack.c.b16 %v6496, %v6489
  %v6714 = vpack.c.b16 %v6497, %v6490
  %v6715 = vpack.c.b16 %v6498, %v6491
  %v6716 = vpack.c.b16 %v6499, %v6492
  %v6717 = vpack.c.b16 %v6500, %v6493
  %v6718 = vpack.c.b16 %v6508, %v6501
  %v6719 = vpack.c.b16 %v6509, %v6502
  %v6720 = vpack.c.b16 %v6510, %v6503
  %v6721 = vpack.c.b16 %v6511, %v6504
  %v6722 = vpack.c.b16 %v6512, %v6505
  %v6723 = vpack.c.b16 %v6513, %v6506
  %v6724 = vpack.c.b16 %v6514, %v6507
  %v6725 = vpack.c.b16 %v6522, %v6515
  %v6726 = vpack.c.b16 %v6523, %v6516
  %v6727 = vpack.c.b16 %v6524, %v6517
  %v6728 = vpack.c.b16 %v6525, %v6518
  %v6729 = vpack.c.b16 %v6526, %v6519
  %v6730 = vpack.c.b16 %v6527, %v6520
  %v6731 = vpack.c.b16 %v6528, %v6521
  %v6732 = vpack.c.b16 %v6536, %v6529
  %v6733 = vpack.c.b16 %v6537, %v6530
  %v6734 = vpack.c.b16 %v6538, %v6531
  %v6735 = vpack.c.b16 %v6539, %v6532
  %v6736 = vpack.c.b16 %v6540, %v6533
  %v6737 = vpack.c.b16 %v6541, %v6534
  %v6738 = vpack.c.b16 %v6542, %v6535
  %v6936 = vsel %vm2735, 0, 0
  %6938 = vmatprep.subr.bf16.mxu0 %v6544
  %6939 = vmatpush1.bf16.msra.mxu0 %v6543
  %6940 = vmatprep.subr.bf16.mxu0 %v6551
  %6941 = vmatpush1.bf16.msra.mxu0 %v6550
  %6942 = vmatprep.subr.bf16.mxu0 %v6558
  %6943 = vmatpush1.bf16.msra.mxu0 %v6557
  %6944 = vmatprep.subr.bf16.mxu0 %v6565
  %6945 = vmatpush1.bf16.msra.mxu0 %v6564
  %6946 = vmatprep.subr.bf16.mxu0 %v6572
  %6947 = vmatpush1.bf16.msra.mxu0 %v6571
  %6948 = vmatprep.subr.bf16.mxu0 %v6579
  %6949 = vmatpush1.bf16.msra.mxu0 %v6578
  %6950 = vmatprep.subr.bf16.mxu0 %v6586
  %6951 = vmatpush1.bf16.msra.mxu0 %v6585
  %6952 = vmatprep.subr.bf16.mxu0 %v6593
  %6953 = vmatpush1.bf16.msra.mxu0 %v6592
  %6954 = vmatprep.subr.bf16.mxu0 %v6600
  %6955 = vmatpush1.bf16.msra.mxu0 %v6599
  %6956 = vmatprep.subr.bf16.mxu0 %v6607
  %6957 = vmatpush1.bf16.msra.mxu0 %v6606
  %6958 = vmatprep.subr.bf16.mxu0 %v6614
  %6959 = vmatpush1.bf16.msra.mxu0 %v6613
  %6960 = vmatprep.subr.bf16.mxu0 %v6621
  %6961 = vmatpush1.bf16.msra.mxu0 %v6620
  %6962 = vmatprep.subr.bf16.mxu0 %v6628
  %6963 = vmatpush1.bf16.msra.mxu0 %v6627
  %6964 = vmatprep.subr.bf16.mxu0 %v6635
  %6965 = vmatpush1.bf16.msra.mxu0 %v6634
  %6966 = vmatprep.subr.bf16.mxu0 %v6642
  %6967 = vmatpush1.bf16.msra.mxu0 %v6641
  %6968 = vmatprep.subr.bf16.mxu0 %v6649
  %6969 = vmatpush1.bf16.msra.mxu0 %v6648
  %6970 = vmatprep.mubr.bf16.mxu0 0
  %6971 = vmatmul.mubr.bf16.gmra.mrb[0].mxu0 0
  %v6972 = vpop.f32.mrb[0].mxu0
  %v6973 = vadd.f32 %v4807, %v6972
  %v6974 = vpop.f32.mrb[0].mxu0
  %v6975 = vadd.f32 %v4809, %v6974
  %v6976 = vpop.f32.mrb[0].mxu0
  %v6977 = vadd.f32 %v4811, %v6976
  %v6978 = vpop.f32.mrb[0].mxu0
  %v6979 = vadd.f32 %v4813, %v6978
  %6980 = vmatprep.mubr.bf16.mxu0 %v3045
  %6981 = vmatmul.mubr.bf16.gmra.mrb[0].mxu0 %v3044
  %v6982 = vpop.f32.mrb[0].mxu0
  %v6983 = vadd.f32 %v4817, %v6982
  %v6984 = vpop.f32.mrb[0].mxu0
  %v6985 = vadd.f32 %v4819, %v6984
  %v6986 = vpop.f32.mrb[0].mxu0
  %v6987 = vadd.f32 %v4821, %v6986
  %v6988 = vpop.f32.mrb[0].mxu0
  %v6989 = vadd.f32 %v4823, %v6988
  %6990 = vmatprep.mubr.bf16.mxu0 %v3049
  %6991 = vmatmul.mubr.bf16.gmra.mrb[0].mxu0 %v3048
  %v6992 = vpop.f32.mrb[0].mxu0
  %v6993 = vadd.f32 %v4827, %v6992
  %v6994 = vpop.f32.mrb[0].mxu0
  %v6995 = vadd.f32 %v4829, %v6994
  %v6996 = vpop.f32.mrb[0].mxu0
  %v6997 = vadd.f32 %v4831, %v6996
  %v6998 = vpop.f32.mrb[0].mxu0
  %v6999 = vadd.f32 %v4833, %v6998
  %7000 = vmatprep.mubr.bf16.mxu0 %v3053
  %7001 = vmatmul.mubr.bf16.gmra.mrb[0].mxu0 %v3052
  %v7002 = vpop.f32.mrb[0].mxu0
  %v7003 = vadd.f32 %v4837, %v7002
  %v7004 = vpop.f32.mrb[0].mxu0
  %v7005 = vadd.f32 %v4839, %v7004
  %v7006 = vpop.f32.mrb[0].mxu0
  %v7007 = vadd.f32 %v4841, %v7006
  %v7008 = vpop.f32.mrb[0].mxu0
  %v7009 = vadd.f32 %v4843, %v7008
  %7010 = vmatprep.mubr.bf16.mxu0 %v3057
  %7011 = vmatmul.mubr.bf16.gmra.mrb[0].mxu0 %v3056
  %v7012 = vpop.f32.mrb[0].mxu0
  %v7013 = vadd.f32 %v4847, %v7012
  %v7014 = vpop.f32.mrb[0].mxu0
  %v7015 = vadd.f32 %v4849, %v7014
  %v7016 = vpop.f32.mrb[0].mxu0
  %v7017 = vadd.f32 %v4851, %v7016
  %v7018 = vpop.f32.mrb[0].mxu0
  %v7019 = vadd.f32 %v4853, %v7018
  %7020 = vmatprep.mubr.bf16.mxu0 %v3061
  %7021 = vmatmul.mubr.bf16.gmra.mrb[0].mxu0 %v3060
  %v7022 = vpop.f32.mrb[0].mxu0
  %v7023 = vadd.f32 %v4857, %v7022
  %v7024 = vpop.f32.mrb[0].mxu0
  %v7025 = vadd.f32 %v4859, %v7024
  %v7026 = vpop.f32.mrb[0].mxu0
  %v7027 = vadd.f32 %v4861, %v7026
  %v7028 = vpop.f32.mrb[0].mxu0
  %v7029 = vadd.f32 %v4863, %v7028
  %7030 = vmatprep.mubr.bf16.mxu0 %v3065
  %7031 = vmatmul.mubr.bf16.gmra.mrb[0].mxu0 %v3064
  %v7032 = vpop.f32.mrb[0].mxu0
  %v7033 = vadd.f32 %v4867, %v7032
  %v7034 = vpop.f32.mrb[0].mxu0
  %v7035 = vadd.f32 %v4869, %v7034
  %v7036 = vpop.f32.mrb[0].mxu0
  %v7037 = vadd.f32 %v4871, %v7036
  %v7038 = vpop.f32.mrb[0].mxu0
  %v7039 = vadd.f32 %v4873, %v7038
  %7040 = vmatprep.mubr.bf16.mxu0 %v3069
  %7041 = vmatmul.mubr.bf16.gmra.mrb[0].mxu0 %v3068
  %v7042 = vpop.f32.mrb[0].mxu0
  %v7043 = vadd.f32 %v4877, %v7042
  %v7044 = vpop.f32.mrb[0].mxu0
  %v7045 = vadd.f32 %v4879, %v7044
  %v7046 = vpop.f32.mrb[0].mxu0
  %v7047 = vadd.f32 %v4881, %v7046
  %v7048 = vpop.f32.mrb[0].mxu0
  %v7049 = vadd.f32 %v4883, %v7048
  %7050 = vmatprep.mubr.bf16.mxu0 %v3073
  %7051 = vmatmul.mubr.bf16.gmra.mrb[0].mxu0 %v3072
  %v7052 = vpop.f32.mrb[0].mxu0
  %v7053 = vadd.f32 %v4887, %v7052
  %v7054 = vpop.f32.mrb[0].mxu0
  %v7055 = vadd.f32 %v4889, %v7054
  %v7056 = vpop.f32.mrb[0].mxu0
  %v7057 = vadd.f32 %v4891, %v7056
  %v7058 = vpop.f32.mrb[0].mxu0
  %v7059 = vadd.f32 %v4893, %v7058
  %7060 = vmatprep.mubr.bf16.mxu0 %v3077
  %7061 = vmatmul.mubr.bf16.gmra.mrb[0].mxu0 %v3076
  %v7062 = vpop.f32.mrb[0].mxu0
  %v7063 = vadd.f32 %v4897, %v7062
  %v7064 = vpop.f32.mrb[0].mxu0
  %v7065 = vadd.f32 %v4899, %v7064
  %v7066 = vpop.f32.mrb[0].mxu0
  %v7067 = vadd.f32 %v4901, %v7066
  %v7068 = vpop.f32.mrb[0].mxu0
  %v7069 = vadd.f32 %v4903, %v7068
  %7070 = vmatprep.mubr.bf16.mxu0 %v3081
  %7071 = vmatmul.mubr.bf16.gmra.mrb[0].mxu0 %v3080
  %v7072 = vpop.f32.mrb[0].mxu0
  %v7073 = vadd.f32 %v4907, %v7072
  %v7074 = vpop.f32.mrb[0].mxu0
  %v7075 = vadd.f32 %v4909, %v7074
  %v7076 = vpop.f32.mrb[0].mxu0
  %v7077 = vadd.f32 %v4911, %v7076
  %v7078 = vpop.f32.mrb[0].mxu0
  %v7079 = vadd.f32 %v4913, %v7078
  %7080 = vmatprep.mubr.bf16.mxu0 %v3085
  %7081 = vmatmul.mubr.bf16.gmra.mrb[0].mxu0 %v3084
  %v7082 = vpop.f32.mrb[0].mxu0
  %v7083 = vadd.f32 %v4917, %v7082
  %v7084 = vpop.f32.mrb[0].mxu0
  %v7085 = vadd.f32 %v4919, %v7084
  %v7086 = vpop.f32.mrb[0].mxu0
  %v7087 = vadd.f32 %v4921, %v7086
  %v7088 = vpop.f32.mrb[0].mxu0
  %v7089 = vadd.f32 %v4923, %v7088
  %7090 = vmatprep.mubr.bf16.mxu0 %v3089
  %7091 = vmatmul.mubr.bf16.gmra.mrb[0].mxu0 %v3088
  %v7092 = vpop.f32.mrb[0].mxu0
  %v7093 = vadd.f32 %v4927, %v7092
  %v7094 = vpop.f32.mrb[0].mxu0
  %v7095 = vadd.f32 %v4929, %v7094
  %v7096 = vpop.f32.mrb[0].mxu0
  %v7097 = vadd.f32 %v4931, %v7096
  %v7098 = vpop.f32.mrb[0].mxu0
  %v7099 = vadd.f32 %v4933, %v7098
  %7100 = vmatprep.mubr.bf16.mxu0 %v3093
  %7101 = vmatmul.mubr.bf16.gmra.mrb[0].mxu0 %v3092
  %v7102 = vpop.f32.mrb[0].mxu0
  %v7103 = vadd.f32 %v4937, %v7102
  %v7104 = vpop.f32.mrb[0].mxu0
  %v7105 = vadd.f32 %v4939, %v7104
  %v7106 = vpop.f32.mrb[0].mxu0
  %v7107 = vadd.f32 %v4941, %v7106
  %v7108 = vpop.f32.mrb[0].mxu0
  %v7109 = vadd.f32 %v4943, %v7108
  %7110 = vdwg.mxu0
  %7111 = vmatprep.subr.bf16.mxu0 %v6656
  %7112 = vmatpush1.bf16.msra.mxu0 %v6655
  %7113 = vmatprep.subr.bf16.mxu0 %v6663
  %7114 = vmatpush1.bf16.msra.mxu0 %v6662
  %7115 = vmatprep.subr.bf16.mxu0 %v6670
  %7116 = vmatpush1.bf16.msra.mxu0 %v6669
  %7117 = vmatprep.subr.bf16.mxu0 %v6677
  %7118 = vmatpush1.bf16.msra.mxu0 %v6676
  %7119 = vmatprep.subr.bf16.mxu0 %v6684
  %7120 = vmatpush1.bf16.msra.mxu0 %v6683
  %7121 = vmatprep.subr.bf16.mxu0 %v6691
  %7122 = vmatpush1.bf16.msra.mxu0 %v6690
  %7123 = vmatprep.subr.bf16.mxu0 %v6698
  %7124 = vmatpush1.bf16.msra.mxu0 %v6697
  %7125 = vmatprep.subr.bf16.mxu0 %v6705
  %7126 = vmatpush1.bf16.msra.mxu0 %v6704
  %7127 = vmatprep.subr.bf16.mxu0 %v6712
  %7128 = vmatpush1.bf16.msra.mxu0 %v6711
  %7129 = vmatprep.subr.bf16.mxu0 %v6719
  %7130 = vmatpush1.bf16.msra.mxu0 %v6718
  %7131 = vmatprep.subr.bf16.mxu0 %v6726
  %7132 = vmatpush1.bf16.msra.mxu0 %v6725
  %7133 = vmatprep.subr.bf16.mxu0 %v6733
  %7134 = vmatpush1.bf16.msra.mxu0 %v6732
  %7135 = vmatprep.subr.bf16.mxu0 0
  %7136 = vmatpush1.bf16.msra.mxu0 0
  %7137 = vmatprep.subr.bf16.mxu0 0
  %7138 = vmatpush1.bf16.msra.mxu0 0
  %7139 = vmatprep.subr.bf16.mxu0 0
  %7140 = vmatpush1.bf16.msra.mxu0 0
  %7141 = vmatprep.subr.bf16.mxu0 0
  %7142 = vmatpush1.bf16.msra.mxu0 0
  %7143 = vmatprep.mubr.bf16.mxu0 %v6936
  %7144 = vmatmul.mubr.bf16.gmra.mrb[0].mxu0 0
  %v7145 = vpop.f32.mrb[0].mxu0
  %v7146 = vadd.f32 %v6973, %v7145
  %v7147 = vpop.f32.mrb[0].mxu0
  %v7148 = vadd.f32 %v6975, %v7147
  %v7149 = vpop.f32.mrb[0].mxu0
  %v7150 = vadd.f32 %v6977, %v7149
  %v7151 = vpop.f32.mrb[0].mxu0
  %v7152 = vadd.f32 %v6979, %v7151
  %7153 = vmatprep.mubr.bf16.mxu0 %v4558
  %7154 = vmatmul.mubr.bf16.gmra.mrb[0].mxu0 %v3046
  %v7155 = vpop.f32.mrb[0].mxu0
  %v7156 = vadd.f32 %v6983, %v7155
  %v7157 = vpop.f32.mrb[0].mxu0
  %v7158 = vadd.f32 %v6985, %v7157
  %v7159 = vpop.f32.mrb[0].mxu0
  %v7160 = vadd.f32 %v6987, %v7159
  %v7161 = vpop.f32.mrb[0].mxu0
  %v7162 = vadd.f32 %v6989, %v7161
  %7163 = vmatprep.mubr.bf16.mxu0 %v4561
  %7164 = vmatmul.mubr.bf16.gmra.mrb[0].mxu0 %v3050
  %v7165 = vpop.f32.mrb[0].mxu0
  %v7166 = vadd.f32 %v6993, %v7165
  %v7167 = vpop.f32.mrb[0].mxu0
  %v7168 = vadd.f32 %v6995, %v7167
  %v7169 = vpop.f32.mrb[0].mxu0
  %v7170 = vadd.f32 %v6997, %v7169
  %v7171 = vpop.f32.mrb[0].mxu0
  %v7172 = vadd.f32 %v6999, %v7171
  %7173 = vmatprep.mubr.bf16.mxu0 %v4564
  %7174 = vmatmul.mubr.bf16.gmra.mrb[0].mxu0 %v3054
  %v7175 = vpop.f32.mrb[0].mxu0
  %v7176 = vadd.f32 %v7003, %v7175
  %v7177 = vpop.f32.mrb[0].mxu0
  %v7178 = vadd.f32 %v7005, %v7177
  %v7179 = vpop.f32.mrb[0].mxu0
  %v7180 = vadd.f32 %v7007, %v7179
  %v7181 = vpop.f32.mrb[0].mxu0
  %v7182 = vadd.f32 %v7009, %v7181
  %7183 = vmatprep.mubr.bf16.mxu0 %v4567
  %7184 = vmatmul.mubr.bf16.gmra.mrb[0].mxu0 %v3058
  %v7185 = vpop.f32.mrb[0].mxu0
  %v7186 = vadd.f32 %v7013, %v7185
  %v7187 = vpop.f32.mrb[0].mxu0
  %v7188 = vadd.f32 %v7015, %v7187
  %v7189 = vpop.f32.mrb[0].mxu0
  %v7190 = vadd.f32 %v7017, %v7189
  %v7191 = vpop.f32.mrb[0].mxu0
  %v7192 = vadd.f32 %v7019, %v7191
  %7193 = vmatprep.mubr.bf16.mxu0 %v4570
  %7194 = vmatmul.mubr.bf16.gmra.mrb[0].mxu0 %v3062
  %v7195 = vpop.f32.mrb[0].mxu0
  %v7196 = vadd.f32 %v7023, %v7195
  %v7197 = vpop.f32.mrb[0].mxu0
  %v7198 = vadd.f32 %v7025, %v7197
  %v7199 = vpop.f32.mrb[0].mxu0
  %v7200 = vadd.f32 %v7027, %v7199
  %v7201 = vpop.f32.mrb[0].mxu0
  %v7202 = vadd.f32 %v7029, %v7201
  %7203 = vmatprep.mubr.bf16.mxu0 %v4573
  %7204 = vmatmul.mubr.bf16.gmra.mrb[0].mxu0 %v3066
  %v7205 = vpop.f32.mrb[0].mxu0
  %v7206 = vadd.f32 %v7033, %v7205
  %v7207 = vpop.f32.mrb[0].mxu0
  %v7208 = vadd.f32 %v7035, %v7207
  %v7209 = vpop.f32.mrb[0].mxu0
  %v7210 = vadd.f32 %v7037, %v7209
  %v7211 = vpop.f32.mrb[0].mxu0
  %v7212 = vadd.f32 %v7039, %v7211
  %7213 = vmatprep.mubr.bf16.mxu0 %v4576
  %7214 = vmatmul.mubr.bf16.gmra.mrb[0].mxu0 %v3070
  %v7215 = vpop.f32.mrb[0].mxu0
  %v7216 = vadd.f32 %v7043, %v7215
  %v7217 = vpop.f32.mrb[0].mxu0
  %v7218 = vadd.f32 %v7045, %v7217
  %v7219 = vpop.f32.mrb[0].mxu0
  %v7220 = vadd.f32 %v7047, %v7219
  %v7221 = vpop.f32.mrb[0].mxu0
  %v7222 = vadd.f32 %v7049, %v7221
  %7223 = vmatprep.mubr.bf16.mxu0 %v4579
  %7224 = vmatmul.mubr.bf16.gmra.mrb[0].mxu0 %v3074
  %v7225 = vpop.f32.mrb[0].mxu0
  %v7226 = vadd.f32 %v7053, %v7225
  %v7227 = vpop.f32.mrb[0].mxu0
  %v7228 = vadd.f32 %v7055, %v7227
  %v7229 = vpop.f32.mrb[0].mxu0
  %v7230 = vadd.f32 %v7057, %v7229
  %v7231 = vpop.f32.mrb[0].mxu0
  %v7232 = vadd.f32 %v7059, %v7231
  %7233 = vmatprep.mubr.bf16.mxu0 %v4582
  %7234 = vmatmul.mubr.bf16.gmra.mrb[0].mxu0 %v3078
  %v7235 = vpop.f32.mrb[0].mxu0
  %v7236 = vadd.f32 %v7063, %v7235
  %v7237 = vpop.f32.mrb[0].mxu0
  %v7238 = vadd.f32 %v7065, %v7237
  %v7239 = vpop.f32.mrb[0].mxu0
  %v7240 = vadd.f32 %v7067, %v7239
  %v7241 = vpop.f32.mrb[0].mxu0
  %v7242 = vadd.f32 %v7069, %v7241
  %7243 = vmatprep.mubr.bf16.mxu0 %v4585
  %7244 = vmatmul.mubr.bf16.gmra.mrb[0].mxu0 %v3082
  %v7245 = vpop.f32.mrb[0].mxu0
  %v7246 = vadd.f32 %v7073, %v7245
  %v7247 = vpop.f32.mrb[0].mxu0
  %v7248 = vadd.f32 %v7075, %v7247
  %v7249 = vpop.f32.mrb[0].mxu0
  %v7250 = vadd.f32 %v7077, %v7249
  %v7251 = vpop.f32.mrb[0].mxu0
  %v7252 = vadd.f32 %v7079, %v7251
  %7253 = vmatprep.mubr.bf16.mxu0 %v4588
  %7254 = vmatmul.mubr.bf16.gmra.mrb[0].mxu0 %v3086
  %v7255 = vpop.f32.mrb[0].mxu0
  %v7256 = vadd.f32 %v7083, %v7255
  %v7257 = vpop.f32.mrb[0].mxu0
  %v7258 = vadd.f32 %v7085, %v7257
  %v7259 = vpop.f32.mrb[0].mxu0
  %v7260 = vadd.f32 %v7087, %v7259
  %v7261 = vpop.f32.mrb[0].mxu0
  %v7262 = vadd.f32 %v7089, %v7261
  %7263 = vmatprep.mubr.bf16.mxu0 %v4591
  %7264 = vmatmul.mubr.bf16.gmra.mrb[0].mxu0 %v3090
  %v7265 = vpop.f32.mrb[0].mxu0
  %v7266 = vadd.f32 %v7093, %v7265
  %v7267 = vpop.f32.mrb[0].mxu0
  %v7268 = vadd.f32 %v7095, %v7267
  %v7269 = vpop.f32.mrb[0].mxu0
  %v7270 = vadd.f32 %v7097, %v7269
  %v7271 = vpop.f32.mrb[0].mxu0
  %v7272 = vadd.f32 %v7099, %v7271
  %7273 = vmatprep.mubr.bf16.mxu0 %v4594
  %7274 = vmatmul.mubr.bf16.gmra.mrb[0].mxu0 %v3094
  %v7275 = vpop.f32.mrb[0].mxu0
  %v7276 = vadd.f32 %v7103, %v7275
  %v7277 = vpop.f32.mrb[0].mxu0
  %v7278 = vadd.f32 %v7105, %v7277
  %v7279 = vpop.f32.mrb[0].mxu0
  %v7280 = vadd.f32 %v7107, %v7279
  %v7281 = vpop.f32.mrb[0].mxu0
  %v7282 = vadd.f32 %v7109, %v7281
  %7283 = vdwg.mxu0
  %7284 = vmatprep.subr.bf16.mxu0 %v6546
  %7285 = vmatpush1.bf16.msra.mxu0 %v6545
  %7286 = vmatprep.subr.bf16.mxu0 %v6553
  %7287 = vmatpush1.bf16.msra.mxu0 %v6552
  %7288 = vmatprep.subr.bf16.mxu0 %v6560
  %7289 = vmatpush1.bf16.msra.mxu0 %v6559
  %7290 = vmatprep.subr.bf16.mxu0 %v6567
  %7291 = vmatpush1.bf16.msra.mxu0 %v6566
  %7292 = vmatprep.subr.bf16.mxu0 %v6574
  %7293 = vmatpush1.bf16.msra.mxu0 %v6573
  %7294 = vmatprep.subr.bf16.mxu0 %v6581
  %7295 = vmatpush1.bf16.msra.mxu0 %v6580
  %7296 = vmatprep.subr.bf16.mxu0 %v6588
  %7297 = vmatpush1.bf16.msra.mxu0 %v6587
  %7298 = vmatprep.subr.bf16.mxu0 %v6595
  %7299 = vmatpush1.bf16.msra.mxu0 %v6594
  %7300 = vmatprep.subr.bf16.mxu0 %v6602
  %7301 = vmatpush1.bf16.msra.mxu0 %v6601
  %7302 = vmatprep.subr.bf16.mxu0 %v6609
  %7303 = vmatpush1.bf16.msra.mxu0 %v6608
  %7304 = vmatprep.subr.bf16.mxu0 %v6616
  %7305 = vmatpush1.bf16.msra.mxu0 %v6615
  %7306 = vmatprep.subr.bf16.mxu0 %v6623
  %7307 = vmatpush1.bf16.msra.mxu0 %v6622
  %7308 = vmatprep.subr.bf16.mxu0 %v6630
  %7309 = vmatpush1.bf16.msra.mxu0 %v6629
  %7310 = vmatprep.subr.bf16.mxu0 %v6637
  %7311 = vmatpush1.bf16.msra.mxu0 %v6636
  %7312 = vmatprep.subr.bf16.mxu0 %v6644
  %7313 = vmatpush1.bf16.msra.mxu0 %v6643
  %7314 = vmatprep.subr.bf16.mxu0 %v6651
  %7315 = vmatpush1.bf16.msra.mxu0 %v6650
  %7316 = vmatprep.mubr.bf16.mxu0 0
  %7317 = vmatmul.mubr.bf16.gmra.mrb[0].mxu0 0
  %v7318 = vpop.f32.mrb[0].mxu0
  %v7319 = vadd.f32 %v5153, %v7318
  %v7320 = vpop.f32.mrb[0].mxu0
  %v7321 = vadd.f32 %v5155, %v7320
  %v7322 = vpop.f32.mrb[0].mxu0
  %v7323 = vadd.f32 %v5157, %v7322
  %v7324 = vpop.f32.mrb[0].mxu0
  %v7325 = vadd.f32 %v5159, %v7324
  %7326 = vmatprep.mubr.bf16.mxu0 %v3045
  %7327 = vmatmul.mubr.bf16.gmra.mrb[0].mxu0 %v3044
  %v7328 = vpop.f32.mrb[0].mxu0
  %v7329 = vadd.f32 %v5163, %v7328
  %v7330 = vpop.f32.mrb[0].mxu0
  %v7331 = vadd.f32 %v5165, %v7330
  %v7332 = vpop.f32.mrb[0].mxu0
  %v7333 = vadd.f32 %v5167, %v7332
  %v7334 = vpop.f32.mrb[0].mxu0
  %v7335 = vadd.f32 %v5169, %v7334
  %7336 = vmatprep.mubr.bf16.mxu0 %v3049
  %7337 = vmatmul.mubr.bf16.gmra.mrb[0].mxu0 %v3048
  %v7338 = vpop.f32.mrb[0].mxu0
  %v7339 = vadd.f32 %v5173, %v7338
  %v7340 = vpop.f32.mrb[0].mxu0
  %v7341 = vadd.f32 %v5175, %v7340
  %v7342 = vpop.f32.mrb[0].mxu0
  %v7343 = vadd.f32 %v5177, %v7342
  %v7344 = vpop.f32.mrb[0].mxu0
  %v7345 = vadd.f32 %v5179, %v7344
  %7346 = vmatprep.mubr.bf16.mxu0 %v3053
  %7347 = vmatmul.mubr.bf16.gmra.mrb[0].mxu0 %v3052
  %v7348 = vpop.f32.mrb[0].mxu0
  %v7349 = vadd.f32 %v5183, %v7348
  %v7350 = vpop.f32.mrb[0].mxu0
  %v7351 = vadd.f32 %v5185, %v7350
  %v7352 = vpop.f32.mrb[0].mxu0
  %v7353 = vadd.f32 %v5187, %v7352
  %v7354 = vpop.f32.mrb[0].mxu0
  %v7355 = vadd.f32 %v5189, %v7354
  %7356 = vmatprep.mubr.bf16.mxu0 %v3057
  %7357 = vmatmul.mubr.bf16.gmra.mrb[0].mxu0 %v3056
  %v7358 = vpop.f32.mrb[0].mxu0
  %v7359 = vadd.f32 %v5193, %v7358
  %v7360 = vpop.f32.mrb[0].mxu0
  %v7361 = vadd.f32 %v5195, %v7360
  %v7362 = vpop.f32.mrb[0].mxu0
  %v7363 = vadd.f32 %v5197, %v7362
  %v7364 = vpop.f32.mrb[0].mxu0
  %v7365 = vadd.f32 %v5199, %v7364
  %7366 = vmatprep.mubr.bf16.mxu0 %v3061
  %7367 = vmatmul.mubr.bf16.gmra.mrb[0].mxu0 %v3060
  %v7368 = vpop.f32.mrb[0].mxu0
  %v7369 = vadd.f32 %v5203, %v7368
  %v7370 = vpop.f32.mrb[0].mxu0
  %v7371 = vadd.f32 %v5205, %v7370
  %v7372 = vpop.f32.mrb[0].mxu0
  %v7373 = vadd.f32 %v5207, %v7372
  %v7374 = vpop.f32.mrb[0].mxu0
  %v7375 = vadd.f32 %v5209, %v7374
  %7376 = vmatprep.mubr.bf16.mxu0 %v3065
  %7377 = vmatmul.mubr.bf16.gmra.mrb[0].mxu0 %v3064
  %v7378 = vpop.f32.mrb[0].mxu0
  %v7379 = vadd.f32 %v5213, %v7378
  %v7380 = vpop.f32.mrb[0].mxu0
  %v7381 = vadd.f32 %v5215, %v7380
  %v7382 = vpop.f32.mrb[0].mxu0
  %v7383 = vadd.f32 %v5217, %v7382
  %v7384 = vpop.f32.mrb[0].mxu0
  %v7385 = vadd.f32 %v5219, %v7384
  %7386 = vmatprep.mubr.bf16.mxu0 %v3069
  %7387 = vmatmul.mubr.bf16.gmra.mrb[0].mxu0 %v3068
  %v7388 = vpop.f32.mrb[0].mxu0
  %v7389 = vadd.f32 %v5223, %v7388
  %v7390 = vpop.f32.mrb[0].mxu0
  %v7391 = vadd.f32 %v5225, %v7390
  %v7392 = vpop.f32.mrb[0].mxu0
  %v7393 = vadd.f32 %v5227, %v7392
  %v7394 = vpop.f32.mrb[0].mxu0
  %v7395 = vadd.f32 %v5229, %v7394
  %7396 = vmatprep.mubr.bf16.mxu0 %v3073
  %7397 = vmatmul.mubr.bf16.gmra.mrb[0].mxu0 %v3072
  %v7398 = vpop.f32.mrb[0].mxu0
  %v7399 = vadd.f32 %v5233, %v7398
  %v7400 = vpop.f32.mrb[0].mxu0
  %v7401 = vadd.f32 %v5235, %v7400
  %v7402 = vpop.f32.mrb[0].mxu0
  %v7403 = vadd.f32 %v5237, %v7402
  %v7404 = vpop.f32.mrb[0].mxu0
  %v7405 = vadd.f32 %v5239, %v7404
  %7406 = vmatprep.mubr.bf16.mxu0 %v3077
  %7407 = vmatmul.mubr.bf16.gmra.mrb[0].mxu0 %v3076
  %v7408 = vpop.f32.mrb[0].mxu0
  %v7409 = vadd.f32 %v5243, %v7408
  %v7410 = vpop.f32.mrb[0].mxu0
  %v7411 = vadd.f32 %v5245, %v7410
  %v7412 = vpop.f32.mrb[0].mxu0
  %v7413 = vadd.f32 %v5247, %v7412
  %v7414 = vpop.f32.mrb[0].mxu0
  %v7415 = vadd.f32 %v5249, %v7414
  %7416 = vmatprep.mubr.bf16.mxu0 %v3081
  %7417 = vmatmul.mubr.bf16.gmra.mrb[0].mxu0 %v3080
  %v7418 = vpop.f32.mrb[0].mxu0
  %v7419 = vadd.f32 %v5253, %v7418
  %v7420 = vpop.f32.mrb[0].mxu0
  %v7421 = vadd.f32 %v5255, %v7420
  %v7422 = vpop.f32.mrb[0].mxu0
  %v7423 = vadd.f32 %v5257, %v7422
  %v7424 = vpop.f32.mrb[0].mxu0
  %v7425 = vadd.f32 %v5259, %v7424
  %7426 = vmatprep.mubr.bf16.mxu0 %v3085
  %7427 = vmatmul.mubr.bf16.gmra.mrb[0].mxu0 %v3084
  %v7428 = vpop.f32.mrb[0].mxu0
  %v7429 = vadd.f32 %v5263, %v7428
  %v7430 = vpop.f32.mrb[0].mxu0
  %v7431 = vadd.f32 %v5265, %v7430
  %v7432 = vpop.f32.mrb[0].mxu0
  %v7433 = vadd.f32 %v5267, %v7432
  %v7434 = vpop.f32.mrb[0].mxu0
  %v7435 = vadd.f32 %v5269, %v7434
  %7436 = vmatprep.mubr.bf16.mxu0 %v3089
  %7437 = vmatmul.mubr.bf16.gmra.mrb[0].mxu0 %v3088
  %v7438 = vpop.f32.mrb[0].mxu0
  %v7439 = vadd.f32 %v5273, %v7438
  %v7440 = vpop.f32.mrb[0].mxu0
  %v7441 = vadd.f32 %v5275, %v7440
  %v7442 = vpop.f32.mrb[0].mxu0
  %v7443 = vadd.f32 %v5277, %v7442
  %v7444 = vpop.f32.mrb[0].mxu0
  %v7445 = vadd.f32 %v5279, %v7444
  %7446 = vmatprep.mubr.bf16.mxu0 %v3093
  %7447 = vmatmul.mubr.bf16.gmra.mrb[0].mxu0 %v3092
  %v7448 = vpop.f32.mrb[0].mxu0
  %v7449 = vadd.f32 %v5283, %v7448
  %v7450 = vpop.f32.mrb[0].mxu0
  %v7451 = vadd.f32 %v5285, %v7450
  %v7452 = vpop.f32.mrb[0].mxu0
  %v7453 = vadd.f32 %v5287, %v7452
  %v7454 = vpop.f32.mrb[0].mxu0
  %v7455 = vadd.f32 %v5289, %v7454
  %7456 = vdwg.mxu0
  %7457 = vmatprep.subr.bf16.mxu0 %v6658
  %7458 = vmatpush1.bf16.msra.mxu0 %v6657
  %7459 = vmatprep.subr.bf16.mxu0 %v6665
  %7460 = vmatpush1.bf16.msra.mxu0 %v6664
  %7461 = vmatprep.subr.bf16.mxu0 %v6672
  %7462 = vmatpush1.bf16.msra.mxu0 %v6671
  %7463 = vmatprep.subr.bf16.mxu0 %v6679
  %7464 = vmatpush1.bf16.msra.mxu0 %v6678
  %7465 = vmatprep.subr.bf16.mxu0 %v6686
  %7466 = vmatpush1.bf16.msra.mxu0 %v6685
  %7467 = vmatprep.subr.bf16.mxu0 %v6693
  %7468 = vmatpush1.bf16.msra.mxu0 %v6692
  %7469 = vmatprep.subr.bf16.mxu0 %v6700
  %7470 = vmatpush1.bf16.msra.mxu0 %v6699
  %7471 = vmatprep.subr.bf16.mxu0 %v6707
  %7472 = vmatpush1.bf16.msra.mxu0 %v6706
  %7473 = vmatprep.subr.bf16.mxu0 %v6714
  %7474 = vmatpush1.bf16.msra.mxu0 %v6713
  %7475 = vmatprep.subr.bf16.mxu0 %v6721
  %7476 = vmatpush1.bf16.msra.mxu0 %v6720
  %7477 = vmatprep.subr.bf16.mxu0 %v6728
  %7478 = vmatpush1.bf16.msra.mxu0 %v6727
  %7479 = vmatprep.subr.bf16.mxu0 %v6735
  %7480 = vmatpush1.bf16.msra.mxu0 %v6734
  %7481 = vmatprep.subr.bf16.mxu0 0
  %7482 = vmatpush1.bf16.msra.mxu0 0
  %7483 = vmatprep.subr.bf16.mxu0 0
  %7484 = vmatpush1.bf16.msra.mxu0 0
  %7485 = vmatprep.subr.bf16.mxu0 0
  %7486 = vmatpush1.bf16.msra.mxu0 0
  %7487 = vmatprep.subr.bf16.mxu0 0
  %7488 = vmatpush1.bf16.msra.mxu0 0
  %7489 = vmatprep.mubr.bf16.mxu0 %v6936
  %7490 = vmatmul.mubr.bf16.gmra.mrb[0].mxu0 0
  %v7491 = vpop.f32.mrb[0].mxu0
  %v7492 = vadd.f32 %v7319, %v7491
  %v7493 = vpop.f32.mrb[0].mxu0
  %v7494 = vadd.f32 %v7321, %v7493
  %v7495 = vpop.f32.mrb[0].mxu0
  %v7496 = vadd.f32 %v7323, %v7495
  %v7497 = vpop.f32.mrb[0].mxu0
  %v7498 = vadd.f32 %v7325, %v7497
  %7499 = vmatprep.mubr.bf16.mxu0 %v4558
  %7500 = vmatmul.mubr.bf16.gmra.mrb[0].mxu0 %v3046
  %v7501 = vpop.f32.mrb[0].mxu0
  %v7502 = vadd.f32 %v7329, %v7501
  %v7503 = vpop.f32.mrb[0].mxu0
  %v7504 = vadd.f32 %v7331, %v7503
  %v7505 = vpop.f32.mrb[0].mxu0
  %v7506 = vadd.f32 %v7333, %v7505
  %v7507 = vpop.f32.mrb[0].mxu0
  %v7508 = vadd.f32 %v7335, %v7507
  %7509 = vmatprep.mubr.bf16.mxu0 %v4561
  %7510 = vmatmul.mubr.bf16.gmra.mrb[0].mxu0 %v3050
  %v7511 = vpop.f32.mrb[0].mxu0
  %v7512 = vadd.f32 %v7339, %v7511
  %v7513 = vpop.f32.mrb[0].mxu0
  %v7514 = vadd.f32 %v7341, %v7513
  %v7515 = vpop.f32.mrb[0].mxu0
  %v7516 = vadd.f32 %v7343, %v7515
  %v7517 = vpop.f32.mrb[0].mxu0
  %v7518 = vadd.f32 %v7345, %v7517
  %7519 = vmatprep.mubr.bf16.mxu0 %v4564
  %7520 = vmatmul.mubr.bf16.gmra.mrb[0].mxu0 %v3054
  %v7521 = vpop.f32.mrb[0].mxu0
  %v7522 = vadd.f32 %v7349, %v7521
  %v7523 = vpop.f32.mrb[0].mxu0
  %v7524 = vadd.f32 %v7351, %v7523
  %v7525 = vpop.f32.mrb[0].mxu0
  %v7526 = vadd.f32 %v7353, %v7525
  %v7527 = vpop.f32.mrb[0].mxu0
  %v7528 = vadd.f32 %v7355, %v7527
  %7529 = vmatprep.mubr.bf16.mxu0 %v4567
  %7530 = vmatmul.mubr.bf16.gmra.mrb[0].mxu0 %v3058
  %v7531 = vpop.f32.mrb[0].mxu0
  %v7532 = vadd.f32 %v7359, %v7531
  %v7533 = vpop.f32.mrb[0].mxu0
  %v7534 = vadd.f32 %v7361, %v7533
  %v7535 = vpop.f32.mrb[0].mxu0
  %v7536 = vadd.f32 %v7363, %v7535
  %v7537 = vpop.f32.mrb[0].mxu0
  %v7538 = vadd.f32 %v7365, %v7537
  %7539 = vmatprep.mubr.bf16.mxu0 %v4570
  %7540 = vmatmul.mubr.bf16.gmra.mrb[0].mxu0 %v3062
  %v7541 = vpop.f32.mrb[0].mxu0
  %v7542 = vadd.f32 %v7369, %v7541
  %v7543 = vpop.f32.mrb[0].mxu0
  %v7544 = vadd.f32 %v7371, %v7543
  %v7545 = vpop.f32.mrb[0].mxu0
  %v7546 = vadd.f32 %v7373, %v7545
  %v7547 = vpop.f32.mrb[0].mxu0
  %v7548 = vadd.f32 %v7375, %v7547
  %7549 = vmatprep.mubr.bf16.mxu0 %v4573
  %7550 = vmatmul.mubr.bf16.gmra.mrb[0].mxu0 %v3066
  %v7551 = vpop.f32.mrb[0].mxu0
  %v7552 = vadd.f32 %v7379, %v7551
  %v7553 = vpop.f32.mrb[0].mxu0
  %v7554 = vadd.f32 %v7381, %v7553
  %v7555 = vpop.f32.mrb[0].mxu0
  %v7556 = vadd.f32 %v7383, %v7555
  %v7557 = vpop.f32.mrb[0].mxu0
  %v7558 = vadd.f32 %v7385, %v7557
  %7559 = vmatprep.mubr.bf16.mxu0 %v4576
  %7560 = vmatmul.mubr.bf16.gmra.mrb[0].mxu0 %v3070
  %v7561 = vpop.f32.mrb[0].mxu0
  %v7562 = vadd.f32 %v7389, %v7561
  %v7563 = vpop.f32.mrb[0].mxu0
  %v7564 = vadd.f32 %v7391, %v7563
  %v7565 = vpop.f32.mrb[0].mxu0
  %v7566 = vadd.f32 %v7393, %v7565
  %v7567 = vpop.f32.mrb[0].mxu0
  %v7568 = vadd.f32 %v7395, %v7567
  %7569 = vmatprep.mubr.bf16.mxu0 %v4579
  %7570 = vmatmul.mubr.bf16.gmra.mrb[0].mxu0 %v3074
  %v7571 = vpop.f32.mrb[0].mxu0
  %v7572 = vadd.f32 %v7399, %v7571
  %v7573 = vpop.f32.mrb[0].mxu0
  %v7574 = vadd.f32 %v7401, %v7573
  %v7575 = vpop.f32.mrb[0].mxu0
  %v7576 = vadd.f32 %v7403, %v7575
  %v7577 = vpop.f32.mrb[0].mxu0
  %v7578 = vadd.f32 %v7405, %v7577
  %7579 = vmatprep.mubr.bf16.mxu0 %v4582
  %7580 = vmatmul.mubr.bf16.gmra.mrb[0].mxu0 %v3078
  %v7581 = vpop.f32.mrb[0].mxu0
  %v7582 = vadd.f32 %v7409, %v7581
  %v7583 = vpop.f32.mrb[0].mxu0
  %v7584 = vadd.f32 %v7411, %v7583
  %v7585 = vpop.f32.mrb[0].mxu0
  %v7586 = vadd.f32 %v7413, %v7585
  %v7587 = vpop.f32.mrb[0].mxu0
  %v7588 = vadd.f32 %v7415, %v7587
  %7589 = vmatprep.mubr.bf16.mxu0 %v4585
  %7590 = vmatmul.mubr.bf16.gmra.mrb[0].mxu0 %v3082
  %v7591 = vpop.f32.mrb[0].mxu0
  %v7592 = vadd.f32 %v7419, %v7591
  %v7593 = vpop.f32.mrb[0].mxu0
  %v7594 = vadd.f32 %v7421, %v7593
  %v7595 = vpop.f32.mrb[0].mxu0
  %v7596 = vadd.f32 %v7423, %v7595
  %v7597 = vpop.f32.mrb[0].mxu0
  %v7598 = vadd.f32 %v7425, %v7597
  %7599 = vmatprep.mubr.bf16.mxu0 %v4588
  %7600 = vmatmul.mubr.bf16.gmra.mrb[0].mxu0 %v3086
  %v7601 = vpop.f32.mrb[0].mxu0
  %v7602 = vadd.f32 %v7429, %v7601
  %v7603 = vpop.f32.mrb[0].mxu0
  %v7604 = vadd.f32 %v7431, %v7603
  %v7605 = vpop.f32.mrb[0].mxu0
  %v7606 = vadd.f32 %v7433, %v7605
  %v7607 = vpop.f32.mrb[0].mxu0
  %v7608 = vadd.f32 %v7435, %v7607
  %7609 = vmatprep.mubr.bf16.mxu0 %v4591
  %7610 = vmatmul.mubr.bf16.gmra.mrb[0].mxu0 %v3090
  %v7611 = vpop.f32.mrb[0].mxu0
  %v7612 = vadd.f32 %v7439, %v7611
  %v7613 = vpop.f32.mrb[0].mxu0
  %v7614 = vadd.f32 %v7441, %v7613
  %v7615 = vpop.f32.mrb[0].mxu0
  %v7616 = vadd.f32 %v7443, %v7615
  %v7617 = vpop.f32.mrb[0].mxu0
  %v7618 = vadd.f32 %v7445, %v7617
  %7619 = vmatprep.mubr.bf16.mxu0 %v4594
  %7620 = vmatmul.mubr.bf16.gmra.mrb[0].mxu0 %v3094
  %v7621 = vpop.f32.mrb[0].mxu0
  %v7622 = vadd.f32 %v7449, %v7621
  %v7623 = vpop.f32.mrb[0].mxu0
  %v7624 = vadd.f32 %v7451, %v7623
  %v7625 = vpop.f32.mrb[0].mxu0
  %v7626 = vadd.f32 %v7453, %v7625
  %v7627 = vpop.f32.mrb[0].mxu0
  %v7628 = vadd.f32 %v7455, %v7627
  %7629 = vdwg.mxu0
  %7630 = vmatprep.subr.bf16.mxu0 %v6548
  %7631 = vmatpush1.bf16.msra.mxu0 %v6547
  %7632 = vmatprep.subr.bf16.mxu0 %v6555
  %7633 = vmatpush1.bf16.msra.mxu0 %v6554
  %7634 = vmatprep.subr.bf16.mxu0 %v6562
  %7635 = vmatpush1.bf16.msra.mxu0 %v6561
  %7636 = vmatprep.subr.bf16.mxu0 %v6569
  %7637 = vmatpush1.bf16.msra.mxu0 %v6568
  %7638 = vmatprep.subr.bf16.mxu0 %v6576
  %7639 = vmatpush1.bf16.msra.mxu0 %v6575
  %7640 = vmatprep.subr.bf16.mxu0 %v6583
  %7641 = vmatpush1.bf16.msra.mxu0 %v6582
  %7642 = vmatprep.subr.bf16.mxu0 %v6590
  %7643 = vmatpush1.bf16.msra.mxu0 %v6589
  %7644 = vmatprep.subr.bf16.mxu0 %v6597
  %7645 = vmatpush1.bf16.msra.mxu0 %v6596
  %7646 = vmatprep.subr.bf16.mxu0 %v6604
  %7647 = vmatpush1.bf16.msra.mxu0 %v6603
  %7648 = vmatprep.subr.bf16.mxu0 %v6611
  %7649 = vmatpush1.bf16.msra.mxu0 %v6610
  %7650 = vmatprep.subr.bf16.mxu0 %v6618
  %7651 = vmatpush1.bf16.msra.mxu0 %v6617
  %7652 = vmatprep.subr.bf16.mxu0 %v6625
  %7653 = vmatpush1.bf16.msra.mxu0 %v6624
  %7654 = vmatprep.subr.bf16.mxu0 %v6632
  %7655 = vmatpush1.bf16.msra.mxu0 %v6631
  %7656 = vmatprep.subr.bf16.mxu0 %v6639
  %7657 = vmatpush1.bf16.msra.mxu0 %v6638
  %7658 = vmatprep.subr.bf16.mxu0 %v6646
  %7659 = vmatpush1.bf16.msra.mxu0 %v6645
  %7660 = vmatprep.subr.bf16.mxu0 %v6653
  %7661 = vmatpush1.bf16.msra.mxu0 %v6652
  %7662 = vmatprep.mubr.bf16.mxu0 0
  %7663 = vmatmul.mubr.bf16.gmra.mrb[0].mxu0 0
  %v7664 = vpop.f32.mrb[0].mxu0
  %v7665 = vadd.f32 %v5499, %v7664
  %v7666 = vpop.f32.mrb[0].mxu0
  %v7667 = vadd.f32 %v5501, %v7666
  %v7668 = vpop.f32.mrb[0].mxu0
  %v7669 = vadd.f32 %v5503, %v7668
  %v7670 = vpop.f32.mrb[0].mxu0
  %v7671 = vadd.f32 %v5505, %v7670
  %7672 = vmatprep.mubr.bf16.mxu0 %v3045
  %7673 = vmatmul.mubr.bf16.gmra.mrb[0].mxu0 %v3044
  %v7674 = vpop.f32.mrb[0].mxu0
  %v7675 = vadd.f32 %v5509, %v7674
  %v7676 = vpop.f32.mrb[0].mxu0
  %v7677 = vadd.f32 %v5511, %v7676
  %v7678 = vpop.f32.mrb[0].mxu0
  %v7679 = vadd.f32 %v5513, %v7678
  %v7680 = vpop.f32.mrb[0].mxu0
  %v7681 = vadd.f32 %v5515, %v7680
  %7682 = vmatprep.mubr.bf16.mxu0 %v3049
  %7683 = vmatmul.mubr.bf16.gmra.mrb[0].mxu0 %v3048
  %v7684 = vpop.f32.mrb[0].mxu0
  %v7685 = vadd.f32 %v5519, %v7684
  %v7686 = vpop.f32.mrb[0].mxu0
  %v7687 = vadd.f32 %v5521, %v7686
  %v7688 = vpop.f32.mrb[0].mxu0
  %v7689 = vadd.f32 %v5523, %v7688
  %v7690 = vpop.f32.mrb[0].mxu0
  %v7691 = vadd.f32 %v5525, %v7690
  %7692 = vmatprep.mubr.bf16.mxu0 %v3053
  %7693 = vmatmul.mubr.bf16.gmra.mrb[0].mxu0 %v3052
  %v7694 = vpop.f32.mrb[0].mxu0
  %v7695 = vadd.f32 %v5529, %v7694
  %v7696 = vpop.f32.mrb[0].mxu0
  %v7697 = vadd.f32 %v5531, %v7696
  %v7698 = vpop.f32.mrb[0].mxu0
  %v7699 = vadd.f32 %v5533, %v7698
  %v7700 = vpop.f32.mrb[0].mxu0
  %v7701 = vadd.f32 %v5535, %v7700
  %7702 = vmatprep.mubr.bf16.mxu0 %v3057
  %7703 = vmatmul.mubr.bf16.gmra.mrb[0].mxu0 %v3056
  %v7704 = vpop.f32.mrb[0].mxu0
  %v7705 = vadd.f32 %v5539, %v7704
  %v7706 = vpop.f32.mrb[0].mxu0
  %v7707 = vadd.f32 %v5541, %v7706
  %v7708 = vpop.f32.mrb[0].mxu0
  %v7709 = vadd.f32 %v5543, %v7708
  %v7710 = vpop.f32.mrb[0].mxu0
  %v7711 = vadd.f32 %v5545, %v7710
  %7712 = vmatprep.mubr.bf16.mxu0 %v3061
  %7713 = vmatmul.mubr.bf16.gmra.mrb[0].mxu0 %v3060
  %v7714 = vpop.f32.mrb[0].mxu0
  %v7715 = vadd.f32 %v5549, %v7714
  %v7716 = vpop.f32.mrb[0].mxu0
  %v7717 = vadd.f32 %v5551, %v7716
  %v7718 = vpop.f32.mrb[0].mxu0
  %v7719 = vadd.f32 %v5553, %v7718
  %v7720 = vpop.f32.mrb[0].mxu0
  %v7721 = vadd.f32 %v5555, %v7720
  %7722 = vmatprep.mubr.bf16.mxu0 %v3065
  %7723 = vmatmul.mubr.bf16.gmra.mrb[0].mxu0 %v3064
  %v7724 = vpop.f32.mrb[0].mxu0
  %v7725 = vadd.f32 %v5559, %v7724
  %v7726 = vpop.f32.mrb[0].mxu0
  %v7727 = vadd.f32 %v5561, %v7726
  %v7728 = vpop.f32.mrb[0].mxu0
  %v7729 = vadd.f32 %v5563, %v7728
  %v7730 = vpop.f32.mrb[0].mxu0
  %v7731 = vadd.f32 %v5565, %v7730
  %7732 = vmatprep.mubr.bf16.mxu0 %v3069
  %7733 = vmatmul.mubr.bf16.gmra.mrb[0].mxu0 %v3068
  %v7734 = vpop.f32.mrb[0].mxu0
  %v7735 = vadd.f32 %v5569, %v7734
  %v7736 = vpop.f32.mrb[0].mxu0
  %v7737 = vadd.f32 %v5571, %v7736
  %v7738 = vpop.f32.mrb[0].mxu0
  %v7739 = vadd.f32 %v5573, %v7738
  %v7740 = vpop.f32.mrb[0].mxu0
  %v7741 = vadd.f32 %v5575, %v7740
  %7742 = vmatprep.mubr.bf16.mxu0 %v3073
  %7743 = vmatmul.mubr.bf16.gmra.mrb[0].mxu0 %v3072
  %v7744 = vpop.f32.mrb[0].mxu0
  %v7745 = vadd.f32 %v5579, %v7744
  %v7746 = vpop.f32.mrb[0].mxu0
  %v7747 = vadd.f32 %v5581, %v7746
  %v7748 = vpop.f32.mrb[0].mxu0
  %v7749 = vadd.f32 %v5583, %v7748
  %v7750 = vpop.f32.mrb[0].mxu0
  %v7751 = vadd.f32 %v5585, %v7750
  %7752 = vmatprep.mubr.bf16.mxu0 %v3077
  %7753 = vmatmul.mubr.bf16.gmra.mrb[0].mxu0 %v3076
  %v7754 = vpop.f32.mrb[0].mxu0
  %v7755 = vadd.f32 %v5589, %v7754
  %v7756 = vpop.f32.mrb[0].mxu0
  %v7757 = vadd.f32 %v5591, %v7756
  %v7758 = vpop.f32.mrb[0].mxu0
  %v7759 = vadd.f32 %v5593, %v7758
  %v7760 = vpop.f32.mrb[0].mxu0
  %v7761 = vadd.f32 %v5595, %v7760
  %7762 = vmatprep.mubr.bf16.mxu0 %v3081
  %7763 = vmatmul.mubr.bf16.gmra.mrb[0].mxu0 %v3080
  %v7764 = vpop.f32.mrb[0].mxu0
  %v7765 = vadd.f32 %v5599, %v7764
  %v7766 = vpop.f32.mrb[0].mxu0
  %v7767 = vadd.f32 %v5601, %v7766
  %v7768 = vpop.f32.mrb[0].mxu0
  %v7769 = vadd.f32 %v5603, %v7768
  %v7770 = vpop.f32.mrb[0].mxu0
  %v7771 = vadd.f32 %v5605, %v7770
  %7772 = vmatprep.mubr.bf16.mxu0 %v3085
  %7773 = vmatmul.mubr.bf16.gmra.mrb[0].mxu0 %v3084
  %v7774 = vpop.f32.mrb[0].mxu0
  %v7775 = vadd.f32 %v5609, %v7774
  %v7776 = vpop.f32.mrb[0].mxu0
  %v7777 = vadd.f32 %v5611, %v7776
  %v7778 = vpop.f32.mrb[0].mxu0
  %v7779 = vadd.f32 %v5613, %v7778
  %v7780 = vpop.f32.mrb[0].mxu0
  %v7781 = vadd.f32 %v5615, %v7780
  %7782 = vmatprep.mubr.bf16.mxu0 %v3089
  %7783 = vmatmul.mubr.bf16.gmra.mrb[0].mxu0 %v3088
  %v7784 = vpop.f32.mrb[0].mxu0
  %v7785 = vadd.f32 %v5619, %v7784
  %v7786 = vpop.f32.mrb[0].mxu0
  %v7787 = vadd.f32 %v5621, %v7786
  %v7788 = vpop.f32.mrb[0].mxu0
  %v7789 = vadd.f32 %v5623, %v7788
  %v7790 = vpop.f32.mrb[0].mxu0
  %v7791 = vadd.f32 %v5625, %v7790
  %7792 = vmatprep.mubr.bf16.mxu0 %v3093
  %7793 = vmatmul.mubr.bf16.gmra.mrb[0].mxu0 %v3092
  %v7794 = vpop.f32.mrb[0].mxu0
  %v7795 = vadd.f32 %v5629, %v7794
  %v7796 = vpop.f32.mrb[0].mxu0
  %v7797 = vadd.f32 %v5631, %v7796
  %v7798 = vpop.f32.mrb[0].mxu0
  %v7799 = vadd.f32 %v5633, %v7798
  %v7800 = vpop.f32.mrb[0].mxu0
  %v7801 = vadd.f32 %v5635, %v7800
  %7802 = vdwg.mxu0
  %7803 = vmatprep.subr.bf16.mxu0 %v6660
  %7804 = vmatpush1.bf16.msra.mxu0 %v6659
  %7805 = vmatprep.subr.bf16.mxu0 %v6667
  %7806 = vmatpush1.bf16.msra.mxu0 %v6666
  %7807 = vmatprep.subr.bf16.mxu0 %v6674
  %7808 = vmatpush1.bf16.msra.mxu0 %v6673
  %7809 = vmatprep.subr.bf16.mxu0 %v6681
  %7810 = vmatpush1.bf16.msra.mxu0 %v6680
  %7811 = vmatprep.subr.bf16.mxu0 %v6688
  %7812 = vmatpush1.bf16.msra.mxu0 %v6687
  %7813 = vmatprep.subr.bf16.mxu0 %v6695
  %7814 = vmatpush1.bf16.msra.mxu0 %v6694
  %7815 = vmatprep.subr.bf16.mxu0 %v6702
  %7816 = vmatpush1.bf16.msra.mxu0 %v6701
  %7817 = vmatprep.subr.bf16.mxu0 %v6709
  %7818 = vmatpush1.bf16.msra.mxu0 %v6708
  %7819 = vmatprep.subr.bf16.mxu0 %v6716
  %7820 = vmatpush1.bf16.msra.mxu0 %v6715
  %7821 = vmatprep.subr.bf16.mxu0 %v6723
  %7822 = vmatpush1.bf16.msra.mxu0 %v6722
  %7823 = vmatprep.subr.bf16.mxu0 %v6730
  %7824 = vmatpush1.bf16.msra.mxu0 %v6729
  %7825 = vmatprep.subr.bf16.mxu0 %v6737
  %7826 = vmatpush1.bf16.msra.mxu0 %v6736
  %7827 = vmatprep.subr.bf16.mxu0 0
  %7828 = vmatpush1.bf16.msra.mxu0 0
  %7829 = vmatprep.subr.bf16.mxu0 0
  %7830 = vmatpush1.bf16.msra.mxu0 0
  %7831 = vmatprep.subr.bf16.mxu0 0
  %7832 = vmatpush1.bf16.msra.mxu0 0
  %7833 = vmatprep.subr.bf16.mxu0 0
  %7834 = vmatpush1.bf16.msra.mxu0 0
  %7835 = vmatprep.mubr.bf16.mxu0 %v6936
  %7836 = vmatmul.mubr.bf16.gmra.mrb[0].mxu0 0
  %v7837 = vpop.f32.mrb[0].mxu0
  %v7838 = vadd.f32 %v7665, %v7837
  %v7839 = vpop.f32.mrb[0].mxu0
  %v7840 = vadd.f32 %v7667, %v7839
  %v7841 = vpop.f32.mrb[0].mxu0
  %v7842 = vadd.f32 %v7669, %v7841
  %v7843 = vpop.f32.mrb[0].mxu0
  %v7844 = vadd.f32 %v7671, %v7843
  %7845 = vmatprep.mubr.bf16.mxu0 %v4558
  %7846 = vmatmul.mubr.bf16.gmra.mrb[0].mxu0 %v3046
  %v7847 = vpop.f32.mrb[0].mxu0
  %v7848 = vadd.f32 %v7675, %v7847
  %v7849 = vpop.f32.mrb[0].mxu0
  %v7850 = vadd.f32 %v7677, %v7849
  %v7851 = vpop.f32.mrb[0].mxu0
  %v7852 = vadd.f32 %v7679, %v7851
  %v7853 = vpop.f32.mrb[0].mxu0
  %v7854 = vadd.f32 %v7681, %v7853
  %7855 = vmatprep.mubr.bf16.mxu0 %v4561
  %7856 = vmatmul.mubr.bf16.gmra.mrb[0].mxu0 %v3050
  %v7857 = vpop.f32.mrb[0].mxu0
  %v7858 = vadd.f32 %v7685, %v7857
  %v7859 = vpop.f32.mrb[0].mxu0
  %v7860 = vadd.f32 %v7687, %v7859
  %v7861 = vpop.f32.mrb[0].mxu0
  %v7862 = vadd.f32 %v7689, %v7861
  %v7863 = vpop.f32.mrb[0].mxu0
  %v7864 = vadd.f32 %v7691, %v7863
  %7865 = vmatprep.mubr.bf16.mxu0 %v4564
  %7866 = vmatmul.mubr.bf16.gmra.mrb[0].mxu0 %v3054
  %v7867 = vpop.f32.mrb[0].mxu0
  %v7868 = vadd.f32 %v7695, %v7867
  %v7869 = vpop.f32.mrb[0].mxu0
  %v7870 = vadd.f32 %v7697, %v7869
  %v7871 = vpop.f32.mrb[0].mxu0
  %v7872 = vadd.f32 %v7699, %v7871
  %v7873 = vpop.f32.mrb[0].mxu0
  %v7874 = vadd.f32 %v7701, %v7873
  %7875 = vmatprep.mubr.bf16.mxu0 %v4567
  %7876 = vmatmul.mubr.bf16.gmra.mrb[0].mxu0 %v3058
  %v7877 = vpop.f32.mrb[0].mxu0
  %v7878 = vadd.f32 %v7705, %v7877
  %v7879 = vpop.f32.mrb[0].mxu0
  %v7880 = vadd.f32 %v7707, %v7879
  %v7881 = vpop.f32.mrb[0].mxu0
  %v7882 = vadd.f32 %v7709, %v7881
  %v7883 = vpop.f32.mrb[0].mxu0
  %v7884 = vadd.f32 %v7711, %v7883
  %7885 = vmatprep.mubr.bf16.mxu0 %v4570
  %7886 = vmatmul.mubr.bf16.gmra.mrb[0].mxu0 %v3062
  %v7887 = vpop.f32.mrb[0].mxu0
  %v7888 = vadd.f32 %v7715, %v7887
  %v7889 = vpop.f32.mrb[0].mxu0
  %v7890 = vadd.f32 %v7717, %v7889
  %v7891 = vpop.f32.mrb[0].mxu0
  %v7892 = vadd.f32 %v7719, %v7891
  %v7893 = vpop.f32.mrb[0].mxu0
  %v7894 = vadd.f32 %v7721, %v7893
  %7895 = vmatprep.mubr.bf16.mxu0 %v4573
  %7896 = vmatmul.mubr.bf16.gmra.mrb[0].mxu0 %v3066
  %v7897 = vpop.f32.mrb[0].mxu0
  %v7898 = vadd.f32 %v7725, %v7897
  %v7899 = vpop.f32.mrb[0].mxu0
  %v7900 = vadd.f32 %v7727, %v7899
  %v7901 = vpop.f32.mrb[0].mxu0
  %v7902 = vadd.f32 %v7729, %v7901
  %v7903 = vpop.f32.mrb[0].mxu0
  %v7904 = vadd.f32 %v7731, %v7903
  %7905 = vmatprep.mubr.bf16.mxu0 %v4576
  %7906 = vmatmul.mubr.bf16.gmra.mrb[0].mxu0 %v3070
  %v7907 = vpop.f32.mrb[0].mxu0
  %v7908 = vadd.f32 %v7735, %v7907
  %v7909 = vpop.f32.mrb[0].mxu0
  %v7910 = vadd.f32 %v7737, %v7909
  %v7911 = vpop.f32.mrb[0].mxu0
  %v7912 = vadd.f32 %v7739, %v7911
  %v7913 = vpop.f32.mrb[0].mxu0
  %v7914 = vadd.f32 %v7741, %v7913
  %7915 = vmatprep.mubr.bf16.mxu0 %v4579
  %7916 = vmatmul.mubr.bf16.gmra.mrb[0].mxu0 %v3074
  %v7917 = vpop.f32.mrb[0].mxu0
  %v7918 = vadd.f32 %v7745, %v7917
  %v7919 = vpop.f32.mrb[0].mxu0
  %v7920 = vadd.f32 %v7747, %v7919
  %v7921 = vpop.f32.mrb[0].mxu0
  %v7922 = vadd.f32 %v7749, %v7921
  %v7923 = vpop.f32.mrb[0].mxu0
  %v7924 = vadd.f32 %v7751, %v7923
  %7925 = vmatprep.mubr.bf16.mxu0 %v4582
  %7926 = vmatmul.mubr.bf16.gmra.mrb[0].mxu0 %v3078
  %v7927 = vpop.f32.mrb[0].mxu0
  %v7928 = vadd.f32 %v7755, %v7927
  %v7929 = vpop.f32.mrb[0].mxu0
  %v7930 = vadd.f32 %v7757, %v7929
  %v7931 = vpop.f32.mrb[0].mxu0
  %v7932 = vadd.f32 %v7759, %v7931
  %v7933 = vpop.f32.mrb[0].mxu0
  %v7934 = vadd.f32 %v7761, %v7933
  %7935 = vmatprep.mubr.bf16.mxu0 %v4585
  %7936 = vmatmul.mubr.bf16.gmra.mrb[0].mxu0 %v3082
  %v7937 = vpop.f32.mrb[0].mxu0
  %v7938 = vadd.f32 %v7765, %v7937
  %v7939 = vpop.f32.mrb[0].mxu0
  %v7940 = vadd.f32 %v7767, %v7939
  %v7941 = vpop.f32.mrb[0].mxu0
  %v7942 = vadd.f32 %v7769, %v7941
  %v7943 = vpop.f32.mrb[0].mxu0
  %v7944 = vadd.f32 %v7771, %v7943
  %7945 = vmatprep.mubr.bf16.mxu0 %v4588
  %7946 = vmatmul.mubr.bf16.gmra.mrb[0].mxu0 %v3086
  %v7947 = vpop.f32.mrb[0].mxu0
  %v7948 = vadd.f32 %v7775, %v7947
  %v7949 = vpop.f32.mrb[0].mxu0
  %v7950 = vadd.f32 %v7777, %v7949
  %v7951 = vpop.f32.mrb[0].mxu0
  %v7952 = vadd.f32 %v7779, %v7951
  %v7953 = vpop.f32.mrb[0].mxu0
  %v7954 = vadd.f32 %v7781, %v7953
  %7955 = vmatprep.mubr.bf16.mxu0 %v4591
  %7956 = vmatmul.mubr.bf16.gmra.mrb[0].mxu0 %v3090
  %v7957 = vpop.f32.mrb[0].mxu0
  %v7958 = vadd.f32 %v7785, %v7957
  %v7959 = vpop.f32.mrb[0].mxu0
  %v7960 = vadd.f32 %v7787, %v7959
  %v7961 = vpop.f32.mrb[0].mxu0
  %v7962 = vadd.f32 %v7789, %v7961
  %v7963 = vpop.f32.mrb[0].mxu0
  %v7964 = vadd.f32 %v7791, %v7963
  %7965 = vmatprep.mubr.bf16.mxu0 %v4594
  %7966 = vmatmul.mubr.bf16.gmra.mrb[0].mxu0 %v3094
  %v7967 = vpop.f32.mrb[0].mxu0
  %v7968 = vadd.f32 %v7795, %v7967
  %v7969 = vpop.f32.mrb[0].mxu0
  %v7970 = vadd.f32 %v7797, %v7969
  %v7971 = vpop.f32.mrb[0].mxu0
  %v7972 = vadd.f32 %v7799, %v7971
  %v7973 = vpop.f32.mrb[0].mxu0
  %v7974 = vadd.f32 %v7801, %v7973
  %7975 = vdwg.mxu0
  %7976 = vmatprep.subr.bf16.mxu0 0
  %7977 = vmatpush1.bf16.msra.mxu0 %v6549
  %7978 = vmatprep.subr.bf16.mxu0 0
  %7979 = vmatpush1.bf16.msra.mxu0 %v6556
  %7980 = vmatprep.subr.bf16.mxu0 0
  %7981 = vmatpush1.bf16.msra.mxu0 %v6563
  %7982 = vmatprep.subr.bf16.mxu0 0
  %7983 = vmatpush1.bf16.msra.mxu0 %v6570
  %7984 = vmatprep.subr.bf16.mxu0 0
  %7985 = vmatpush1.bf16.msra.mxu0 %v6577
  %7986 = vmatprep.subr.bf16.mxu0 0
  %7987 = vmatpush1.bf16.msra.mxu0 %v6584
  %7988 = vmatprep.subr.bf16.mxu0 0
  %7989 = vmatpush1.bf16.msra.mxu0 %v6591
  %7990 = vmatprep.subr.bf16.mxu0 0
  %7991 = vmatpush1.bf16.msra.mxu0 %v6598
  %7992 = vmatprep.subr.bf16.mxu0 0
  %7993 = vmatpush1.bf16.msra.mxu0 %v6605
  %7994 = vmatprep.subr.bf16.mxu0 0
  %7995 = vmatpush1.bf16.msra.mxu0 %v6612
  %7996 = vmatprep.subr.bf16.mxu0 0
  %7997 = vmatpush1.bf16.msra.mxu0 %v6619
  %7998 = vmatprep.subr.bf16.mxu0 0
  %7999 = vmatpush1.bf16.msra.mxu0 %v6626
  %8000 = vmatprep.subr.bf16.mxu0 0
  %8001 = vmatpush1.bf16.msra.mxu0 %v6633
  %8002 = vmatprep.subr.bf16.mxu0 0
  %8003 = vmatpush1.bf16.msra.mxu0 %v6640
  %8004 = vmatprep.subr.bf16.mxu0 0
  %8005 = vmatpush1.bf16.msra.mxu0 %v6647
  %8006 = vmatprep.subr.bf16.mxu0 0
  %8007 = vmatpush1.bf16.msra.mxu0 %v6654
  %8008 = vmatprep.mubr.bf16.mxu0 0
  %8009 = vmatmul.mubr.bf16.gmra.mrb[0].mxu0 0
  %v8010 = vpop.f32.mrb[0].mxu0
  %v8011 = vadd.f32 %v5817, %v8010
  %v8012 = vpop.f32.mrb[0].mxu0
  %v8013 = vpop.f32.mrb[0].mxu0
  %v8014 = vadd.f32 %v5820, %v8013
  %v8015 = vpop.f32.mrb[0].mxu0
  %8016 = vmatprep.mubr.bf16.mxu0 %v3045
  %8017 = vmatmul.mubr.bf16.gmra.mrb[0].mxu0 %v3044
  %v8018 = vpop.f32.mrb[0].mxu0
  %v8019 = vadd.f32 %v5825, %v8018
  %v8020 = vpop.f32.mrb[0].mxu0
  %v8021 = vpop.f32.mrb[0].mxu0
  %v8022 = vadd.f32 %v5828, %v8021
  %v8023 = vpop.f32.mrb[0].mxu0
  %8024 = vmatprep.mubr.bf16.mxu0 %v3049
  %8025 = vmatmul.mubr.bf16.gmra.mrb[0].mxu0 %v3048
  %v8026 = vpop.f32.mrb[0].mxu0
  %v8027 = vadd.f32 %v5833, %v8026
  %v8028 = vpop.f32.mrb[0].mxu0
  %v8029 = vpop.f32.mrb[0].mxu0
  %v8030 = vadd.f32 %v5836, %v8029
  %v8031 = vpop.f32.mrb[0].mxu0
  %8032 = vmatprep.mubr.bf16.mxu0 %v3053
  %8033 = vmatmul.mubr.bf16.gmra.mrb[0].mxu0 %v3052
  %v8034 = vpop.f32.mrb[0].mxu0
  %v8035 = vadd.f32 %v5841, %v8034
  %v8036 = vpop.f32.mrb[0].mxu0
  %v8037 = vpop.f32.mrb[0].mxu0
  %v8038 = vadd.f32 %v5844, %v8037
  %v8039 = vpop.f32.mrb[0].mxu0
  %8040 = vmatprep.mubr.bf16.mxu0 %v3057
  %8041 = vmatmul.mubr.bf16.gmra.mrb[0].mxu0 %v3056
  %v8042 = vpop.f32.mrb[0].mxu0
  %v8043 = vadd.f32 %v5849, %v8042
  %v8044 = vpop.f32.mrb[0].mxu0
  %v8045 = vpop.f32.mrb[0].mxu0
  %v8046 = vadd.f32 %v5852, %v8045
  %v8047 = vpop.f32.mrb[0].mxu0
  %8048 = vmatprep.mubr.bf16.mxu0 %v3061
  %8049 = vmatmul.mubr.bf16.gmra.mrb[0].mxu0 %v3060
  %v8050 = vpop.f32.mrb[0].mxu0
  %v8051 = vadd.f32 %v5857, %v8050
  %v8052 = vpop.f32.mrb[0].mxu0
  %v8053 = vpop.f32.mrb[0].mxu0
  %v8054 = vadd.f32 %v5860, %v8053
  %v8055 = vpop.f32.mrb[0].mxu0
  %8056 = vmatprep.mubr.bf16.mxu0 %v3065
  %8057 = vmatmul.mubr.bf16.gmra.mrb[0].mxu0 %v3064
  %v8058 = vpop.f32.mrb[0].mxu0
  %v8059 = vadd.f32 %v5865, %v8058
  %v8060 = vpop.f32.mrb[0].mxu0
  %v8061 = vpop.f32.mrb[0].mxu0
  %v8062 = vadd.f32 %v5868, %v8061
  %v8063 = vpop.f32.mrb[0].mxu0
  %8064 = vmatprep.mubr.bf16.mxu0 %v3069
  %8065 = vmatmul.mubr.bf16.gmra.mrb[0].mxu0 %v3068
  %v8066 = vpop.f32.mrb[0].mxu0
  %v8067 = vadd.f32 %v5873, %v8066
  %v8068 = vpop.f32.mrb[0].mxu0
  %v8069 = vpop.f32.mrb[0].mxu0
  %v8070 = vadd.f32 %v5876, %v8069
  %v8071 = vpop.f32.mrb[0].mxu0
  %8072 = vmatprep.mubr.bf16.mxu0 %v3073
  %8073 = vmatmul.mubr.bf16.gmra.mrb[0].mxu0 %v3072
  %v8074 = vpop.f32.mrb[0].mxu0
  %v8075 = vadd.f32 %v5881, %v8074
  %v8076 = vpop.f32.mrb[0].mxu0
  %v8077 = vpop.f32.mrb[0].mxu0
  %v8078 = vadd.f32 %v5884, %v8077
  %v8079 = vpop.f32.mrb[0].mxu0
  %8080 = vmatprep.mubr.bf16.mxu0 %v3077
  %8081 = vmatmul.mubr.bf16.gmra.mrb[0].mxu0 %v3076
  %v8082 = vpop.f32.mrb[0].mxu0
  %v8083 = vadd.f32 %v5889, %v8082
  %v8084 = vpop.f32.mrb[0].mxu0
  %v8085 = vpop.f32.mrb[0].mxu0
  %v8086 = vadd.f32 %v5892, %v8085
  %v8087 = vpop.f32.mrb[0].mxu0
  %8088 = vmatprep.mubr.bf16.mxu0 %v3081
  %8089 = vmatmul.mubr.bf16.gmra.mrb[0].mxu0 %v3080
  %v8090 = vpop.f32.mrb[0].mxu0
  %v8091 = vadd.f32 %v5897, %v8090
  %v8092 = vpop.f32.mrb[0].mxu0
  %v8093 = vpop.f32.mrb[0].mxu0
  %v8094 = vadd.f32 %v5900, %v8093
  %v8095 = vpop.f32.mrb[0].mxu0
  %8096 = vmatprep.mubr.bf16.mxu0 %v3085
  %8097 = vmatmul.mubr.bf16.gmra.mrb[0].mxu0 %v3084
  %v8098 = vpop.f32.mrb[0].mxu0
  %v8099 = vadd.f32 %v5905, %v8098
  %v8100 = vpop.f32.mrb[0].mxu0
  %v8101 = vpop.f32.mrb[0].mxu0
  %v8102 = vadd.f32 %v5908, %v8101
  %v8103 = vpop.f32.mrb[0].mxu0
  %8104 = vmatprep.mubr.bf16.mxu0 %v3089
  %8105 = vmatmul.mubr.bf16.gmra.mrb[0].mxu0 %v3088
  %v8106 = vpop.f32.mrb[0].mxu0
  %v8107 = vadd.f32 %v5913, %v8106
  %v8108 = vpop.f32.mrb[0].mxu0
  %v8109 = vpop.f32.mrb[0].mxu0
  %v8110 = vadd.f32 %v5916, %v8109
  %v8111 = vpop.f32.mrb[0].mxu0
  %8112 = vmatprep.mubr.bf16.mxu0 %v3093
  %8113 = vmatmul.mubr.bf16.gmra.mrb[0].mxu0 %v3092
  %v8114 = vpop.f32.mrb[0].mxu0
  %v8115 = vadd.f32 %v5921, %v8114
  %v8116 = vpop.f32.mrb[0].mxu0
  %v8117 = vpop.f32.mrb[0].mxu0
  %v8118 = vadd.f32 %v5924, %v8117
  %v8119 = vpop.f32.mrb[0].mxu0
  %8120 = vdwg.mxu0
  %8121 = vmatprep.subr.bf16.mxu0 0
  %8122 = vmatpush1.bf16.msra.mxu0 %v6661
  %8123 = vmatprep.subr.bf16.mxu0 0
  %8124 = vmatpush1.bf16.msra.mxu0 %v6668
  %8125 = vmatprep.subr.bf16.mxu0 0
  %8126 = vmatpush1.bf16.msra.mxu0 %v6675
  %8127 = vmatprep.subr.bf16.mxu0 0
  %8128 = vmatpush1.bf16.msra.mxu0 %v6682
  %8129 = vmatprep.subr.bf16.mxu0 0
  %8130 = vmatpush1.bf16.msra.mxu0 %v6689
  %8131 = vmatprep.subr.bf16.mxu0 0
  %8132 = vmatpush1.bf16.msra.mxu0 %v6696
  %8133 = vmatprep.subr.bf16.mxu0 0
  %8134 = vmatpush1.bf16.msra.mxu0 %v6703
  %8135 = vmatprep.subr.bf16.mxu0 0
  %8136 = vmatpush1.bf16.msra.mxu0 %v6710
  %8137 = vmatprep.subr.bf16.mxu0 0
  %8138 = vmatpush1.bf16.msra.mxu0 %v6717
  %8139 = vmatprep.subr.bf16.mxu0 0
  %8140 = vmatpush1.bf16.msra.mxu0 %v6724
  %8141 = vmatprep.subr.bf16.mxu0 0
  %8142 = vmatpush1.bf16.msra.mxu0 %v6731
  %8143 = vmatprep.subr.bf16.mxu0 0
  %8144 = vmatpush1.bf16.msra.mxu0 %v6738
  %8145 = vmatprep.subr.bf16.mxu0 0
  %8146 = vmatpush1.bf16.msra.mxu0 0
  %8147 = vmatprep.subr.bf16.mxu0 0
  %8148 = vmatpush1.bf16.msra.mxu0 0
  %8149 = vmatprep.subr.bf16.mxu0 0
  %8150 = vmatpush1.bf16.msra.mxu0 0
  %8151 = vmatprep.subr.bf16.mxu0 0
  %8152 = vmatpush1.bf16.msra.mxu0 0
  %8153 = vmatprep.mubr.bf16.mxu0 %v6936
  %8154 = vmatmul.mubr.bf16.gmra.mrb[0].mxu0 0
  %v8155 = vpop.f32.mrb[0].mxu0
  %v8156 = vadd.f32 %v8011, %v8155
  %v8157 = vpop.f32.mrb[0].mxu0
  %v8158 = vpop.f32.mrb[0].mxu0
  %v8159 = vadd.f32 %v8014, %v8158
  %v8160 = vpop.f32.mrb[0].mxu0
  %8161 = vmatprep.mubr.bf16.mxu0 %v4558
  %8162 = vmatmul.mubr.bf16.gmra.mrb[0].mxu0 %v3046
  %v8163 = vpop.f32.mrb[0].mxu0
  %v8164 = vadd.f32 %v8019, %v8163
  %v8165 = vpop.f32.mrb[0].mxu0
  %v8166 = vpop.f32.mrb[0].mxu0
  %v8167 = vadd.f32 %v8022, %v8166
  %v8168 = vpop.f32.mrb[0].mxu0
  %8169 = vmatprep.mubr.bf16.mxu0 %v4561
  %8170 = vmatmul.mubr.bf16.gmra.mrb[0].mxu0 %v3050
  %v8171 = vpop.f32.mrb[0].mxu0
  %v8172 = vadd.f32 %v8027, %v8171
  %v8173 = vpop.f32.mrb[0].mxu0
  %v8174 = vpop.f32.mrb[0].mxu0
  %v8175 = vadd.f32 %v8030, %v8174
  %v8176 = vpop.f32.mrb[0].mxu0
  %8177 = vmatprep.mubr.bf16.mxu0 %v4564
  %8178 = vmatmul.mubr.bf16.gmra.mrb[0].mxu0 %v3054
  %v8179 = vpop.f32.mrb[0].mxu0
  %v8180 = vadd.f32 %v8035, %v8179
  %v8181 = vpop.f32.mrb[0].mxu0
  %v8182 = vpop.f32.mrb[0].mxu0
  %v8183 = vadd.f32 %v8038, %v8182
  %v8184 = vpop.f32.mrb[0].mxu0
  %8185 = vmatprep.mubr.bf16.mxu0 %v4567
  %8186 = vmatmul.mubr.bf16.gmra.mrb[0].mxu0 %v3058
  %v8187 = vpop.f32.mrb[0].mxu0
  %v8188 = vadd.f32 %v8043, %v8187
  %v8189 = vpop.f32.mrb[0].mxu0
  %v8190 = vpop.f32.mrb[0].mxu0
  %v8191 = vadd.f32 %v8046, %v8190
  %v8192 = vpop.f32.mrb[0].mxu0
  %8193 = vmatprep.mubr.bf16.mxu0 %v4570
  %8194 = vmatmul.mubr.bf16.gmra.mrb[0].mxu0 %v3062
  %v8195 = vpop.f32.mrb[0].mxu0
  %v8196 = vadd.f32 %v8051, %v8195
  %v8197 = vpop.f32.mrb[0].mxu0
  %v8198 = vpop.f32.mrb[0].mxu0
  %v8199 = vadd.f32 %v8054, %v8198
  %v8200 = vpop.f32.mrb[0].mxu0
  %8201 = vmatprep.mubr.bf16.mxu0 %v4573
  %8202 = vmatmul.mubr.bf16.gmra.mrb[0].mxu0 %v3066
  %v8203 = vpop.f32.mrb[0].mxu0
  %v8204 = vadd.f32 %v8059, %v8203
  %v8205 = vpop.f32.mrb[0].mxu0
  %v8206 = vpop.f32.mrb[0].mxu0
  %v8207 = vadd.f32 %v8062, %v8206
  %v8208 = vpop.f32.mrb[0].mxu0
  %8209 = vmatprep.mubr.bf16.mxu0 %v4576
  %8210 = vmatmul.mubr.bf16.gmra.mrb[0].mxu0 %v3070
  %v8211 = vpop.f32.mrb[0].mxu0
  %v8212 = vadd.f32 %v8067, %v8211
  %v8213 = vpop.f32.mrb[0].mxu0
  %v8214 = vpop.f32.mrb[0].mxu0
  %v8215 = vadd.f32 %v8070, %v8214
  %v8216 = vpop.f32.mrb[0].mxu0
  %8217 = vmatprep.mubr.bf16.mxu0 %v4579
  %8218 = vmatmul.mubr.bf16.gmra.mrb[0].mxu0 %v3074
  %v8219 = vpop.f32.mrb[0].mxu0
  %v8220 = vadd.f32 %v8075, %v8219
  %v8221 = vpop.f32.mrb[0].mxu0
  %v8222 = vpop.f32.mrb[0].mxu0
  %v8223 = vadd.f32 %v8078, %v8222
  %v8224 = vpop.f32.mrb[0].mxu0
  %8225 = vmatprep.mubr.bf16.mxu0 %v4582
  %8226 = vmatmul.mubr.bf16.gmra.mrb[0].mxu0 %v3078
  %v8227 = vpop.f32.mrb[0].mxu0
  %v8228 = vadd.f32 %v8083, %v8227
  %v8229 = vpop.f32.mrb[0].mxu0
  %v8230 = vpop.f32.mrb[0].mxu0
  %v8231 = vadd.f32 %v8086, %v8230
  %v8232 = vpop.f32.mrb[0].mxu0
  %8233 = vmatprep.mubr.bf16.mxu0 %v4585
  %8234 = vmatmul.mubr.bf16.gmra.mrb[0].mxu0 %v3082
  %v8235 = vpop.f32.mrb[0].mxu0
  %v8236 = vadd.f32 %v8091, %v8235
  %v8237 = vpop.f32.mrb[0].mxu0
  %v8238 = vpop.f32.mrb[0].mxu0
  %v8239 = vadd.f32 %v8094, %v8238
  %v8240 = vpop.f32.mrb[0].mxu0
  %8241 = vmatprep.mubr.bf16.mxu0 %v4588
  %8242 = vmatmul.mubr.bf16.gmra.mrb[0].mxu0 %v3086
  %v8243 = vpop.f32.mrb[0].mxu0
  %v8244 = vadd.f32 %v8099, %v8243
  %v8245 = vpop.f32.mrb[0].mxu0
  %v8246 = vpop.f32.mrb[0].mxu0
  %v8247 = vadd.f32 %v8102, %v8246
  %v8248 = vpop.f32.mrb[0].mxu0
  %8249 = vmatprep.mubr.bf16.mxu0 %v4591
  %8250 = vmatmul.mubr.bf16.gmra.mrb[0].mxu0 %v3090
  %v8251 = vpop.f32.mrb[0].mxu0
  %v8252 = vadd.f32 %v8107, %v8251
  %v8253 = vpop.f32.mrb[0].mxu0
  %v8254 = vpop.f32.mrb[0].mxu0
  %v8255 = vadd.f32 %v8110, %v8254
  %v8256 = vpop.f32.mrb[0].mxu0
  %8257 = vmatprep.mubr.bf16.mxu0 %v4594
  %8258 = vmatmul.mubr.bf16.gmra.mrb[0].mxu0 %v3094
  %v8259 = vpop.f32.mrb[0].mxu0
  %v8260 = vadd.f32 %v8115, %v8259
  %v8261 = vpop.f32.mrb[0].mxu0
  %v8262 = vpop.f32.mrb[0].mxu0
  %v8263 = vadd.f32 %v8118, %v8262
  %v8264 = vpop.f32.mrb[0].mxu0
  %8265 = vdwg.mxu0
  %s8266 = scalar_lea.vmem %s3, 3136
  %v8267 = vld [vmem:[%s8266] sm:$0xff]
  %v8268 = vld [vmem:[%s8266 + $0x8] sm:$0xff]
  %v8269 = vld [vmem:[%s8266 + $0x10] sm:$0xff]
  %v8270 = vld [vmem:[%s8266 + $0x18] sm:$0xf]
  %v8271 = vld [vmem:[%s8266 + $0x1c] sm:$0xff]
  %v8272 = vld [vmem:[%s8266 + $0x24] sm:$0xff]
  %v8273 = vld [vmem:[%s8266 + $0x2c] sm:$0xff]
  %v8274 = vld [vmem:[%s8266 + $0x34] sm:$0xf]
  %v8275 = vld [vmem:[%s8266 + $0x38] sm:$0xff]
  %v8276 = vld [vmem:[%s8266 + $0x40] sm:$0xff]
  %v8277 = vld [vmem:[%s8266 + $0x48] sm:$0xff]
  %v8278 = vld [vmem:[%s8266 + $0x50] sm:$0xf]
  %v8279 = vld [vmem:[%s8266 + $0x54] sm:$0xff]
  %v8280 = vld [vmem:[%s8266 + $0x5c] sm:$0xff]
  %v8281 = vld [vmem:[%s8266 + $0x64] sm:$0xff]
  %v8282 = vld [vmem:[%s8266 + $0x6c] sm:$0xf]
  %v8283 = vld [vmem:[%s8266 + $0x70] sm:$0xff]
  %v8284 = vld [vmem:[%s8266 + $0x78] sm:$0xff]
  %v8285 = vld [vmem:[%s8266 + $0x80] sm:$0xff]
  %v8286 = vld [vmem:[%s8266 + $0x88] sm:$0xf]
  %v8287 = vld [vmem:[%s8266 + $0x8c] sm:$0xff]
  %v8288 = vld [vmem:[%s8266 + $0x94] sm:$0xff]
  %v8289 = vld [vmem:[%s8266 + $0x9c] sm:$0xff]
  %v8290 = vld [vmem:[%s8266 + $0xa4] sm:$0xf]
  %v8291 = vld [vmem:[%s8266 + $0xa8] sm:$0xff]
  %v8292 = vld [vmem:[%s8266 + $0xb0] sm:$0xff]
  %v8293 = vld [vmem:[%s8266 + $0xb8] sm:$0xff]
  %v8294 = vld [vmem:[%s8266 + $0xc0] sm:$0xf]
  %v8295 = vld [vmem:[%s8266 + $0xc4] sm:$0xff]
  %v8296 = vld [vmem:[%s8266 + $0xcc] sm:$0xff]
  %v8297 = vld [vmem:[%s8266 + $0xd4] sm:$0xff]
  %v8298 = vld [vmem:[%s8266 + $0xdc] sm:$0xf]
  %v8299 = vld [vmem:[%s8266 + $0xe0] sm:$0xff]
  %v8300 = vld [vmem:[%s8266 + $0xe8] sm:$0xff]
  %v8301 = vld [vmem:[%s8266 + $0xf0] sm:$0xff]
  %v8302 = vld [vmem:[%s8266 + $0xf8] sm:$0xf]
  %v8303 = vld [vmem:[%s8266 + $0xfc] sm:$0xff]
  %v8304 = vld [vmem:[%s8266 + $0x104] sm:$0xff]
  %v8305 = vld [vmem:[%s8266 + $0x10c] sm:$0xff]
  %v8306 = vld [vmem:[%s8266 + $0x114] sm:$0xf]
  %v8307 = vld [vmem:[%s8266 + $0x118] sm:$0xff]
  %v8308 = vld [vmem:[%s8266 + $0x120] sm:$0xff]
  %v8309 = vld [vmem:[%s8266 + $0x128] sm:$0xff]
  %v8310 = vld [vmem:[%s8266 + $0x130] sm:$0xf]
  %v8311 = vld [vmem:[%s8266 + $0x134] sm:$0xff]
  %v8312 = vld [vmem:[%s8266 + $0x13c] sm:$0xff]
  %v8313 = vld [vmem:[%s8266 + $0x144] sm:$0xff]
  %v8314 = vld [vmem:[%s8266 + $0x14c] sm:$0xf]
  %v8315 = vld [vmem:[%s8266 + $0x150] sm:$0xff]
  %v8316 = vld [vmem:[%s8266 + $0x158] sm:$0xff]
  %v8317 = vld [vmem:[%s8266 + $0x160] sm:$0xff]
  %v8318 = vld [vmem:[%s8266 + $0x168] sm:$0xf]
  %v8319 = vld [vmem:[%s8266 + $0x16c] sm:$0xff]
  %v8320 = vld [vmem:[%s8266 + $0x174] sm:$0xff]
  %v8321 = vld [vmem:[%s8266 + $0x17c] sm:$0xff]
  %v8322 = vld [vmem:[%s8266 + $0x184] sm:$0xf]
  %v8323 = vld [vmem:[%s8266 + $0x188] sm:$0xff]
  %v8324 = vld [vmem:[%s8266 + $0x190] sm:$0xff]
  %v8325 = vld [vmem:[%s8266 + $0x198] sm:$0xff]
  %v8326 = vld [vmem:[%s8266 + $0x1a0] sm:$0xf]
  %v8327 = vld [vmem:[%s8266 + $0x1a4] sm:$0xff]
  %v8328 = vld [vmem:[%s8266 + $0x1ac] sm:$0xff]
  %v8329 = vld [vmem:[%s8266 + $0x1b4] sm:$0xff]
  %v8330 = vld [vmem:[%s8266 + $0x1bc] sm:$0xf]
  %v8331 = vld [vmem:[%s8266 + $0x1c0] sm:$0xff]
  %v8332 = vld [vmem:[%s8266 + $0x1c8] sm:$0xff]
  %v8333 = vld [vmem:[%s8266 + $0x1d0] sm:$0xff]
  %v8334 = vld [vmem:[%s8266 + $0x1d8] sm:$0xf]
  %v8335 = vld [vmem:[%s8266 + $0x1dc] sm:$0xff]
  %v8336 = vld [vmem:[%s8266 + $0x1e4] sm:$0xff]
  %v8337 = vld [vmem:[%s8266 + $0x1ec] sm:$0xff]
  %v8338 = vld [vmem:[%s8266 + $0x1f4] sm:$0xf]
  %v8339 = vld [vmem:[%s8266 + $0x1f8] sm:$0xff]
  %v8340 = vld [vmem:[%s8266 + $0x200] sm:$0xff]
  %v8341 = vld [vmem:[%s8266 + $0x208] sm:$0xff]
  %v8342 = vld [vmem:[%s8266 + $0x210] sm:$0xf]
  %v8343 = vld [vmem:[%s8266 + $0x214] sm:$0xff]
  %v8344 = vld [vmem:[%s8266 + $0x21c] sm:$0xff]
  %v8345 = vld [vmem:[%s8266 + $0x224] sm:$0xff]
  %v8346 = vld [vmem:[%s8266 + $0x22c] sm:$0xf]
  %v8347 = vld [vmem:[%s8266 + $0x230] sm:$0xff]
  %v8348 = vld [vmem:[%s8266 + $0x238] sm:$0xff]
  %v8349 = vld [vmem:[%s8266 + $0x240] sm:$0xff]
  %v8350 = vld [vmem:[%s8266 + $0x248] sm:$0xf]
  %v8351 = vld [vmem:[%s8266 + $0x24c] sm:$0xff]
  %v8352 = vld [vmem:[%s8266 + $0x254] sm:$0xff]
  %v8353 = vld [vmem:[%s8266 + $0x25c] sm:$0xff]
  %v8354 = vld [vmem:[%s8266 + $0x264] sm:$0xf]
  %v8355 = vld [vmem:[%s8266 + $0x268] sm:$0xff]
  %v8356 = vld [vmem:[%s8266 + $0x270] sm:$0xff]
  %v8357 = vld [vmem:[%s8266 + $0x278] sm:$0xff]
  %v8358 = vld [vmem:[%s8266 + $0x280] sm:$0xf]
  %v8359 = vld [vmem:[%s8266 + $0x284] sm:$0xff]
  %v8360 = vld [vmem:[%s8266 + $0x28c] sm:$0xff]
  %v8361 = vld [vmem:[%s8266 + $0x294] sm:$0xff]
  %v8362 = vld [vmem:[%s8266 + $0x29c] sm:$0xf]
  %v8363 = vld [vmem:[%s8266 + $0x2a0] sm:$0xff]
  %v8364 = vld [vmem:[%s8266 + $0x2a8] sm:$0xff]
  %v8365 = vld [vmem:[%s8266 + $0x2b0] sm:$0xff]
  %v8366 = vld [vmem:[%s8266 + $0x2b8] sm:$0xf]
  %v8367 = vld [vmem:[%s8266 + $0x2bc] sm:$0xff]
  %v8368 = vld [vmem:[%s8266 + $0x2c4] sm:$0xff]
  %v8369 = vld [vmem:[%s8266 + $0x2cc] sm:$0xff]
  %v8370 = vld [vmem:[%s8266 + $0x2d4] sm:$0xf]
  %v8371 = vld [vmem:[%s8266 + $0x2d8] sm:$0xff]
  %v8372 = vld [vmem:[%s8266 + $0x2e0] sm:$0xff]
  %v8373 = vld [vmem:[%s8266 + $0x2e8] sm:$0xff]
  %v8374 = vld [vmem:[%s8266 + $0x2f0] sm:$0xf]
  %v8375 = vld [vmem:[%s8266 + $0x2f4] sm:$0xff]
  %v8376 = vld [vmem:[%s8266 + $0x2fc] sm:$0xff]
  %v8377 = vld [vmem:[%s8266 + $0x304] sm:$0xff]
  %v8378 = vld [vmem:[%s8266 + $0x30c] sm:$0xf]
  %v8379 = vld [vmem:[%s8266 + $0x310] sm:$0xff]
  %v8380 = vld [vmem:[%s8266 + $0x318] sm:$0xff]
  %v8381 = vld [vmem:[%s8266 + $0x320] sm:$0xff]
  %v8382 = vld [vmem:[%s8266 + $0x328] sm:$0xf]
  %v8383 = vld [vmem:[%s8266 + $0x32c] sm:$0xff]
  %v8384 = vld [vmem:[%s8266 + $0x334] sm:$0xff]
  %v8385 = vld [vmem:[%s8266 + $0x33c] sm:$0xff]
  %v8386 = vld [vmem:[%s8266 + $0x344] sm:$0xf]
  %v8387 = vld [vmem:[%s8266 + $0x348] sm:$0xff]
  %v8388 = vld [vmem:[%s8266 + $0x350] sm:$0xff]
  %v8389 = vld [vmem:[%s8266 + $0x358] sm:$0xff]
  %v8390 = vld [vmem:[%s8266 + $0x360] sm:$0xf]
  %v8391 = vld [vmem:[%s8266 + $0x364] sm:$0xff]
  %v8392 = vld [vmem:[%s8266 + $0x36c] sm:$0xff]
  %v8393 = vld [vmem:[%s8266 + $0x374] sm:$0xff]
  %v8394 = vld [vmem:[%s8266 + $0x37c] sm:$0xf]
  %v8395 = vld [vmem:[%s8266 + $0x380] sm:$0xff]
  %v8396 = vld [vmem:[%s8266 + $0x388] sm:$0xff]
  %v8397 = vld [vmem:[%s8266 + $0x390] sm:$0xff]
  %v8398 = vld [vmem:[%s8266 + $0x398] sm:$0xf]
  %v8399 = vld [vmem:[%s8266 + $0x39c] sm:$0xff]
  %v8400 = vld [vmem:[%s8266 + $0x3a4] sm:$0xff]
  %v8401 = vld [vmem:[%s8266 + $0x3ac] sm:$0xff]
  %v8402 = vld [vmem:[%s8266 + $0x3b4] sm:$0xf]
  %v8403 = vld [vmem:[%s8266 + $0x3b8] sm:$0xff]
  %v8404 = vld [vmem:[%s8266 + $0x3c0] sm:$0xff]
  %v8405 = vld [vmem:[%s8266 + $0x3c8] sm:$0xff]
  %v8406 = vld [vmem:[%s8266 + $0x3d0] sm:$0xf]
  %v8407 = vld [vmem:[%s8266 + $0x3d4] sm:$0xff]
  %v8408 = vld [vmem:[%s8266 + $0x3dc] sm:$0xff]
  %v8409 = vld [vmem:[%s8266 + $0x3e4] sm:$0xff]
  %v8410 = vld [vmem:[%s8266 + $0x3ec] sm:$0xf]
  %v8411 = vld [vmem:[%s8266 + $0x3f0] sm:$0xff]
  %v8412 = vld [vmem:[%s8266 + $0x3f8] sm:$0xff]
  %v8413 = vld [vmem:[%s8266 + $0x400] sm:$0xff]
  %v8414 = vld [vmem:[%s8266 + $0x408] sm:$0xf]
  %v8415 = vld [vmem:[%s8266 + $0x40c] sm:$0xff]
  %v8416 = vld [vmem:[%s8266 + $0x414] sm:$0xff]
  %v8417 = vld [vmem:[%s8266 + $0x41c] sm:$0xff]
  %v8418 = vld [vmem:[%s8266 + $0x424] sm:$0xf]
  %v8419 = vld [vmem:[%s8266 + $0x428] sm:$0xff]
  %v8420 = vld [vmem:[%s8266 + $0x430] sm:$0xff]
  %v8421 = vld [vmem:[%s8266 + $0x438] sm:$0xff]
  %v8422 = vld [vmem:[%s8266 + $0x440] sm:$0xf]
  %v8423 = vld [vmem:[%s8266 + $0x444] sm:$0xff]
  %v8424 = vld [vmem:[%s8266 + $0x44c] sm:$0xff]
  %v8425 = vld [vmem:[%s8266 + $0x454] sm:$0xff]
  %v8426 = vld [vmem:[%s8266 + $0x45c] sm:$0xf]
  %v8427 = vld [vmem:[%s8266 + $0x460] sm:$0xff]
  %v8428 = vld [vmem:[%s8266 + $0x468] sm:$0xff]
  %v8429 = vld [vmem:[%s8266 + $0x470] sm:$0xff]
  %v8430 = vld [vmem:[%s8266 + $0x478] sm:$0xf]
  %v8431 = vld [vmem:[%s8266 + $0x47c] sm:$0xff]
  %v8432 = vld [vmem:[%s8266 + $0x484] sm:$0xff]
  %v8433 = vld [vmem:[%s8266 + $0x48c] sm:$0xff]
  %v8434 = vld [vmem:[%s8266 + $0x494] sm:$0xf]
  %v8435 = vld [vmem:[%s8266 + $0x498] sm:$0xff]
  %v8436 = vld [vmem:[%s8266 + $0x4a0] sm:$0xff]
  %v8437 = vld [vmem:[%s8266 + $0x4a8] sm:$0xff]
  %v8438 = vld [vmem:[%s8266 + $0x4b0] sm:$0xf]
  %v8439 = vld [vmem:[%s8266 + $0x4b4] sm:$0xff]
  %v8440 = vld [vmem:[%s8266 + $0x4bc] sm:$0xff]
  %v8441 = vld [vmem:[%s8266 + $0x4c4] sm:$0xff]
  %v8442 = vld [vmem:[%s8266 + $0x4cc] sm:$0xf]
  %v8443 = vld [vmem:[%s8266 + $0x4d0] sm:$0xff]
  %v8444 = vld [vmem:[%s8266 + $0x4d8] sm:$0xff]
  %v8445 = vld [vmem:[%s8266 + $0x4e0] sm:$0xff]
  %v8446 = vld [vmem:[%s8266 + $0x4e8] sm:$0xf]
  %v8447 = vld [vmem:[%s8266 + $0x4ec] sm:$0xff]
  %v8448 = vld [vmem:[%s8266 + $0x4f4] sm:$0xff]
  %v8449 = vld [vmem:[%s8266 + $0x4fc] sm:$0xff]
  %v8450 = vld [vmem:[%s8266 + $0x504] sm:$0xf]
  %v8451 = vld [vmem:[%s8266 + $0x508] sm:$0xff]
  %v8452 = vld [vmem:[%s8266 + $0x510] sm:$0xff]
  %v8453 = vld [vmem:[%s8266 + $0x518] sm:$0xff]
  %v8454 = vld [vmem:[%s8266 + $0x520] sm:$0xf]
  %v8455 = vld [vmem:[%s8266 + $0x524] sm:$0xff]
  %v8456 = vld [vmem:[%s8266 + $0x52c] sm:$0xff]
  %v8457 = vld [vmem:[%s8266 + $0x534] sm:$0xff]
  %v8458 = vld [vmem:[%s8266 + $0x53c] sm:$0xf]
  %v8459 = vld [vmem:[%s8266 + $0x540] sm:$0xff]
  %v8460 = vld [vmem:[%s8266 + $0x548] sm:$0xff]
  %v8461 = vld [vmem:[%s8266 + $0x550] sm:$0xff]
  %v8462 = vld [vmem:[%s8266 + $0x558] sm:$0xf]
  %v8463 = vld [vmem:[%s8266 + $0x55c] sm:$0xff]
  %v8464 = vld [vmem:[%s8266 + $0x564] sm:$0xff]
  %v8465 = vld [vmem:[%s8266 + $0x56c] sm:$0xff]
  %v8466 = vld [vmem:[%s8266 + $0x574] sm:$0xf]
  %v8467 = vld [vmem:[%s8266 + $0x578] sm:$0xff]
  %v8468 = vld [vmem:[%s8266 + $0x580] sm:$0xff]
  %v8469 = vld [vmem:[%s8266 + $0x588] sm:$0xff]
  %v8470 = vld [vmem:[%s8266 + $0x590] sm:$0xf]
  %v8471 = vld [vmem:[%s8266 + $0x594] sm:$0xff]
  %v8472 = vld [vmem:[%s8266 + $0x59c] sm:$0xff]
  %v8473 = vld [vmem:[%s8266 + $0x5a4] sm:$0xff]
  %v8474 = vld [vmem:[%s8266 + $0x5ac] sm:$0xf]
  %v8475 = vld [vmem:[%s8266 + $0x5b0] sm:$0xff]
  %v8476 = vld [vmem:[%s8266 + $0x5b8] sm:$0xff]
  %v8477 = vld [vmem:[%s8266 + $0x5c0] sm:$0xff]
  %v8478 = vld [vmem:[%s8266 + $0x5c8] sm:$0xf]
  %v8479 = vld [vmem:[%s8266 + $0x5cc] sm:$0xff]
  %v8480 = vld [vmem:[%s8266 + $0x5d4] sm:$0xff]
  %v8481 = vld [vmem:[%s8266 + $0x5dc] sm:$0xff]
  %v8482 = vld [vmem:[%s8266 + $0x5e4] sm:$0xf]
  %v8483 = vld [vmem:[%s8266 + $0x5e8] sm:$0xff]
  %v8484 = vld [vmem:[%s8266 + $0x5f0] sm:$0xff]
  %v8485 = vld [vmem:[%s8266 + $0x5f8] sm:$0xff]
  %v8486 = vld [vmem:[%s8266 + $0x600] sm:$0xf]
  %v8487 = vld [vmem:[%s8266 + $0x604] sm:$0xff]
  %v8488 = vld [vmem:[%s8266 + $0x60c] sm:$0xff]
  %v8489 = vld [vmem:[%s8266 + $0x614] sm:$0xff]
  %v8490 = vld [vmem:[%s8266 + $0x61c] sm:$0xf]
  %v8715 = vunpack.c.l.b16 %v8267
  %v8716 = vunpack.c.h.b16 %v8267
  %v8717 = vunpack.c.l.b16 %v8268
  %v8718 = vunpack.c.h.b16 %v8268
  %v8719 = vunpack.c.l.b16 %v8269
  %v8720 = vunpack.c.h.b16 %v8269
  %v8721 = vunpack.c.l.b16 %v8270
  %v8722 = vunpack.c.l.b16 %v8271
  %v8723 = vunpack.c.h.b16 %v8271
  %v8724 = vunpack.c.l.b16 %v8272
  %v8725 = vunpack.c.h.b16 %v8272
  %v8726 = vunpack.c.l.b16 %v8273
  %v8727 = vunpack.c.h.b16 %v8273
  %v8728 = vunpack.c.l.b16 %v8274
  %v8729 = vunpack.c.l.b16 %v8275
  %v8730 = vunpack.c.h.b16 %v8275
  %v8731 = vunpack.c.l.b16 %v8276
  %v8732 = vunpack.c.h.b16 %v8276
  %v8733 = vunpack.c.l.b16 %v8277
  %v8734 = vunpack.c.h.b16 %v8277
  %v8735 = vunpack.c.l.b16 %v8278
  %v8736 = vunpack.c.l.b16 %v8279
  %v8737 = vunpack.c.h.b16 %v8279
  %v8738 = vunpack.c.l.b16 %v8280
  %v8739 = vunpack.c.h.b16 %v8280
  %v8740 = vunpack.c.l.b16 %v8281
  %v8741 = vunpack.c.h.b16 %v8281
  %v8742 = vunpack.c.l.b16 %v8282
  %v8743 = vunpack.c.l.b16 %v8283
  %v8744 = vunpack.c.h.b16 %v8283
  %v8745 = vunpack.c.l.b16 %v8284
  %v8746 = vunpack.c.h.b16 %v8284
  %v8747 = vunpack.c.l.b16 %v8285
  %v8748 = vunpack.c.h.b16 %v8285
  %v8749 = vunpack.c.l.b16 %v8286
  %v8750 = vunpack.c.l.b16 %v8287
  %v8751 = vunpack.c.h.b16 %v8287
  %v8752 = vunpack.c.l.b16 %v8288
  %v8753 = vunpack.c.h.b16 %v8288
  %v8754 = vunpack.c.l.b16 %v8289
  %v8755 = vunpack.c.h.b16 %v8289
  %v8756 = vunpack.c.l.b16 %v8290
  %v8757 = vunpack.c.l.b16 %v8291
  %v8758 = vunpack.c.h.b16 %v8291
  %v8759 = vunpack.c.l.b16 %v8292
  %v8760 = vunpack.c.h.b16 %v8292
  %v8761 = vunpack.c.l.b16 %v8293
  %v8762 = vunpack.c.h.b16 %v8293
  %v8763 = vunpack.c.l.b16 %v8294
  %v8764 = vunpack.c.l.b16 %v8295
  %v8765 = vunpack.c.h.b16 %v8295
  %v8766 = vunpack.c.l.b16 %v8296
  %v8767 = vunpack.c.h.b16 %v8296
  %v8768 = vunpack.c.l.b16 %v8297
  %v8769 = vunpack.c.h.b16 %v8297
  %v8770 = vunpack.c.l.b16 %v8298
  %v8771 = vunpack.c.l.b16 %v8299
  %v8772 = vunpack.c.h.b16 %v8299
  %v8773 = vunpack.c.l.b16 %v8300
  %v8774 = vunpack.c.h.b16 %v8300
  %v8775 = vunpack.c.l.b16 %v8301
  %v8776 = vunpack.c.h.b16 %v8301
  %v8777 = vunpack.c.l.b16 %v8302
  %v8778 = vunpack.c.l.b16 %v8303
  %v8779 = vunpack.c.h.b16 %v8303
  %v8780 = vunpack.c.l.b16 %v8304
  %v8781 = vunpack.c.h.b16 %v8304
  %v8782 = vunpack.c.l.b16 %v8305
  %v8783 = vunpack.c.h.b16 %v8305
  %v8784 = vunpack.c.l.b16 %v8306
  %v8785 = vunpack.c.l.b16 %v8307
  %v8786 = vunpack.c.h.b16 %v8307
  %v8787 = vunpack.c.l.b16 %v8308
  %v8788 = vunpack.c.h.b16 %v8308
  %v8789 = vunpack.c.l.b16 %v8309
  %v8790 = vunpack.c.h.b16 %v8309
  %v8791 = vunpack.c.l.b16 %v8310
  %v8792 = vunpack.c.l.b16 %v8311
  %v8793 = vunpack.c.h.b16 %v8311
  %v8794 = vunpack.c.l.b16 %v8312
  %v8795 = vunpack.c.h.b16 %v8312
  %v8796 = vunpack.c.l.b16 %v8313
  %v8797 = vunpack.c.h.b16 %v8313
  %v8798 = vunpack.c.l.b16 %v8314
  %v8799 = vunpack.c.l.b16 %v8315
  %v8800 = vunpack.c.h.b16 %v8315
  %v8801 = vunpack.c.l.b16 %v8316
  %v8802 = vunpack.c.h.b16 %v8316
  %v8803 = vunpack.c.l.b16 %v8317
  %v8804 = vunpack.c.h.b16 %v8317
  %v8805 = vunpack.c.l.b16 %v8318
  %v8806 = vunpack.c.l.b16 %v8319
  %v8807 = vunpack.c.h.b16 %v8319
  %v8808 = vunpack.c.l.b16 %v8320
  %v8809 = vunpack.c.h.b16 %v8320
  %v8810 = vunpack.c.l.b16 %v8321
  %v8811 = vunpack.c.h.b16 %v8321
  %v8812 = vunpack.c.l.b16 %v8322
  %v8813 = vunpack.c.l.b16 %v8323
  %v8814 = vunpack.c.h.b16 %v8323
  %v8815 = vunpack.c.l.b16 %v8324
  %v8816 = vunpack.c.h.b16 %v8324
  %v8817 = vunpack.c.l.b16 %v8325
  %v8818 = vunpack.c.h.b16 %v8325
  %v8819 = vunpack.c.l.b16 %v8326
  %v8820 = vunpack.c.l.b16 %v8327
  %v8821 = vunpack.c.h.b16 %v8327
  %v8822 = vunpack.c.l.b16 %v8328
  %v8823 = vunpack.c.h.b16 %v8328
  %v8824 = vunpack.c.l.b16 %v8329
  %v8825 = vunpack.c.h.b16 %v8329
  %v8826 = vunpack.c.l.b16 %v8330
  %v8827 = vunpack.c.l.b16 %v8331
  %v8828 = vunpack.c.h.b16 %v8331
  %v8829 = vunpack.c.l.b16 %v8332
  %v8830 = vunpack.c.h.b16 %v8332
  %v8831 = vunpack.c.l.b16 %v8333
  %v8832 = vunpack.c.h.b16 %v8333
  %v8833 = vunpack.c.l.b16 %v8334
  %v8834 = vunpack.c.l.b16 %v8335
  %v8835 = vunpack.c.h.b16 %v8335
  %v8836 = vunpack.c.l.b16 %v8336
  %v8837 = vunpack.c.h.b16 %v8336
  %v8838 = vunpack.c.l.b16 %v8337
  %v8839 = vunpack.c.h.b16 %v8337
  %v8840 = vunpack.c.l.b16 %v8338
  %v8841 = vunpack.c.l.b16 %v8339
  %v8842 = vunpack.c.h.b16 %v8339
  %v8843 = vunpack.c.l.b16 %v8340
  %v8844 = vunpack.c.h.b16 %v8340
  %v8845 = vunpack.c.l.b16 %v8341
  %v8846 = vunpack.c.h.b16 %v8341
  %v8847 = vunpack.c.l.b16 %v8342
  %v8848 = vunpack.c.l.b16 %v8343
  %v8849 = vunpack.c.h.b16 %v8343
  %v8850 = vunpack.c.l.b16 %v8344
  %v8851 = vunpack.c.h.b16 %v8344
  %v8852 = vunpack.c.l.b16 %v8345
  %v8853 = vunpack.c.h.b16 %v8345
  %v8854 = vunpack.c.l.b16 %v8346
  %v8855 = vunpack.c.l.b16 %v8347
  %v8856 = vunpack.c.h.b16 %v8347
  %v8857 = vunpack.c.l.b16 %v8348
  %v8858 = vunpack.c.h.b16 %v8348
  %v8859 = vunpack.c.l.b16 %v8349
  %v8860 = vunpack.c.h.b16 %v8349
  %v8861 = vunpack.c.l.b16 %v8350
  %v8862 = vunpack.c.l.b16 %v8351
  %v8863 = vunpack.c.h.b16 %v8351
  %v8864 = vunpack.c.l.b16 %v8352
  %v8865 = vunpack.c.h.b16 %v8352
  %v8866 = vunpack.c.l.b16 %v8353
  %v8867 = vunpack.c.h.b16 %v8353
  %v8868 = vunpack.c.l.b16 %v8354
  %v8869 = vunpack.c.l.b16 %v8355
  %v8870 = vunpack.c.h.b16 %v8355
  %v8871 = vunpack.c.l.b16 %v8356
  %v8872 = vunpack.c.h.b16 %v8356
  %v8873 = vunpack.c.l.b16 %v8357
  %v8874 = vunpack.c.h.b16 %v8357
  %v8875 = vunpack.c.l.b16 %v8358
  %v8876 = vunpack.c.l.b16 %v8359
  %v8877 = vunpack.c.h.b16 %v8359
  %v8878 = vunpack.c.l.b16 %v8360
  %v8879 = vunpack.c.h.b16 %v8360
  %v8880 = vunpack.c.l.b16 %v8361
  %v8881 = vunpack.c.h.b16 %v8361
  %v8882 = vunpack.c.l.b16 %v8362
  %v8883 = vunpack.c.l.b16 %v8363
  %v8884 = vunpack.c.h.b16 %v8363
  %v8885 = vunpack.c.l.b16 %v8364
  %v8886 = vunpack.c.h.b16 %v8364
  %v8887 = vunpack.c.l.b16 %v8365
  %v8888 = vunpack.c.h.b16 %v8365
  %v8889 = vunpack.c.l.b16 %v8366
  %v8890 = vunpack.c.l.b16 %v8367
  %v8891 = vunpack.c.h.b16 %v8367
  %v8892 = vunpack.c.l.b16 %v8368
  %v8893 = vunpack.c.h.b16 %v8368
  %v8894 = vunpack.c.l.b16 %v8369
  %v8895 = vunpack.c.h.b16 %v8369
  %v8896 = vunpack.c.l.b16 %v8370
  %v8897 = vunpack.c.l.b16 %v8371
  %v8898 = vunpack.c.h.b16 %v8371
  %v8899 = vunpack.c.l.b16 %v8372
  %v8900 = vunpack.c.h.b16 %v8372
  %v8901 = vunpack.c.l.b16 %v8373
  %v8902 = vunpack.c.h.b16 %v8373
  %v8903 = vunpack.c.l.b16 %v8374
  %v8904 = vunpack.c.l.b16 %v8375
  %v8905 = vunpack.c.h.b16 %v8375
  %v8906 = vunpack.c.l.b16 %v8376
  %v8907 = vunpack.c.h.b16 %v8376
  %v8908 = vunpack.c.l.b16 %v8377
  %v8909 = vunpack.c.h.b16 %v8377
  %v8910 = vunpack.c.l.b16 %v8378
  %v8911 = vunpack.c.l.b16 %v8379
  %v8912 = vunpack.c.h.b16 %v8379
  %v8913 = vunpack.c.l.b16 %v8380
  %v8914 = vunpack.c.h.b16 %v8380
  %v8915 = vunpack.c.l.b16 %v8381
  %v8916 = vunpack.c.h.b16 %v8381
  %v8917 = vunpack.c.l.b16 %v8382
  %v8918 = vunpack.c.l.b16 %v8383
  %v8919 = vunpack.c.h.b16 %v8383
  %v8920 = vunpack.c.l.b16 %v8384
  %v8921 = vunpack.c.h.b16 %v8384
  %v8922 = vunpack.c.l.b16 %v8385
  %v8923 = vunpack.c.h.b16 %v8385
  %v8924 = vunpack.c.l.b16 %v8386
  %v8925 = vunpack.c.l.b16 %v8387
  %v8926 = vunpack.c.h.b16 %v8387
  %v8927 = vunpack.c.l.b16 %v8388
  %v8928 = vunpack.c.h.b16 %v8388
  %v8929 = vunpack.c.l.b16 %v8389
  %v8930 = vunpack.c.h.b16 %v8389
  %v8931 = vunpack.c.l.b16 %v8390
  %v8932 = vunpack.c.l.b16 %v8391
  %v8933 = vunpack.c.h.b16 %v8391
  %v8934 = vunpack.c.l.b16 %v8392
  %v8935 = vunpack.c.h.b16 %v8392
  %v8936 = vunpack.c.l.b16 %v8393
  %v8937 = vunpack.c.h.b16 %v8393
  %v8938 = vunpack.c.l.b16 %v8394
  %v8939 = vunpack.c.l.b16 %v8395
  %v8940 = vunpack.c.h.b16 %v8395
  %v8941 = vunpack.c.l.b16 %v8396
  %v8942 = vunpack.c.h.b16 %v8396
  %v8943 = vunpack.c.l.b16 %v8397
  %v8944 = vunpack.c.h.b16 %v8397
  %v8945 = vunpack.c.l.b16 %v8398
  %v8946 = vunpack.c.l.b16 %v8399
  %v8947 = vunpack.c.h.b16 %v8399
  %v8948 = vunpack.c.l.b16 %v8400
  %v8949 = vunpack.c.h.b16 %v8400
  %v8950 = vunpack.c.l.b16 %v8401
  %v8951 = vunpack.c.h.b16 %v8401
  %v8952 = vunpack.c.l.b16 %v8402
  %v8953 = vunpack.c.l.b16 %v8403
  %v8954 = vunpack.c.h.b16 %v8403
  %v8955 = vunpack.c.l.b16 %v8404
  %v8956 = vunpack.c.h.b16 %v8404
  %v8957 = vunpack.c.l.b16 %v8405
  %v8958 = vunpack.c.h.b16 %v8405
  %v8959 = vunpack.c.l.b16 %v8406
  %v8960 = vunpack.c.l.b16 %v8407
  %v8961 = vunpack.c.h.b16 %v8407
  %v8962 = vunpack.c.l.b16 %v8408
  %v8963 = vunpack.c.h.b16 %v8408
  %v8964 = vunpack.c.l.b16 %v8409
  %v8965 = vunpack.c.h.b16 %v8409
  %v8966 = vunpack.c.l.b16 %v8410
  %v8967 = vunpack.c.l.b16 %v8411
  %v8968 = vunpack.c.h.b16 %v8411
  %v8969 = vunpack.c.l.b16 %v8412
  %v8970 = vunpack.c.h.b16 %v8412
  %v8971 = vunpack.c.l.b16 %v8413
  %v8972 = vunpack.c.h.b16 %v8413
  %v8973 = vunpack.c.l.b16 %v8414
  %v8974 = vunpack.c.l.b16 %v8415
  %v8975 = vunpack.c.h.b16 %v8415
  %v8976 = vunpack.c.l.b16 %v8416
  %v8977 = vunpack.c.h.b16 %v8416
  %v8978 = vunpack.c.l.b16 %v8417
  %v8979 = vunpack.c.h.b16 %v8417
  %v8980 = vunpack.c.l.b16 %v8418
  %v8981 = vunpack.c.l.b16 %v8419
  %v8982 = vunpack.c.h.b16 %v8419
  %v8983 = vunpack.c.l.b16 %v8420
  %v8984 = vunpack.c.h.b16 %v8420
  %v8985 = vunpack.c.l.b16 %v8421
  %v8986 = vunpack.c.h.b16 %v8421
  %v8987 = vunpack.c.l.b16 %v8422
  %v8988 = vunpack.c.l.b16 %v8423
  %v8989 = vunpack.c.h.b16 %v8423
  %v8990 = vunpack.c.l.b16 %v8424
  %v8991 = vunpack.c.h.b16 %v8424
  %v8992 = vunpack.c.l.b16 %v8425
  %v8993 = vunpack.c.h.b16 %v8425
  %v8994 = vunpack.c.l.b16 %v8426
  %v8995 = vunpack.c.l.b16 %v8427
  %v8996 = vunpack.c.h.b16 %v8427
  %v8997 = vunpack.c.l.b16 %v8428
  %v8998 = vunpack.c.h.b16 %v8428
  %v8999 = vunpack.c.l.b16 %v8429
  %v9000 = vunpack.c.h.b16 %v8429
  %v9001 = vunpack.c.l.b16 %v8430
  %v9002 = vunpack.c.l.b16 %v8431
  %v9003 = vunpack.c.h.b16 %v8431
  %v9004 = vunpack.c.l.b16 %v8432
  %v9005 = vunpack.c.h.b16 %v8432
  %v9006 = vunpack.c.l.b16 %v8433
  %v9007 = vunpack.c.h.b16 %v8433
  %v9008 = vunpack.c.l.b16 %v8434
  %v9009 = vunpack.c.l.b16 %v8435
  %v9010 = vunpack.c.h.b16 %v8435
  %v9011 = vunpack.c.l.b16 %v8436
  %v9012 = vunpack.c.h.b16 %v8436
  %v9013 = vunpack.c.l.b16 %v8437
  %v9014 = vunpack.c.h.b16 %v8437
  %v9015 = vunpack.c.l.b16 %v8438
  %v9016 = vunpack.c.l.b16 %v8439
  %v9017 = vunpack.c.h.b16 %v8439
  %v9018 = vunpack.c.l.b16 %v8440
  %v9019 = vunpack.c.h.b16 %v8440
  %v9020 = vunpack.c.l.b16 %v8441
  %v9021 = vunpack.c.h.b16 %v8441
  %v9022 = vunpack.c.l.b16 %v8442
  %v9023 = vunpack.c.l.b16 %v8443
  %v9024 = vunpack.c.h.b16 %v8443
  %v9025 = vunpack.c.l.b16 %v8444
  %v9026 = vunpack.c.h.b16 %v8444
  %v9027 = vunpack.c.l.b16 %v8445
  %v9028 = vunpack.c.h.b16 %v8445
  %v9029 = vunpack.c.l.b16 %v8446
  %v9030 = vunpack.c.l.b16 %v8447
  %v9031 = vunpack.c.h.b16 %v8447
  %v9032 = vunpack.c.l.b16 %v8448
  %v9033 = vunpack.c.h.b16 %v8448
  %v9034 = vunpack.c.l.b16 %v8449
  %v9035 = vunpack.c.h.b16 %v8449
  %v9036 = vunpack.c.l.b16 %v8450
  %v9037 = vunpack.c.l.b16 %v8451
  %v9038 = vunpack.c.h.b16 %v8451
  %v9039 = vunpack.c.l.b16 %v8452
  %v9040 = vunpack.c.h.b16 %v8452
  %v9041 = vunpack.c.l.b16 %v8453
  %v9042 = vunpack.c.h.b16 %v8453
  %v9043 = vunpack.c.l.b16 %v8454
  %v9044 = vunpack.c.l.b16 %v8455
  %v9045 = vunpack.c.h.b16 %v8455
  %v9046 = vunpack.c.l.b16 %v8456
  %v9047 = vunpack.c.h.b16 %v8456
  %v9048 = vunpack.c.l.b16 %v8457
  %v9049 = vunpack.c.h.b16 %v8457
  %v9050 = vunpack.c.l.b16 %v8458
  %v9051 = vunpack.c.l.b16 %v8459
  %v9052 = vunpack.c.h.b16 %v8459
  %v9053 = vunpack.c.l.b16 %v8460
  %v9054 = vunpack.c.h.b16 %v8460
  %v9055 = vunpack.c.l.b16 %v8461
  %v9056 = vunpack.c.h.b16 %v8461
  %v9057 = vunpack.c.l.b16 %v8462
  %v9058 = vunpack.c.l.b16 %v8463
  %v9059 = vunpack.c.h.b16 %v8463
  %v9060 = vunpack.c.l.b16 %v8464
  %v9061 = vunpack.c.h.b16 %v8464
  %v9062 = vunpack.c.l.b16 %v8465
  %v9063 = vunpack.c.h.b16 %v8465
  %v9064 = vunpack.c.l.b16 %v8466
  %v9065 = vunpack.c.l.b16 %v8467
  %v9066 = vunpack.c.h.b16 %v8467
  %v9067 = vunpack.c.l.b16 %v8468
  %v9068 = vunpack.c.h.b16 %v8468
  %v9069 = vunpack.c.l.b16 %v8469
  %v9070 = vunpack.c.h.b16 %v8469
  %v9071 = vunpack.c.l.b16 %v8470
  %v9072 = vunpack.c.l.b16 %v8471
  %v9073 = vunpack.c.h.b16 %v8471
  %v9074 = vunpack.c.l.b16 %v8472
  %v9075 = vunpack.c.h.b16 %v8472
  %v9076 = vunpack.c.l.b16 %v8473
  %v9077 = vunpack.c.h.b16 %v8473
  %v9078 = vunpack.c.l.b16 %v8474
  %v9079 = vunpack.c.l.b16 %v8475
  %v9080 = vunpack.c.h.b16 %v8475
  %v9081 = vunpack.c.l.b16 %v8476
  %v9082 = vunpack.c.h.b16 %v8476
  %v9083 = vunpack.c.l.b16 %v8477
  %v9084 = vunpack.c.h.b16 %v8477
  %v9085 = vunpack.c.l.b16 %v8478
  %v9086 = vunpack.c.l.b16 %v8479
  %v9087 = vunpack.c.h.b16 %v8479
  %v9088 = vunpack.c.l.b16 %v8480
  %v9089 = vunpack.c.h.b16 %v8480
  %v9090 = vunpack.c.l.b16 %v8481
  %v9091 = vunpack.c.h.b16 %v8481
  %v9092 = vunpack.c.l.b16 %v8482
  %v9093 = vunpack.c.l.b16 %v8483
  %v9094 = vunpack.c.h.b16 %v8483
  %v9095 = vunpack.c.l.b16 %v8484
  %v9096 = vunpack.c.h.b16 %v8484
  %v9097 = vunpack.c.l.b16 %v8485
  %v9098 = vunpack.c.h.b16 %v8485
  %v9099 = vunpack.c.l.b16 %v8486
  %v9100 = vunpack.c.l.b16 %v8487
  %v9101 = vunpack.c.h.b16 %v8487
  %v9102 = vunpack.c.l.b16 %v8488
  %v9103 = vunpack.c.h.b16 %v8488
  %v9104 = vunpack.c.l.b16 %v8489
  %v9105 = vunpack.c.h.b16 %v8489
  %v9106 = vunpack.c.l.b16 %v8490
  %v9107 = vpack.c.b16 %v8722, %v8715
  %v9108 = vpack.c.b16 %v8723, %v8716
  %v9109 = vpack.c.b16 %v8724, %v8717
  %v9110 = vpack.c.b16 %v8725, %v8718
  %v9111 = vpack.c.b16 %v8726, %v8719
  %v9112 = vpack.c.b16 %v8727, %v8720
  %v9113 = vpack.c.b16 %v8728, %v8721
  %v9114 = vpack.c.b16 %v8736, %v8729
  %v9115 = vpack.c.b16 %v8737, %v8730
  %v9116 = vpack.c.b16 %v8738, %v8731
  %v9117 = vpack.c.b16 %v8739, %v8732
  %v9118 = vpack.c.b16 %v8740, %v8733
  %v9119 = vpack.c.b16 %v8741, %v8734
  %v9120 = vpack.c.b16 %v8742, %v8735
  %v9121 = vpack.c.b16 %v8750, %v8743
  %v9122 = vpack.c.b16 %v8751, %v8744
  %v9123 = vpack.c.b16 %v8752, %v8745
  %v9124 = vpack.c.b16 %v8753, %v8746
  %v9125 = vpack.c.b16 %v8754, %v8747
  %v9126 = vpack.c.b16 %v8755, %v8748
  %v9127 = vpack.c.b16 %v8756, %v8749
  %v9128 = vpack.c.b16 %v8764, %v8757
  %v9129 = vpack.c.b16 %v8765, %v8758
  %v9130 = vpack.c.b16 %v8766, %v8759
  %v9131 = vpack.c.b16 %v8767, %v8760
  %v9132 = vpack.c.b16 %v8768, %v8761
  %v9133 = vpack.c.b16 %v8769, %v8762
  %v9134 = vpack.c.b16 %v8770, %v8763
  %v9135 = vpack.c.b16 %v8778, %v8771
  %v9136 = vpack.c.b16 %v8779, %v8772
  %v9137 = vpack.c.b16 %v8780, %v8773
  %v9138 = vpack.c.b16 %v8781, %v8774
  %v9139 = vpack.c.b16 %v8782, %v8775
  %v9140 = vpack.c.b16 %v8783, %v8776
  %v9141 = vpack.c.b16 %v8784, %v8777
  %v9142 = vpack.c.b16 %v8792, %v8785
  %v9143 = vpack.c.b16 %v8793, %v8786
  %v9144 = vpack.c.b16 %v8794, %v8787
  %v9145 = vpack.c.b16 %v8795, %v8788
  %v9146 = vpack.c.b16 %v8796, %v8789
  %v9147 = vpack.c.b16 %v8797, %v8790
  %v9148 = vpack.c.b16 %v8798, %v8791
  %v9149 = vpack.c.b16 %v8806, %v8799
  %v9150 = vpack.c.b16 %v8807, %v8800
  %v9151 = vpack.c.b16 %v8808, %v8801
  %v9152 = vpack.c.b16 %v8809, %v8802
  %v9153 = vpack.c.b16 %v8810, %v8803
  %v9154 = vpack.c.b16 %v8811, %v8804
  %v9155 = vpack.c.b16 %v8812, %v8805
  %v9156 = vpack.c.b16 %v8820, %v8813
  %v9157 = vpack.c.b16 %v8821, %v8814
  %v9158 = vpack.c.b16 %v8822, %v8815
  %v9159 = vpack.c.b16 %v8823, %v8816
  %v9160 = vpack.c.b16 %v8824, %v8817
  %v9161 = vpack.c.b16 %v8825, %v8818
  %v9162 = vpack.c.b16 %v8826, %v8819
  %v9163 = vpack.c.b16 %v8834, %v8827
  %v9164 = vpack.c.b16 %v8835, %v8828
  %v9165 = vpack.c.b16 %v8836, %v8829
  %v9166 = vpack.c.b16 %v8837, %v8830
  %v9167 = vpack.c.b16 %v8838, %v8831
  %v9168 = vpack.c.b16 %v8839, %v8832
  %v9169 = vpack.c.b16 %v8840, %v8833
  %v9170 = vpack.c.b16 %v8848, %v8841
  %v9171 = vpack.c.b16 %v8849, %v8842
  %v9172 = vpack.c.b16 %v8850, %v8843
  %v9173 = vpack.c.b16 %v8851, %v8844
  %v9174 = vpack.c.b16 %v8852, %v8845
  %v9175 = vpack.c.b16 %v8853, %v8846
  %v9176 = vpack.c.b16 %v8854, %v8847
  %v9177 = vpack.c.b16 %v8862, %v8855
  %v9178 = vpack.c.b16 %v8863, %v8856
  %v9179 = vpack.c.b16 %v8864, %v8857
  %v9180 = vpack.c.b16 %v8865, %v8858
  %v9181 = vpack.c.b16 %v8866, %v8859
  %v9182 = vpack.c.b16 %v8867, %v8860
  %v9183 = vpack.c.b16 %v8868, %v8861
  %v9184 = vpack.c.b16 %v8876, %v8869
  %v9185 = vpack.c.b16 %v8877, %v8870
  %v9186 = vpack.c.b16 %v8878, %v8871
  %v9187 = vpack.c.b16 %v8879, %v8872
  %v9188 = vpack.c.b16 %v8880, %v8873
  %v9189 = vpack.c.b16 %v8881, %v8874
  %v9190 = vpack.c.b16 %v8882, %v8875
  %v9191 = vpack.c.b16 %v8890, %v8883
  %v9192 = vpack.c.b16 %v8891, %v8884
  %v9193 = vpack.c.b16 %v8892, %v8885
  %v9194 = vpack.c.b16 %v8893, %v8886
  %v9195 = vpack.c.b16 %v8894, %v8887
  %v9196 = vpack.c.b16 %v8895, %v8888
  %v9197 = vpack.c.b16 %v8896, %v8889
  %v9198 = vpack.c.b16 %v8904, %v8897
  %v9199 = vpack.c.b16 %v8905, %v8898
  %v9200 = vpack.c.b16 %v8906, %v8899
  %v9201 = vpack.c.b16 %v8907, %v8900
  %v9202 = vpack.c.b16 %v8908, %v8901
  %v9203 = vpack.c.b16 %v8909, %v8902
  %v9204 = vpack.c.b16 %v8910, %v8903
  %v9205 = vpack.c.b16 %v8918, %v8911
  %v9206 = vpack.c.b16 %v8919, %v8912
  %v9207 = vpack.c.b16 %v8920, %v8913
  %v9208 = vpack.c.b16 %v8921, %v8914
  %v9209 = vpack.c.b16 %v8922, %v8915
  %v9210 = vpack.c.b16 %v8923, %v8916
  %v9211 = vpack.c.b16 %v8924, %v8917
  %v9212 = vpack.c.b16 %v8932, %v8925
  %v9213 = vpack.c.b16 %v8933, %v8926
  %v9214 = vpack.c.b16 %v8934, %v8927
  %v9215 = vpack.c.b16 %v8935, %v8928
  %v9216 = vpack.c.b16 %v8936, %v8929
  %v9217 = vpack.c.b16 %v8937, %v8930
  %v9218 = vpack.c.b16 %v8938, %v8931
  %v9219 = vpack.c.b16 %v8946, %v8939
  %v9220 = vpack.c.b16 %v8947, %v8940
  %v9221 = vpack.c.b16 %v8948, %v8941
  %v9222 = vpack.c.b16 %v8949, %v8942
  %v9223 = vpack.c.b16 %v8950, %v8943
  %v9224 = vpack.c.b16 %v8951, %v8944
  %v9225 = vpack.c.b16 %v8952, %v8945
  %v9226 = vpack.c.b16 %v8960, %v8953
  %v9227 = vpack.c.b16 %v8961, %v8954
  %v9228 = vpack.c.b16 %v8962, %v8955
  %v9229 = vpack.c.b16 %v8963, %v8956
  %v9230 = vpack.c.b16 %v8964, %v8957
  %v9231 = vpack.c.b16 %v8965, %v8958
  %v9232 = vpack.c.b16 %v8966, %v8959
  %v9233 = vpack.c.b16 %v8974, %v8967
  %v9234 = vpack.c.b16 %v8975, %v8968
  %v9235 = vpack.c.b16 %v8976, %v8969
  %v9236 = vpack.c.b16 %v8977, %v8970
  %v9237 = vpack.c.b16 %v8978, %v8971
  %v9238 = vpack.c.b16 %v8979, %v8972
  %v9239 = vpack.c.b16 %v8980, %v8973
  %v9240 = vpack.c.b16 %v8988, %v8981
  %v9241 = vpack.c.b16 %v8989, %v8982
  %v9242 = vpack.c.b16 %v8990, %v8983
  %v9243 = vpack.c.b16 %v8991, %v8984
  %v9244 = vpack.c.b16 %v8992, %v8985
  %v9245 = vpack.c.b16 %v8993, %v8986
  %v9246 = vpack.c.b16 %v8994, %v8987
  %v9247 = vpack.c.b16 %v9002, %v8995
  %v9248 = vpack.c.b16 %v9003, %v8996
  %v9249 = vpack.c.b16 %v9004, %v8997
  %v9250 = vpack.c.b16 %v9005, %v8998
  %v9251 = vpack.c.b16 %v9006, %v8999
  %v9252 = vpack.c.b16 %v9007, %v9000
  %v9253 = vpack.c.b16 %v9008, %v9001
  %v9254 = vpack.c.b16 %v9016, %v9009
  %v9255 = vpack.c.b16 %v9017, %v9010
  %v9256 = vpack.c.b16 %v9018, %v9011
  %v9257 = vpack.c.b16 %v9019, %v9012
  %v9258 = vpack.c.b16 %v9020, %v9013
  %v9259 = vpack.c.b16 %v9021, %v9014
  %v9260 = vpack.c.b16 %v9022, %v9015
  %v9261 = vpack.c.b16 %v9030, %v9023
  %v9262 = vpack.c.b16 %v9031, %v9024
  %v9263 = vpack.c.b16 %v9032, %v9025
  %v9264 = vpack.c.b16 %v9033, %v9026
  %v9265 = vpack.c.b16 %v9034, %v9027
  %v9266 = vpack.c.b16 %v9035, %v9028
  %v9267 = vpack.c.b16 %v9036, %v9029
  %v9268 = vpack.c.b16 %v9044, %v9037
  %v9269 = vpack.c.b16 %v9045, %v9038
  %v9270 = vpack.c.b16 %v9046, %v9039
  %v9271 = vpack.c.b16 %v9047, %v9040
  %v9272 = vpack.c.b16 %v9048, %v9041
  %v9273 = vpack.c.b16 %v9049, %v9042
  %v9274 = vpack.c.b16 %v9050, %v9043
  %v9275 = vpack.c.b16 %v9058, %v9051
  %v9276 = vpack.c.b16 %v9059, %v9052
  %v9277 = vpack.c.b16 %v9060, %v9053
  %v9278 = vpack.c.b16 %v9061, %v9054
  %v9279 = vpack.c.b16 %v9062, %v9055
  %v9280 = vpack.c.b16 %v9063, %v9056
  %v9281 = vpack.c.b16 %v9064, %v9057
  %v9282 = vpack.c.b16 %v9072, %v9065
  %v9283 = vpack.c.b16 %v9073, %v9066
  %v9284 = vpack.c.b16 %v9074, %v9067
  %v9285 = vpack.c.b16 %v9075, %v9068
  %v9286 = vpack.c.b16 %v9076, %v9069
  %v9287 = vpack.c.b16 %v9077, %v9070
  %v9288 = vpack.c.b16 %v9078, %v9071
  %v9289 = vpack.c.b16 %v9086, %v9079
  %v9290 = vpack.c.b16 %v9087, %v9080
  %v9291 = vpack.c.b16 %v9088, %v9081
  %v9292 = vpack.c.b16 %v9089, %v9082
  %v9293 = vpack.c.b16 %v9090, %v9083
  %v9294 = vpack.c.b16 %v9091, %v9084
  %v9295 = vpack.c.b16 %v9092, %v9085
  %v9296 = vpack.c.b16 %v9100, %v9093
  %v9297 = vpack.c.b16 %v9101, %v9094
  %v9298 = vpack.c.b16 %v9102, %v9095
  %v9299 = vpack.c.b16 %v9103, %v9096
  %v9300 = vpack.c.b16 %v9104, %v9097
  %v9301 = vpack.c.b16 %v9105, %v9098
  %v9302 = vpack.c.b16 %v9106, %v9099
  %9499 = vmatprep.subr.bf16.mxu0 %v9108
  %9500 = vmatpush1.bf16.msra.mxu0 %v9107
  %9501 = vmatprep.subr.bf16.mxu0 %v9115
  %9502 = vmatpush1.bf16.msra.mxu0 %v9114
  %9503 = vmatprep.subr.bf16.mxu0 %v9122
  %9504 = vmatpush1.bf16.msra.mxu0 %v9121
  %9505 = vmatprep.subr.bf16.mxu0 %v9129
  %9506 = vmatpush1.bf16.msra.mxu0 %v9128
  %9507 = vmatprep.subr.bf16.mxu0 %v9136
  %9508 = vmatpush1.bf16.msra.mxu0 %v9135
  %9509 = vmatprep.subr.bf16.mxu0 %v9143
  %9510 = vmatpush1.bf16.msra.mxu0 %v9142
  %9511 = vmatprep.subr.bf16.mxu0 %v9150
  %9512 = vmatpush1.bf16.msra.mxu0 %v9149
  %9513 = vmatprep.subr.bf16.mxu0 %v9157
  %9514 = vmatpush1.bf16.msra.mxu0 %v9156
  %9515 = vmatprep.subr.bf16.mxu0 %v9164
  %9516 = vmatpush1.bf16.msra.mxu0 %v9163
  %9517 = vmatprep.subr.bf16.mxu0 %v9171
  %9518 = vmatpush1.bf16.msra.mxu0 %v9170
  %9519 = vmatprep.subr.bf16.mxu0 %v9178
  %9520 = vmatpush1.bf16.msra.mxu0 %v9177
  %9521 = vmatprep.subr.bf16.mxu0 %v9185
  %9522 = vmatpush1.bf16.msra.mxu0 %v9184
  %9523 = vmatprep.subr.bf16.mxu0 %v9192
  %9524 = vmatpush1.bf16.msra.mxu0 %v9191
  %9525 = vmatprep.subr.bf16.mxu0 %v9199
  %9526 = vmatpush1.bf16.msra.mxu0 %v9198
  %9527 = vmatprep.subr.bf16.mxu0 %v9206
  %9528 = vmatpush1.bf16.msra.mxu0 %v9205
  %9529 = vmatprep.subr.bf16.mxu0 %v9213
  %9530 = vmatpush1.bf16.msra.mxu0 %v9212
  %9531 = vmatprep.mubr.bf16.mxu0 %v3049
  %9532 = vmatmul.mubr.bf16.gmra.mrb[0].mxu0 %v3048
  %v9533 = vpop.f32.mrb[0].mxu0
  %v9534 = vadd.f32 0.0, %v9533
  %v9535 = vpop.f32.mrb[0].mxu0
  %v9536 = vadd.f32 0.0, %v9535
  %v9537 = vpop.f32.mrb[0].mxu0
  %v9538 = vadd.f32 0.0, %v9537
  %v9539 = vpop.f32.mrb[0].mxu0
  %v9540 = vadd.f32 0.0, %v9539
  %9541 = vmatprep.mubr.bf16.mxu0 %v3053
  %9542 = vmatmul.mubr.bf16.gmra.mrb[0].mxu0 %v3052
  %v9543 = vpop.f32.mrb[0].mxu0
  %v9544 = vadd.f32 0.0, %v9543
  %v9545 = vpop.f32.mrb[0].mxu0
  %v9546 = vadd.f32 0.0, %v9545
  %v9547 = vpop.f32.mrb[0].mxu0
  %v9548 = vadd.f32 0.0, %v9547
  %v9549 = vpop.f32.mrb[0].mxu0
  %v9550 = vadd.f32 0.0, %v9549
  %9551 = vmatprep.mubr.bf16.mxu0 %v3057
  %9552 = vmatmul.mubr.bf16.gmra.mrb[0].mxu0 %v3056
  %v9553 = vpop.f32.mrb[0].mxu0
  %v9554 = vadd.f32 0.0, %v9553
  %v9555 = vpop.f32.mrb[0].mxu0
  %v9556 = vadd.f32 0.0, %v9555
  %v9557 = vpop.f32.mrb[0].mxu0
  %v9558 = vadd.f32 0.0, %v9557
  %v9559 = vpop.f32.mrb[0].mxu0
  %v9560 = vadd.f32 0.0, %v9559
  %9561 = vmatprep.mubr.bf16.mxu0 %v3061
  %9562 = vmatmul.mubr.bf16.gmra.mrb[0].mxu0 %v3060
  %v9563 = vpop.f32.mrb[0].mxu0
  %v9564 = vadd.f32 0.0, %v9563
  %v9565 = vpop.f32.mrb[0].mxu0
  %v9566 = vadd.f32 0.0, %v9565
  %v9567 = vpop.f32.mrb[0].mxu0
  %v9568 = vadd.f32 0.0, %v9567
  %v9569 = vpop.f32.mrb[0].mxu0
  %v9570 = vadd.f32 0.0, %v9569
  %9571 = vmatprep.mubr.bf16.mxu0 %v3065
  %9572 = vmatmul.mubr.bf16.gmra.mrb[0].mxu0 %v3064
  %v9573 = vpop.f32.mrb[0].mxu0
  %v9574 = vadd.f32 0.0, %v9573
  %v9575 = vpop.f32.mrb[0].mxu0
  %v9576 = vadd.f32 0.0, %v9575
  %v9577 = vpop.f32.mrb[0].mxu0
  %v9578 = vadd.f32 0.0, %v9577
  %v9579 = vpop.f32.mrb[0].mxu0
  %v9580 = vadd.f32 0.0, %v9579
  %9581 = vmatprep.mubr.bf16.mxu0 %v3069
  %9582 = vmatmul.mubr.bf16.gmra.mrb[0].mxu0 %v3068
  %v9583 = vpop.f32.mrb[0].mxu0
  %v9584 = vadd.f32 0.0, %v9583
  %v9585 = vpop.f32.mrb[0].mxu0
  %v9586 = vadd.f32 0.0, %v9585
  %v9587 = vpop.f32.mrb[0].mxu0
  %v9588 = vadd.f32 0.0, %v9587
  %v9589 = vpop.f32.mrb[0].mxu0
  %v9590 = vadd.f32 0.0, %v9589
  %9591 = vmatprep.mubr.bf16.mxu0 %v3073
  %9592 = vmatmul.mubr.bf16.gmra.mrb[0].mxu0 %v3072
  %v9593 = vpop.f32.mrb[0].mxu0
  %v9594 = vadd.f32 0.0, %v9593
  %v9595 = vpop.f32.mrb[0].mxu0
  %v9596 = vadd.f32 0.0, %v9595
  %v9597 = vpop.f32.mrb[0].mxu0
  %v9598 = vadd.f32 0.0, %v9597
  %v9599 = vpop.f32.mrb[0].mxu0
  %v9600 = vadd.f32 0.0, %v9599
  %9601 = vmatprep.mubr.bf16.mxu0 %v3077
  %9602 = vmatmul.mubr.bf16.gmra.mrb[0].mxu0 %v3076
  %v9603 = vpop.f32.mrb[0].mxu0
  %v9604 = vadd.f32 0.0, %v9603
  %v9605 = vpop.f32.mrb[0].mxu0
  %v9606 = vadd.f32 0.0, %v9605
  %v9607 = vpop.f32.mrb[0].mxu0
  %v9608 = vadd.f32 0.0, %v9607
  %v9609 = vpop.f32.mrb[0].mxu0
  %v9610 = vadd.f32 0.0, %v9609
  %9611 = vmatprep.mubr.bf16.mxu0 %v3081
  %9612 = vmatmul.mubr.bf16.gmra.mrb[0].mxu0 %v3080
  %v9613 = vpop.f32.mrb[0].mxu0
  %v9614 = vadd.f32 0.0, %v9613
  %v9615 = vpop.f32.mrb[0].mxu0
  %v9616 = vadd.f32 0.0, %v9615
  %v9617 = vpop.f32.mrb[0].mxu0
  %v9618 = vadd.f32 0.0, %v9617
  %v9619 = vpop.f32.mrb[0].mxu0
  %v9620 = vadd.f32 0.0, %v9619
  %9621 = vmatprep.mubr.bf16.mxu0 %v3085
  %9622 = vmatmul.mubr.bf16.gmra.mrb[0].mxu0 %v3084
  %v9623 = vpop.f32.mrb[0].mxu0
  %v9624 = vadd.f32 0.0, %v9623
  %v9625 = vpop.f32.mrb[0].mxu0
  %v9626 = vadd.f32 0.0, %v9625
  %v9627 = vpop.f32.mrb[0].mxu0
  %v9628 = vadd.f32 0.0, %v9627
  %v9629 = vpop.f32.mrb[0].mxu0
  %v9630 = vadd.f32 0.0, %v9629
  %9631 = vmatprep.mubr.bf16.mxu0 %v3089
  %9632 = vmatmul.mubr.bf16.gmra.mrb[0].mxu0 %v3088
  %v9633 = vpop.f32.mrb[0].mxu0
  %v9634 = vadd.f32 0.0, %v9633
  %v9635 = vpop.f32.mrb[0].mxu0
  %v9636 = vadd.f32 0.0, %v9635
  %v9637 = vpop.f32.mrb[0].mxu0
  %v9638 = vadd.f32 0.0, %v9637
  %v9639 = vpop.f32.mrb[0].mxu0
  %v9640 = vadd.f32 0.0, %v9639
  %9641 = vmatprep.mubr.bf16.mxu0 %v3093
  %9642 = vmatmul.mubr.bf16.gmra.mrb[0].mxu0 %v3092
  %v9643 = vpop.f32.mrb[0].mxu0
  %v9644 = vadd.f32 0.0, %v9643
  %v9645 = vpop.f32.mrb[0].mxu0
  %v9646 = vadd.f32 0.0, %v9645
  %v9647 = vpop.f32.mrb[0].mxu0
  %v9648 = vadd.f32 0.0, %v9647
  %v9649 = vpop.f32.mrb[0].mxu0
  %v9650 = vadd.f32 0.0, %v9649
  %9651 = vmatprep.mubr.bf16.mxu0 %v3097
  %9652 = vmatmul.mubr.bf16.gmra.mrb[0].mxu0 %v3096
  %v9653 = vpop.f32.mrb[0].mxu0
  %v9654 = vadd.f32 0.0, %v9653
  %v9655 = vpop.f32.mrb[0].mxu0
  %v9656 = vadd.f32 0.0, %v9655
  %v9657 = vpop.f32.mrb[0].mxu0
  %v9658 = vadd.f32 0.0, %v9657
  %v9659 = vpop.f32.mrb[0].mxu0
  %v9660 = vadd.f32 0.0, %v9659
  %9661 = vmatprep.mubr.bf16.mxu0 0
  %9662 = vmatmul.mubr.bf16.gmra.mrb[0].mxu0 0
  %v9663 = vpop.f32.mrb[0].mxu0
  %v9664 = vadd.f32 0.0, %v9663
  %v9665 = vpop.f32.mrb[0].mxu0
  %v9666 = vadd.f32 0.0, %v9665
  %v9667 = vpop.f32.mrb[0].mxu0
  %v9668 = vadd.f32 0.0, %v9667
  %v9669 = vpop.f32.mrb[0].mxu0
  %v9670 = vadd.f32 0.0, %v9669
  %9671 = vdwg.mxu0
  %9672 = vmatprep.subr.bf16.mxu0 %v9220
  %9673 = vmatpush1.bf16.msra.mxu0 %v9219
  %9674 = vmatprep.subr.bf16.mxu0 %v9227
  %9675 = vmatpush1.bf16.msra.mxu0 %v9226
  %9676 = vmatprep.subr.bf16.mxu0 %v9234
  %9677 = vmatpush1.bf16.msra.mxu0 %v9233
  %9678 = vmatprep.subr.bf16.mxu0 %v9241
  %9679 = vmatpush1.bf16.msra.mxu0 %v9240
  %9680 = vmatprep.subr.bf16.mxu0 %v9248
  %9681 = vmatpush1.bf16.msra.mxu0 %v9247
  %9682 = vmatprep.subr.bf16.mxu0 %v9255
  %9683 = vmatpush1.bf16.msra.mxu0 %v9254
  %9684 = vmatprep.subr.bf16.mxu0 %v9262
  %9685 = vmatpush1.bf16.msra.mxu0 %v9261
  %9686 = vmatprep.subr.bf16.mxu0 %v9269
  %9687 = vmatpush1.bf16.msra.mxu0 %v9268
  %9688 = vmatprep.subr.bf16.mxu0 %v9276
  %9689 = vmatpush1.bf16.msra.mxu0 %v9275
  %9690 = vmatprep.subr.bf16.mxu0 %v9283
  %9691 = vmatpush1.bf16.msra.mxu0 %v9282
  %9692 = vmatprep.subr.bf16.mxu0 %v9290
  %9693 = vmatpush1.bf16.msra.mxu0 %v9289
  %9694 = vmatprep.subr.bf16.mxu0 %v9297
  %9695 = vmatpush1.bf16.msra.mxu0 %v9296
  %9696 = vmatprep.subr.bf16.mxu0 0
  %9697 = vmatpush1.bf16.msra.mxu0 0
  %9698 = vmatprep.subr.bf16.mxu0 0
  %9699 = vmatpush1.bf16.msra.mxu0 0
  %9700 = vmatprep.subr.bf16.mxu0 0
  %9701 = vmatpush1.bf16.msra.mxu0 0
  %9702 = vmatprep.subr.bf16.mxu0 0
  %9703 = vmatpush1.bf16.msra.mxu0 0
  %9704 = vmatprep.mubr.bf16.mxu0 %v4561
  %9705 = vmatmul.mubr.bf16.gmra.mrb[0].mxu0 %v3050
  %v9706 = vpop.f32.mrb[0].mxu0
  %v9707 = vadd.f32 %v9534, %v9706
  %v9708 = vpop.f32.mrb[0].mxu0
  %v9709 = vadd.f32 %v9536, %v9708
  %v9710 = vpop.f32.mrb[0].mxu0
  %v9711 = vadd.f32 %v9538, %v9710
  %v9712 = vpop.f32.mrb[0].mxu0
  %v9713 = vadd.f32 %v9540, %v9712
  %9714 = vmatprep.mubr.bf16.mxu0 %v4564
  %9715 = vmatmul.mubr.bf16.gmra.mrb[0].mxu0 %v3054
  %v9716 = vpop.f32.mrb[0].mxu0
  %v9717 = vadd.f32 %v9544, %v9716
  %v9718 = vpop.f32.mrb[0].mxu0
  %v9719 = vadd.f32 %v9546, %v9718
  %v9720 = vpop.f32.mrb[0].mxu0
  %v9721 = vadd.f32 %v9548, %v9720
  %v9722 = vpop.f32.mrb[0].mxu0
  %v9723 = vadd.f32 %v9550, %v9722
  %9724 = vmatprep.mubr.bf16.mxu0 %v4567
  %9725 = vmatmul.mubr.bf16.gmra.mrb[0].mxu0 %v3058
  %v9726 = vpop.f32.mrb[0].mxu0
  %v9727 = vadd.f32 %v9554, %v9726
  %v9728 = vpop.f32.mrb[0].mxu0
  %v9729 = vadd.f32 %v9556, %v9728
  %v9730 = vpop.f32.mrb[0].mxu0
  %v9731 = vadd.f32 %v9558, %v9730
  %v9732 = vpop.f32.mrb[0].mxu0
  %v9733 = vadd.f32 %v9560, %v9732
  %9734 = vmatprep.mubr.bf16.mxu0 %v4570
  %9735 = vmatmul.mubr.bf16.gmra.mrb[0].mxu0 %v3062
  %v9736 = vpop.f32.mrb[0].mxu0
  %v9737 = vadd.f32 %v9564, %v9736
  %v9738 = vpop.f32.mrb[0].mxu0
  %v9739 = vadd.f32 %v9566, %v9738
  %v9740 = vpop.f32.mrb[0].mxu0
  %v9741 = vadd.f32 %v9568, %v9740
  %v9742 = vpop.f32.mrb[0].mxu0
  %v9743 = vadd.f32 %v9570, %v9742
  %9744 = vmatprep.mubr.bf16.mxu0 %v4573
  %9745 = vmatmul.mubr.bf16.gmra.mrb[0].mxu0 %v3066
  %v9746 = vpop.f32.mrb[0].mxu0
  %v9747 = vadd.f32 %v9574, %v9746
  %v9748 = vpop.f32.mrb[0].mxu0
  %v9749 = vadd.f32 %v9576, %v9748
  %v9750 = vpop.f32.mrb[0].mxu0
  %v9751 = vadd.f32 %v9578, %v9750
  %v9752 = vpop.f32.mrb[0].mxu0
  %v9753 = vadd.f32 %v9580, %v9752
  %9754 = vmatprep.mubr.bf16.mxu0 %v4576
  %9755 = vmatmul.mubr.bf16.gmra.mrb[0].mxu0 %v3070
  %v9756 = vpop.f32.mrb[0].mxu0
  %v9757 = vadd.f32 %v9584, %v9756
  %v9758 = vpop.f32.mrb[0].mxu0
  %v9759 = vadd.f32 %v9586, %v9758
  %v9760 = vpop.f32.mrb[0].mxu0
  %v9761 = vadd.f32 %v9588, %v9760
  %v9762 = vpop.f32.mrb[0].mxu0
  %v9763 = vadd.f32 %v9590, %v9762
  %9764 = vmatprep.mubr.bf16.mxu0 %v4579
  %9765 = vmatmul.mubr.bf16.gmra.mrb[0].mxu0 %v3074
  %v9766 = vpop.f32.mrb[0].mxu0
  %v9767 = vadd.f32 %v9594, %v9766
  %v9768 = vpop.f32.mrb[0].mxu0
  %v9769 = vadd.f32 %v9596, %v9768
  %v9770 = vpop.f32.mrb[0].mxu0
  %v9771 = vadd.f32 %v9598, %v9770
  %v9772 = vpop.f32.mrb[0].mxu0
  %v9773 = vadd.f32 %v9600, %v9772
  %9774 = vmatprep.mubr.bf16.mxu0 %v4582
  %9775 = vmatmul.mubr.bf16.gmra.mrb[0].mxu0 %v3078
  %v9776 = vpop.f32.mrb[0].mxu0
  %v9777 = vadd.f32 %v9604, %v9776
  %v9778 = vpop.f32.mrb[0].mxu0
  %v9779 = vadd.f32 %v9606, %v9778
  %v9780 = vpop.f32.mrb[0].mxu0
  %v9781 = vadd.f32 %v9608, %v9780
  %v9782 = vpop.f32.mrb[0].mxu0
  %v9783 = vadd.f32 %v9610, %v9782
  %9784 = vmatprep.mubr.bf16.mxu0 %v4585
  %9785 = vmatmul.mubr.bf16.gmra.mrb[0].mxu0 %v3082
  %v9786 = vpop.f32.mrb[0].mxu0
  %v9787 = vadd.f32 %v9614, %v9786
  %v9788 = vpop.f32.mrb[0].mxu0
  %v9789 = vadd.f32 %v9616, %v9788
  %v9790 = vpop.f32.mrb[0].mxu0
  %v9791 = vadd.f32 %v9618, %v9790
  %v9792 = vpop.f32.mrb[0].mxu0
  %v9793 = vadd.f32 %v9620, %v9792
  %9794 = vmatprep.mubr.bf16.mxu0 %v4588
  %9795 = vmatmul.mubr.bf16.gmra.mrb[0].mxu0 %v3086
  %v9796 = vpop.f32.mrb[0].mxu0
  %v9797 = vadd.f32 %v9624, %v9796
  %v9798 = vpop.f32.mrb[0].mxu0
  %v9799 = vadd.f32 %v9626, %v9798
  %v9800 = vpop.f32.mrb[0].mxu0
  %v9801 = vadd.f32 %v9628, %v9800
  %v9802 = vpop.f32.mrb[0].mxu0
  %v9803 = vadd.f32 %v9630, %v9802
  %9804 = vmatprep.mubr.bf16.mxu0 %v4591
  %9805 = vmatmul.mubr.bf16.gmra.mrb[0].mxu0 %v3090
  %v9806 = vpop.f32.mrb[0].mxu0
  %v9807 = vadd.f32 %v9634, %v9806
  %v9808 = vpop.f32.mrb[0].mxu0
  %v9809 = vadd.f32 %v9636, %v9808
  %v9810 = vpop.f32.mrb[0].mxu0
  %v9811 = vadd.f32 %v9638, %v9810
  %v9812 = vpop.f32.mrb[0].mxu0
  %v9813 = vadd.f32 %v9640, %v9812
  %9814 = vmatprep.mubr.bf16.mxu0 %v4594
  %9815 = vmatmul.mubr.bf16.gmra.mrb[0].mxu0 %v3094
  %v9816 = vpop.f32.mrb[0].mxu0
  %v9817 = vadd.f32 %v9644, %v9816
  %v9818 = vpop.f32.mrb[0].mxu0
  %v9819 = vadd.f32 %v9646, %v9818
  %v9820 = vpop.f32.mrb[0].mxu0
  %v9821 = vadd.f32 %v9648, %v9820
  %v9822 = vpop.f32.mrb[0].mxu0
  %v9823 = vadd.f32 %v9650, %v9822
  %9824 = vmatprep.mubr.bf16.mxu0 %v4597
  %9825 = vmatmul.mubr.bf16.gmra.mrb[0].mxu0 %v3098
  %v9826 = vpop.f32.mrb[0].mxu0
  %v9827 = vadd.f32 %v9654, %v9826
  %v9828 = vpop.f32.mrb[0].mxu0
  %v9829 = vadd.f32 %v9656, %v9828
  %v9830 = vpop.f32.mrb[0].mxu0
  %v9831 = vadd.f32 %v9658, %v9830
  %v9832 = vpop.f32.mrb[0].mxu0
  %v9833 = vadd.f32 %v9660, %v9832
  %9834 = vmatprep.mubr.bf16.mxu0 %v6936
  %9835 = vmatmul.mubr.bf16.gmra.mrb[0].mxu0 0
  %v9836 = vpop.f32.mrb[0].mxu0
  %v9837 = vadd.f32 %v9664, %v9836
  %v9838 = vpop.f32.mrb[0].mxu0
  %v9839 = vadd.f32 %v9666, %v9838
  %v9840 = vpop.f32.mrb[0].mxu0
  %v9841 = vadd.f32 %v9668, %v9840
  %v9842 = vpop.f32.mrb[0].mxu0
  %v9843 = vadd.f32 %v9670, %v9842
  %9844 = vdwg.mxu0
  %9845 = vmatprep.subr.bf16.mxu0 %v9110
  %9846 = vmatpush1.bf16.msra.mxu0 %v9109
  %9847 = vmatprep.subr.bf16.mxu0 %v9117
  %9848 = vmatpush1.bf16.msra.mxu0 %v9116
  %9849 = vmatprep.subr.bf16.mxu0 %v9124
  %9850 = vmatpush1.bf16.msra.mxu0 %v9123
  %9851 = vmatprep.subr.bf16.mxu0 %v9131
  %9852 = vmatpush1.bf16.msra.mxu0 %v9130
  %9853 = vmatprep.subr.bf16.mxu0 %v9138
  %9854 = vmatpush1.bf16.msra.mxu0 %v9137
  %9855 = vmatprep.subr.bf16.mxu0 %v9145
  %9856 = vmatpush1.bf16.msra.mxu0 %v9144
  %9857 = vmatprep.subr.bf16.mxu0 %v9152
  %9858 = vmatpush1.bf16.msra.mxu0 %v9151
  %9859 = vmatprep.subr.bf16.mxu0 %v9159
  %9860 = vmatpush1.bf16.msra.mxu0 %v9158
  %9861 = vmatprep.subr.bf16.mxu0 %v9166
  %9862 = vmatpush1.bf16.msra.mxu0 %v9165
  %9863 = vmatprep.subr.bf16.mxu0 %v9173
  %9864 = vmatpush1.bf16.msra.mxu0 %v9172
  %9865 = vmatprep.subr.bf16.mxu0 %v9180
  %9866 = vmatpush1.bf16.msra.mxu0 %v9179
  %9867 = vmatprep.subr.bf16.mxu0 %v9187
  %9868 = vmatpush1.bf16.msra.mxu0 %v9186
  %9869 = vmatprep.subr.bf16.mxu0 %v9194
  %9870 = vmatpush1.bf16.msra.mxu0 %v9193
  %9871 = vmatprep.subr.bf16.mxu0 %v9201
  %9872 = vmatpush1.bf16.msra.mxu0 %v9200
  %9873 = vmatprep.subr.bf16.mxu0 %v9208
  %9874 = vmatpush1.bf16.msra.mxu0 %v9207
  %9875 = vmatprep.subr.bf16.mxu0 %v9215
  %9876 = vmatpush1.bf16.msra.mxu0 %v9214
  %9877 = vmatprep.mubr.bf16.mxu0 %v3049
  %9878 = vmatmul.mubr.bf16.gmra.mrb[0].mxu0 %v3048
  %v9879 = vpop.f32.mrb[0].mxu0
  %v9880 = vadd.f32 0.0, %v9879
  %v9881 = vpop.f32.mrb[0].mxu0
  %v9882 = vadd.f32 0.0, %v9881
  %v9883 = vpop.f32.mrb[0].mxu0
  %v9884 = vadd.f32 0.0, %v9883
  %v9885 = vpop.f32.mrb[0].mxu0
  %v9886 = vadd.f32 0.0, %v9885
  %9887 = vmatprep.mubr.bf16.mxu0 %v3053
  %9888 = vmatmul.mubr.bf16.gmra.mrb[0].mxu0 %v3052
  %v9889 = vpop.f32.mrb[0].mxu0
  %v9890 = vadd.f32 0.0, %v9889
  %v9891 = vpop.f32.mrb[0].mxu0
  %v9892 = vadd.f32 0.0, %v9891
  %v9893 = vpop.f32.mrb[0].mxu0
  %v9894 = vadd.f32 0.0, %v9893
  %v9895 = vpop.f32.mrb[0].mxu0
  %v9896 = vadd.f32 0.0, %v9895
  %9897 = vmatprep.mubr.bf16.mxu0 %v3057
  %9898 = vmatmul.mubr.bf16.gmra.mrb[0].mxu0 %v3056
  %v9899 = vpop.f32.mrb[0].mxu0
  %v9900 = vadd.f32 0.0, %v9899
  %v9901 = vpop.f32.mrb[0].mxu0
  %v9902 = vadd.f32 0.0, %v9901
  %v9903 = vpop.f32.mrb[0].mxu0
  %v9904 = vadd.f32 0.0, %v9903
  %v9905 = vpop.f32.mrb[0].mxu0
  %v9906 = vadd.f32 0.0, %v9905
  %9907 = vmatprep.mubr.bf16.mxu0 %v3061
  %9908 = vmatmul.mubr.bf16.gmra.mrb[0].mxu0 %v3060
  %v9909 = vpop.f32.mrb[0].mxu0
  %v9910 = vadd.f32 0.0, %v9909
  %v9911 = vpop.f32.mrb[0].mxu0
  %v9912 = vadd.f32 0.0, %v9911
  %v9913 = vpop.f32.mrb[0].mxu0
  %v9914 = vadd.f32 0.0, %v9913
  %v9915 = vpop.f32.mrb[0].mxu0
  %v9916 = vadd.f32 0.0, %v9915
  %9917 = vmatprep.mubr.bf16.mxu0 %v3065
  %9918 = vmatmul.mubr.bf16.gmra.mrb[0].mxu0 %v3064
  %v9919 = vpop.f32.mrb[0].mxu0
  %v9920 = vadd.f32 0.0, %v9919
  %v9921 = vpop.f32.mrb[0].mxu0
  %v9922 = vadd.f32 0.0, %v9921
  %v9923 = vpop.f32.mrb[0].mxu0
  %v9924 = vadd.f32 0.0, %v9923
  %v9925 = vpop.f32.mrb[0].mxu0
  %v9926 = vadd.f32 0.0, %v9925
  %9927 = vmatprep.mubr.bf16.mxu0 %v3069
  %9928 = vmatmul.mubr.bf16.gmra.mrb[0].mxu0 %v3068
  %v9929 = vpop.f32.mrb[0].mxu0
  %v9930 = vadd.f32 0.0, %v9929
  %v9931 = vpop.f32.mrb[0].mxu0
  %v9932 = vadd.f32 0.0, %v9931
  %v9933 = vpop.f32.mrb[0].mxu0
  %v9934 = vadd.f32 0.0, %v9933
  %v9935 = vpop.f32.mrb[0].mxu0
  %v9936 = vadd.f32 0.0, %v9935
  %9937 = vmatprep.mubr.bf16.mxu0 %v3073
  %9938 = vmatmul.mubr.bf16.gmra.mrb[0].mxu0 %v3072
  %v9939 = vpop.f32.mrb[0].mxu0
  %v9940 = vadd.f32 0.0, %v9939
  %v9941 = vpop.f32.mrb[0].mxu0
  %v9942 = vadd.f32 0.0, %v9941
  %v9943 = vpop.f32.mrb[0].mxu0
  %v9944 = vadd.f32 0.0, %v9943
  %v9945 = vpop.f32.mrb[0].mxu0
  %v9946 = vadd.f32 0.0, %v9945
  %9947 = vmatprep.mubr.bf16.mxu0 %v3077
  %9948 = vmatmul.mubr.bf16.gmra.mrb[0].mxu0 %v3076
  %v9949 = vpop.f32.mrb[0].mxu0
  %v9950 = vadd.f32 0.0, %v9949
  %v9951 = vpop.f32.mrb[0].mxu0
  %v9952 = vadd.f32 0.0, %v9951
  %v9953 = vpop.f32.mrb[0].mxu0
  %v9954 = vadd.f32 0.0, %v9953
  %v9955 = vpop.f32.mrb[0].mxu0
  %v9956 = vadd.f32 0.0, %v9955
  %9957 = vmatprep.mubr.bf16.mxu0 %v3081
  %9958 = vmatmul.mubr.bf16.gmra.mrb[0].mxu0 %v3080
  %v9959 = vpop.f32.mrb[0].mxu0
  %v9960 = vadd.f32 0.0, %v9959
  %v9961 = vpop.f32.mrb[0].mxu0
  %v9962 = vadd.f32 0.0, %v9961
  %v9963 = vpop.f32.mrb[0].mxu0
  %v9964 = vadd.f32 0.0, %v9963
  %v9965 = vpop.f32.mrb[0].mxu0
  %v9966 = vadd.f32 0.0, %v9965
  %9967 = vmatprep.mubr.bf16.mxu0 %v3085
  %9968 = vmatmul.mubr.bf16.gmra.mrb[0].mxu0 %v3084
  %v9969 = vpop.f32.mrb[0].mxu0
  %v9970 = vadd.f32 0.0, %v9969
  %v9971 = vpop.f32.mrb[0].mxu0
  %v9972 = vadd.f32 0.0, %v9971
  %v9973 = vpop.f32.mrb[0].mxu0
  %v9974 = vadd.f32 0.0, %v9973
  %v9975 = vpop.f32.mrb[0].mxu0
  %v9976 = vadd.f32 0.0, %v9975
  %9977 = vmatprep.mubr.bf16.mxu0 %v3089
  %9978 = vmatmul.mubr.bf16.gmra.mrb[0].mxu0 %v3088
  %v9979 = vpop.f32.mrb[0].mxu0
  %v9980 = vadd.f32 0.0, %v9979
  %v9981 = vpop.f32.mrb[0].mxu0
  %v9982 = vadd.f32 0.0, %v9981
  %v9983 = vpop.f32.mrb[0].mxu0
  %v9984 = vadd.f32 0.0, %v9983
  %v9985 = vpop.f32.mrb[0].mxu0
  %v9986 = vadd.f32 0.0, %v9985
  %9987 = vmatprep.mubr.bf16.mxu0 %v3093
  %9988 = vmatmul.mubr.bf16.gmra.mrb[0].mxu0 %v3092
  %v9989 = vpop.f32.mrb[0].mxu0
  %v9990 = vadd.f32 0.0, %v9989
  %v9991 = vpop.f32.mrb[0].mxu0
  %v9992 = vadd.f32 0.0, %v9991
  %v9993 = vpop.f32.mrb[0].mxu0
  %v9994 = vadd.f32 0.0, %v9993
  %v9995 = vpop.f32.mrb[0].mxu0
  %v9996 = vadd.f32 0.0, %v9995
  %9997 = vmatprep.mubr.bf16.mxu0 %v3097
  %9998 = vmatmul.mubr.bf16.gmra.mrb[0].mxu0 %v3096
  %v9999 = vpop.f32.mrb[0].mxu0
  %v10000 = vadd.f32 0.0, %v9999
  %v10001 = vpop.f32.mrb[0].mxu0
  %v10002 = vadd.f32 0.0, %v10001
  %v10003 = vpop.f32.mrb[0].mxu0
  %v10004 = vadd.f32 0.0, %v10003
  %v10005 = vpop.f32.mrb[0].mxu0
  %v10006 = vadd.f32 0.0, %v10005
  %10007 = vmatprep.mubr.bf16.mxu0 0
  %10008 = vmatmul.mubr.bf16.gmra.mrb[0].mxu0 0
  %v10009 = vpop.f32.mrb[0].mxu0
  %v10010 = vadd.f32 0.0, %v10009
  %v10011 = vpop.f32.mrb[0].mxu0
  %v10012 = vadd.f32 0.0, %v10011
  %v10013 = vpop.f32.mrb[0].mxu0
  %v10014 = vadd.f32 0.0, %v10013
  %v10015 = vpop.f32.mrb[0].mxu0
  %v10016 = vadd.f32 0.0, %v10015
  %10017 = vdwg.mxu0
  %10018 = vmatprep.subr.bf16.mxu0 %v9222
  %10019 = vmatpush1.bf16.msra.mxu0 %v9221
  %10020 = vmatprep.subr.bf16.mxu0 %v9229
  %10021 = vmatpush1.bf16.msra.mxu0 %v9228
  %10022 = vmatprep.subr.bf16.mxu0 %v9236
  %10023 = vmatpush1.bf16.msra.mxu0 %v9235
  %10024 = vmatprep.subr.bf16.mxu0 %v9243
  %10025 = vmatpush1.bf16.msra.mxu0 %v9242
  %10026 = vmatprep.subr.bf16.mxu0 %v9250
  %10027 = vmatpush1.bf16.msra.mxu0 %v9249
  %10028 = vmatprep.subr.bf16.mxu0 %v9257
  %10029 = vmatpush1.bf16.msra.mxu0 %v9256
  %10030 = vmatprep.subr.bf16.mxu0 %v9264
  %10031 = vmatpush1.bf16.msra.mxu0 %v9263
  %10032 = vmatprep.subr.bf16.mxu0 %v9271
  %10033 = vmatpush1.bf16.msra.mxu0 %v9270
  %10034 = vmatprep.subr.bf16.mxu0 %v9278
  %10035 = vmatpush1.bf16.msra.mxu0 %v9277
  %10036 = vmatprep.subr.bf16.mxu0 %v9285
  %10037 = vmatpush1.bf16.msra.mxu0 %v9284
  %10038 = vmatprep.subr.bf16.mxu0 %v9292
  %10039 = vmatpush1.bf16.msra.mxu0 %v9291
  %10040 = vmatprep.subr.bf16.mxu0 %v9299
  %10041 = vmatpush1.bf16.msra.mxu0 %v9298
  %10042 = vmatprep.subr.bf16.mxu0 0
  %10043 = vmatpush1.bf16.msra.mxu0 0
  %10044 = vmatprep.subr.bf16.mxu0 0
  %10045 = vmatpush1.bf16.msra.mxu0 0
  %10046 = vmatprep.subr.bf16.mxu0 0
  %10047 = vmatpush1.bf16.msra.mxu0 0
  %10048 = vmatprep.subr.bf16.mxu0 0
  %10049 = vmatpush1.bf16.msra.mxu0 0
  %10050 = vmatprep.mubr.bf16.mxu0 %v4561
  %10051 = vmatmul.mubr.bf16.gmra.mrb[0].mxu0 %v3050
  %v10052 = vpop.f32.mrb[0].mxu0
  %v10053 = vadd.f32 %v9880, %v10052
  %v10054 = vpop.f32.mrb[0].mxu0
  %v10055 = vadd.f32 %v9882, %v10054
  %v10056 = vpop.f32.mrb[0].mxu0
  %v10057 = vadd.f32 %v9884, %v10056
  %v10058 = vpop.f32.mrb[0].mxu0
  %v10059 = vadd.f32 %v9886, %v10058
  %10060 = vmatprep.mubr.bf16.mxu0 %v4564
  %10061 = vmatmul.mubr.bf16.gmra.mrb[0].mxu0 %v3054
  %v10062 = vpop.f32.mrb[0].mxu0
  %v10063 = vadd.f32 %v9890, %v10062
  %v10064 = vpop.f32.mrb[0].mxu0
  %v10065 = vadd.f32 %v9892, %v10064
  %v10066 = vpop.f32.mrb[0].mxu0
  %v10067 = vadd.f32 %v9894, %v10066
  %v10068 = vpop.f32.mrb[0].mxu0
  %v10069 = vadd.f32 %v9896, %v10068
  %10070 = vmatprep.mubr.bf16.mxu0 %v4567
  %10071 = vmatmul.mubr.bf16.gmra.mrb[0].mxu0 %v3058
  %v10072 = vpop.f32.mrb[0].mxu0
  %v10073 = vadd.f32 %v9900, %v10072
  %v10074 = vpop.f32.mrb[0].mxu0
  %v10075 = vadd.f32 %v9902, %v10074
  %v10076 = vpop.f32.mrb[0].mxu0
  %v10077 = vadd.f32 %v9904, %v10076
  %v10078 = vpop.f32.mrb[0].mxu0
  %v10079 = vadd.f32 %v9906, %v10078
  %10080 = vmatprep.mubr.bf16.mxu0 %v4570
  %10081 = vmatmul.mubr.bf16.gmra.mrb[0].mxu0 %v3062
  %v10082 = vpop.f32.mrb[0].mxu0
  %v10083 = vadd.f32 %v9910, %v10082
  %v10084 = vpop.f32.mrb[0].mxu0
  %v10085 = vadd.f32 %v9912, %v10084
  %v10086 = vpop.f32.mrb[0].mxu0
  %v10087 = vadd.f32 %v9914, %v10086
  %v10088 = vpop.f32.mrb[0].mxu0
  %v10089 = vadd.f32 %v9916, %v10088
  %10090 = vmatprep.mubr.bf16.mxu0 %v4573
  %10091 = vmatmul.mubr.bf16.gmra.mrb[0].mxu0 %v3066
  %v10092 = vpop.f32.mrb[0].mxu0
  %v10093 = vadd.f32 %v9920, %v10092
  %v10094 = vpop.f32.mrb[0].mxu0
  %v10095 = vadd.f32 %v9922, %v10094
  %v10096 = vpop.f32.mrb[0].mxu0
  %v10097 = vadd.f32 %v9924, %v10096
  %v10098 = vpop.f32.mrb[0].mxu0
  %v10099 = vadd.f32 %v9926, %v10098
  %10100 = vmatprep.mubr.bf16.mxu0 %v4576
  %10101 = vmatmul.mubr.bf16.gmra.mrb[0].mxu0 %v3070
  %v10102 = vpop.f32.mrb[0].mxu0
  %v10103 = vadd.f32 %v9930, %v10102
  %v10104 = vpop.f32.mrb[0].mxu0
  %v10105 = vadd.f32 %v9932, %v10104
  %v10106 = vpop.f32.mrb[0].mxu0
  %v10107 = vadd.f32 %v9934, %v10106
  %v10108 = vpop.f32.mrb[0].mxu0
  %v10109 = vadd.f32 %v9936, %v10108
  %10110 = vmatprep.mubr.bf16.mxu0 %v4579
  %10111 = vmatmul.mubr.bf16.gmra.mrb[0].mxu0 %v3074
  %v10112 = vpop.f32.mrb[0].mxu0
  %v10113 = vadd.f32 %v9940, %v10112
  %v10114 = vpop.f32.mrb[0].mxu0
  %v10115 = vadd.f32 %v9942, %v10114
  %v10116 = vpop.f32.mrb[0].mxu0
  %v10117 = vadd.f32 %v9944, %v10116
  %v10118 = vpop.f32.mrb[0].mxu0
  %v10119 = vadd.f32 %v9946, %v10118
  %10120 = vmatprep.mubr.bf16.mxu0 %v4582
  %10121 = vmatmul.mubr.bf16.gmra.mrb[0].mxu0 %v3078
  %v10122 = vpop.f32.mrb[0].mxu0
  %v10123 = vadd.f32 %v9950, %v10122
  %v10124 = vpop.f32.mrb[0].mxu0
  %v10125 = vadd.f32 %v9952, %v10124
  %v10126 = vpop.f32.mrb[0].mxu0
  %v10127 = vadd.f32 %v9954, %v10126
  %v10128 = vpop.f32.mrb[0].mxu0
  %v10129 = vadd.f32 %v9956, %v10128
  %10130 = vmatprep.mubr.bf16.mxu0 %v4585
  %10131 = vmatmul.mubr.bf16.gmra.mrb[0].mxu0 %v3082
  %v10132 = vpop.f32.mrb[0].mxu0
  %v10133 = vadd.f32 %v9960, %v10132
  %v10134 = vpop.f32.mrb[0].mxu0
  %v10135 = vadd.f32 %v9962, %v10134
  %v10136 = vpop.f32.mrb[0].mxu0
  %v10137 = vadd.f32 %v9964, %v10136
  %v10138 = vpop.f32.mrb[0].mxu0
  %v10139 = vadd.f32 %v9966, %v10138
  %10140 = vmatprep.mubr.bf16.mxu0 %v4588
  %10141 = vmatmul.mubr.bf16.gmra.mrb[0].mxu0 %v3086
  %v10142 = vpop.f32.mrb[0].mxu0
  %v10143 = vadd.f32 %v9970, %v10142
  %v10144 = vpop.f32.mrb[0].mxu0
  %v10145 = vadd.f32 %v9972, %v10144
  %v10146 = vpop.f32.mrb[0].mxu0
  %v10147 = vadd.f32 %v9974, %v10146
  %v10148 = vpop.f32.mrb[0].mxu0
  %v10149 = vadd.f32 %v9976, %v10148
  %10150 = vmatprep.mubr.bf16.mxu0 %v4591
  %10151 = vmatmul.mubr.bf16.gmra.mrb[0].mxu0 %v3090
  %v10152 = vpop.f32.mrb[0].mxu0
  %v10153 = vadd.f32 %v9980, %v10152
  %v10154 = vpop.f32.mrb[0].mxu0
  %v10155 = vadd.f32 %v9982, %v10154
  %v10156 = vpop.f32.mrb[0].mxu0
  %v10157 = vadd.f32 %v9984, %v10156
  %v10158 = vpop.f32.mrb[0].mxu0
  %v10159 = vadd.f32 %v9986, %v10158
  %10160 = vmatprep.mubr.bf16.mxu0 %v4594
  %10161 = vmatmul.mubr.bf16.gmra.mrb[0].mxu0 %v3094
  %v10162 = vpop.f32.mrb[0].mxu0
  %v10163 = vadd.f32 %v9990, %v10162
  %v10164 = vpop.f32.mrb[0].mxu0
  %v10165 = vadd.f32 %v9992, %v10164
  %v10166 = vpop.f32.mrb[0].mxu0
  %v10167 = vadd.f32 %v9994, %v10166
  %v10168 = vpop.f32.mrb[0].mxu0
  %v10169 = vadd.f32 %v9996, %v10168
  %10170 = vmatprep.mubr.bf16.mxu0 %v4597
  %10171 = vmatmul.mubr.bf16.gmra.mrb[0].mxu0 %v3098
  %v10172 = vpop.f32.mrb[0].mxu0
  %v10173 = vadd.f32 %v10000, %v10172
  %v10174 = vpop.f32.mrb[0].mxu0
  %v10175 = vadd.f32 %v10002, %v10174
  %v10176 = vpop.f32.mrb[0].mxu0
  %v10177 = vadd.f32 %v10004, %v10176
  %v10178 = vpop.f32.mrb[0].mxu0
  %v10179 = vadd.f32 %v10006, %v10178
  %10180 = vmatprep.mubr.bf16.mxu0 %v6936
  %10181 = vmatmul.mubr.bf16.gmra.mrb[0].mxu0 0
  %v10182 = vpop.f32.mrb[0].mxu0
  %v10183 = vadd.f32 %v10010, %v10182
  %v10184 = vpop.f32.mrb[0].mxu0
  %v10185 = vadd.f32 %v10012, %v10184
  %v10186 = vpop.f32.mrb[0].mxu0
  %v10187 = vadd.f32 %v10014, %v10186
  %v10188 = vpop.f32.mrb[0].mxu0
  %v10189 = vadd.f32 %v10016, %v10188
  %10190 = vdwg.mxu0
  %10191 = vmatprep.subr.bf16.mxu0 %v9112
  %10192 = vmatpush1.bf16.msra.mxu0 %v9111
  %10193 = vmatprep.subr.bf16.mxu0 %v9119
  %10194 = vmatpush1.bf16.msra.mxu0 %v9118
  %10195 = vmatprep.subr.bf16.mxu0 %v9126
  %10196 = vmatpush1.bf16.msra.mxu0 %v9125
  %10197 = vmatprep.subr.bf16.mxu0 %v9133
  %10198 = vmatpush1.bf16.msra.mxu0 %v9132
  %10199 = vmatprep.subr.bf16.mxu0 %v9140
  %10200 = vmatpush1.bf16.msra.mxu0 %v9139
  %10201 = vmatprep.subr.bf16.mxu0 %v9147
  %10202 = vmatpush1.bf16.msra.mxu0 %v9146
  %10203 = vmatprep.subr.bf16.mxu0 %v9154
  %10204 = vmatpush1.bf16.msra.mxu0 %v9153
  %10205 = vmatprep.subr.bf16.mxu0 %v9161
  %10206 = vmatpush1.bf16.msra.mxu0 %v9160
  %10207 = vmatprep.subr.bf16.mxu0 %v9168
  %10208 = vmatpush1.bf16.msra.mxu0 %v9167
  %10209 = vmatprep.subr.bf16.mxu0 %v9175
  %10210 = vmatpush1.bf16.msra.mxu0 %v9174
  %10211 = vmatprep.subr.bf16.mxu0 %v9182
  %10212 = vmatpush1.bf16.msra.mxu0 %v9181
  %10213 = vmatprep.subr.bf16.mxu0 %v9189
  %10214 = vmatpush1.bf16.msra.mxu0 %v9188
  %10215 = vmatprep.subr.bf16.mxu0 %v9196
  %10216 = vmatpush1.bf16.msra.mxu0 %v9195
  %10217 = vmatprep.subr.bf16.mxu0 %v9203
  %10218 = vmatpush1.bf16.msra.mxu0 %v9202
  %10219 = vmatprep.subr.bf16.mxu0 %v9210
  %10220 = vmatpush1.bf16.msra.mxu0 %v9209
  %10221 = vmatprep.subr.bf16.mxu0 %v9217
  %10222 = vmatpush1.bf16.msra.mxu0 %v9216
  %10223 = vmatprep.mubr.bf16.mxu0 %v3049
  %10224 = vmatmul.mubr.bf16.gmra.mrb[0].mxu0 %v3048
  %v10225 = vpop.f32.mrb[0].mxu0
  %v10226 = vadd.f32 0.0, %v10225
  %v10227 = vpop.f32.mrb[0].mxu0
  %v10228 = vadd.f32 0.0, %v10227
  %v10229 = vpop.f32.mrb[0].mxu0
  %v10230 = vadd.f32 0.0, %v10229
  %v10231 = vpop.f32.mrb[0].mxu0
  %v10232 = vadd.f32 0.0, %v10231
  %10233 = vmatprep.mubr.bf16.mxu0 %v3053
  %10234 = vmatmul.mubr.bf16.gmra.mrb[0].mxu0 %v3052
  %v10235 = vpop.f32.mrb[0].mxu0
  %v10236 = vadd.f32 0.0, %v10235
  %v10237 = vpop.f32.mrb[0].mxu0
  %v10238 = vadd.f32 0.0, %v10237
  %v10239 = vpop.f32.mrb[0].mxu0
  %v10240 = vadd.f32 0.0, %v10239
  %v10241 = vpop.f32.mrb[0].mxu0
  %v10242 = vadd.f32 0.0, %v10241
  %10243 = vmatprep.mubr.bf16.mxu0 %v3057
  %10244 = vmatmul.mubr.bf16.gmra.mrb[0].mxu0 %v3056
  %v10245 = vpop.f32.mrb[0].mxu0
  %v10246 = vadd.f32 0.0, %v10245
  %v10247 = vpop.f32.mrb[0].mxu0
  %v10248 = vadd.f32 0.0, %v10247
  %v10249 = vpop.f32.mrb[0].mxu0
  %v10250 = vadd.f32 0.0, %v10249
  %v10251 = vpop.f32.mrb[0].mxu0
  %v10252 = vadd.f32 0.0, %v10251
  %10253 = vmatprep.mubr.bf16.mxu0 %v3061
  %10254 = vmatmul.mubr.bf16.gmra.mrb[0].mxu0 %v3060
  %v10255 = vpop.f32.mrb[0].mxu0
  %v10256 = vadd.f32 0.0, %v10255
  %v10257 = vpop.f32.mrb[0].mxu0
  %v10258 = vadd.f32 0.0, %v10257
  %v10259 = vpop.f32.mrb[0].mxu0
  %v10260 = vadd.f32 0.0, %v10259
  %v10261 = vpop.f32.mrb[0].mxu0
  %v10262 = vadd.f32 0.0, %v10261
  %10263 = vmatprep.mubr.bf16.mxu0 %v3065
  %10264 = vmatmul.mubr.bf16.gmra.mrb[0].mxu0 %v3064
  %v10265 = vpop.f32.mrb[0].mxu0
  %v10266 = vadd.f32 0.0, %v10265
  %v10267 = vpop.f32.mrb[0].mxu0
  %v10268 = vadd.f32 0.0, %v10267
  %v10269 = vpop.f32.mrb[0].mxu0
  %v10270 = vadd.f32 0.0, %v10269
  %v10271 = vpop.f32.mrb[0].mxu0
  %v10272 = vadd.f32 0.0, %v10271
  %10273 = vmatprep.mubr.bf16.mxu0 %v3069
  %10274 = vmatmul.mubr.bf16.gmra.mrb[0].mxu0 %v3068
  %v10275 = vpop.f32.mrb[0].mxu0
  %v10276 = vadd.f32 0.0, %v10275
  %v10277 = vpop.f32.mrb[0].mxu0
  %v10278 = vadd.f32 0.0, %v10277
  %v10279 = vpop.f32.mrb[0].mxu0
  %v10280 = vadd.f32 0.0, %v10279
  %v10281 = vpop.f32.mrb[0].mxu0
  %v10282 = vadd.f32 0.0, %v10281
  %10283 = vmatprep.mubr.bf16.mxu0 %v3073
  %10284 = vmatmul.mubr.bf16.gmra.mrb[0].mxu0 %v3072
  %v10285 = vpop.f32.mrb[0].mxu0
  %v10286 = vadd.f32 0.0, %v10285
  %v10287 = vpop.f32.mrb[0].mxu0
  %v10288 = vadd.f32 0.0, %v10287
  %v10289 = vpop.f32.mrb[0].mxu0
  %v10290 = vadd.f32 0.0, %v10289
  %v10291 = vpop.f32.mrb[0].mxu0
  %v10292 = vadd.f32 0.0, %v10291
  %10293 = vmatprep.mubr.bf16.mxu0 %v3077
  %10294 = vmatmul.mubr.bf16.gmra.mrb[0].mxu0 %v3076
  %v10295 = vpop.f32.mrb[0].mxu0
  %v10296 = vadd.f32 0.0, %v10295
  %v10297 = vpop.f32.mrb[0].mxu0
  %v10298 = vadd.f32 0.0, %v10297
  %v10299 = vpop.f32.mrb[0].mxu0
  %v10300 = vadd.f32 0.0, %v10299
  %v10301 = vpop.f32.mrb[0].mxu0
  %v10302 = vadd.f32 0.0, %v10301
  %10303 = vmatprep.mubr.bf16.mxu0 %v3081
  %10304 = vmatmul.mubr.bf16.gmra.mrb[0].mxu0 %v3080
  %v10305 = vpop.f32.mrb[0].mxu0
  %v10306 = vadd.f32 0.0, %v10305
  %v10307 = vpop.f32.mrb[0].mxu0
  %v10308 = vadd.f32 0.0, %v10307
  %v10309 = vpop.f32.mrb[0].mxu0
  %v10310 = vadd.f32 0.0, %v10309
  %v10311 = vpop.f32.mrb[0].mxu0
  %v10312 = vadd.f32 0.0, %v10311
  %10313 = vmatprep.mubr.bf16.mxu0 %v3085
  %10314 = vmatmul.mubr.bf16.gmra.mrb[0].mxu0 %v3084
  %v10315 = vpop.f32.mrb[0].mxu0
  %v10316 = vadd.f32 0.0, %v10315
  %v10317 = vpop.f32.mrb[0].mxu0
  %v10318 = vadd.f32 0.0, %v10317
  %v10319 = vpop.f32.mrb[0].mxu0
  %v10320 = vadd.f32 0.0, %v10319
  %v10321 = vpop.f32.mrb[0].mxu0
  %v10322 = vadd.f32 0.0, %v10321
  %10323 = vmatprep.mubr.bf16.mxu0 %v3089
  %10324 = vmatmul.mubr.bf16.gmra.mrb[0].mxu0 %v3088
  %v10325 = vpop.f32.mrb[0].mxu0
  %v10326 = vadd.f32 0.0, %v10325
  %v10327 = vpop.f32.mrb[0].mxu0
  %v10328 = vadd.f32 0.0, %v10327
  %v10329 = vpop.f32.mrb[0].mxu0
  %v10330 = vadd.f32 0.0, %v10329
  %v10331 = vpop.f32.mrb[0].mxu0
  %v10332 = vadd.f32 0.0, %v10331
  %10333 = vmatprep.mubr.bf16.mxu0 %v3093
  %10334 = vmatmul.mubr.bf16.gmra.mrb[0].mxu0 %v3092
  %v10335 = vpop.f32.mrb[0].mxu0
  %v10336 = vadd.f32 0.0, %v10335
  %v10337 = vpop.f32.mrb[0].mxu0
  %v10338 = vadd.f32 0.0, %v10337
  %v10339 = vpop.f32.mrb[0].mxu0
  %v10340 = vadd.f32 0.0, %v10339
  %v10341 = vpop.f32.mrb[0].mxu0
  %v10342 = vadd.f32 0.0, %v10341
  %10343 = vmatprep.mubr.bf16.mxu0 %v3097
  %10344 = vmatmul.mubr.bf16.gmra.mrb[0].mxu0 %v3096
  %v10345 = vpop.f32.mrb[0].mxu0
  %v10346 = vadd.f32 0.0, %v10345
  %v10347 = vpop.f32.mrb[0].mxu0
  %v10348 = vadd.f32 0.0, %v10347
  %v10349 = vpop.f32.mrb[0].mxu0
  %v10350 = vadd.f32 0.0, %v10349
  %v10351 = vpop.f32.mrb[0].mxu0
  %v10352 = vadd.f32 0.0, %v10351
  %10353 = vmatprep.mubr.bf16.mxu0 0
  %10354 = vmatmul.mubr.bf16.gmra.mrb[0].mxu0 0
  %v10355 = vpop.f32.mrb[0].mxu0
  %v10356 = vadd.f32 0.0, %v10355
  %v10357 = vpop.f32.mrb[0].mxu0
  %v10358 = vadd.f32 0.0, %v10357
  %v10359 = vpop.f32.mrb[0].mxu0
  %v10360 = vadd.f32 0.0, %v10359
  %v10361 = vpop.f32.mrb[0].mxu0
  %v10362 = vadd.f32 0.0, %v10361
  %10363 = vdwg.mxu0
  %10364 = vmatprep.subr.bf16.mxu0 %v9224
  %10365 = vmatpush1.bf16.msra.mxu0 %v9223
  %10366 = vmatprep.subr.bf16.mxu0 %v9231
  %10367 = vmatpush1.bf16.msra.mxu0 %v9230
  %10368 = vmatprep.subr.bf16.mxu0 %v9238
  %10369 = vmatpush1.bf16.msra.mxu0 %v9237
  %10370 = vmatprep.subr.bf16.mxu0 %v9245
  %10371 = vmatpush1.bf16.msra.mxu0 %v9244
  %10372 = vmatprep.subr.bf16.mxu0 %v9252
  %10373 = vmatpush1.bf16.msra.mxu0 %v9251
  %10374 = vmatprep.subr.bf16.mxu0 %v9259
  %10375 = vmatpush1.bf16.msra.mxu0 %v9258
  %10376 = vmatprep.subr.bf16.mxu0 %v9266
  %10377 = vmatpush1.bf16.msra.mxu0 %v9265
  %10378 = vmatprep.subr.bf16.mxu0 %v9273
  %10379 = vmatpush1.bf16.msra.mxu0 %v9272
  %10380 = vmatprep.subr.bf16.mxu0 %v9280
  %10381 = vmatpush1.bf16.msra.mxu0 %v9279
  %10382 = vmatprep.subr.bf16.mxu0 %v9287
  %10383 = vmatpush1.bf16.msra.mxu0 %v9286
  %10384 = vmatprep.subr.bf16.mxu0 %v9294
  %10385 = vmatpush1.bf16.msra.mxu0 %v9293
  %10386 = vmatprep.subr.bf16.mxu0 %v9301
  %10387 = vmatpush1.bf16.msra.mxu0 %v9300
  %10388 = vmatprep.subr.bf16.mxu0 0
  %10389 = vmatpush1.bf16.msra.mxu0 0
  %10390 = vmatprep.subr.bf16.mxu0 0
  %10391 = vmatpush1.bf16.msra.mxu0 0
  %10392 = vmatprep.subr.bf16.mxu0 0
  %10393 = vmatpush1.bf16.msra.mxu0 0
  %10394 = vmatprep.subr.bf16.mxu0 0
  %10395 = vmatpush1.bf16.msra.mxu0 0
  %10396 = vmatprep.mubr.bf16.mxu0 %v4561
  %10397 = vmatmul.mubr.bf16.gmra.mrb[0].mxu0 %v3050
  %v10398 = vpop.f32.mrb[0].mxu0
  %v10399 = vadd.f32 %v10226, %v10398
  %v10400 = vpop.f32.mrb[0].mxu0
  %v10401 = vadd.f32 %v10228, %v10400
  %v10402 = vpop.f32.mrb[0].mxu0
  %v10403 = vadd.f32 %v10230, %v10402
  %v10404 = vpop.f32.mrb[0].mxu0
  %v10405 = vadd.f32 %v10232, %v10404
  %10406 = vmatprep.mubr.bf16.mxu0 %v4564
  %10407 = vmatmul.mubr.bf16.gmra.mrb[0].mxu0 %v3054
  %v10408 = vpop.f32.mrb[0].mxu0
  %v10409 = vadd.f32 %v10236, %v10408
  %v10410 = vpop.f32.mrb[0].mxu0
  %v10411 = vadd.f32 %v10238, %v10410
  %v10412 = vpop.f32.mrb[0].mxu0
  %v10413 = vadd.f32 %v10240, %v10412
  %v10414 = vpop.f32.mrb[0].mxu0
  %v10415 = vadd.f32 %v10242, %v10414
  %10416 = vmatprep.mubr.bf16.mxu0 %v4567
  %10417 = vmatmul.mubr.bf16.gmra.mrb[0].mxu0 %v3058
  %v10418 = vpop.f32.mrb[0].mxu0
  %v10419 = vadd.f32 %v10246, %v10418
  %v10420 = vpop.f32.mrb[0].mxu0
  %v10421 = vadd.f32 %v10248, %v10420
  %v10422 = vpop.f32.mrb[0].mxu0
  %v10423 = vadd.f32 %v10250, %v10422
  %v10424 = vpop.f32.mrb[0].mxu0
  %v10425 = vadd.f32 %v10252, %v10424
  %10426 = vmatprep.mubr.bf16.mxu0 %v4570
  %10427 = vmatmul.mubr.bf16.gmra.mrb[0].mxu0 %v3062
  %v10428 = vpop.f32.mrb[0].mxu0
  %v10429 = vadd.f32 %v10256, %v10428
  %v10430 = vpop.f32.mrb[0].mxu0
  %v10431 = vadd.f32 %v10258, %v10430
  %v10432 = vpop.f32.mrb[0].mxu0
  %v10433 = vadd.f32 %v10260, %v10432
  %v10434 = vpop.f32.mrb[0].mxu0
  %v10435 = vadd.f32 %v10262, %v10434
  %10436 = vmatprep.mubr.bf16.mxu0 %v4573
  %10437 = vmatmul.mubr.bf16.gmra.mrb[0].mxu0 %v3066
  %v10438 = vpop.f32.mrb[0].mxu0
  %v10439 = vadd.f32 %v10266, %v10438
  %v10440 = vpop.f32.mrb[0].mxu0
  %v10441 = vadd.f32 %v10268, %v10440
  %v10442 = vpop.f32.mrb[0].mxu0
  %v10443 = vadd.f32 %v10270, %v10442
  %v10444 = vpop.f32.mrb[0].mxu0
  %v10445 = vadd.f32 %v10272, %v10444
  %10446 = vmatprep.mubr.bf16.mxu0 %v4576
  %10447 = vmatmul.mubr.bf16.gmra.mrb[0].mxu0 %v3070
  %v10448 = vpop.f32.mrb[0].mxu0
  %v10449 = vadd.f32 %v10276, %v10448
  %v10450 = vpop.f32.mrb[0].mxu0
  %v10451 = vadd.f32 %v10278, %v10450
  %v10452 = vpop.f32.mrb[0].mxu0
  %v10453 = vadd.f32 %v10280, %v10452
  %v10454 = vpop.f32.mrb[0].mxu0
  %v10455 = vadd.f32 %v10282, %v10454
  %10456 = vmatprep.mubr.bf16.mxu0 %v4579
  %10457 = vmatmul.mubr.bf16.gmra.mrb[0].mxu0 %v3074
  %v10458 = vpop.f32.mrb[0].mxu0
  %v10459 = vadd.f32 %v10286, %v10458
  %v10460 = vpop.f32.mrb[0].mxu0
  %v10461 = vadd.f32 %v10288, %v10460
  %v10462 = vpop.f32.mrb[0].mxu0
  %v10463 = vadd.f32 %v10290, %v10462
  %v10464 = vpop.f32.mrb[0].mxu0
  %v10465 = vadd.f32 %v10292, %v10464
  %10466 = vmatprep.mubr.bf16.mxu0 %v4582
  %10467 = vmatmul.mubr.bf16.gmra.mrb[0].mxu0 %v3078
  %v10468 = vpop.f32.mrb[0].mxu0
  %v10469 = vadd.f32 %v10296, %v10468
  %v10470 = vpop.f32.mrb[0].mxu0
  %v10471 = vadd.f32 %v10298, %v10470
  %v10472 = vpop.f32.mrb[0].mxu0
  %v10473 = vadd.f32 %v10300, %v10472
  %v10474 = vpop.f32.mrb[0].mxu0
  %v10475 = vadd.f32 %v10302, %v10474
  %10476 = vmatprep.mubr.bf16.mxu0 %v4585
  %10477 = vmatmul.mubr.bf16.gmra.mrb[0].mxu0 %v3082
  %v10478 = vpop.f32.mrb[0].mxu0
  %v10479 = vadd.f32 %v10306, %v10478
  %v10480 = vpop.f32.mrb[0].mxu0
  %v10481 = vadd.f32 %v10308, %v10480
  %v10482 = vpop.f32.mrb[0].mxu0
  %v10483 = vadd.f32 %v10310, %v10482
  %v10484 = vpop.f32.mrb[0].mxu0
  %v10485 = vadd.f32 %v10312, %v10484
  %10486 = vmatprep.mubr.bf16.mxu0 %v4588
  %10487 = vmatmul.mubr.bf16.gmra.mrb[0].mxu0 %v3086
  %v10488 = vpop.f32.mrb[0].mxu0
  %v10489 = vadd.f32 %v10316, %v10488
  %v10490 = vpop.f32.mrb[0].mxu0
  %v10491 = vadd.f32 %v10318, %v10490
  %v10492 = vpop.f32.mrb[0].mxu0
  %v10493 = vadd.f32 %v10320, %v10492
  %v10494 = vpop.f32.mrb[0].mxu0
  %v10495 = vadd.f32 %v10322, %v10494
  %10496 = vmatprep.mubr.bf16.mxu0 %v4591
  %10497 = vmatmul.mubr.bf16.gmra.mrb[0].mxu0 %v3090
  %v10498 = vpop.f32.mrb[0].mxu0
  %v10499 = vadd.f32 %v10326, %v10498
  %v10500 = vpop.f32.mrb[0].mxu0
  %v10501 = vadd.f32 %v10328, %v10500
  %v10502 = vpop.f32.mrb[0].mxu0
  %v10503 = vadd.f32 %v10330, %v10502
  %v10504 = vpop.f32.mrb[0].mxu0
  %v10505 = vadd.f32 %v10332, %v10504
  %10506 = vmatprep.mubr.bf16.mxu0 %v4594
  %10507 = vmatmul.mubr.bf16.gmra.mrb[0].mxu0 %v3094
  %v10508 = vpop.f32.mrb[0].mxu0
  %v10509 = vadd.f32 %v10336, %v10508
  %v10510 = vpop.f32.mrb[0].mxu0
  %v10511 = vadd.f32 %v10338, %v10510
  %v10512 = vpop.f32.mrb[0].mxu0
  %v10513 = vadd.f32 %v10340, %v10512
  %v10514 = vpop.f32.mrb[0].mxu0
  %v10515 = vadd.f32 %v10342, %v10514
  %10516 = vmatprep.mubr.bf16.mxu0 %v4597
  %10517 = vmatmul.mubr.bf16.gmra.mrb[0].mxu0 %v3098
  %v10518 = vpop.f32.mrb[0].mxu0
  %v10519 = vadd.f32 %v10346, %v10518
  %v10520 = vpop.f32.mrb[0].mxu0
  %v10521 = vadd.f32 %v10348, %v10520
  %v10522 = vpop.f32.mrb[0].mxu0
  %v10523 = vadd.f32 %v10350, %v10522
  %v10524 = vpop.f32.mrb[0].mxu0
  %v10525 = vadd.f32 %v10352, %v10524
  %10526 = vmatprep.mubr.bf16.mxu0 %v6936
  %10527 = vmatmul.mubr.bf16.gmra.mrb[0].mxu0 0
  %v10528 = vpop.f32.mrb[0].mxu0
  %v10529 = vadd.f32 %v10356, %v10528
  %v10530 = vpop.f32.mrb[0].mxu0
  %v10531 = vadd.f32 %v10358, %v10530
  %v10532 = vpop.f32.mrb[0].mxu0
  %v10533 = vadd.f32 %v10360, %v10532
  %v10534 = vpop.f32.mrb[0].mxu0
  %v10535 = vadd.f32 %v10362, %v10534
  %10536 = vdwg.mxu0
  %10537 = vmatprep.subr.bf16.mxu0 0
  %10538 = vmatpush1.bf16.msra.mxu0 %v9113
  %10539 = vmatprep.subr.bf16.mxu0 0
  %10540 = vmatpush1.bf16.msra.mxu0 %v9120
  %10541 = vmatprep.subr.bf16.mxu0 0
  %10542 = vmatpush1.bf16.msra.mxu0 %v9127
  %10543 = vmatprep.subr.bf16.mxu0 0
  %10544 = vmatpush1.bf16.msra.mxu0 %v9134
  %10545 = vmatprep.subr.bf16.mxu0 0
  %10546 = vmatpush1.bf16.msra.mxu0 %v9141
  %10547 = vmatprep.subr.bf16.mxu0 0
  %10548 = vmatpush1.bf16.msra.mxu0 %v9148
  %10549 = vmatprep.subr.bf16.mxu0 0
  %10550 = vmatpush1.bf16.msra.mxu0 %v9155
  %10551 = vmatprep.subr.bf16.mxu0 0
  %10552 = vmatpush1.bf16.msra.mxu0 %v9162
  %10553 = vmatprep.subr.bf16.mxu0 0
  %10554 = vmatpush1.bf16.msra.mxu0 %v9169
  %10555 = vmatprep.subr.bf16.mxu0 0
  %10556 = vmatpush1.bf16.msra.mxu0 %v9176
  %10557 = vmatprep.subr.bf16.mxu0 0
  %10558 = vmatpush1.bf16.msra.mxu0 %v9183
  %10559 = vmatprep.subr.bf16.mxu0 0
  %10560 = vmatpush1.bf16.msra.mxu0 %v9190
  %10561 = vmatprep.subr.bf16.mxu0 0
  %10562 = vmatpush1.bf16.msra.mxu0 %v9197
  %10563 = vmatprep.subr.bf16.mxu0 0
  %10564 = vmatpush1.bf16.msra.mxu0 %v9204
  %10565 = vmatprep.subr.bf16.mxu0 0
  %10566 = vmatpush1.bf16.msra.mxu0 %v9211
  %10567 = vmatprep.subr.bf16.mxu0 0
  %10568 = vmatpush1.bf16.msra.mxu0 %v9218
  %10569 = vmatprep.mubr.bf16.mxu0 %v3049
  %10570 = vmatmul.mubr.bf16.gmra.mrb[0].mxu0 %v3048
  %v10571 = vpop.f32.mrb[0].mxu0
  %v10572 = vadd.f32 0.0, %v10571
  %v10573 = vpop.f32.mrb[0].mxu0
  %v10574 = vpop.f32.mrb[0].mxu0
  %v10575 = vadd.f32 0.0, %v10574
  %v10576 = vpop.f32.mrb[0].mxu0
  %10577 = vmatprep.mubr.bf16.mxu0 %v3053
  %10578 = vmatmul.mubr.bf16.gmra.mrb[0].mxu0 %v3052
  %v10579 = vpop.f32.mrb[0].mxu0
  %v10580 = vadd.f32 0.0, %v10579
  %v10581 = vpop.f32.mrb[0].mxu0
  %v10582 = vpop.f32.mrb[0].mxu0
  %v10583 = vadd.f32 0.0, %v10582
  %v10584 = vpop.f32.mrb[0].mxu0
  %10585 = vmatprep.mubr.bf16.mxu0 %v3057
  %10586 = vmatmul.mubr.bf16.gmra.mrb[0].mxu0 %v3056
  %v10587 = vpop.f32.mrb[0].mxu0
  %v10588 = vadd.f32 0.0, %v10587
  %v10589 = vpop.f32.mrb[0].mxu0
  %v10590 = vpop.f32.mrb[0].mxu0
  %v10591 = vadd.f32 0.0, %v10590
  %v10592 = vpop.f32.mrb[0].mxu0
  %10593 = vmatprep.mubr.bf16.mxu0 %v3061
  %10594 = vmatmul.mubr.bf16.gmra.mrb[0].mxu0 %v3060
  %v10595 = vpop.f32.mrb[0].mxu0
  %v10596 = vadd.f32 0.0, %v10595
  %v10597 = vpop.f32.mrb[0].mxu0
  %v10598 = vpop.f32.mrb[0].mxu0
  %v10599 = vadd.f32 0.0, %v10598
  %v10600 = vpop.f32.mrb[0].mxu0
  %10601 = vmatprep.mubr.bf16.mxu0 %v3065
  %10602 = vmatmul.mubr.bf16.gmra.mrb[0].mxu0 %v3064
  %v10603 = vpop.f32.mrb[0].mxu0
  %v10604 = vadd.f32 0.0, %v10603
  %v10605 = vpop.f32.mrb[0].mxu0
  %v10606 = vpop.f32.mrb[0].mxu0
  %v10607 = vadd.f32 0.0, %v10606
  %v10608 = vpop.f32.mrb[0].mxu0
  %10609 = vmatprep.mubr.bf16.mxu0 %v3069
  %10610 = vmatmul.mubr.bf16.gmra.mrb[0].mxu0 %v3068
  %v10611 = vpop.f32.mrb[0].mxu0
  %v10612 = vadd.f32 0.0, %v10611
  %v10613 = vpop.f32.mrb[0].mxu0
  %v10614 = vpop.f32.mrb[0].mxu0
  %v10615 = vadd.f32 0.0, %v10614
  %v10616 = vpop.f32.mrb[0].mxu0
  %10617 = vmatprep.mubr.bf16.mxu0 %v3073
  %10618 = vmatmul.mubr.bf16.gmra.mrb[0].mxu0 %v3072
  %v10619 = vpop.f32.mrb[0].mxu0
  %v10620 = vadd.f32 0.0, %v10619
  %v10621 = vpop.f32.mrb[0].mxu0
  %v10622 = vpop.f32.mrb[0].mxu0
  %v10623 = vadd.f32 0.0, %v10622
  %v10624 = vpop.f32.mrb[0].mxu0
  %10625 = vmatprep.mubr.bf16.mxu0 %v3077
  %10626 = vmatmul.mubr.bf16.gmra.mrb[0].mxu0 %v3076
  %v10627 = vpop.f32.mrb[0].mxu0
  %v10628 = vadd.f32 0.0, %v10627
  %v10629 = vpop.f32.mrb[0].mxu0
  %v10630 = vpop.f32.mrb[0].mxu0
  %v10631 = vadd.f32 0.0, %v10630
  %v10632 = vpop.f32.mrb[0].mxu0
  %10633 = vmatprep.mubr.bf16.mxu0 %v3081
  %10634 = vmatmul.mubr.bf16.gmra.mrb[0].mxu0 %v3080
  %v10635 = vpop.f32.mrb[0].mxu0
  %v10636 = vadd.f32 0.0, %v10635
  %v10637 = vpop.f32.mrb[0].mxu0
  %v10638 = vpop.f32.mrb[0].mxu0
  %v10639 = vadd.f32 0.0, %v10638
  %v10640 = vpop.f32.mrb[0].mxu0
  %10641 = vmatprep.mubr.bf16.mxu0 %v3085
  %10642 = vmatmul.mubr.bf16.gmra.mrb[0].mxu0 %v3084
  %v10643 = vpop.f32.mrb[0].mxu0
  %v10644 = vadd.f32 0.0, %v10643
  %v10645 = vpop.f32.mrb[0].mxu0
  %v10646 = vpop.f32.mrb[0].mxu0
  %v10647 = vadd.f32 0.0, %v10646
  %v10648 = vpop.f32.mrb[0].mxu0
  %10649 = vmatprep.mubr.bf16.mxu0 %v3089
  %10650 = vmatmul.mubr.bf16.gmra.mrb[0].mxu0 %v3088
  %v10651 = vpop.f32.mrb[0].mxu0
  %v10652 = vadd.f32 0.0, %v10651
  %v10653 = vpop.f32.mrb[0].mxu0
  %v10654 = vpop.f32.mrb[0].mxu0
  %v10655 = vadd.f32 0.0, %v10654
  %v10656 = vpop.f32.mrb[0].mxu0
  %10657 = vmatprep.mubr.bf16.mxu0 %v3093
  %10658 = vmatmul.mubr.bf16.gmra.mrb[0].mxu0 %v3092
  %v10659 = vpop.f32.mrb[0].mxu0
  %v10660 = vadd.f32 0.0, %v10659
  %v10661 = vpop.f32.mrb[0].mxu0
  %v10662 = vpop.f32.mrb[0].mxu0
  %v10663 = vadd.f32 0.0, %v10662
  %v10664 = vpop.f32.mrb[0].mxu0
  %10665 = vmatprep.mubr.bf16.mxu0 %v3097
  %10666 = vmatmul.mubr.bf16.gmra.mrb[0].mxu0 %v3096
  %v10667 = vpop.f32.mrb[0].mxu0
  %v10668 = vadd.f32 0.0, %v10667
  %v10669 = vpop.f32.mrb[0].mxu0
  %v10670 = vpop.f32.mrb[0].mxu0
  %v10671 = vadd.f32 0.0, %v10670
  %v10672 = vpop.f32.mrb[0].mxu0
  %10673 = vmatprep.mubr.bf16.mxu0 0
  %10674 = vmatmul.mubr.bf16.gmra.mrb[0].mxu0 0
  %v10675 = vpop.f32.mrb[0].mxu0
  %v10676 = vadd.f32 0.0, %v10675
  %v10677 = vpop.f32.mrb[0].mxu0
  %v10678 = vpop.f32.mrb[0].mxu0
  %v10679 = vadd.f32 0.0, %v10678
  %v10680 = vpop.f32.mrb[0].mxu0
  %10681 = vdwg.mxu0
  %10682 = vmatprep.subr.bf16.mxu0 0
  %10683 = vmatpush1.bf16.msra.mxu0 %v9225
  %10684 = vmatprep.subr.bf16.mxu0 0
  %10685 = vmatpush1.bf16.msra.mxu0 %v9232
  %10686 = vmatprep.subr.bf16.mxu0 0
  %10687 = vmatpush1.bf16.msra.mxu0 %v9239
  %10688 = vmatprep.subr.bf16.mxu0 0
  %10689 = vmatpush1.bf16.msra.mxu0 %v9246
  %10690 = vmatprep.subr.bf16.mxu0 0
  %10691 = vmatpush1.bf16.msra.mxu0 %v9253
  %10692 = vmatprep.subr.bf16.mxu0 0
  %10693 = vmatpush1.bf16.msra.mxu0 %v9260
  %10694 = vmatprep.subr.bf16.mxu0 0
  %10695 = vmatpush1.bf16.msra.mxu0 %v9267
  %10696 = vmatprep.subr.bf16.mxu0 0
  %10697 = vmatpush1.bf16.msra.mxu0 %v9274
  %10698 = vmatprep.subr.bf16.mxu0 0
  %10699 = vmatpush1.bf16.msra.mxu0 %v9281
  %10700 = vmatprep.subr.bf16.mxu0 0
  %10701 = vmatpush1.bf16.msra.mxu0 %v9288
  %10702 = vmatprep.subr.bf16.mxu0 0
  %10703 = vmatpush1.bf16.msra.mxu0 %v9295
  %10704 = vmatprep.subr.bf16.mxu0 0
  %10705 = vmatpush1.bf16.msra.mxu0 %v9302
  %10706 = vmatprep.subr.bf16.mxu0 0
  %10707 = vmatpush1.bf16.msra.mxu0 0
  %10708 = vmatprep.subr.bf16.mxu0 0
  %10709 = vmatpush1.bf16.msra.mxu0 0
  %10710 = vmatprep.subr.bf16.mxu0 0
  %10711 = vmatpush1.bf16.msra.mxu0 0
  %10712 = vmatprep.subr.bf16.mxu0 0
  %10713 = vmatpush1.bf16.msra.mxu0 0
  %10714 = vmatprep.mubr.bf16.mxu0 %v4561
  %10715 = vmatmul.mubr.bf16.gmra.mrb[0].mxu0 %v3050
  %v10716 = vpop.f32.mrb[0].mxu0
  %v10717 = vadd.f32 %v10572, %v10716
  %v10718 = vpop.f32.mrb[0].mxu0
  %v10719 = vpop.f32.mrb[0].mxu0
  %v10720 = vadd.f32 %v10575, %v10719
  %v10721 = vpop.f32.mrb[0].mxu0
  %10722 = vmatprep.mubr.bf16.mxu0 %v4564
  %10723 = vmatmul.mubr.bf16.gmra.mrb[0].mxu0 %v3054
  %v10724 = vpop.f32.mrb[0].mxu0
  %v10725 = vadd.f32 %v10580, %v10724
  %v10726 = vpop.f32.mrb[0].mxu0
  %v10727 = vpop.f32.mrb[0].mxu0
  %v10728 = vadd.f32 %v10583, %v10727
  %v10729 = vpop.f32.mrb[0].mxu0
  %10730 = vmatprep.mubr.bf16.mxu0 %v4567
  %10731 = vmatmul.mubr.bf16.gmra.mrb[0].mxu0 %v3058
  %v10732 = vpop.f32.mrb[0].mxu0
  %v10733 = vadd.f32 %v10588, %v10732
  %v10734 = vpop.f32.mrb[0].mxu0
  %v10735 = vpop.f32.mrb[0].mxu0
  %v10736 = vadd.f32 %v10591, %v10735
  %v10737 = vpop.f32.mrb[0].mxu0
  %10738 = vmatprep.mubr.bf16.mxu0 %v4570
  %10739 = vmatmul.mubr.bf16.gmra.mrb[0].mxu0 %v3062
  %v10740 = vpop.f32.mrb[0].mxu0
  %v10741 = vadd.f32 %v10596, %v10740
  %v10742 = vpop.f32.mrb[0].mxu0
  %v10743 = vpop.f32.mrb[0].mxu0
  %v10744 = vadd.f32 %v10599, %v10743
  %v10745 = vpop.f32.mrb[0].mxu0
  %10746 = vmatprep.mubr.bf16.mxu0 %v4573
  %10747 = vmatmul.mubr.bf16.gmra.mrb[0].mxu0 %v3066
  %v10748 = vpop.f32.mrb[0].mxu0
  %v10749 = vadd.f32 %v10604, %v10748
  %v10750 = vpop.f32.mrb[0].mxu0
  %v10751 = vpop.f32.mrb[0].mxu0
  %v10752 = vadd.f32 %v10607, %v10751
  %v10753 = vpop.f32.mrb[0].mxu0
  %10754 = vmatprep.mubr.bf16.mxu0 %v4576
  %10755 = vmatmul.mubr.bf16.gmra.mrb[0].mxu0 %v3070
  %v10756 = vpop.f32.mrb[0].mxu0
  %v10757 = vadd.f32 %v10612, %v10756
  %v10758 = vpop.f32.mrb[0].mxu0
  %v10759 = vpop.f32.mrb[0].mxu0
  %v10760 = vadd.f32 %v10615, %v10759
  %v10761 = vpop.f32.mrb[0].mxu0
  %10762 = vmatprep.mubr.bf16.mxu0 %v4579
  %10763 = vmatmul.mubr.bf16.gmra.mrb[0].mxu0 %v3074
  %v10764 = vpop.f32.mrb[0].mxu0
  %v10765 = vadd.f32 %v10620, %v10764
  %v10766 = vpop.f32.mrb[0].mxu0
  %v10767 = vpop.f32.mrb[0].mxu0
  %v10768 = vadd.f32 %v10623, %v10767
  %v10769 = vpop.f32.mrb[0].mxu0
  %10770 = vmatprep.mubr.bf16.mxu0 %v4582
  %10771 = vmatmul.mubr.bf16.gmra.mrb[0].mxu0 %v3078
  %v10772 = vpop.f32.mrb[0].mxu0
  %v10773 = vadd.f32 %v10628, %v10772
  %v10774 = vpop.f32.mrb[0].mxu0
  %v10775 = vpop.f32.mrb[0].mxu0
  %v10776 = vadd.f32 %v10631, %v10775
  %v10777 = vpop.f32.mrb[0].mxu0
  %10778 = vmatprep.mubr.bf16.mxu0 %v4585
  %10779 = vmatmul.mubr.bf16.gmra.mrb[0].mxu0 %v3082
  %v10780 = vpop.f32.mrb[0].mxu0
  %v10781 = vadd.f32 %v10636, %v10780
  %v10782 = vpop.f32.mrb[0].mxu0
  %v10783 = vpop.f32.mrb[0].mxu0
  %v10784 = vadd.f32 %v10639, %v10783
  %v10785 = vpop.f32.mrb[0].mxu0
  %10786 = vmatprep.mubr.bf16.mxu0 %v4588
  %10787 = vmatmul.mubr.bf16.gmra.mrb[0].mxu0 %v3086
  %v10788 = vpop.f32.mrb[0].mxu0
  %v10789 = vadd.f32 %v10644, %v10788
  %v10790 = vpop.f32.mrb[0].mxu0
  %v10791 = vpop.f32.mrb[0].mxu0
  %v10792 = vadd.f32 %v10647, %v10791
  %v10793 = vpop.f32.mrb[0].mxu0
  %10794 = vmatprep.mubr.bf16.mxu0 %v4591
  %10795 = vmatmul.mubr.bf16.gmra.mrb[0].mxu0 %v3090
  %v10796 = vpop.f32.mrb[0].mxu0
  %v10797 = vadd.f32 %v10652, %v10796
  %v10798 = vpop.f32.mrb[0].mxu0
  %v10799 = vpop.f32.mrb[0].mxu0
  %v10800 = vadd.f32 %v10655, %v10799
  %v10801 = vpop.f32.mrb[0].mxu0
  %10802 = vmatprep.mubr.bf16.mxu0 %v4594
  %10803 = vmatmul.mubr.bf16.gmra.mrb[0].mxu0 %v3094
  %v10804 = vpop.f32.mrb[0].mxu0
  %v10805 = vadd.f32 %v10660, %v10804
  %v10806 = vpop.f32.mrb[0].mxu0
  %v10807 = vpop.f32.mrb[0].mxu0
  %v10808 = vadd.f32 %v10663, %v10807
  %v10809 = vpop.f32.mrb[0].mxu0
  %10810 = vmatprep.mubr.bf16.mxu0 %v4597
  %10811 = vmatmul.mubr.bf16.gmra.mrb[0].mxu0 %v3098
  %v10812 = vpop.f32.mrb[0].mxu0
  %v10813 = vadd.f32 %v10668, %v10812
  %v10814 = vpop.f32.mrb[0].mxu0
  %v10815 = vpop.f32.mrb[0].mxu0
  %v10816 = vadd.f32 %v10671, %v10815
  %v10817 = vpop.f32.mrb[0].mxu0
  %10818 = vmatprep.mubr.bf16.mxu0 %v6936
  %10819 = vmatmul.mubr.bf16.gmra.mrb[0].mxu0 0
  %v10820 = vpop.f32.mrb[0].mxu0
  %v10821 = vadd.f32 %v10676, %v10820
  %v10822 = vpop.f32.mrb[0].mxu0
  %v10823 = vpop.f32.mrb[0].mxu0
  %v10824 = vadd.f32 %v10679, %v10823
  %v10825 = vpop.f32.mrb[0].mxu0
  %10826 = vdwg.mxu0
  %v10827 = vadd.f32 %v7146, %v9707
  %v10828 = vadd.f32 %v7148, %v9709
  %v10829 = vadd.f32 %v7492, %v10053
  %v10830 = vadd.f32 %v7494, %v10055
  %v10831 = vadd.f32 %v7838, %v10399
  %v10832 = vadd.f32 %v7840, %v10401
  %v10833 = vadd.f32 %v8156, %v10717
  %v10834 = vadd.f32 %v7150, %v9711
  %v10835 = vadd.f32 %v7152, %v9713
  %v10836 = vadd.f32 %v7496, %v10057
  %v10837 = vadd.f32 %v7498, %v10059
  %v10838 = vadd.f32 %v7842, %v10403
  %v10839 = vadd.f32 %v7844, %v10405
  %v10840 = vadd.f32 %v8159, %v10720
  %v10841 = vadd.f32 %v7156, %v9717
  %v10842 = vadd.f32 %v7158, %v9719
  %v10843 = vadd.f32 %v7502, %v10063
  %v10844 = vadd.f32 %v7504, %v10065
  %v10845 = vadd.f32 %v7848, %v10409
  %v10846 = vadd.f32 %v7850, %v10411
  %v10847 = vadd.f32 %v8164, %v10725
  %v10848 = vadd.f32 %v7160, %v9721
  %v10849 = vadd.f32 %v7162, %v9723
  %v10850 = vadd.f32 %v7506, %v10067
  %v10851 = vadd.f32 %v7508, %v10069
  %v10852 = vadd.f32 %v7852, %v10413
  %v10853 = vadd.f32 %v7854, %v10415
  %v10854 = vadd.f32 %v8167, %v10728
  %v10855 = vadd.f32 %v7166, %v9727
  %v10856 = vadd.f32 %v7168, %v9729
  %v10857 = vadd.f32 %v7512, %v10073
  %v10858 = vadd.f32 %v7514, %v10075
  %v10859 = vadd.f32 %v7858, %v10419
  %v10860 = vadd.f32 %v7860, %v10421
  %v10861 = vadd.f32 %v8172, %v10733
  %v10862 = vadd.f32 %v7170, %v9731
  %v10863 = vadd.f32 %v7172, %v9733
  %v10864 = vadd.f32 %v7516, %v10077
  %v10865 = vadd.f32 %v7518, %v10079
  %v10866 = vadd.f32 %v7862, %v10423
  %v10867 = vadd.f32 %v7864, %v10425
  %v10868 = vadd.f32 %v8175, %v10736
  %v10869 = vadd.f32 %v7176, %v9737
  %v10870 = vadd.f32 %v7178, %v9739
  %v10871 = vadd.f32 %v7522, %v10083
  %v10872 = vadd.f32 %v7524, %v10085
  %v10873 = vadd.f32 %v7868, %v10429
  %v10874 = vadd.f32 %v7870, %v10431
  %v10875 = vadd.f32 %v8180, %v10741
  %v10876 = vadd.f32 %v7180, %v9741
  %v10877 = vadd.f32 %v7182, %v9743
  %v10878 = vadd.f32 %v7526, %v10087
  %v10879 = vadd.f32 %v7528, %v10089
  %v10880 = vadd.f32 %v7872, %v10433
  %v10881 = vadd.f32 %v7874, %v10435
  %v10882 = vadd.f32 %v8183, %v10744
  %v10883 = vadd.f32 %v7186, %v9747
  %v10884 = vadd.f32 %v7188, %v9749
  %v10885 = vadd.f32 %v7532, %v10093
  %v10886 = vadd.f32 %v7534, %v10095
  %v10887 = vadd.f32 %v7878, %v10439
  %v10888 = vadd.f32 %v7880, %v10441
  %v10889 = vadd.f32 %v8188, %v10749
  %v10890 = vadd.f32 %v7190, %v9751
  %v10891 = vadd.f32 %v7192, %v9753
  %v10892 = vadd.f32 %v7536, %v10097
  %v10893 = vadd.f32 %v7538, %v10099
  %v10894 = vadd.f32 %v7882, %v10443
  %v10895 = vadd.f32 %v7884, %v10445
  %v10896 = vadd.f32 %v8191, %v10752
  %v10897 = vadd.f32 %v7196, %v9757
  %v10898 = vadd.f32 %v7198, %v9759
  %v10899 = vadd.f32 %v7542, %v10103
  %v10900 = vadd.f32 %v7544, %v10105
  %v10901 = vadd.f32 %v7888, %v10449
  %v10902 = vadd.f32 %v7890, %v10451
  %v10903 = vadd.f32 %v8196, %v10757
  %v10904 = vadd.f32 %v7200, %v9761
  %v10905 = vadd.f32 %v7202, %v9763
  %v10906 = vadd.f32 %v7546, %v10107
  %v10907 = vadd.f32 %v7548, %v10109
  %v10908 = vadd.f32 %v7892, %v10453
  %v10909 = vadd.f32 %v7894, %v10455
  %v10910 = vadd.f32 %v8199, %v10760
  %v10911 = vadd.f32 %v7206, %v9767
  %v10912 = vadd.f32 %v7208, %v9769
  %v10913 = vadd.f32 %v7552, %v10113
  %v10914 = vadd.f32 %v7554, %v10115
  %v10915 = vadd.f32 %v7898, %v10459
  %v10916 = vadd.f32 %v7900, %v10461
  %v10917 = vadd.f32 %v8204, %v10765
  %v10918 = vadd.f32 %v7210, %v9771
  %v10919 = vadd.f32 %v7212, %v9773
  %v10920 = vadd.f32 %v7556, %v10117
  %v10921 = vadd.f32 %v7558, %v10119
  %v10922 = vadd.f32 %v7902, %v10463
  %v10923 = vadd.f32 %v7904, %v10465
  %v10924 = vadd.f32 %v8207, %v10768
  %v10925 = vadd.f32 %v7216, %v9777
  %v10926 = vadd.f32 %v7218, %v9779
  %v10927 = vadd.f32 %v7562, %v10123
  %v10928 = vadd.f32 %v7564, %v10125
  %v10929 = vadd.f32 %v7908, %v10469
  %v10930 = vadd.f32 %v7910, %v10471
  %v10931 = vadd.f32 %v8212, %v10773
  %v10932 = vadd.f32 %v7220, %v9781
  %v10933 = vadd.f32 %v7222, %v9783
  %v10934 = vadd.f32 %v7566, %v10127
  %v10935 = vadd.f32 %v7568, %v10129
  %v10936 = vadd.f32 %v7912, %v10473
  %v10937 = vadd.f32 %v7914, %v10475
  %v10938 = vadd.f32 %v8215, %v10776
  %v10939 = vadd.f32 %v7226, %v9787
  %v10940 = vadd.f32 %v7228, %v9789
  %v10941 = vadd.f32 %v7572, %v10133
  %v10942 = vadd.f32 %v7574, %v10135
  %v10943 = vadd.f32 %v7918, %v10479
  %v10944 = vadd.f32 %v7920, %v10481
  %v10945 = vadd.f32 %v8220, %v10781
  %v10946 = vadd.f32 %v7230, %v9791
  %v10947 = vadd.f32 %v7232, %v9793
  %v10948 = vadd.f32 %v7576, %v10137
  %v10949 = vadd.f32 %v7578, %v10139
  %v10950 = vadd.f32 %v7922, %v10483
  %v10951 = vadd.f32 %v7924, %v10485
  %v10952 = vadd.f32 %v8223, %v10784
  %v10953 = vadd.f32 %v7236, %v9797
  %v10954 = vadd.f32 %v7238, %v9799
  %v10955 = vadd.f32 %v7582, %v10143
  %v10956 = vadd.f32 %v7584, %v10145
  %v10957 = vadd.f32 %v7928, %v10489
  %v10958 = vadd.f32 %v7930, %v10491
  %v10959 = vadd.f32 %v8228, %v10789
  %v10960 = vadd.f32 %v7240, %v9801
  %v10961 = vadd.f32 %v7242, %v9803
  %v10962 = vadd.f32 %v7586, %v10147
  %v10963 = vadd.f32 %v7588, %v10149
  %v10964 = vadd.f32 %v7932, %v10493
  %v10965 = vadd.f32 %v7934, %v10495
  %v10966 = vadd.f32 %v8231, %v10792
  %v10967 = vadd.f32 %v7246, %v9807
  %v10968 = vadd.f32 %v7248, %v9809
  %v10969 = vadd.f32 %v7592, %v10153
  %v10970 = vadd.f32 %v7594, %v10155
  %v10971 = vadd.f32 %v7938, %v10499
  %v10972 = vadd.f32 %v7940, %v10501
  %v10973 = vadd.f32 %v8236, %v10797
  %v10974 = vadd.f32 %v7250, %v9811
  %v10975 = vadd.f32 %v7252, %v9813
  %v10976 = vadd.f32 %v7596, %v10157
  %v10977 = vadd.f32 %v7598, %v10159
  %v10978 = vadd.f32 %v7942, %v10503
  %v10979 = vadd.f32 %v7944, %v10505
  %v10980 = vadd.f32 %v8239, %v10800
  %v10981 = vadd.f32 %v7256, %v9817
  %v10982 = vadd.f32 %v7258, %v9819
  %v10983 = vadd.f32 %v7602, %v10163
  %v10984 = vadd.f32 %v7604, %v10165
  %v10985 = vadd.f32 %v7948, %v10509
  %v10986 = vadd.f32 %v7950, %v10511
  %v10987 = vadd.f32 %v8244, %v10805
  %v10988 = vadd.f32 %v7260, %v9821
  %v10989 = vadd.f32 %v7262, %v9823
  %v10990 = vadd.f32 %v7606, %v10167
  %v10991 = vadd.f32 %v7608, %v10169
  %v10992 = vadd.f32 %v7952, %v10513
  %v10993 = vadd.f32 %v7954, %v10515
  %v10994 = vadd.f32 %v8247, %v10808
  %v10995 = vadd.f32 %v7266, %v9827
  %v10996 = vadd.f32 %v7268, %v9829
  %v10997 = vadd.f32 %v7612, %v10173
  %v10998 = vadd.f32 %v7614, %v10175
  %v10999 = vadd.f32 %v7958, %v10519
  %v11000 = vadd.f32 %v7960, %v10521
  %v11001 = vadd.f32 %v8252, %v10813
  %v11002 = vadd.f32 %v7270, %v9831
  %v11003 = vadd.f32 %v7272, %v9833
  %v11004 = vadd.f32 %v7616, %v10177
  %v11005 = vadd.f32 %v7618, %v10179
  %v11006 = vadd.f32 %v7962, %v10523
  %v11007 = vadd.f32 %v7964, %v10525
  %v11008 = vadd.f32 %v8255, %v10816
  %v11009 = vadd.f32 %v7276, %v9837
  %v11010 = vadd.f32 %v7278, %v9839
  %v11011 = vadd.f32 %v7622, %v10183
  %v11012 = vadd.f32 %v7624, %v10185
  %v11013 = vadd.f32 %v7968, %v10529
  %v11014 = vadd.f32 %v7970, %v10531
  %v11015 = vadd.f32 %v8260, %v10821
  %v11016 = vadd.f32 %v7280, %v9841
  %v11017 = vadd.f32 %v7282, %v9843
  %v11018 = vadd.f32 %v7626, %v10187
  %v11019 = vadd.f32 %v7628, %v10189
  %v11020 = vadd.f32 %v7972, %v10533
  %v11021 = vadd.f32 %v7974, %v10535
  %v11022 = vadd.f32 %v8263, %v10824
  %v11023 = vld [vmem:[%s4] sm:$0xff]
  %v11025 = vlaneseq
  %v11026 = vshrl.u32 %v11025, 7
  %v11027 = vsub.s32 0, %v11026
  %v11028 = vrot.slane %v11023, %v11027
  %v11029 = vlaneseq
  %v11030 = vshrl.u32 %v11029, 7
  %v11031 = vsub.s32 1, %v11030
  %v11032 = vrot.slane %v11023, %v11031
  %v11033 = vlaneseq
  %v11034 = vshrl.u32 %v11033, 7
  %v11035 = vsub.s32 2, %v11034
  %v11036 = vrot.slane %v11023, %v11035
  %v11037 = vlaneseq
  %v11038 = vshrl.u32 %v11037, 7
  %v11039 = vsub.s32 3, %v11038
  %v11040 = vrot.slane %v11023, %v11039
  %v11041 = vlaneseq
  %v11042 = vshrl.u32 %v11041, 7
  %v11043 = vsub.s32 4, %v11042
  %v11044 = vrot.slane %v11023, %v11043
  %v11045 = vlaneseq
  %v11046 = vshrl.u32 %v11045, 7
  %v11047 = vsub.s32 5, %v11046
  %v11048 = vrot.slane %v11023, %v11047
  %v11049 = vlaneseq
  %v11050 = vshrl.u32 %v11049, 7
  %v11051 = vsub.s32 6, %v11050
  %v11052 = vrot.slane %v11023, %v11051
  %v11060 = vadd.f32 %v10827, %v11028
  %v11061 = vadd.f32 %v10828, %v11032
  %v11062 = vadd.f32 %v10829, %v11036
  %v11063 = vadd.f32 %v10830, %v11040
  %v11064 = vadd.f32 %v10831, %v11044
  %v11065 = vadd.f32 %v10832, %v11048
  %v11066 = vadd.f32 %v10833, %v11052
  %v11067 = vadd.f32 %v10834, %v11028
  %v11068 = vadd.f32 %v10835, %v11032
  %v11069 = vadd.f32 %v10836, %v11036
  %v11070 = vadd.f32 %v10837, %v11040
  %v11071 = vadd.f32 %v10838, %v11044
  %v11072 = vadd.f32 %v10839, %v11048
  %v11073 = vadd.f32 %v10840, %v11052
  %v11074 = vadd.f32 %v10841, %v11028
  %v11075 = vadd.f32 %v10842, %v11032
  %v11076 = vadd.f32 %v10843, %v11036
  %v11077 = vadd.f32 %v10844, %v11040
  %v11078 = vadd.f32 %v10845, %v11044
  %v11079 = vadd.f32 %v10846, %v11048
  %v11080 = vadd.f32 %v10847, %v11052
  %v11081 = vadd.f32 %v10848, %v11028
  %v11082 = vadd.f32 %v10849, %v11032
  %v11083 = vadd.f32 %v10850, %v11036
  %v11084 = vadd.f32 %v10851, %v11040
  %v11085 = vadd.f32 %v10852, %v11044
  %v11086 = vadd.f32 %v10853, %v11048
  %v11087 = vadd.f32 %v10854, %v11052
  %v11088 = vadd.f32 %v10855, %v11028
  %v11089 = vadd.f32 %v10856, %v11032
  %v11090 = vadd.f32 %v10857, %v11036
  %v11091 = vadd.f32 %v10858, %v11040
  %v11092 = vadd.f32 %v10859, %v11044
  %v11093 = vadd.f32 %v10860, %v11048
  %v11094 = vadd.f32 %v10861, %v11052
  %v11095 = vadd.f32 %v10862, %v11028
  %v11096 = vadd.f32 %v10863, %v11032
  %v11097 = vadd.f32 %v10864, %v11036
  %v11098 = vadd.f32 %v10865, %v11040
  %v11099 = vadd.f32 %v10866, %v11044
  %v11100 = vadd.f32 %v10867, %v11048
  %v11101 = vadd.f32 %v10868, %v11052
  %v11102 = vadd.f32 %v10869, %v11028
  %v11103 = vadd.f32 %v10870, %v11032
  %v11104 = vadd.f32 %v10871, %v11036
  %v11105 = vadd.f32 %v10872, %v11040
  %v11106 = vadd.f32 %v10873, %v11044
  %v11107 = vadd.f32 %v10874, %v11048
  %v11108 = vadd.f32 %v10875, %v11052
  %v11109 = vadd.f32 %v10876, %v11028
  %v11110 = vadd.f32 %v10877, %v11032
  %v11111 = vadd.f32 %v10878, %v11036
  %v11112 = vadd.f32 %v10879, %v11040
  %v11113 = vadd.f32 %v10880, %v11044
  %v11114 = vadd.f32 %v10881, %v11048
  %v11115 = vadd.f32 %v10882, %v11052
  %v11116 = vadd.f32 %v10883, %v11028
  %v11117 = vadd.f32 %v10884, %v11032
  %v11118 = vadd.f32 %v10885, %v11036
  %v11119 = vadd.f32 %v10886, %v11040
  %v11120 = vadd.f32 %v10887, %v11044
  %v11121 = vadd.f32 %v10888, %v11048
  %v11122 = vadd.f32 %v10889, %v11052
  %v11123 = vadd.f32 %v10890, %v11028
  %v11124 = vadd.f32 %v10891, %v11032
  %v11125 = vadd.f32 %v10892, %v11036
  %v11126 = vadd.f32 %v10893, %v11040
  %v11127 = vadd.f32 %v10894, %v11044
  %v11128 = vadd.f32 %v10895, %v11048
  %v11129 = vadd.f32 %v10896, %v11052
  %v11130 = vadd.f32 %v10897, %v11028
  %v11131 = vadd.f32 %v10898, %v11032
  %v11132 = vadd.f32 %v10899, %v11036
  %v11133 = vadd.f32 %v10900, %v11040
  %v11134 = vadd.f32 %v10901, %v11044
  %v11135 = vadd.f32 %v10902, %v11048
  %v11136 = vadd.f32 %v10903, %v11052
  %v11137 = vadd.f32 %v10904, %v11028
  %v11138 = vadd.f32 %v10905, %v11032
  %v11139 = vadd.f32 %v10906, %v11036
  %v11140 = vadd.f32 %v10907, %v11040
  %v11141 = vadd.f32 %v10908, %v11044
  %v11142 = vadd.f32 %v10909, %v11048
  %v11143 = vadd.f32 %v10910, %v11052
  %v11144 = vadd.f32 %v10911, %v11028
  %v11145 = vadd.f32 %v10912, %v11032
  %v11146 = vadd.f32 %v10913, %v11036
  %v11147 = vadd.f32 %v10914, %v11040
  %v11148 = vadd.f32 %v10915, %v11044
  %v11149 = vadd.f32 %v10916, %v11048
  %v11150 = vadd.f32 %v10917, %v11052
  %v11151 = vadd.f32 %v10918, %v11028
  %v11152 = vadd.f32 %v10919, %v11032
  %v11153 = vadd.f32 %v10920, %v11036
  %v11154 = vadd.f32 %v10921, %v11040
  %v11155 = vadd.f32 %v10922, %v11044
  %v11156 = vadd.f32 %v10923, %v11048
  %v11157 = vadd.f32 %v10924, %v11052
  %v11158 = vadd.f32 %v10925, %v11028
  %v11159 = vadd.f32 %v10926, %v11032
  %v11160 = vadd.f32 %v10927, %v11036
  %v11161 = vadd.f32 %v10928, %v11040
  %v11162 = vadd.f32 %v10929, %v11044
  %v11163 = vadd.f32 %v10930, %v11048
  %v11164 = vadd.f32 %v10931, %v11052
  %v11165 = vadd.f32 %v10932, %v11028
  %v11166 = vadd.f32 %v10933, %v11032
  %v11167 = vadd.f32 %v10934, %v11036
  %v11168 = vadd.f32 %v10935, %v11040
  %v11169 = vadd.f32 %v10936, %v11044
  %v11170 = vadd.f32 %v10937, %v11048
  %v11171 = vadd.f32 %v10938, %v11052
  %v11172 = vadd.f32 %v10939, %v11028
  %v11173 = vadd.f32 %v10940, %v11032
  %v11174 = vadd.f32 %v10941, %v11036
  %v11175 = vadd.f32 %v10942, %v11040
  %v11176 = vadd.f32 %v10943, %v11044
  %v11177 = vadd.f32 %v10944, %v11048
  %v11178 = vadd.f32 %v10945, %v11052
  %v11179 = vadd.f32 %v10946, %v11028
  %v11180 = vadd.f32 %v10947, %v11032
  %v11181 = vadd.f32 %v10948, %v11036
  %v11182 = vadd.f32 %v10949, %v11040
  %v11183 = vadd.f32 %v10950, %v11044
  %v11184 = vadd.f32 %v10951, %v11048
  %v11185 = vadd.f32 %v10952, %v11052
  %v11186 = vadd.f32 %v10953, %v11028
  %v11187 = vadd.f32 %v10954, %v11032
  %v11188 = vadd.f32 %v10955, %v11036
  %v11189 = vadd.f32 %v10956, %v11040
  %v11190 = vadd.f32 %v10957, %v11044
  %v11191 = vadd.f32 %v10958, %v11048
  %v11192 = vadd.f32 %v10959, %v11052
  %v11193 = vadd.f32 %v10960, %v11028
  %v11194 = vadd.f32 %v10961, %v11032
  %v11195 = vadd.f32 %v10962, %v11036
  %v11196 = vadd.f32 %v10963, %v11040
  %v11197 = vadd.f32 %v10964, %v11044
  %v11198 = vadd.f32 %v10965, %v11048
  %v11199 = vadd.f32 %v10966, %v11052
  %v11200 = vadd.f32 %v10967, %v11028
  %v11201 = vadd.f32 %v10968, %v11032
  %v11202 = vadd.f32 %v10969, %v11036
  %v11203 = vadd.f32 %v10970, %v11040
  %v11204 = vadd.f32 %v10971, %v11044
  %v11205 = vadd.f32 %v10972, %v11048
  %v11206 = vadd.f32 %v10973, %v11052
  %v11207 = vadd.f32 %v10974, %v11028
  %v11208 = vadd.f32 %v10975, %v11032
  %v11209 = vadd.f32 %v10976, %v11036
  %v11210 = vadd.f32 %v10977, %v11040
  %v11211 = vadd.f32 %v10978, %v11044
  %v11212 = vadd.f32 %v10979, %v11048
  %v11213 = vadd.f32 %v10980, %v11052
  %v11214 = vadd.f32 %v10981, %v11028
  %v11215 = vadd.f32 %v10982, %v11032
  %v11216 = vadd.f32 %v10983, %v11036
  %v11217 = vadd.f32 %v10984, %v11040
  %v11218 = vadd.f32 %v10985, %v11044
  %v11219 = vadd.f32 %v10986, %v11048
  %v11220 = vadd.f32 %v10987, %v11052
  %v11221 = vadd.f32 %v10988, %v11028
  %v11222 = vadd.f32 %v10989, %v11032
  %v11223 = vadd.f32 %v10990, %v11036
  %v11224 = vadd.f32 %v10991, %v11040
  %v11225 = vadd.f32 %v10992, %v11044
  %v11226 = vadd.f32 %v10993, %v11048
  %v11227 = vadd.f32 %v10994, %v11052
  %v11228 = vadd.f32 %v10995, %v11028
  %v11229 = vadd.f32 %v10996, %v11032
  %v11230 = vadd.f32 %v10997, %v11036
  %v11231 = vadd.f32 %v10998, %v11040
  %v11232 = vadd.f32 %v10999, %v11044
  %v11233 = vadd.f32 %v11000, %v11048
  %v11234 = vadd.f32 %v11001, %v11052
  %v11235 = vadd.f32 %v11002, %v11028
  %v11236 = vadd.f32 %v11003, %v11032
  %v11237 = vadd.f32 %v11004, %v11036
  %v11238 = vadd.f32 %v11005, %v11040
  %v11239 = vadd.f32 %v11006, %v11044
  %v11240 = vadd.f32 %v11007, %v11048
  %v11241 = vadd.f32 %v11008, %v11052
  %v11242 = vadd.f32 %v11009, %v11028
  %v11243 = vadd.f32 %v11010, %v11032
  %v11244 = vadd.f32 %v11011, %v11036
  %v11245 = vadd.f32 %v11012, %v11040
  %v11246 = vadd.f32 %v11013, %v11044
  %v11247 = vadd.f32 %v11014, %v11048
  %v11248 = vadd.f32 %v11015, %v11052
  %v11249 = vadd.f32 %v11016, %v11028
  %v11250 = vadd.f32 %v11017, %v11032
  %v11251 = vadd.f32 %v11018, %v11036
  %v11252 = vadd.f32 %v11019, %v11040
  %v11253 = vadd.f32 %v11020, %v11044
  %v11254 = vadd.f32 %v11021, %v11048
  %v11255 = vadd.f32 %v11022, %v11052
  %v11256 = vmax.f32 %v11060, 0.0
  %v11257 = vmax.f32 %v11061, 0.0
  %v11258 = vmax.f32 %v11062, 0.0
  %v11259 = vmax.f32 %v11063, 0.0
  %v11260 = vmax.f32 %v11064, 0.0
  %v11261 = vmax.f32 %v11065, 0.0
  %v11262 = vmax.f32 %v11066, 0.0
  %v11263 = vmax.f32 %v11067, 0.0
  %v11264 = vmax.f32 %v11068, 0.0
  %v11265 = vmax.f32 %v11069, 0.0
  %v11266 = vmax.f32 %v11070, 0.0
  %v11267 = vmax.f32 %v11071, 0.0
  %v11268 = vmax.f32 %v11072, 0.0
  %v11269 = vmax.f32 %v11073, 0.0
  %v11270 = vmax.f32 %v11074, 0.0
  %v11271 = vmax.f32 %v11075, 0.0
  %v11272 = vmax.f32 %v11076, 0.0
  %v11273 = vmax.f32 %v11077, 0.0
  %v11274 = vmax.f32 %v11078, 0.0
  %v11275 = vmax.f32 %v11079, 0.0
  %v11276 = vmax.f32 %v11080, 0.0
  %v11277 = vmax.f32 %v11081, 0.0
  %v11278 = vmax.f32 %v11082, 0.0
  %v11279 = vmax.f32 %v11083, 0.0
  %v11280 = vmax.f32 %v11084, 0.0
  %v11281 = vmax.f32 %v11085, 0.0
  %v11282 = vmax.f32 %v11086, 0.0
  %v11283 = vmax.f32 %v11087, 0.0
  %v11284 = vmax.f32 %v11088, 0.0
  %v11285 = vmax.f32 %v11089, 0.0
  %v11286 = vmax.f32 %v11090, 0.0
  %v11287 = vmax.f32 %v11091, 0.0
  %v11288 = vmax.f32 %v11092, 0.0
  %v11289 = vmax.f32 %v11093, 0.0
  %v11290 = vmax.f32 %v11094, 0.0
  %v11291 = vmax.f32 %v11095, 0.0
  %v11292 = vmax.f32 %v11096, 0.0
  %v11293 = vmax.f32 %v11097, 0.0
  %v11294 = vmax.f32 %v11098, 0.0
  %v11295 = vmax.f32 %v11099, 0.0
  %v11296 = vmax.f32 %v11100, 0.0
  %v11297 = vmax.f32 %v11101, 0.0
  %v11298 = vmax.f32 %v11102, 0.0
  %v11299 = vmax.f32 %v11103, 0.0
  %v11300 = vmax.f32 %v11104, 0.0
  %v11301 = vmax.f32 %v11105, 0.0
  %v11302 = vmax.f32 %v11106, 0.0
  %v11303 = vmax.f32 %v11107, 0.0
  %v11304 = vmax.f32 %v11108, 0.0
  %v11305 = vmax.f32 %v11109, 0.0
  %v11306 = vmax.f32 %v11110, 0.0
  %v11307 = vmax.f32 %v11111, 0.0
  %v11308 = vmax.f32 %v11112, 0.0
  %v11309 = vmax.f32 %v11113, 0.0
  %v11310 = vmax.f32 %v11114, 0.0
  %v11311 = vmax.f32 %v11115, 0.0
  %v11312 = vmax.f32 %v11116, 0.0
  %v11313 = vmax.f32 %v11117, 0.0
  %v11314 = vmax.f32 %v11118, 0.0
  %v11315 = vmax.f32 %v11119, 0.0
  %v11316 = vmax.f32 %v11120, 0.0
  %v11317 = vmax.f32 %v11121, 0.0
  %v11318 = vmax.f32 %v11122, 0.0
  %v11319 = vmax.f32 %v11123, 0.0
  %v11320 = vmax.f32 %v11124, 0.0
  %v11321 = vmax.f32 %v11125, 0.0
  %v11322 = vmax.f32 %v11126, 0.0
  %v11323 = vmax.f32 %v11127, 0.0
  %v11324 = vmax.f32 %v11128, 0.0
  %v11325 = vmax.f32 %v11129, 0.0
  %v11326 = vmax.f32 %v11130, 0.0
  %v11327 = vmax.f32 %v11131, 0.0
  %v11328 = vmax.f32 %v11132, 0.0
  %v11329 = vmax.f32 %v11133, 0.0
  %v11330 = vmax.f32 %v11134, 0.0
  %v11331 = vmax.f32 %v11135, 0.0
  %v11332 = vmax.f32 %v11136, 0.0
  %v11333 = vmax.f32 %v11137, 0.0
  %v11334 = vmax.f32 %v11138, 0.0
  %v11335 = vmax.f32 %v11139, 0.0
  %v11336 = vmax.f32 %v11140, 0.0
  %v11337 = vmax.f32 %v11141, 0.0
  %v11338 = vmax.f32 %v11142, 0.0
  %v11339 = vmax.f32 %v11143, 0.0
  %v11340 = vmax.f32 %v11144, 0.0
  %v11341 = vmax.f32 %v11145, 0.0
  %v11342 = vmax.f32 %v11146, 0.0
  %v11343 = vmax.f32 %v11147, 0.0
  %v11344 = vmax.f32 %v11148, 0.0
  %v11345 = vmax.f32 %v11149, 0.0
  %v11346 = vmax.f32 %v11150, 0.0
  %v11347 = vmax.f32 %v11151, 0.0
  %v11348 = vmax.f32 %v11152, 0.0
  %v11349 = vmax.f32 %v11153, 0.0
  %v11350 = vmax.f32 %v11154, 0.0
  %v11351 = vmax.f32 %v11155, 0.0
  %v11352 = vmax.f32 %v11156, 0.0
  %v11353 = vmax.f32 %v11157, 0.0
  %v11354 = vmax.f32 %v11158, 0.0
  %v11355 = vmax.f32 %v11159, 0.0
  %v11356 = vmax.f32 %v11160, 0.0
  %v11357 = vmax.f32 %v11161, 0.0
  %v11358 = vmax.f32 %v11162, 0.0
  %v11359 = vmax.f32 %v11163, 0.0
  %v11360 = vmax.f32 %v11164, 0.0
  %v11361 = vmax.f32 %v11165, 0.0
  %v11362 = vmax.f32 %v11166, 0.0
  %v11363 = vmax.f32 %v11167, 0.0
  %v11364 = vmax.f32 %v11168, 0.0
  %v11365 = vmax.f32 %v11169, 0.0
  %v11366 = vmax.f32 %v11170, 0.0
  %v11367 = vmax.f32 %v11171, 0.0
  %v11368 = vmax.f32 %v11172, 0.0
  %v11369 = vmax.f32 %v11173, 0.0
  %v11370 = vmax.f32 %v11174, 0.0
  %v11371 = vmax.f32 %v11175, 0.0
  %v11372 = vmax.f32 %v11176, 0.0
  %v11373 = vmax.f32 %v11177, 0.0
  %v11374 = vmax.f32 %v11178, 0.0
  %v11375 = vmax.f32 %v11179, 0.0
  %v11376 = vmax.f32 %v11180, 0.0
  %v11377 = vmax.f32 %v11181, 0.0
  %v11378 = vmax.f32 %v11182, 0.0
  %v11379 = vmax.f32 %v11183, 0.0
  %v11380 = vmax.f32 %v11184, 0.0
  %v11381 = vmax.f32 %v11185, 0.0
  %v11382 = vmax.f32 %v11186, 0.0
  %v11383 = vmax.f32 %v11187, 0.0
  %v11384 = vmax.f32 %v11188, 0.0
  %v11385 = vmax.f32 %v11189, 0.0
  %v11386 = vmax.f32 %v11190, 0.0
  %v11387 = vmax.f32 %v11191, 0.0
  %v11388 = vmax.f32 %v11192, 0.0
  %v11389 = vmax.f32 %v11193, 0.0
  %v11390 = vmax.f32 %v11194, 0.0
  %v11391 = vmax.f32 %v11195, 0.0
  %v11392 = vmax.f32 %v11196, 0.0
  %v11393 = vmax.f32 %v11197, 0.0
  %v11394 = vmax.f32 %v11198, 0.0
  %v11395 = vmax.f32 %v11199, 0.0
  %v11396 = vmax.f32 %v11200, 0.0
  %v11397 = vmax.f32 %v11201, 0.0
  %v11398 = vmax.f32 %v11202, 0.0
  %v11399 = vmax.f32 %v11203, 0.0
  %v11400 = vmax.f32 %v11204, 0.0
  %v11401 = vmax.f32 %v11205, 0.0
  %v11402 = vmax.f32 %v11206, 0.0
  %v11403 = vmax.f32 %v11207, 0.0
  %v11404 = vmax.f32 %v11208, 0.0
  %v11405 = vmax.f32 %v11209, 0.0
  %v11406 = vmax.f32 %v11210, 0.0
  %v11407 = vmax.f32 %v11211, 0.0
  %v11408 = vmax.f32 %v11212, 0.0
  %v11409 = vmax.f32 %v11213, 0.0
  %v11410 = vmax.f32 %v11214, 0.0
  %v11411 = vmax.f32 %v11215, 0.0
  %v11412 = vmax.f32 %v11216, 0.0
  %v11413 = vmax.f32 %v11217, 0.0
  %v11414 = vmax.f32 %v11218, 0.0
  %v11415 = vmax.f32 %v11219, 0.0
  %v11416 = vmax.f32 %v11220, 0.0
  %v11417 = vmax.f32 %v11221, 0.0
  %v11418 = vmax.f32 %v11222, 0.0
  %v11419 = vmax.f32 %v11223, 0.0
  %v11420 = vmax.f32 %v11224, 0.0
  %v11421 = vmax.f32 %v11225, 0.0
  %v11422 = vmax.f32 %v11226, 0.0
  %v11423 = vmax.f32 %v11227, 0.0
  %v11424 = vmax.f32 %v11228, 0.0
  %v11425 = vmax.f32 %v11229, 0.0
  %v11426 = vmax.f32 %v11230, 0.0
  %v11427 = vmax.f32 %v11231, 0.0
  %v11428 = vmax.f32 %v11232, 0.0
  %v11429 = vmax.f32 %v11233, 0.0
  %v11430 = vmax.f32 %v11234, 0.0
  %v11431 = vmax.f32 %v11235, 0.0
  %v11432 = vmax.f32 %v11236, 0.0
  %v11433 = vmax.f32 %v11237, 0.0
  %v11434 = vmax.f32 %v11238, 0.0
  %v11435 = vmax.f32 %v11239, 0.0
  %v11436 = vmax.f32 %v11240, 0.0
  %v11437 = vmax.f32 %v11241, 0.0
  %v11438 = vmax.f32 %v11242, 0.0
  %v11439 = vmax.f32 %v11243, 0.0
  %v11440 = vmax.f32 %v11244, 0.0
  %v11441 = vmax.f32 %v11245, 0.0
  %v11442 = vmax.f32 %v11246, 0.0
  %v11443 = vmax.f32 %v11247, 0.0
  %v11444 = vmax.f32 %v11248, 0.0
  %v11445 = vmax.f32 %v11249, 0.0
  %v11446 = vmax.f32 %v11250, 0.0
  %v11447 = vmax.f32 %v11251, 0.0
  %v11448 = vmax.f32 %v11252, 0.0
  %v11449 = vmax.f32 %v11253, 0.0
  %v11450 = vmax.f32 %v11254, 0.0
  %v11451 = vmax.f32 %v11255, 0.0
  %v11452 = vmax.f32 %v11256, %v11270
  %v11453 = vmax.f32 %v11257, %v11271
  %v11454 = vmax.f32 %v11258, %v11272
  %v11455 = vmax.f32 %v11259, %v11273
  %v11456 = vmax.f32 %v11260, %v11274
  %v11457 = vmax.f32 %v11261, %v11275
  %v11458 = vmax.f32 %v11262, %v11276
  %v11459 = vmax.f32 %v11263, %v11277
  %v11460 = vmax.f32 %v11264, %v11278
  %v11461 = vmax.f32 %v11265, %v11279
  %v11462 = vmax.f32 %v11266, %v11280
  %v11463 = vmax.f32 %v11267, %v11281
  %v11464 = vmax.f32 %v11268, %v11282
  %v11465 = vmax.f32 %v11269, %v11283
  %v11466 = vmax.f32 %v11284, %v11298
  %v11467 = vmax.f32 %v11285, %v11299
  %v11468 = vmax.f32 %v11286, %v11300
  %v11469 = vmax.f32 %v11287, %v11301
  %v11470 = vmax.f32 %v11288, %v11302
  %v11471 = vmax.f32 %v11289, %v11303
  %v11472 = vmax.f32 %v11290, %v11304
  %v11473 = vmax.f32 %v11291, %v11305
  %v11474 = vmax.f32 %v11292, %v11306
  %v11475 = vmax.f32 %v11293, %v11307
  %v11476 = vmax.f32 %v11294, %v11308
  %v11477 = vmax.f32 %v11295, %v11309
  %v11478 = vmax.f32 %v11296, %v11310
  %v11479 = vmax.f32 %v11297, %v11311
  %v11480 = vmax.f32 %v11312, %v11326
  %v11481 = vmax.f32 %v11313, %v11327
  %v11482 = vmax.f32 %v11314, %v11328
  %v11483 = vmax.f32 %v11315, %v11329
  %v11484 = vmax.f32 %v11316, %v11330
  %v11485 = vmax.f32 %v11317, %v11331
  %v11486 = vmax.f32 %v11318, %v11332
  %v11487 = vmax.f32 %v11319, %v11333
  %v11488 = vmax.f32 %v11320, %v11334
  %v11489 = vmax.f32 %v11321, %v11335
  %v11490 = vmax.f32 %v11322, %v11336
  %v11491 = vmax.f32 %v11323, %v11337
  %v11492 = vmax.f32 %v11324, %v11338
  %v11493 = vmax.f32 %v11325, %v11339
  %v11494 = vmax.f32 %v11340, %v11354
  %v11495 = vmax.f32 %v11341, %v11355
  %v11496 = vmax.f32 %v11342, %v11356
  %v11497 = vmax.f32 %v11343, %v11357
  %v11498 = vmax.f32 %v11344, %v11358
  %v11499 = vmax.f32 %v11345, %v11359
  %v11500 = vmax.f32 %v11346, %v11360
  %v11501 = vmax.f32 %v11347, %v11361
  %v11502 = vmax.f32 %v11348, %v11362
  %v11503 = vmax.f32 %v11349, %v11363
  %v11504 = vmax.f32 %v11350, %v11364
  %v11505 = vmax.f32 %v11351, %v11365
  %v11506 = vmax.f32 %v11352, %v11366
  %v11507 = vmax.f32 %v11353, %v11367
  %v11508 = vmax.f32 %v11368, %v11382
  %v11509 = vmax.f32 %v11369, %v11383
  %v11510 = vmax.f32 %v11370, %v11384
  %v11511 = vmax.f32 %v11371, %v11385
  %v11512 = vmax.f32 %v11372, %v11386
  %v11513 = vmax.f32 %v11373, %v11387
  %v11514 = vmax.f32 %v11374, %v11388
  %v11515 = vmax.f32 %v11375, %v11389
  %v11516 = vmax.f32 %v11376, %v11390
  %v11517 = vmax.f32 %v11377, %v11391
  %v11518 = vmax.f32 %v11378, %v11392
  %v11519 = vmax.f32 %v11379, %v11393
  %v11520 = vmax.f32 %v11380, %v11394
  %v11521 = vmax.f32 %v11381, %v11395
  %v11522 = vmax.f32 %v11396, %v11410
  %v11523 = vmax.f32 %v11397, %v11411
  %v11524 = vmax.f32 %v11398, %v11412
  %v11525 = vmax.f32 %v11399, %v11413
  %v11526 = vmax.f32 %v11400, %v11414
  %v11527 = vmax.f32 %v11401, %v11415
  %v11528 = vmax.f32 %v11402, %v11416
  %v11529 = vmax.f32 %v11403, %v11417
  %v11530 = vmax.f32 %v11404, %v11418
  %v11531 = vmax.f32 %v11405, %v11419
  %v11532 = vmax.f32 %v11406, %v11420
  %v11533 = vmax.f32 %v11407, %v11421
  %v11534 = vmax.f32 %v11408, %v11422
  %v11535 = vmax.f32 %v11409, %v11423
  %v11536 = vmax.f32 %v11424, %v11438
  %v11537 = vmax.f32 %v11425, %v11439
  %v11538 = vmax.f32 %v11426, %v11440
  %v11539 = vmax.f32 %v11427, %v11441
  %v11540 = vmax.f32 %v11428, %v11442
  %v11541 = vmax.f32 %v11429, %v11443
  %v11542 = vmax.f32 %v11430, %v11444
  %v11543 = vmax.f32 %v11431, %v11445
  %v11544 = vmax.f32 %v11432, %v11446
  %v11545 = vmax.f32 %v11433, %v11447
  %v11546 = vmax.f32 %v11434, %v11448
  %v11547 = vmax.f32 %v11435, %v11449
  %v11548 = vmax.f32 %v11436, %v11450
  %v11549 = vmax.f32 %v11437, %v11451
  %11606 = vrot.lane.b32.xlu0 %v11455, 64
  %v11607 = vpop.permute.xlu0 %11606
  %11608 = vrot.lane.b32.xlu0 %v11456, 64
  %v11609 = vpop.permute.xlu0 %11608
  %11610 = vrot.lane.b32.xlu0 %v11457, 64
  %v11611 = vpop.permute.xlu0 %11610
  %11612 = vrot.lane.b32.xlu0 %v11458, 64
  %v11613 = vpop.permute.xlu0 %11612
  %11614 = vrot.lane.b32.xlu0 %v11462, 64
  %v11615 = vpop.permute.xlu0 %11614
  %11616 = vrot.lane.b32.xlu0 %v11463, 64
  %v11617 = vpop.permute.xlu0 %11616
  %11618 = vrot.lane.b32.xlu0 %v11464, 64
  %v11619 = vpop.permute.xlu0 %11618
  %11620 = vrot.lane.b32.xlu0 %v11465, 64
  %v11621 = vpop.permute.xlu0 %11620
  %11622 = vrot.lane.b32.xlu0 %v11469, 64
  %v11623 = vpop.permute.xlu0 %11622
  %11624 = vrot.lane.b32.xlu0 %v11470, 64
  %v11625 = vpop.permute.xlu0 %11624
  %11626 = vrot.lane.b32.xlu0 %v11471, 64
  %v11627 = vpop.permute.xlu0 %11626
  %11628 = vrot.lane.b32.xlu0 %v11472, 64
  %v11629 = vpop.permute.xlu0 %11628
  %11630 = vrot.lane.b32.xlu0 %v11476, 64
  %v11631 = vpop.permute.xlu0 %11630
  %11632 = vrot.lane.b32.xlu0 %v11477, 64
  %v11633 = vpop.permute.xlu0 %11632
  %11634 = vrot.lane.b32.xlu0 %v11478, 64
  %v11635 = vpop.permute.xlu0 %11634
  %11636 = vrot.lane.b32.xlu0 %v11479, 64
  %v11637 = vpop.permute.xlu0 %11636
  %11638 = vrot.lane.b32.xlu0 %v11483, 64
  %v11639 = vpop.permute.xlu0 %11638
  %11640 = vrot.lane.b32.xlu0 %v11484, 64
  %v11641 = vpop.permute.xlu0 %11640
  %11642 = vrot.lane.b32.xlu0 %v11485, 64
  %v11643 = vpop.permute.xlu0 %11642
  %11644 = vrot.lane.b32.xlu0 %v11486, 64
  %v11645 = vpop.permute.xlu0 %11644
  %11646 = vrot.lane.b32.xlu0 %v11490, 64
  %v11647 = vpop.permute.xlu0 %11646
  %11648 = vrot.lane.b32.xlu0 %v11491, 64
  %v11649 = vpop.permute.xlu0 %11648
  %11650 = vrot.lane.b32.xlu0 %v11492, 64
  %v11651 = vpop.permute.xlu0 %11650
  %11652 = vrot.lane.b32.xlu0 %v11493, 64
  %v11653 = vpop.permute.xlu0 %11652
  %11654 = vrot.lane.b32.xlu0 %v11497, 64
  %v11655 = vpop.permute.xlu0 %11654
  %11656 = vrot.lane.b32.xlu0 %v11498, 64
  %v11657 = vpop.permute.xlu0 %11656
  %11658 = vrot.lane.b32.xlu0 %v11499, 64
  %v11659 = vpop.permute.xlu0 %11658
  %11660 = vrot.lane.b32.xlu0 %v11500, 64
  %v11661 = vpop.permute.xlu0 %11660
  %11662 = vrot.lane.b32.xlu0 %v11504, 64
  %v11663 = vpop.permute.xlu0 %11662
  %11664 = vrot.lane.b32.xlu0 %v11505, 64
  %v11665 = vpop.permute.xlu0 %11664
  %11666 = vrot.lane.b32.xlu0 %v11506, 64
  %v11667 = vpop.permute.xlu0 %11666
  %11668 = vrot.lane.b32.xlu0 %v11507, 64
  %v11669 = vpop.permute.xlu0 %11668
  %11670 = vrot.lane.b32.xlu0 %v11511, 64
  %v11671 = vpop.permute.xlu0 %11670
  %11672 = vrot.lane.b32.xlu0 %v11512, 64
  %v11673 = vpop.permute.xlu0 %11672
  %11674 = vrot.lane.b32.xlu0 %v11513, 64
  %v11675 = vpop.permute.xlu0 %11674
  %11676 = vrot.lane.b32.xlu0 %v11514, 64
  %v11677 = vpop.permute.xlu0 %11676
  %11678 = vrot.lane.b32.xlu0 %v11518, 64
  %v11679 = vpop.permute.xlu0 %11678
  %11680 = vrot.lane.b32.xlu0 %v11519, 64
  %v11681 = vpop.permute.xlu0 %11680
  %11682 = vrot.lane.b32.xlu0 %v11520, 64
  %v11683 = vpop.permute.xlu0 %11682
  %11684 = vrot.lane.b32.xlu0 %v11521, 64
  %v11685 = vpop.permute.xlu0 %11684
  %11686 = vrot.lane.b32.xlu0 %v11525, 64
  %v11687 = vpop.permute.xlu0 %11686
  %11688 = vrot.lane.b32.xlu0 %v11526, 64
  %v11689 = vpop.permute.xlu0 %11688
  %11690 = vrot.lane.b32.xlu0 %v11527, 64
  %v11691 = vpop.permute.xlu0 %11690
  %11692 = vrot.lane.b32.xlu0 %v11528, 64
  %v11693 = vpop.permute.xlu0 %11692
  %11694 = vrot.lane.b32.xlu0 %v11532, 64
  %v11695 = vpop.permute.xlu0 %11694
  %11696 = vrot.lane.b32.xlu0 %v11533, 64
  %v11697 = vpop.permute.xlu0 %11696
  %11698 = vrot.lane.b32.xlu0 %v11534, 64
  %v11699 = vpop.permute.xlu0 %11698
  %11700 = vrot.lane.b32.xlu0 %v11535, 64
  %v11701 = vpop.permute.xlu0 %11700
  %11702 = vrot.lane.b32.xlu0 %v11539, 64
  %v11703 = vpop.permute.xlu0 %11702
  %11704 = vrot.lane.b32.xlu0 %v11540, 64
  %v11705 = vpop.permute.xlu0 %11704
  %11706 = vrot.lane.b32.xlu0 %v11541, 64
  %v11707 = vpop.permute.xlu0 %11706
  %11708 = vrot.lane.b32.xlu0 %v11542, 64
  %v11709 = vpop.permute.xlu0 %11708
  %11710 = vrot.lane.b32.xlu0 %v11546, 64
  %v11711 = vpop.permute.xlu0 %11710
  %11712 = vrot.lane.b32.xlu0 %v11547, 64
  %v11713 = vpop.permute.xlu0 %11712
  %11714 = vrot.lane.b32.xlu0 %v11548, 64
  %v11715 = vpop.permute.xlu0 %11714
  %11716 = vrot.lane.b32.xlu0 %v11549, 64
  %v11717 = vpop.permute.xlu0 %11716
  %v11718 = vsel %vm2735, %v11607, %v11609
  %v11719 = vsel %vm2735, %v11609, %v11611
  %v11720 = vsel %vm2735, %v11611, %v11613
  %v11721 = vsel %vm2735, %v11615, %v11617
  %v11722 = vsel %vm2735, %v11617, %v11619
  %v11723 = vsel %vm2735, %v11619, %v11621
  %v11724 = vsel %vm2735, %v11623, %v11625
  %v11725 = vsel %vm2735, %v11625, %v11627
  %v11726 = vsel %vm2735, %v11627, %v11629
  %v11727 = vsel %vm2735, %v11631, %v11633
  %v11728 = vsel %vm2735, %v11633, %v11635
  %v11729 = vsel %vm2735, %v11635, %v11637
  %v11730 = vsel %vm2735, %v11639, %v11641
  %v11731 = vsel %vm2735, %v11641, %v11643
  %v11732 = vsel %vm2735, %v11643, %v11645
  %v11733 = vsel %vm2735, %v11647, %v11649
  %v11734 = vsel %vm2735, %v11649, %v11651
  %v11735 = vsel %vm2735, %v11651, %v11653
  %v11736 = vsel %vm2735, %v11655, %v11657
  %v11737 = vsel %vm2735, %v11657, %v11659
  %v11738 = vsel %vm2735, %v11659, %v11661
  %v11739 = vsel %vm2735, %v11663, %v11665
  %v11740 = vsel %vm2735, %v11665, %v11667
  %v11741 = vsel %vm2735, %v11667, %v11669
  %v11742 = vsel %vm2735, %v11671, %v11673
  %v11743 = vsel %vm2735, %v11673, %v11675
  %v11744 = vsel %vm2735, %v11675, %v11677
  %v11745 = vsel %vm2735, %v11679, %v11681
  %v11746 = vsel %vm2735, %v11681, %v11683
  %v11747 = vsel %vm2735, %v11683, %v11685
  %v11748 = vsel %vm2735, %v11687, %v11689
  %v11749 = vsel %vm2735, %v11689, %v11691
  %v11750 = vsel %vm2735, %v11691, %v11693
  %v11751 = vsel %vm2735, %v11695, %v11697
  %v11752 = vsel %vm2735, %v11697, %v11699
  %v11753 = vsel %vm2735, %v11699, %v11701
  %v11754 = vsel %vm2735, %v11703, %v11705
  %v11755 = vsel %vm2735, %v11705, %v11707
  %v11756 = vsel %vm2735, %v11707, %v11709
  %v11757 = vsel %vm2735, %v11711, %v11713
  %v11758 = vsel %vm2735, %v11713, %v11715
  %v11759 = vsel %vm2735, %v11715, %v11717
  %v11816 = vmax.f32 %v11452, %v11718
  %v11817 = vmax.f32 %v11453, %v11719
  %v11818 = vmax.f32 %v11454, %v11720
  %v11819 = vmax.f32 %v11455, %v11613
  %v11820 = vmax.f32 %v11459, %v11721
  %v11821 = vmax.f32 %v11460, %v11722
  %v11822 = vmax.f32 %v11461, %v11723
  %v11823 = vmax.f32 %v11462, %v11621
  %v11824 = vmax.f32 %v11466, %v11724
  %v11825 = vmax.f32 %v11467, %v11725
  %v11826 = vmax.f32 %v11468, %v11726
  %v11827 = vmax.f32 %v11469, %v11629
  %v11828 = vmax.f32 %v11473, %v11727
  %v11829 = vmax.f32 %v11474, %v11728
  %v11830 = vmax.f32 %v11475, %v11729
  %v11831 = vmax.f32 %v11476, %v11637
  %v11832 = vmax.f32 %v11480, %v11730
  %v11833 = vmax.f32 %v11481, %v11731
  %v11834 = vmax.f32 %v11482, %v11732
  %v11835 = vmax.f32 %v11483, %v11645
  %v11836 = vmax.f32 %v11487, %v11733
  %v11837 = vmax.f32 %v11488, %v11734
  %v11838 = vmax.f32 %v11489, %v11735
  %v11839 = vmax.f32 %v11490, %v11653
  %v11840 = vmax.f32 %v11494, %v11736
  %v11841 = vmax.f32 %v11495, %v11737
  %v11842 = vmax.f32 %v11496, %v11738
  %v11843 = vmax.f32 %v11497, %v11661
  %v11844 = vmax.f32 %v11501, %v11739
  %v11845 = vmax.f32 %v11502, %v11740
  %v11846 = vmax.f32 %v11503, %v11741
  %v11847 = vmax.f32 %v11504, %v11669
  %v11848 = vmax.f32 %v11508, %v11742
  %v11849 = vmax.f32 %v11509, %v11743
  %v11850 = vmax.f32 %v11510, %v11744
  %v11851 = vmax.f32 %v11511, %v11677
  %v11852 = vmax.f32 %v11515, %v11745
  %v11853 = vmax.f32 %v11516, %v11746
  %v11854 = vmax.f32 %v11517, %v11747
  %v11855 = vmax.f32 %v11518, %v11685
  %v11856 = vmax.f32 %v11522, %v11748
  %v11857 = vmax.f32 %v11523, %v11749
  %v11858 = vmax.f32 %v11524, %v11750
  %v11859 = vmax.f32 %v11525, %v11693
  %v11860 = vmax.f32 %v11529, %v11751
  %v11861 = vmax.f32 %v11530, %v11752
  %v11862 = vmax.f32 %v11531, %v11753
  %v11863 = vmax.f32 %v11532, %v11701
  %v11864 = vmax.f32 %v11536, %v11754
  %v11865 = vmax.f32 %v11537, %v11755
  %v11866 = vmax.f32 %v11538, %v11756
  %v11867 = vmax.f32 %v11539, %v11709
  %v11868 = vmax.f32 %v11543, %v11757
  %v11869 = vmax.f32 %v11544, %v11758
  %v11870 = vmax.f32 %v11545, %v11759
  %v11871 = vmax.f32 %v11546, %v11717
  %v11872 = vpack.c.bf16 %v11820, %v11816
  %v11873 = vpack.c.bf16 %v11821, %v11817
  %v11874 = vpack.c.bf16 %v11822, %v11818
  %v11875 = vpack.c.bf16 %v11823, %v11819
  %v11876 = vpack.c.bf16 %v11828, %v11824
  %v11877 = vpack.c.bf16 %v11829, %v11825
  %v11878 = vpack.c.bf16 %v11830, %v11826
  %v11879 = vpack.c.bf16 %v11831, %v11827
  %v11880 = vpack.c.bf16 %v11836, %v11832
  %v11881 = vpack.c.bf16 %v11837, %v11833
  %v11882 = vpack.c.bf16 %v11838, %v11834
  %v11883 = vpack.c.bf16 %v11839, %v11835
  %v11884 = vpack.c.bf16 %v11844, %v11840
  %v11885 = vpack.c.bf16 %v11845, %v11841
  %v11886 = vpack.c.bf16 %v11846, %v11842
  %v11887 = vpack.c.bf16 %v11847, %v11843
  %v11888 = vpack.c.bf16 %v11852, %v11848
  %v11889 = vpack.c.bf16 %v11853, %v11849
  %v11890 = vpack.c.bf16 %v11854, %v11850
  %v11891 = vpack.c.bf16 %v11855, %v11851
  %v11892 = vpack.c.bf16 %v11860, %v11856
  %v11893 = vpack.c.bf16 %v11861, %v11857
  %v11894 = vpack.c.bf16 %v11862, %v11858
  %v11895 = vpack.c.bf16 %v11863, %v11859
  %v11896 = vpack.c.bf16 %v11868, %v11864
  %v11897 = vpack.c.bf16 %v11869, %v11865
  %v11898 = vpack.c.bf16 %v11870, %v11866
  %v11899 = vpack.c.bf16 %v11871, %v11867
  %v11900 = vld [vmem:[%s5] sm:$0xf]
  %v11901 = vld [vmem:[%s5 + $0x4] sm:$0xf]
  %v11902 = vld [vmem:[%s5 + $0x8] sm:$0xf]
  %v11903 = vld [vmem:[%s5 + $0xc] sm:$0xf]
  %v11904 = vld [vmem:[%s5 + $0x10] sm:$0xf]
  %v11905 = vld [vmem:[%s5 + $0x14] sm:$0xf]
  %v11906 = vld [vmem:[%s5 + $0x18] sm:$0xf]
  %v11907 = vld [vmem:[%s5 + $0x1c] sm:$0xf]
  %v11908 = vld [vmem:[%s5 + $0x20] sm:$0xf]
  %v11909 = vld [vmem:[%s5 + $0x24] sm:$0xf]
  %v11910 = vld [vmem:[%s5 + $0x28] sm:$0xf]
  %v11911 = vld [vmem:[%s5 + $0x2c] sm:$0xf]
  %v11912 = vld [vmem:[%s5 + $0x30] sm:$0xf]
  %v11913 = vld [vmem:[%s5 + $0x34] sm:$0xf]
  %v11914 = vld [vmem:[%s5 + $0x38] sm:$0xf]
  %v11915 = vld [vmem:[%s5 + $0x3c] sm:$0xf]
  %v11916 = vld [vmem:[%s5 + $0x40] sm:$0xf]
  %v11917 = vld [vmem:[%s5 + $0x44] sm:$0xf]
  %v11918 = vld [vmem:[%s5 + $0x48] sm:$0xf]
  %v11919 = vld [vmem:[%s5 + $0x4c] sm:$0xf]
  %v11920 = vld [vmem:[%s5 + $0x50] sm:$0xf]
  %v11921 = vld [vmem:[%s5 + $0x54] sm:$0xf]
  %v11922 = vld [vmem:[%s5 + $0x58] sm:$0xf]
  %v11923 = vld [vmem:[%s5 + $0x5c] sm:$0xf]
  %v11924 = vld [vmem:[%s5 + $0x60] sm:$0xf]
  %v11925 = vld [vmem:[%s5 + $0x64] sm:$0xf]
  %v11926 = vld [vmem:[%s5 + $0x68] sm:$0xf]
  %v11927 = vld [vmem:[%s5 + $0x6c] sm:$0xf]
  %v11928 = vld [vmem:[%s5 + $0x70] sm:$0xf]
  %v11929 = vld [vmem:[%s5 + $0x74] sm:$0xf]
  %v11930 = vld [vmem:[%s5 + $0x78] sm:$0xf]
  %v11931 = vld [vmem:[%s5 + $0x7c] sm:$0xf]
  %v11932 = vld [vmem:[%s5 + $0x80] sm:$0xf]
  %v11933 = vld [vmem:[%s5 + $0x84] sm:$0xf]
  %v11934 = vld [vmem:[%s5 + $0x88] sm:$0xf]
  %v11935 = vld [vmem:[%s5 + $0x8c] sm:$0xf]
  %v11936 = vld [vmem:[%s5 + $0x90] sm:$0xf]
  %v11937 = vld [vmem:[%s5 + $0x94] sm:$0xf]
  %v11938 = vld [vmem:[%s5 + $0x98] sm:$0xf]
  %v11939 = vld [vmem:[%s5 + $0x9c] sm:$0xf]
  %v11940 = vld [vmem:[%s5 + $0xa0] sm:$0xf]
  %v11941 = vld [vmem:[%s5 + $0xa4] sm:$0xf]
  %v11942 = vld [vmem:[%s5 + $0xa8] sm:$0xf]
  %v11943 = vld [vmem:[%s5 + $0xac] sm:$0xf]
  %v11944 = vld [vmem:[%s5 + $0xb0] sm:$0xf]
  %v11945 = vld [vmem:[%s5 + $0xb4] sm:$0xf]
  %v11946 = vld [vmem:[%s5 + $0xb8] sm:$0xf]
  %v11947 = vld [vmem:[%s5 + $0xbc] sm:$0xf]
  %v11948 = vld [vmem:[%s5 + $0xc0] sm:$0xf]
  %v11949 = vld [vmem:[%s5 + $0xc4] sm:$0xf]
  %v11950 = vld [vmem:[%s5 + $0xc8] sm:$0xf]
  %v11951 = vld [vmem:[%s5 + $0xcc] sm:$0xf]
  %v11952 = vld [vmem:[%s5 + $0xd0] sm:$0xf]
  %v11953 = vld [vmem:[%s5 + $0xd4] sm:$0xf]
  %v11954 = vld [vmem:[%s5 + $0xd8] sm:$0xf]
  %v11955 = vld [vmem:[%s5 + $0xdc] sm:$0xf]
  %s11956 = scalar_lea.vmem %s5, 224
  %v11957 = vld [vmem:[%s11956] sm:$0xf]
  %v11958 = vld [vmem:[%s11956 + $0x4] sm:$0xf]
  %v11959 = vld [vmem:[%s11956 + $0x8] sm:$0xf]
  %v11960 = vld [vmem:[%s11956 + $0xc] sm:$0xf]
  %v11961 = vld [vmem:[%s11956 + $0x10] sm:$0xf]
  %v11962 = vld [vmem:[%s11956 + $0x14] sm:$0xf]
  %v11963 = vld [vmem:[%s11956 + $0x18] sm:$0xf]
  %v11964 = vld [vmem:[%s11956 + $0x1c] sm:$0xf]
  %v11965 = vld [vmem:[%s11956 + $0x20] sm:$0xf]
  %v11966 = vld [vmem:[%s11956 + $0x24] sm:$0xf]
  %v11967 = vld [vmem:[%s11956 + $0x28] sm:$0xf]
  %v11968 = vld [vmem:[%s11956 + $0x2c] sm:$0xf]
  %v11969 = vld [vmem:[%s11956 + $0x30] sm:$0xf]
  %v11970 = vld [vmem:[%s11956 + $0x34] sm:$0xf]
  %v11971 = vld [vmem:[%s11956 + $0x38] sm:$0xf]
  %v11972 = vld [vmem:[%s11956 + $0x3c] sm:$0xf]
  %v11973 = vld [vmem:[%s11956 + $0x40] sm:$0xf]
  %v11974 = vld [vmem:[%s11956 + $0x44] sm:$0xf]
  %v11975 = vld [vmem:[%s11956 + $0x48] sm:$0xf]
  %v11976 = vld [vmem:[%s11956 + $0x4c] sm:$0xf]
  %v11977 = vld [vmem:[%s11956 + $0x50] sm:$0xf]
  %v11978 = vld [vmem:[%s11956 + $0x54] sm:$0xf]
  %v11979 = vld [vmem:[%s11956 + $0x58] sm:$0xf]
  %v11980 = vld [vmem:[%s11956 + $0x5c] sm:$0xf]
  %v11981 = vld [vmem:[%s11956 + $0x60] sm:$0xf]
  %v11982 = vld [vmem:[%s11956 + $0x64] sm:$0xf]
  %v11983 = vld [vmem:[%s11956 + $0x68] sm:$0xf]
  %v11984 = vld [vmem:[%s11956 + $0x6c] sm:$0xf]
  %v11985 = vld [vmem:[%s11956 + $0x70] sm:$0xf]
  %v11986 = vld [vmem:[%s11956 + $0x74] sm:$0xf]
  %v11987 = vld [vmem:[%s11956 + $0x78] sm:$0xf]
  %v11988 = vld [vmem:[%s11956 + $0x7c] sm:$0xf]
  %v11989 = vld [vmem:[%s11956 + $0x80] sm:$0xf]
  %v11990 = vld [vmem:[%s11956 + $0x84] sm:$0xf]
  %v11991 = vld [vmem:[%s11956 + $0x88] sm:$0xf]
  %v11992 = vld [vmem:[%s11956 + $0x8c] sm:$0xf]
  %v11993 = vld [vmem:[%s11956 + $0x90] sm:$0xf]
  %v11994 = vld [vmem:[%s11956 + $0x94] sm:$0xf]
  %v11995 = vld [vmem:[%s11956 + $0x98] sm:$0xf]
  %v11996 = vld [vmem:[%s11956 + $0x9c] sm:$0xf]
  %v11997 = vld [vmem:[%s11956 + $0xa0] sm:$0xf]
  %v11998 = vld [vmem:[%s11956 + $0xa4] sm:$0xf]
  %v11999 = vld [vmem:[%s11956 + $0xa8] sm:$0xf]
  %v12000 = vld [vmem:[%s11956 + $0xac] sm:$0xf]
  %v12001 = vld [vmem:[%s11956 + $0xb0] sm:$0xf]
  %v12002 = vld [vmem:[%s11956 + $0xb4] sm:$0xf]
  %v12003 = vld [vmem:[%s11956 + $0xb8] sm:$0xf]
  %v12004 = vld [vmem:[%s11956 + $0xbc] sm:$0xf]
  %v12005 = vld [vmem:[%s11956 + $0xc0] sm:$0xf]
  %v12006 = vld [vmem:[%s11956 + $0xc4] sm:$0xf]
  %v12007 = vld [vmem:[%s11956 + $0xc8] sm:$0xf]
  %v12008 = vld [vmem:[%s11956 + $0xcc] sm:$0xf]
  %v12009 = vld [vmem:[%s11956 + $0xd0] sm:$0xf]
  %v12010 = vld [vmem:[%s11956 + $0xd4] sm:$0xf]
  %v12011 = vld [vmem:[%s11956 + $0xd8] sm:$0xf]
  %v12012 = vld [vmem:[%s11956 + $0xdc] sm:$0xf]
  %v12069 = vunpack.c.l.b16 %v11957
  %v12070 = vunpack.c.l.b16 %v11958
  %v12071 = vunpack.c.l.b16 %v11959
  %v12072 = vunpack.c.l.b16 %v11960
  %v12073 = vunpack.c.l.b16 %v11961
  %v12074 = vunpack.c.l.b16 %v11962
  %v12075 = vunpack.c.l.b16 %v11963
  %v12076 = vunpack.c.l.b16 %v11964
  %v12077 = vunpack.c.l.b16 %v11965
  %v12078 = vunpack.c.l.b16 %v11966
  %v12079 = vunpack.c.l.b16 %v11967
  %v12080 = vunpack.c.l.b16 %v11968
  %v12081 = vunpack.c.l.b16 %v11969
  %v12082 = vunpack.c.l.b16 %v11970
  %v12083 = vunpack.c.l.b16 %v11971
  %v12084 = vunpack.c.l.b16 %v11972
  %v12085 = vunpack.c.l.b16 %v11973
  %v12086 = vunpack.c.l.b16 %v11974
  %v12087 = vunpack.c.l.b16 %v11975
  %v12088 = vunpack.c.l.b16 %v11976
  %v12089 = vunpack.c.l.b16 %v11977
  %v12090 = vunpack.c.l.b16 %v11978
  %v12091 = vunpack.c.l.b16 %v11979
  %v12092 = vunpack.c.l.b16 %v11980
  %v12093 = vunpack.c.l.b16 %v11981
  %v12094 = vunpack.c.l.b16 %v11982
  %v12095 = vunpack.c.l.b16 %v11983
  %v12096 = vunpack.c.l.b16 %v11984
  %v12097 = vunpack.c.l.b16 %v11985
  %v12098 = vunpack.c.l.b16 %v11986
  %v12099 = vunpack.c.l.b16 %v11987
  %v12100 = vunpack.c.l.b16 %v11988
  %v12101 = vunpack.c.l.b16 %v11989
  %v12102 = vunpack.c.l.b16 %v11990
  %v12103 = vunpack.c.l.b16 %v11991
  %v12104 = vunpack.c.l.b16 %v11992
  %v12105 = vunpack.c.l.b16 %v11993
  %v12106 = vunpack.c.l.b16 %v11994
  %v12107 = vunpack.c.l.b16 %v11995
  %v12108 = vunpack.c.l.b16 %v11996
  %v12109 = vunpack.c.l.b16 %v11997
  %v12110 = vunpack.c.l.b16 %v11998
  %v12111 = vunpack.c.l.b16 %v11999
  %v12112 = vunpack.c.l.b16 %v12000
  %v12113 = vunpack.c.l.b16 %v12001
  %v12114 = vunpack.c.l.b16 %v12002
  %v12115 = vunpack.c.l.b16 %v12003
  %v12116 = vunpack.c.l.b16 %v12004
  %v12117 = vunpack.c.l.b16 %v12005
  %v12118 = vunpack.c.l.b16 %v12006
  %v12119 = vunpack.c.l.b16 %v12007
  %v12120 = vunpack.c.l.b16 %v12008
  %v12121 = vunpack.c.l.b16 %v12009
  %v12122 = vunpack.c.l.b16 %v12010
  %v12123 = vunpack.c.l.b16 %v12011
  %v12124 = vunpack.c.l.b16 %v12012
  %v12125 = vpack.c.b16 %v12070, %v12069
  %v12126 = vpack.c.b16 %v12072, %v12071
  %v12127 = vpack.c.b16 %v12074, %v12073
  %v12128 = vpack.c.b16 %v12076, %v12075
  %v12129 = vpack.c.b16 %v12078, %v12077
  %v12130 = vpack.c.b16 %v12080, %v12079
  %v12131 = vpack.c.b16 %v12082, %v12081
  %v12132 = vpack.c.b16 %v12084, %v12083
  %v12133 = vpack.c.b16 %v12086, %v12085
  %v12134 = vpack.c.b16 %v12088, %v12087
  %v12135 = vpack.c.b16 %v12090, %v12089
  %v12136 = vpack.c.b16 %v12092, %v12091
  %v12137 = vpack.c.b16 %v12094, %v12093
  %v12138 = vpack.c.b16 %v12096, %v12095
  %v12139 = vpack.c.b16 %v12098, %v12097
  %v12140 = vpack.c.b16 %v12100, %v12099
  %v12141 = vpack.c.b16 %v12102, %v12101
  %v12142 = vpack.c.b16 %v12104, %v12103
  %v12143 = vpack.c.b16 %v12106, %v12105
  %v12144 = vpack.c.b16 %v12108, %v12107
  %v12145 = vpack.c.b16 %v12110, %v12109
  %v12146 = vpack.c.b16 %v12112, %v12111
  %v12147 = vpack.c.b16 %v12114, %v12113
  %v12148 = vpack.c.b16 %v12116, %v12115
  %v12149 = vpack.c.b16 %v12118, %v12117
  %v12150 = vpack.c.b16 %v12120, %v12119
  %v12151 = vpack.c.b16 %v12122, %v12121
  %v12152 = vpack.c.b16 %v12124, %v12123
  %v12182 = vsel %vm2735, %v11879, 0
  %12184 = vmatprep.subr.bf16.mxu0 0
  %12185 = vmatpush1.bf16.msra.mxu0 %v12125
  %12186 = vmatprep.subr.bf16.mxu0 0
  %12187 = vmatpush1.bf16.msra.mxu0 %v12126
  %12188 = vmatprep.subr.bf16.mxu0 0
  %12189 = vmatpush1.bf16.msra.mxu0 %v12127
  %12190 = vmatprep.subr.bf16.mxu0 0
  %12191 = vmatpush1.bf16.msra.mxu0 %v12128
  %12192 = vmatprep.subr.bf16.mxu0 0
  %12193 = vmatpush1.bf16.msra.mxu0 %v12129
  %12194 = vmatprep.subr.bf16.mxu0 0
  %12195 = vmatpush1.bf16.msra.mxu0 %v12130
  %12196 = vmatprep.subr.bf16.mxu0 0
  %12197 = vmatpush1.bf16.msra.mxu0 %v12131
  %12198 = vmatprep.subr.bf16.mxu0 0
  %12199 = vmatpush1.bf16.msra.mxu0 %v12132
  %12200 = vmatprep.subr.bf16.mxu0 0
  %12201 = vmatpush1.bf16.msra.mxu0 %v12133
  %12202 = vmatprep.subr.bf16.mxu0 0
  %12203 = vmatpush1.bf16.msra.mxu0 %v12134
  %12204 = vmatprep.subr.bf16.mxu0 0
  %12205 = vmatpush1.bf16.msra.mxu0 %v12135
  %12206 = vmatprep.subr.bf16.mxu0 0
  %12207 = vmatpush1.bf16.msra.mxu0 %v12136
  %12208 = vmatprep.subr.bf16.mxu0 0
  %12209 = vmatpush1.bf16.msra.mxu0 %v12137
  %12210 = vmatprep.subr.bf16.mxu0 0
  %12211 = vmatpush1.bf16.msra.mxu0 %v12138
  %12212 = vmatprep.subr.bf16.mxu0 0
  %12213 = vmatpush1.bf16.msra.mxu0 %v12139
  %12214 = vmatprep.subr.bf16.mxu0 0
  %12215 = vmatpush1.bf16.msra.mxu0 %v12140
  %12216 = vmatprep.mubr.bf16.mxu0 %v11877
  %12217 = vmatmul.mubr.bf16.gmra.mrb[0].mxu0 %v11876
  %v12218 = vpop.f32.mrb[0].mxu0
  %v12219 = vadd.f32 0.0, %v12218
  %v12220 = vpop.f32.mrb[0].mxu0
  %v12221 = vpop.f32.mrb[0].mxu0
  %v12222 = vadd.f32 0.0, %v12221
  %v12223 = vpop.f32.mrb[0].mxu0
  %12224 = vdwg.mxu0
  %12225 = vmatprep.subr.bf16.mxu0 0
  %12226 = vmatpush1.bf16.msra.mxu0 %v12141
  %12227 = vmatprep.subr.bf16.mxu0 0
  %12228 = vmatpush1.bf16.msra.mxu0 %v12142
  %12229 = vmatprep.subr.bf16.mxu0 0
  %12230 = vmatpush1.bf16.msra.mxu0 %v12143
  %12231 = vmatprep.subr.bf16.mxu0 0
  %12232 = vmatpush1.bf16.msra.mxu0 %v12144
  %12233 = vmatprep.subr.bf16.mxu0 0
  %12234 = vmatpush1.bf16.msra.mxu0 %v12145
  %12235 = vmatprep.subr.bf16.mxu0 0
  %12236 = vmatpush1.bf16.msra.mxu0 %v12146
  %12237 = vmatprep.subr.bf16.mxu0 0
  %12238 = vmatpush1.bf16.msra.mxu0 %v12147
  %12239 = vmatprep.subr.bf16.mxu0 0
  %12240 = vmatpush1.bf16.msra.mxu0 %v12148
  %12241 = vmatprep.subr.bf16.mxu0 0
  %12242 = vmatpush1.bf16.msra.mxu0 %v12149
  %12243 = vmatprep.subr.bf16.mxu0 0
  %12244 = vmatpush1.bf16.msra.mxu0 %v12150
  %12245 = vmatprep.subr.bf16.mxu0 0
  %12246 = vmatpush1.bf16.msra.mxu0 %v12151
  %12247 = vmatprep.subr.bf16.mxu0 0
  %12248 = vmatpush1.bf16.msra.mxu0 %v12152
  %12249 = vmatprep.subr.bf16.mxu0 0
  %12250 = vmatpush1.bf16.msra.mxu0 0
  %12251 = vmatprep.subr.bf16.mxu0 0
  %12252 = vmatpush1.bf16.msra.mxu0 0
  %12253 = vmatprep.subr.bf16.mxu0 0
  %12254 = vmatpush1.bf16.msra.mxu0 0
  %12255 = vmatprep.subr.bf16.mxu0 0
  %12256 = vmatpush1.bf16.msra.mxu0 0
  %12257 = vmatprep.mubr.bf16.mxu0 %v12182
  %12258 = vmatmul.mubr.bf16.gmra.mrb[0].mxu0 %v11878
  %v12259 = vpop.f32.mrb[0].mxu0
  %v12260 = vadd.f32 %v12219, %v12259
  %v12261 = vpop.f32.mrb[0].mxu0
  %v12262 = vpop.f32.mrb[0].mxu0
  %v12263 = vadd.f32 %v12222, %v12262
  %v12264 = vpop.f32.mrb[0].mxu0
  %12265 = vdwg.mxu0
  %v12322 = vunpack.c.l.b16 %v11900
  %v12323 = vunpack.c.l.b16 %v11901
  %v12324 = vunpack.c.l.b16 %v11902
  %v12325 = vunpack.c.l.b16 %v11903
  %v12326 = vunpack.c.l.b16 %v11904
  %v12327 = vunpack.c.l.b16 %v11905
  %v12328 = vunpack.c.l.b16 %v11906
  %v12329 = vunpack.c.l.b16 %v11907
  %v12330 = vunpack.c.l.b16 %v11908
  %v12331 = vunpack.c.l.b16 %v11909
  %v12332 = vunpack.c.l.b16 %v11910
  %v12333 = vunpack.c.l.b16 %v11911
  %v12334 = vunpack.c.l.b16 %v11912
  %v12335 = vunpack.c.l.b16 %v11913
  %v12336 = vunpack.c.l.b16 %v11914
  %v12337 = vunpack.c.l.b16 %v11915
  %v12338 = vunpack.c.l.b16 %v11916
  %v12339 = vunpack.c.l.b16 %v11917
  %v12340 = vunpack.c.l.b16 %v11918
  %v12341 = vunpack.c.l.b16 %v11919
  %v12342 = vunpack.c.l.b16 %v11920
  %v12343 = vunpack.c.l.b16 %v11921
  %v12344 = vunpack.c.l.b16 %v11922
  %v12345 = vunpack.c.l.b16 %v11923
  %v12346 = vunpack.c.l.b16 %v11924
  %v12347 = vunpack.c.l.b16 %v11925
  %v12348 = vunpack.c.l.b16 %v11926
  %v12349 = vunpack.c.l.b16 %v11927
  %v12350 = vunpack.c.l.b16 %v11928
  %v12351 = vunpack.c.l.b16 %v11929
  %v12352 = vunpack.c.l.b16 %v11930
  %v12353 = vunpack.c.l.b16 %v11931
  %v12354 = vunpack.c.l.b16 %v11932
  %v12355 = vunpack.c.l.b16 %v11933
  %v12356 = vunpack.c.l.b16 %v11934
  %v12357 = vunpack.c.l.b16 %v11935
  %v12358 = vunpack.c.l.b16 %v11936
  %v12359 = vunpack.c.l.b16 %v11937
  %v12360 = vunpack.c.l.b16 %v11938
  %v12361 = vunpack.c.l.b16 %v11939
  %v12362 = vunpack.c.l.b16 %v11940
  %v12363 = vunpack.c.l.b16 %v11941
  %v12364 = vunpack.c.l.b16 %v11942
  %v12365 = vunpack.c.l.b16 %v11943
  %v12366 = vunpack.c.l.b16 %v11944
  %v12367 = vunpack.c.l.b16 %v11945
  %v12368 = vunpack.c.l.b16 %v11946
  %v12369 = vunpack.c.l.b16 %v11947
  %v12370 = vunpack.c.l.b16 %v11948
  %v12371 = vunpack.c.l.b16 %v11949
  %v12372 = vunpack.c.l.b16 %v11950
  %v12373 = vunpack.c.l.b16 %v11951
  %v12374 = vunpack.c.l.b16 %v11952
  %v12375 = vunpack.c.l.b16 %v11953
  %v12376 = vunpack.c.l.b16 %v11954
  %v12377 = vunpack.c.l.b16 %v11955
  %v12378 = vpack.c.b16 %v12323, %v12322
  %v12379 = vpack.c.b16 %v12325, %v12324
  %v12380 = vpack.c.b16 %v12327, %v12326
  %v12381 = vpack.c.b16 %v12329, %v12328
  %v12382 = vpack.c.b16 %v12331, %v12330
  %v12383 = vpack.c.b16 %v12333, %v12332
  %v12384 = vpack.c.b16 %v12335, %v12334
  %v12385 = vpack.c.b16 %v12337, %v12336
  %v12386 = vpack.c.b16 %v12339, %v12338
  %v12387 = vpack.c.b16 %v12341, %v12340
  %v12388 = vpack.c.b16 %v12343, %v12342
  %v12389 = vpack.c.b16 %v12345, %v12344
  %v12390 = vpack.c.b16 %v12347, %v12346
  %v12391 = vpack.c.b16 %v12349, %v12348
  %v12392 = vpack.c.b16 %v12351, %v12350
  %v12393 = vpack.c.b16 %v12353, %v12352
  %v12394 = vpack.c.b16 %v12355, %v12354
  %v12395 = vpack.c.b16 %v12357, %v12356
  %v12396 = vpack.c.b16 %v12359, %v12358
  %v12397 = vpack.c.b16 %v12361, %v12360
  %v12398 = vpack.c.b16 %v12363, %v12362
  %v12399 = vpack.c.b16 %v12365, %v12364
  %v12400 = vpack.c.b16 %v12367, %v12366
  %v12401 = vpack.c.b16 %v12369, %v12368
  %v12402 = vpack.c.b16 %v12371, %v12370
  %v12403 = vpack.c.b16 %v12373, %v12372
  %v12404 = vpack.c.b16 %v12375, %v12374
  %v12405 = vpack.c.b16 %v12377, %v12376
  %v12435 = vsel %vm2735, %v11875, 0
  %12437 = vmatprep.subr.bf16.mxu0 0
  %12438 = vmatpush1.bf16.msra.mxu0 %v12378
  %12439 = vmatprep.subr.bf16.mxu0 0
  %12440 = vmatpush1.bf16.msra.mxu0 %v12379
  %12441 = vmatprep.subr.bf16.mxu0 0
  %12442 = vmatpush1.bf16.msra.mxu0 %v12380
  %12443 = vmatprep.subr.bf16.mxu0 0
  %12444 = vmatpush1.bf16.msra.mxu0 %v12381
  %12445 = vmatprep.subr.bf16.mxu0 0
  %12446 = vmatpush1.bf16.msra.mxu0 %v12382
  %12447 = vmatprep.subr.bf16.mxu0 0
  %12448 = vmatpush1.bf16.msra.mxu0 %v12383
  %12449 = vmatprep.subr.bf16.mxu0 0
  %12450 = vmatpush1.bf16.msra.mxu0 %v12384
  %12451 = vmatprep.subr.bf16.mxu0 0
  %12452 = vmatpush1.bf16.msra.mxu0 %v12385
  %12453 = vmatprep.subr.bf16.mxu0 0
  %12454 = vmatpush1.bf16.msra.mxu0 %v12386
  %12455 = vmatprep.subr.bf16.mxu0 0
  %12456 = vmatpush1.bf16.msra.mxu0 %v12387
  %12457 = vmatprep.subr.bf16.mxu0 0
  %12458 = vmatpush1.bf16.msra.mxu0 %v12388
  %12459 = vmatprep.subr.bf16.mxu0 0
  %12460 = vmatpush1.bf16.msra.mxu0 %v12389
  %12461 = vmatprep.subr.bf16.mxu0 0
  %12462 = vmatpush1.bf16.msra.mxu0 %v12390
  %12463 = vmatprep.subr.bf16.mxu0 0
  %12464 = vmatpush1.bf16.msra.mxu0 %v12391
  %12465 = vmatprep.subr.bf16.mxu0 0
  %12466 = vmatpush1.bf16.msra.mxu0 %v12392
  %12467 = vmatprep.subr.bf16.mxu0 0
  %12468 = vmatpush1.bf16.msra.mxu0 %v12393
  %12469 = vmatprep.mubr.bf16.mxu0 %v11873
  %12470 = vmatmul.mubr.bf16.gmra.mrb[0].mxu0 %v11872
  %v12471 = vpop.f32.mrb[0].mxu0
  %v12472 = vadd.f32 %v12260, %v12471
  %v12473 = vpop.f32.mrb[0].mxu0
  %v12474 = vpop.f32.mrb[0].mxu0
  %v12475 = vadd.f32 %v12263, %v12474
  %v12476 = vpop.f32.mrb[0].mxu0
  %12477 = vdwg.mxu0
  %12478 = vmatprep.subr.bf16.mxu0 0
  %12479 = vmatpush1.bf16.msra.mxu0 %v12394
  %12480 = vmatprep.subr.bf16.mxu0 0
  %12481 = vmatpush1.bf16.msra.mxu0 %v12395
  %12482 = vmatprep.subr.bf16.mxu0 0
  %12483 = vmatpush1.bf16.msra.mxu0 %v12396
  %12484 = vmatprep.subr.bf16.mxu0 0
  %12485 = vmatpush1.bf16.msra.mxu0 %v12397
  %12486 = vmatprep.subr.bf16.mxu0 0
  %12487 = vmatpush1.bf16.msra.mxu0 %v12398
  %12488 = vmatprep.subr.bf16.mxu0 0
  %12489 = vmatpush1.bf16.msra.mxu0 %v12399
  %12490 = vmatprep.subr.bf16.mxu0 0
  %12491 = vmatpush1.bf16.msra.mxu0 %v12400
  %12492 = vmatprep.subr.bf16.mxu0 0
  %12493 = vmatpush1.bf16.msra.mxu0 %v12401
  %12494 = vmatprep.subr.bf16.mxu0 0
  %12495 = vmatpush1.bf16.msra.mxu0 %v12402
  %12496 = vmatprep.subr.bf16.mxu0 0
  %12497 = vmatpush1.bf16.msra.mxu0 %v12403
  %12498 = vmatprep.subr.bf16.mxu0 0
  %12499 = vmatpush1.bf16.msra.mxu0 %v12404
  %12500 = vmatprep.subr.bf16.mxu0 0
  %12501 = vmatpush1.bf16.msra.mxu0 %v12405
  %12502 = vmatprep.subr.bf16.mxu0 0
  %12503 = vmatpush1.bf16.msra.mxu0 0
  %12504 = vmatprep.subr.bf16.mxu0 0
  %12505 = vmatpush1.bf16.msra.mxu0 0
  %12506 = vmatprep.subr.bf16.mxu0 0
  %12507 = vmatpush1.bf16.msra.mxu0 0
  %12508 = vmatprep.subr.bf16.mxu0 0
  %12509 = vmatpush1.bf16.msra.mxu0 0
  %12510 = vmatprep.mubr.bf16.mxu0 %v12435
  %12511 = vmatmul.mubr.bf16.gmra.mrb[0].mxu0 %v11874
  %v12512 = vpop.f32.mrb[0].mxu0
  %v12513 = vadd.f32 %v12472, %v12512
  %v12514 = vpop.f32.mrb[0].mxu0
  %v12515 = vpop.f32.mrb[0].mxu0
  %v12516 = vadd.f32 %v12475, %v12515
  %v12517 = vpop.f32.mrb[0].mxu0
  %12518 = vdwg.mxu0
  %s12519 = scalar_lea.vmem %s5, 448
  %v12520 = vld [vmem:[%s12519] sm:$0xf]
  %v12521 = vld [vmem:[%s12519 + $0x4] sm:$0xf]
  %v12522 = vld [vmem:[%s12519 + $0x8] sm:$0xf]
  %v12523 = vld [vmem:[%s12519 + $0xc] sm:$0xf]
  %v12524 = vld [vmem:[%s12519 + $0x10] sm:$0xf]
  %v12525 = vld [vmem:[%s12519 + $0x14] sm:$0xf]
  %v12526 = vld [vmem:[%s12519 + $0x18] sm:$0xf]
  %v12527 = vld [vmem:[%s12519 + $0x1c] sm:$0xf]
  %v12528 = vld [vmem:[%s12519 + $0x20] sm:$0xf]
  %v12529 = vld [vmem:[%s12519 + $0x24] sm:$0xf]
  %v12530 = vld [vmem:[%s12519 + $0x28] sm:$0xf]
  %v12531 = vld [vmem:[%s12519 + $0x2c] sm:$0xf]
  %v12532 = vld [vmem:[%s12519 + $0x30] sm:$0xf]
  %v12533 = vld [vmem:[%s12519 + $0x34] sm:$0xf]
  %v12534 = vld [vmem:[%s12519 + $0x38] sm:$0xf]
  %v12535 = vld [vmem:[%s12519 + $0x3c] sm:$0xf]
  %v12536 = vld [vmem:[%s12519 + $0x40] sm:$0xf]
  %v12537 = vld [vmem:[%s12519 + $0x44] sm:$0xf]
  %v12538 = vld [vmem:[%s12519 + $0x48] sm:$0xf]
  %v12539 = vld [vmem:[%s12519 + $0x4c] sm:$0xf]
  %v12540 = vld [vmem:[%s12519 + $0x50] sm:$0xf]
  %v12541 = vld [vmem:[%s12519 + $0x54] sm:$0xf]
  %v12542 = vld [vmem:[%s12519 + $0x58] sm:$0xf]
  %v12543 = vld [vmem:[%s12519 + $0x5c] sm:$0xf]
  %v12544 = vld [vmem:[%s12519 + $0x60] sm:$0xf]
  %v12545 = vld [vmem:[%s12519 + $0x64] sm:$0xf]
  %v12546 = vld [vmem:[%s12519 + $0x68] sm:$0xf]
  %v12547 = vld [vmem:[%s12519 + $0x6c] sm:$0xf]
  %v12548 = vld [vmem:[%s12519 + $0x70] sm:$0xf]
  %v12549 = vld [vmem:[%s12519 + $0x74] sm:$0xf]
  %v12550 = vld [vmem:[%s12519 + $0x78] sm:$0xf]
  %v12551 = vld [vmem:[%s12519 + $0x7c] sm:$0xf]
  %v12552 = vld [vmem:[%s12519 + $0x80] sm:$0xf]
  %v12553 = vld [vmem:[%s12519 + $0x84] sm:$0xf]
  %v12554 = vld [vmem:[%s12519 + $0x88] sm:$0xf]
  %v12555 = vld [vmem:[%s12519 + $0x8c] sm:$0xf]
  %v12556 = vld [vmem:[%s12519 + $0x90] sm:$0xf]
  %v12557 = vld [vmem:[%s12519 + $0x94] sm:$0xf]
  %v12558 = vld [vmem:[%s12519 + $0x98] sm:$0xf]
  %v12559 = vld [vmem:[%s12519 + $0x9c] sm:$0xf]
  %v12560 = vld [vmem:[%s12519 + $0xa0] sm:$0xf]
  %v12561 = vld [vmem:[%s12519 + $0xa4] sm:$0xf]
  %v12562 = vld [vmem:[%s12519 + $0xa8] sm:$0xf]
  %v12563 = vld [vmem:[%s12519 + $0xac] sm:$0xf]
  %v12564 = vld [vmem:[%s12519 + $0xb0] sm:$0xf]
  %v12565 = vld [vmem:[%s12519 + $0xb4] sm:$0xf]
  %v12566 = vld [vmem:[%s12519 + $0xb8] sm:$0xf]
  %v12567 = vld [vmem:[%s12519 + $0xbc] sm:$0xf]
  %v12568 = vld [vmem:[%s12519 + $0xc0] sm:$0xf]
  %v12569 = vld [vmem:[%s12519 + $0xc4] sm:$0xf]
  %v12570 = vld [vmem:[%s12519 + $0xc8] sm:$0xf]
  %v12571 = vld [vmem:[%s12519 + $0xcc] sm:$0xf]
  %v12572 = vld [vmem:[%s12519 + $0xd0] sm:$0xf]
  %v12573 = vld [vmem:[%s12519 + $0xd4] sm:$0xf]
  %v12574 = vld [vmem:[%s12519 + $0xd8] sm:$0xf]
  %v12575 = vld [vmem:[%s12519 + $0xdc] sm:$0xf]
  %v12632 = vunpack.c.l.b16 %v12520
  %v12633 = vunpack.c.l.b16 %v12521
  %v12634 = vunpack.c.l.b16 %v12522
  %v12635 = vunpack.c.l.b16 %v12523
  %v12636 = vunpack.c.l.b16 %v12524
  %v12637 = vunpack.c.l.b16 %v12525
  %v12638 = vunpack.c.l.b16 %v12526
  %v12639 = vunpack.c.l.b16 %v12527
  %v12640 = vunpack.c.l.b16 %v12528
  %v12641 = vunpack.c.l.b16 %v12529
  %v12642 = vunpack.c.l.b16 %v12530
  %v12643 = vunpack.c.l.b16 %v12531
  %v12644 = vunpack.c.l.b16 %v12532
  %v12645 = vunpack.c.l.b16 %v12533
  %v12646 = vunpack.c.l.b16 %v12534
  %v12647 = vunpack.c.l.b16 %v12535
  %v12648 = vunpack.c.l.b16 %v12536
  %v12649 = vunpack.c.l.b16 %v12537
  %v12650 = vunpack.c.l.b16 %v12538
  %v12651 = vunpack.c.l.b16 %v12539
  %v12652 = vunpack.c.l.b16 %v12540
  %v12653 = vunpack.c.l.b16 %v12541
  %v12654 = vunpack.c.l.b16 %v12542
  %v12655 = vunpack.c.l.b16 %v12543
  %v12656 = vunpack.c.l.b16 %v12544
  %v12657 = vunpack.c.l.b16 %v12545
  %v12658 = vunpack.c.l.b16 %v12546
  %v12659 = vunpack.c.l.b16 %v12547
  %v12660 = vunpack.c.l.b16 %v12548
  %v12661 = vunpack.c.l.b16 %v12549
  %v12662 = vunpack.c.l.b16 %v12550
  %v12663 = vunpack.c.l.b16 %v12551
  %v12664 = vunpack.c.l.b16 %v12552
  %v12665 = vunpack.c.l.b16 %v12553
  %v12666 = vunpack.c.l.b16 %v12554
  %v12667 = vunpack.c.l.b16 %v12555
  %v12668 = vunpack.c.l.b16 %v12556
  %v12669 = vunpack.c.l.b16 %v12557
  %v12670 = vunpack.c.l.b16 %v12558
  %v12671 = vunpack.c.l.b16 %v12559
  %v12672 = vunpack.c.l.b16 %v12560
  %v12673 = vunpack.c.l.b16 %v12561
  %v12674 = vunpack.c.l.b16 %v12562
  %v12675 = vunpack.c.l.b16 %v12563
  %v12676 = vunpack.c.l.b16 %v12564
  %v12677 = vunpack.c.l.b16 %v12565
  %v12678 = vunpack.c.l.b16 %v12566
  %v12679 = vunpack.c.l.b16 %v12567
  %v12680 = vunpack.c.l.b16 %v12568
  %v12681 = vunpack.c.l.b16 %v12569
  %v12682 = vunpack.c.l.b16 %v12570
  %v12683 = vunpack.c.l.b16 %v12571
  %v12684 = vunpack.c.l.b16 %v12572
  %v12685 = vunpack.c.l.b16 %v12573
  %v12686 = vunpack.c.l.b16 %v12574
  %v12687 = vunpack.c.l.b16 %v12575
  %v12688 = vpack.c.b16 %v12633, %v12632
  %v12689 = vpack.c.b16 %v12635, %v12634
  %v12690 = vpack.c.b16 %v12637, %v12636
  %v12691 = vpack.c.b16 %v12639, %v12638
  %v12692 = vpack.c.b16 %v12641, %v12640
  %v12693 = vpack.c.b16 %v12643, %v12642
  %v12694 = vpack.c.b16 %v12645, %v12644
  %v12695 = vpack.c.b16 %v12647, %v12646
  %v12696 = vpack.c.b16 %v12649, %v12648
  %v12697 = vpack.c.b16 %v12651, %v12650
  %v12698 = vpack.c.b16 %v12653, %v12652
  %v12699 = vpack.c.b16 %v12655, %v12654
  %v12700 = vpack.c.b16 %v12657, %v12656
  %v12701 = vpack.c.b16 %v12659, %v12658
  %v12702 = vpack.c.b16 %v12661, %v12660
  %v12703 = vpack.c.b16 %v12663, %v12662
  %v12704 = vpack.c.b16 %v12665, %v12664
  %v12705 = vpack.c.b16 %v12667, %v12666
  %v12706 = vpack.c.b16 %v12669, %v12668
  %v12707 = vpack.c.b16 %v12671, %v12670
  %v12708 = vpack.c.b16 %v12673, %v12672
  %v12709 = vpack.c.b16 %v12675, %v12674
  %v12710 = vpack.c.b16 %v12677, %v12676
  %v12711 = vpack.c.b16 %v12679, %v12678
  %v12712 = vpack.c.b16 %v12681, %v12680
  %v12713 = vpack.c.b16 %v12683, %v12682
  %v12714 = vpack.c.b16 %v12685, %v12684
  %v12715 = vpack.c.b16 %v12687, %v12686
  %v12745 = vsel %vm2735, %v11883, 0
  %12747 = vmatprep.subr.bf16.mxu0 0
  %12748 = vmatpush1.bf16.msra.mxu0 %v12688
  %12749 = vmatprep.subr.bf16.mxu0 0
  %12750 = vmatpush1.bf16.msra.mxu0 %v12689
  %12751 = vmatprep.subr.bf16.mxu0 0
  %12752 = vmatpush1.bf16.msra.mxu0 %v12690
  %12753 = vmatprep.subr.bf16.mxu0 0
  %12754 = vmatpush1.bf16.msra.mxu0 %v12691
  %12755 = vmatprep.subr.bf16.mxu0 0
  %12756 = vmatpush1.bf16.msra.mxu0 %v12692
  %12757 = vmatprep.subr.bf16.mxu0 0
  %12758 = vmatpush1.bf16.msra.mxu0 %v12693
  %12759 = vmatprep.subr.bf16.mxu0 0
  %12760 = vmatpush1.bf16.msra.mxu0 %v12694
  %12761 = vmatprep.subr.bf16.mxu0 0
  %12762 = vmatpush1.bf16.msra.mxu0 %v12695
  %12763 = vmatprep.subr.bf16.mxu0 0
  %12764 = vmatpush1.bf16.msra.mxu0 %v12696
  %12765 = vmatprep.subr.bf16.mxu0 0
  %12766 = vmatpush1.bf16.msra.mxu0 %v12697
  %12767 = vmatprep.subr.bf16.mxu0 0
  %12768 = vmatpush1.bf16.msra.mxu0 %v12698
  %12769 = vmatprep.subr.bf16.mxu0 0
  %12770 = vmatpush1.bf16.msra.mxu0 %v12699
  %12771 = vmatprep.subr.bf16.mxu0 0
  %12772 = vmatpush1.bf16.msra.mxu0 %v12700
  %12773 = vmatprep.subr.bf16.mxu0 0
  %12774 = vmatpush1.bf16.msra.mxu0 %v12701
  %12775 = vmatprep.subr.bf16.mxu0 0
  %12776 = vmatpush1.bf16.msra.mxu0 %v12702
  %12777 = vmatprep.subr.bf16.mxu0 0
  %12778 = vmatpush1.bf16.msra.mxu0 %v12703
  %12779 = vmatprep.mubr.bf16.mxu0 %v11881
  %12780 = vmatmul.mubr.bf16.gmra.mrb[0].mxu0 %v11880
  %v12781 = vpop.f32.mrb[0].mxu0
  %v12782 = vadd.f32 0.0, %v12781
  %v12783 = vpop.f32.mrb[0].mxu0
  %v12784 = vpop.f32.mrb[0].mxu0
  %v12785 = vadd.f32 0.0, %v12784
  %v12786 = vpop.f32.mrb[0].mxu0
  %12787 = vdwg.mxu0
  %12788 = vmatprep.subr.bf16.mxu0 0
  %12789 = vmatpush1.bf16.msra.mxu0 %v12704
  %12790 = vmatprep.subr.bf16.mxu0 0
  %12791 = vmatpush1.bf16.msra.mxu0 %v12705
  %12792 = vmatprep.subr.bf16.mxu0 0
  %12793 = vmatpush1.bf16.msra.mxu0 %v12706
  %12794 = vmatprep.subr.bf16.mxu0 0
  %12795 = vmatpush1.bf16.msra.mxu0 %v12707
  %12796 = vmatprep.subr.bf16.mxu0 0
  %12797 = vmatpush1.bf16.msra.mxu0 %v12708
  %12798 = vmatprep.subr.bf16.mxu0 0
  %12799 = vmatpush1.bf16.msra.mxu0 %v12709
  %12800 = vmatprep.subr.bf16.mxu0 0
  %12801 = vmatpush1.bf16.msra.mxu0 %v12710
  %12802 = vmatprep.subr.bf16.mxu0 0
  %12803 = vmatpush1.bf16.msra.mxu0 %v12711
  %12804 = vmatprep.subr.bf16.mxu0 0
  %12805 = vmatpush1.bf16.msra.mxu0 %v12712
  %12806 = vmatprep.subr.bf16.mxu0 0
  %12807 = vmatpush1.bf16.msra.mxu0 %v12713
  %12808 = vmatprep.subr.bf16.mxu0 0
  %12809 = vmatpush1.bf16.msra.mxu0 %v12714
  %12810 = vmatprep.subr.bf16.mxu0 0
  %12811 = vmatpush1.bf16.msra.mxu0 %v12715
  %12812 = vmatprep.subr.bf16.mxu0 0
  %12813 = vmatpush1.bf16.msra.mxu0 0
  %12814 = vmatprep.subr.bf16.mxu0 0
  %12815 = vmatpush1.bf16.msra.mxu0 0
  %12816 = vmatprep.subr.bf16.mxu0 0
  %12817 = vmatpush1.bf16.msra.mxu0 0
  %12818 = vmatprep.subr.bf16.mxu0 0
  %12819 = vmatpush1.bf16.msra.mxu0 0
  %12820 = vmatprep.mubr.bf16.mxu0 %v12745
  %12821 = vmatmul.mubr.bf16.gmra.mrb[0].mxu0 %v11882
  %v12822 = vpop.f32.mrb[0].mxu0
  %v12823 = vadd.f32 %v12782, %v12822
  %v12824 = vpop.f32.mrb[0].mxu0
  %v12825 = vpop.f32.mrb[0].mxu0
  %v12826 = vadd.f32 %v12785, %v12825
  %v12827 = vpop.f32.mrb[0].mxu0
  %12828 = vdwg.mxu0
  %v12829 = vadd.f32 %v12513, %v12823
  %v12830 = vadd.f32 %v12516, %v12826
  %s12831 = scalar_lea.vmem %s5, 672
  %v12832 = vld [vmem:[%s12831] sm:$0xf]
  %v12833 = vld [vmem:[%s12831 + $0x4] sm:$0xf]
  %v12834 = vld [vmem:[%s12831 + $0x8] sm:$0xf]
  %v12835 = vld [vmem:[%s12831 + $0xc] sm:$0xf]
  %v12836 = vld [vmem:[%s12831 + $0x10] sm:$0xf]
  %v12837 = vld [vmem:[%s12831 + $0x14] sm:$0xf]
  %v12838 = vld [vmem:[%s12831 + $0x18] sm:$0xf]
  %v12839 = vld [vmem:[%s12831 + $0x1c] sm:$0xf]
  %v12840 = vld [vmem:[%s12831 + $0x20] sm:$0xf]
  %v12841 = vld [vmem:[%s12831 + $0x24] sm:$0xf]
  %v12842 = vld [vmem:[%s12831 + $0x28] sm:$0xf]
  %v12843 = vld [vmem:[%s12831 + $0x2c] sm:$0xf]
  %v12844 = vld [vmem:[%s12831 + $0x30] sm:$0xf]
  %v12845 = vld [vmem:[%s12831 + $0x34] sm:$0xf]
  %v12846 = vld [vmem:[%s12831 + $0x38] sm:$0xf]
  %v12847 = vld [vmem:[%s12831 + $0x3c] sm:$0xf]
  %v12848 = vld [vmem:[%s12831 + $0x40] sm:$0xf]
  %v12849 = vld [vmem:[%s12831 + $0x44] sm:$0xf]
  %v12850 = vld [vmem:[%s12831 + $0x48] sm:$0xf]
  %v12851 = vld [vmem:[%s12831 + $0x4c] sm:$0xf]
  %v12852 = vld [vmem:[%s12831 + $0x50] sm:$0xf]
  %v12853 = vld [vmem:[%s12831 + $0x54] sm:$0xf]
  %v12854 = vld [vmem:[%s12831 + $0x58] sm:$0xf]
  %v12855 = vld [vmem:[%s12831 + $0x5c] sm:$0xf]
  %v12856 = vld [vmem:[%s12831 + $0x60] sm:$0xf]
  %v12857 = vld [vmem:[%s12831 + $0x64] sm:$0xf]
  %v12858 = vld [vmem:[%s12831 + $0x68] sm:$0xf]
  %v12859 = vld [vmem:[%s12831 + $0x6c] sm:$0xf]
  %v12860 = vld [vmem:[%s12831 + $0x70] sm:$0xf]
  %v12861 = vld [vmem:[%s12831 + $0x74] sm:$0xf]
  %v12862 = vld [vmem:[%s12831 + $0x78] sm:$0xf]
  %v12863 = vld [vmem:[%s12831 + $0x7c] sm:$0xf]
  %v12864 = vld [vmem:[%s12831 + $0x80] sm:$0xf]
  %v12865 = vld [vmem:[%s12831 + $0x84] sm:$0xf]
  %v12866 = vld [vmem:[%s12831 + $0x88] sm:$0xf]
  %v12867 = vld [vmem:[%s12831 + $0x8c] sm:$0xf]
  %v12868 = vld [vmem:[%s12831 + $0x90] sm:$0xf]
  %v12869 = vld [vmem:[%s12831 + $0x94] sm:$0xf]
  %v12870 = vld [vmem:[%s12831 + $0x98] sm:$0xf]
  %v12871 = vld [vmem:[%s12831 + $0x9c] sm:$0xf]
  %v12872 = vld [vmem:[%s12831 + $0xa0] sm:$0xf]
  %v12873 = vld [vmem:[%s12831 + $0xa4] sm:$0xf]
  %v12874 = vld [vmem:[%s12831 + $0xa8] sm:$0xf]
  %v12875 = vld [vmem:[%s12831 + $0xac] sm:$0xf]
  %v12876 = vld [vmem:[%s12831 + $0xb0] sm:$0xf]
  %v12877 = vld [vmem:[%s12831 + $0xb4] sm:$0xf]
  %v12878 = vld [vmem:[%s12831 + $0xb8] sm:$0xf]
  %v12879 = vld [vmem:[%s12831 + $0xbc] sm:$0xf]
  %v12880 = vld [vmem:[%s12831 + $0xc0] sm:$0xf]
  %v12881 = vld [vmem:[%s12831 + $0xc4] sm:$0xf]
  %v12882 = vld [vmem:[%s12831 + $0xc8] sm:$0xf]
  %v12883 = vld [vmem:[%s12831 + $0xcc] sm:$0xf]
  %v12884 = vld [vmem:[%s12831 + $0xd0] sm:$0xf]
  %v12885 = vld [vmem:[%s12831 + $0xd4] sm:$0xf]
  %v12886 = vld [vmem:[%s12831 + $0xd8] sm:$0xf]
  %v12887 = vld [vmem:[%s12831 + $0xdc] sm:$0xf]
  %v12944 = vunpack.c.l.b16 %v12832
  %v12945 = vunpack.c.l.b16 %v12833
  %v12946 = vunpack.c.l.b16 %v12834
  %v12947 = vunpack.c.l.b16 %v12835
  %v12948 = vunpack.c.l.b16 %v12836
  %v12949 = vunpack.c.l.b16 %v12837
  %v12950 = vunpack.c.l.b16 %v12838
  %v12951 = vunpack.c.l.b16 %v12839
  %v12952 = vunpack.c.l.b16 %v12840
  %v12953 = vunpack.c.l.b16 %v12841
  %v12954 = vunpack.c.l.b16 %v12842
  %v12955 = vunpack.c.l.b16 %v12843
  %v12956 = vunpack.c.l.b16 %v12844
  %v12957 = vunpack.c.l.b16 %v12845
  %v12958 = vunpack.c.l.b16 %v12846
  %v12959 = vunpack.c.l.b16 %v12847
  %v12960 = vunpack.c.l.b16 %v12848
  %v12961 = vunpack.c.l.b16 %v12849
  %v12962 = vunpack.c.l.b16 %v12850
  %v12963 = vunpack.c.l.b16 %v12851
  %v12964 = vunpack.c.l.b16 %v12852
  %v12965 = vunpack.c.l.b16 %v12853
  %v12966 = vunpack.c.l.b16 %v12854
  %v12967 = vunpack.c.l.b16 %v12855
  %v12968 = vunpack.c.l.b16 %v12856
  %v12969 = vunpack.c.l.b16 %v12857
  %v12970 = vunpack.c.l.b16 %v12858
  %v12971 = vunpack.c.l.b16 %v12859
  %v12972 = vunpack.c.l.b16 %v12860
  %v12973 = vunpack.c.l.b16 %v12861
  %v12974 = vunpack.c.l.b16 %v12862
  %v12975 = vunpack.c.l.b16 %v12863
  %v12976 = vunpack.c.l.b16 %v12864
  %v12977 = vunpack.c.l.b16 %v12865
  %v12978 = vunpack.c.l.b16 %v12866
  %v12979 = vunpack.c.l.b16 %v12867
  %v12980 = vunpack.c.l.b16 %v12868
  %v12981 = vunpack.c.l.b16 %v12869
  %v12982 = vunpack.c.l.b16 %v12870
  %v12983 = vunpack.c.l.b16 %v12871
  %v12984 = vunpack.c.l.b16 %v12872
  %v12985 = vunpack.c.l.b16 %v12873
  %v12986 = vunpack.c.l.b16 %v12874
  %v12987 = vunpack.c.l.b16 %v12875
  %v12988 = vunpack.c.l.b16 %v12876
  %v12989 = vunpack.c.l.b16 %v12877
  %v12990 = vunpack.c.l.b16 %v12878
  %v12991 = vunpack.c.l.b16 %v12879
  %v12992 = vunpack.c.l.b16 %v12880
  %v12993 = vunpack.c.l.b16 %v12881
  %v12994 = vunpack.c.l.b16 %v12882
  %v12995 = vunpack.c.l.b16 %v12883
  %v12996 = vunpack.c.l.b16 %v12884
  %v12997 = vunpack.c.l.b16 %v12885
  %v12998 = vunpack.c.l.b16 %v12886
  %v12999 = vunpack.c.l.b16 %v12887
  %v13000 = vpack.c.b16 %v12945, %v12944
  %v13001 = vpack.c.b16 %v12947, %v12946
  %v13002 = vpack.c.b16 %v12949, %v12948
  %v13003 = vpack.c.b16 %v12951, %v12950
  %v13004 = vpack.c.b16 %v12953, %v12952
  %v13005 = vpack.c.b16 %v12955, %v12954
  %v13006 = vpack.c.b16 %v12957, %v12956
  %v13007 = vpack.c.b16 %v12959, %v12958
  %v13008 = vpack.c.b16 %v12961, %v12960
  %v13009 = vpack.c.b16 %v12963, %v12962
  %v13010 = vpack.c.b16 %v12965, %v12964
  %v13011 = vpack.c.b16 %v12967, %v12966
  %v13012 = vpack.c.b16 %v12969, %v12968
  %v13013 = vpack.c.b16 %v12971, %v12970
  %v13014 = vpack.c.b16 %v12973, %v12972
  %v13015 = vpack.c.b16 %v12975, %v12974
  %v13016 = vpack.c.b16 %v12977, %v12976
  %v13017 = vpack.c.b16 %v12979, %v12978
  %v13018 = vpack.c.b16 %v12981, %v12980
  %v13019 = vpack.c.b16 %v12983, %v12982
  %v13020 = vpack.c.b16 %v12985, %v12984
  %v13021 = vpack.c.b16 %v12987, %v12986
  %v13022 = vpack.c.b16 %v12989, %v12988
  %v13023 = vpack.c.b16 %v12991, %v12990
  %v13024 = vpack.c.b16 %v12993, %v12992
  %v13025 = vpack.c.b16 %v12995, %v12994
  %v13026 = vpack.c.b16 %v12997, %v12996
  %v13027 = vpack.c.b16 %v12999, %v12998
  %v13057 = vsel %vm2735, %v11887, 0
  %13059 = vmatprep.subr.bf16.mxu0 0
  %13060 = vmatpush1.bf16.msra.mxu0 %v13000
  %13061 = vmatprep.subr.bf16.mxu0 0
  %13062 = vmatpush1.bf16.msra.mxu0 %v13001
  %13063 = vmatprep.subr.bf16.mxu0 0
  %13064 = vmatpush1.bf16.msra.mxu0 %v13002
  %13065 = vmatprep.subr.bf16.mxu0 0
  %13066 = vmatpush1.bf16.msra.mxu0 %v13003
  %13067 = vmatprep.subr.bf16.mxu0 0
  %13068 = vmatpush1.bf16.msra.mxu0 %v13004
  %13069 = vmatprep.subr.bf16.mxu0 0
  %13070 = vmatpush1.bf16.msra.mxu0 %v13005
  %13071 = vmatprep.subr.bf16.mxu0 0
  %13072 = vmatpush1.bf16.msra.mxu0 %v13006
  %13073 = vmatprep.subr.bf16.mxu0 0
  %13074 = vmatpush1.bf16.msra.mxu0 %v13007
  %13075 = vmatprep.subr.bf16.mxu0 0
  %13076 = vmatpush1.bf16.msra.mxu0 %v13008
  %13077 = vmatprep.subr.bf16.mxu0 0
  %13078 = vmatpush1.bf16.msra.mxu0 %v13009
  %13079 = vmatprep.subr.bf16.mxu0 0
  %13080 = vmatpush1.bf16.msra.mxu0 %v13010
  %13081 = vmatprep.subr.bf16.mxu0 0
  %13082 = vmatpush1.bf16.msra.mxu0 %v13011
  %13083 = vmatprep.subr.bf16.mxu0 0
  %13084 = vmatpush1.bf16.msra.mxu0 %v13012
  %13085 = vmatprep.subr.bf16.mxu0 0
  %13086 = vmatpush1.bf16.msra.mxu0 %v13013
  %13087 = vmatprep.subr.bf16.mxu0 0
  %13088 = vmatpush1.bf16.msra.mxu0 %v13014
  %13089 = vmatprep.subr.bf16.mxu0 0
  %13090 = vmatpush1.bf16.msra.mxu0 %v13015
  %13091 = vmatprep.mubr.bf16.mxu0 %v11885
  %13092 = vmatmul.mubr.bf16.gmra.mrb[0].mxu0 %v11884
  %v13093 = vpop.f32.mrb[0].mxu0
  %v13094 = vadd.f32 0.0, %v13093
  %v13095 = vpop.f32.mrb[0].mxu0
  %v13096 = vpop.f32.mrb[0].mxu0
  %v13097 = vadd.f32 0.0, %v13096
  %v13098 = vpop.f32.mrb[0].mxu0
  %13099 = vdwg.mxu0
  %13100 = vmatprep.subr.bf16.mxu0 0
  %13101 = vmatpush1.bf16.msra.mxu0 %v13016
  %13102 = vmatprep.subr.bf16.mxu0 0
  %13103 = vmatpush1.bf16.msra.mxu0 %v13017
  %13104 = vmatprep.subr.bf16.mxu0 0
  %13105 = vmatpush1.bf16.msra.mxu0 %v13018
  %13106 = vmatprep.subr.bf16.mxu0 0
  %13107 = vmatpush1.bf16.msra.mxu0 %v13019
  %13108 = vmatprep.subr.bf16.mxu0 0
  %13109 = vmatpush1.bf16.msra.mxu0 %v13020
  %13110 = vmatprep.subr.bf16.mxu0 0
  %13111 = vmatpush1.bf16.msra.mxu0 %v13021
  %13112 = vmatprep.subr.bf16.mxu0 0
  %13113 = vmatpush1.bf16.msra.mxu0 %v13022
  %13114 = vmatprep.subr.bf16.mxu0 0
  %13115 = vmatpush1.bf16.msra.mxu0 %v13023
  %13116 = vmatprep.subr.bf16.mxu0 0
  %13117 = vmatpush1.bf16.msra.mxu0 %v13024
  %13118 = vmatprep.subr.bf16.mxu0 0
  %13119 = vmatpush1.bf16.msra.mxu0 %v13025
  %13120 = vmatprep.subr.bf16.mxu0 0
  %13121 = vmatpush1.bf16.msra.mxu0 %v13026
  %13122 = vmatprep.subr.bf16.mxu0 0
  %13123 = vmatpush1.bf16.msra.mxu0 %v13027
  %13124 = vmatprep.subr.bf16.mxu0 0
  %13125 = vmatpush1.bf16.msra.mxu0 0
  %13126 = vmatprep.subr.bf16.mxu0 0
  %13127 = vmatpush1.bf16.msra.mxu0 0
  %13128 = vmatprep.subr.bf16.mxu0 0
  %13129 = vmatpush1.bf16.msra.mxu0 0
  %13130 = vmatprep.subr.bf16.mxu0 0
  %13131 = vmatpush1.bf16.msra.mxu0 0
  %13132 = vmatprep.mubr.bf16.mxu0 %v13057
  %13133 = vmatmul.mubr.bf16.gmra.mrb[0].mxu0 %v11886
  %v13134 = vpop.f32.mrb[0].mxu0
  %v13135 = vadd.f32 %v13094, %v13134
  %v13136 = vpop.f32.mrb[0].mxu0
  %v13137 = vpop.f32.mrb[0].mxu0
  %v13138 = vadd.f32 %v13097, %v13137
  %v13139 = vpop.f32.mrb[0].mxu0
  %13140 = vdwg.mxu0
  %v13141 = vadd.f32 %v12829, %v13135
  %v13142 = vadd.f32 %v12830, %v13138
  %s13143 = scalar_lea.vmem %s5, 896
  %v13144 = vld [vmem:[%s13143] sm:$0xf]
  %v13145 = vld [vmem:[%s13143 + $0x4] sm:$0xf]
  %v13146 = vld [vmem:[%s13143 + $0x8] sm:$0xf]
  %v13147 = vld [vmem:[%s13143 + $0xc] sm:$0xf]
  %v13148 = vld [vmem:[%s13143 + $0x10] sm:$0xf]
  %v13149 = vld [vmem:[%s13143 + $0x14] sm:$0xf]
  %v13150 = vld [vmem:[%s13143 + $0x18] sm:$0xf]
  %v13151 = vld [vmem:[%s13143 + $0x1c] sm:$0xf]
  %v13152 = vld [vmem:[%s13143 + $0x20] sm:$0xf]
  %v13153 = vld [vmem:[%s13143 + $0x24] sm:$0xf]
  %v13154 = vld [vmem:[%s13143 + $0x28] sm:$0xf]
  %v13155 = vld [vmem:[%s13143 + $0x2c] sm:$0xf]
  %v13156 = vld [vmem:[%s13143 + $0x30] sm:$0xf]
  %v13157 = vld [vmem:[%s13143 + $0x34] sm:$0xf]
  %v13158 = vld [vmem:[%s13143 + $0x38] sm:$0xf]
  %v13159 = vld [vmem:[%s13143 + $0x3c] sm:$0xf]
  %v13160 = vld [vmem:[%s13143 + $0x40] sm:$0xf]
  %v13161 = vld [vmem:[%s13143 + $0x44] sm:$0xf]
  %v13162 = vld [vmem:[%s13143 + $0x48] sm:$0xf]
  %v13163 = vld [vmem:[%s13143 + $0x4c] sm:$0xf]
  %v13164 = vld [vmem:[%s13143 + $0x50] sm:$0xf]
  %v13165 = vld [vmem:[%s13143 + $0x54] sm:$0xf]
  %v13166 = vld [vmem:[%s13143 + $0x58] sm:$0xf]
  %v13167 = vld [vmem:[%s13143 + $0x5c] sm:$0xf]
  %v13168 = vld [vmem:[%s13143 + $0x60] sm:$0xf]
  %v13169 = vld [vmem:[%s13143 + $0x64] sm:$0xf]
  %v13170 = vld [vmem:[%s13143 + $0x68] sm:$0xf]
  %v13171 = vld [vmem:[%s13143 + $0x6c] sm:$0xf]
  %v13172 = vld [vmem:[%s13143 + $0x70] sm:$0xf]
  %v13173 = vld [vmem:[%s13143 + $0x74] sm:$0xf]
  %v13174 = vld [vmem:[%s13143 + $0x78] sm:$0xf]
  %v13175 = vld [vmem:[%s13143 + $0x7c] sm:$0xf]
  %v13176 = vld [vmem:[%s13143 + $0x80] sm:$0xf]
  %v13177 = vld [vmem:[%s13143 + $0x84] sm:$0xf]
  %v13178 = vld [vmem:[%s13143 + $0x88] sm:$0xf]
  %v13179 = vld [vmem:[%s13143 + $0x8c] sm:$0xf]
  %v13180 = vld [vmem:[%s13143 + $0x90] sm:$0xf]
  %v13181 = vld [vmem:[%s13143 + $0x94] sm:$0xf]
  %v13182 = vld [vmem:[%s13143 + $0x98] sm:$0xf]
  %v13183 = vld [vmem:[%s13143 + $0x9c] sm:$0xf]
  %v13184 = vld [vmem:[%s13143 + $0xa0] sm:$0xf]
  %v13185 = vld [vmem:[%s13143 + $0xa4] sm:$0xf]
  %v13186 = vld [vmem:[%s13143 + $0xa8] sm:$0xf]
  %v13187 = vld [vmem:[%s13143 + $0xac] sm:$0xf]
  %v13188 = vld [vmem:[%s13143 + $0xb0] sm:$0xf]
  %v13189 = vld [vmem:[%s13143 + $0xb4] sm:$0xf]
  %v13190 = vld [vmem:[%s13143 + $0xb8] sm:$0xf]
  %v13191 = vld [vmem:[%s13143 + $0xbc] sm:$0xf]
  %v13192 = vld [vmem:[%s13143 + $0xc0] sm:$0xf]
  %v13193 = vld [vmem:[%s13143 + $0xc4] sm:$0xf]
  %v13194 = vld [vmem:[%s13143 + $0xc8] sm:$0xf]
  %v13195 = vld [vmem:[%s13143 + $0xcc] sm:$0xf]
  %v13196 = vld [vmem:[%s13143 + $0xd0] sm:$0xf]
  %v13197 = vld [vmem:[%s13143 + $0xd4] sm:$0xf]
  %v13198 = vld [vmem:[%s13143 + $0xd8] sm:$0xf]
  %v13199 = vld [vmem:[%s13143 + $0xdc] sm:$0xf]
  %v13256 = vunpack.c.l.b16 %v13144
  %v13257 = vunpack.c.l.b16 %v13145
  %v13258 = vunpack.c.l.b16 %v13146
  %v13259 = vunpack.c.l.b16 %v13147
  %v13260 = vunpack.c.l.b16 %v13148
  %v13261 = vunpack.c.l.b16 %v13149
  %v13262 = vunpack.c.l.b16 %v13150
  %v13263 = vunpack.c.l.b16 %v13151
  %v13264 = vunpack.c.l.b16 %v13152
  %v13265 = vunpack.c.l.b16 %v13153
  %v13266 = vunpack.c.l.b16 %v13154
  %v13267 = vunpack.c.l.b16 %v13155
  %v13268 = vunpack.c.l.b16 %v13156
  %v13269 = vunpack.c.l.b16 %v13157
  %v13270 = vunpack.c.l.b16 %v13158
  %v13271 = vunpack.c.l.b16 %v13159
  %v13272 = vunpack.c.l.b16 %v13160
  %v13273 = vunpack.c.l.b16 %v13161
  %v13274 = vunpack.c.l.b16 %v13162
  %v13275 = vunpack.c.l.b16 %v13163
  %v13276 = vunpack.c.l.b16 %v13164
  %v13277 = vunpack.c.l.b16 %v13165
  %v13278 = vunpack.c.l.b16 %v13166
  %v13279 = vunpack.c.l.b16 %v13167
  %v13280 = vunpack.c.l.b16 %v13168
  %v13281 = vunpack.c.l.b16 %v13169
  %v13282 = vunpack.c.l.b16 %v13170
  %v13283 = vunpack.c.l.b16 %v13171
  %v13284 = vunpack.c.l.b16 %v13172
  %v13285 = vunpack.c.l.b16 %v13173
  %v13286 = vunpack.c.l.b16 %v13174
  %v13287 = vunpack.c.l.b16 %v13175
  %v13288 = vunpack.c.l.b16 %v13176
  %v13289 = vunpack.c.l.b16 %v13177
  %v13290 = vunpack.c.l.b16 %v13178
  %v13291 = vunpack.c.l.b16 %v13179
  %v13292 = vunpack.c.l.b16 %v13180
  %v13293 = vunpack.c.l.b16 %v13181
  %v13294 = vunpack.c.l.b16 %v13182
  %v13295 = vunpack.c.l.b16 %v13183
  %v13296 = vunpack.c.l.b16 %v13184
  %v13297 = vunpack.c.l.b16 %v13185
  %v13298 = vunpack.c.l.b16 %v13186
  %v13299 = vunpack.c.l.b16 %v13187
  %v13300 = vunpack.c.l.b16 %v13188
  %v13301 = vunpack.c.l.b16 %v13189
  %v13302 = vunpack.c.l.b16 %v13190
  %v13303 = vunpack.c.l.b16 %v13191
  %v13304 = vunpack.c.l.b16 %v13192
  %v13305 = vunpack.c.l.b16 %v13193
  %v13306 = vunpack.c.l.b16 %v13194
  %v13307 = vunpack.c.l.b16 %v13195
  %v13308 = vunpack.c.l.b16 %v13196
  %v13309 = vunpack.c.l.b16 %v13197
  %v13310 = vunpack.c.l.b16 %v13198
  %v13311 = vunpack.c.l.b16 %v13199
  %v13312 = vpack.c.b16 %v13257, %v13256
  %v13313 = vpack.c.b16 %v13259, %v13258
  %v13314 = vpack.c.b16 %v13261, %v13260
  %v13315 = vpack.c.b16 %v13263, %v13262
  %v13316 = vpack.c.b16 %v13265, %v13264
  %v13317 = vpack.c.b16 %v13267, %v13266
  %v13318 = vpack.c.b16 %v13269, %v13268
  %v13319 = vpack.c.b16 %v13271, %v13270
  %v13320 = vpack.c.b16 %v13273, %v13272
  %v13321 = vpack.c.b16 %v13275, %v13274
  %v13322 = vpack.c.b16 %v13277, %v13276
  %v13323 = vpack.c.b16 %v13279, %v13278
  %v13324 = vpack.c.b16 %v13281, %v13280
  %v13325 = vpack.c.b16 %v13283, %v13282
  %v13326 = vpack.c.b16 %v13285, %v13284
  %v13327 = vpack.c.b16 %v13287, %v13286
  %v13328 = vpack.c.b16 %v13289, %v13288
  %v13329 = vpack.c.b16 %v13291, %v13290
  %v13330 = vpack.c.b16 %v13293, %v13292
  %v13331 = vpack.c.b16 %v13295, %v13294
  %v13332 = vpack.c.b16 %v13297, %v13296
  %v13333 = vpack.c.b16 %v13299, %v13298
  %v13334 = vpack.c.b16 %v13301, %v13300
  %v13335 = vpack.c.b16 %v13303, %v13302
  %v13336 = vpack.c.b16 %v13305, %v13304
  %v13337 = vpack.c.b16 %v13307, %v13306
  %v13338 = vpack.c.b16 %v13309, %v13308
  %v13339 = vpack.c.b16 %v13311, %v13310
  %v13369 = vsel %vm2735, %v11891, 0
  %13371 = vmatprep.subr.bf16.mxu0 0
  %13372 = vmatpush1.bf16.msra.mxu0 %v13312
  %13373 = vmatprep.subr.bf16.mxu0 0
  %13374 = vmatpush1.bf16.msra.mxu0 %v13313
  %13375 = vmatprep.subr.bf16.mxu0 0
  %13376 = vmatpush1.bf16.msra.mxu0 %v13314
  %13377 = vmatprep.subr.bf16.mxu0 0
  %13378 = vmatpush1.bf16.msra.mxu0 %v13315
  %13379 = vmatprep.subr.bf16.mxu0 0
  %13380 = vmatpush1.bf16.msra.mxu0 %v13316
  %13381 = vmatprep.subr.bf16.mxu0 0
  %13382 = vmatpush1.bf16.msra.mxu0 %v13317
  %13383 = vmatprep.subr.bf16.mxu0 0
  %13384 = vmatpush1.bf16.msra.mxu0 %v13318
  %13385 = vmatprep.subr.bf16.mxu0 0
  %13386 = vmatpush1.bf16.msra.mxu0 %v13319
  %13387 = vmatprep.subr.bf16.mxu0 0
  %13388 = vmatpush1.bf16.msra.mxu0 %v13320
  %13389 = vmatprep.subr.bf16.mxu0 0
  %13390 = vmatpush1.bf16.msra.mxu0 %v13321
  %13391 = vmatprep.subr.bf16.mxu0 0
  %13392 = vmatpush1.bf16.msra.mxu0 %v13322
  %13393 = vmatprep.subr.bf16.mxu0 0
  %13394 = vmatpush1.bf16.msra.mxu0 %v13323
  %13395 = vmatprep.subr.bf16.mxu0 0
  %13396 = vmatpush1.bf16.msra.mxu0 %v13324
  %13397 = vmatprep.subr.bf16.mxu0 0
  %13398 = vmatpush1.bf16.msra.mxu0 %v13325
  %13399 = vmatprep.subr.bf16.mxu0 0
  %13400 = vmatpush1.bf16.msra.mxu0 %v13326
  %13401 = vmatprep.subr.bf16.mxu0 0
  %13402 = vmatpush1.bf16.msra.mxu0 %v13327
  %13403 = vmatprep.mubr.bf16.mxu0 %v11889
  %13404 = vmatmul.mubr.bf16.gmra.mrb[0].mxu0 %v11888
  %v13405 = vpop.f32.mrb[0].mxu0
  %v13406 = vadd.f32 0.0, %v13405
  %v13407 = vpop.f32.mrb[0].mxu0
  %v13408 = vpop.f32.mrb[0].mxu0
  %v13409 = vadd.f32 0.0, %v13408
  %v13410 = vpop.f32.mrb[0].mxu0
  %13411 = vdwg.mxu0
  %13412 = vmatprep.subr.bf16.mxu0 0
  %13413 = vmatpush1.bf16.msra.mxu0 %v13328
  %13414 = vmatprep.subr.bf16.mxu0 0
  %13415 = vmatpush1.bf16.msra.mxu0 %v13329
  %13416 = vmatprep.subr.bf16.mxu0 0
  %13417 = vmatpush1.bf16.msra.mxu0 %v13330
  %13418 = vmatprep.subr.bf16.mxu0 0
  %13419 = vmatpush1.bf16.msra.mxu0 %v13331
  %13420 = vmatprep.subr.bf16.mxu0 0
  %13421 = vmatpush1.bf16.msra.mxu0 %v13332
  %13422 = vmatprep.subr.bf16.mxu0 0
  %13423 = vmatpush1.bf16.msra.mxu0 %v13333
  %13424 = vmatprep.subr.bf16.mxu0 0
  %13425 = vmatpush1.bf16.msra.mxu0 %v13334
  %13426 = vmatprep.subr.bf16.mxu0 0
  %13427 = vmatpush1.bf16.msra.mxu0 %v13335
  %13428 = vmatprep.subr.bf16.mxu0 0
  %13429 = vmatpush1.bf16.msra.mxu0 %v13336
  %13430 = vmatprep.subr.bf16.mxu0 0
  %13431 = vmatpush1.bf16.msra.mxu0 %v13337
  %13432 = vmatprep.subr.bf16.mxu0 0
  %13433 = vmatpush1.bf16.msra.mxu0 %v13338
  %13434 = vmatprep.subr.bf16.mxu0 0
  %13435 = vmatpush1.bf16.msra.mxu0 %v13339
  %13436 = vmatprep.subr.bf16.mxu0 0
  %13437 = vmatpush1.bf16.msra.mxu0 0
  %13438 = vmatprep.subr.bf16.mxu0 0
  %13439 = vmatpush1.bf16.msra.mxu0 0
  %13440 = vmatprep.subr.bf16.mxu0 0
  %13441 = vmatpush1.bf16.msra.mxu0 0
  %13442 = vmatprep.subr.bf16.mxu0 0
  %13443 = vmatpush1.bf16.msra.mxu0 0
  %13444 = vmatprep.mubr.bf16.mxu0 %v13369
  %13445 = vmatmul.mubr.bf16.gmra.mrb[0].mxu0 %v11890
  %v13446 = vpop.f32.mrb[0].mxu0
  %v13447 = vadd.f32 %v13406, %v13446
  %v13448 = vpop.f32.mrb[0].mxu0
  %v13449 = vpop.f32.mrb[0].mxu0
  %v13450 = vadd.f32 %v13409, %v13449
  %v13451 = vpop.f32.mrb[0].mxu0
  %13452 = vdwg.mxu0
  %v13453 = vadd.f32 %v13141, %v13447
  %v13454 = vadd.f32 %v13142, %v13450
  %s13455 = scalar_lea.vmem %s5, 1120
  %v13456 = vld [vmem:[%s13455] sm:$0xf]
  %v13457 = vld [vmem:[%s13455 + $0x4] sm:$0xf]
  %v13458 = vld [vmem:[%s13455 + $0x8] sm:$0xf]
  %v13459 = vld [vmem:[%s13455 + $0xc] sm:$0xf]
  %v13460 = vld [vmem:[%s13455 + $0x10] sm:$0xf]
  %v13461 = vld [vmem:[%s13455 + $0x14] sm:$0xf]
  %v13462 = vld [vmem:[%s13455 + $0x18] sm:$0xf]
  %v13463 = vld [vmem:[%s13455 + $0x1c] sm:$0xf]
  %v13464 = vld [vmem:[%s13455 + $0x20] sm:$0xf]
  %v13465 = vld [vmem:[%s13455 + $0x24] sm:$0xf]
  %v13466 = vld [vmem:[%s13455 + $0x28] sm:$0xf]
  %v13467 = vld [vmem:[%s13455 + $0x2c] sm:$0xf]
  %v13468 = vld [vmem:[%s13455 + $0x30] sm:$0xf]
  %v13469 = vld [vmem:[%s13455 + $0x34] sm:$0xf]
  %v13470 = vld [vmem:[%s13455 + $0x38] sm:$0xf]
  %v13471 = vld [vmem:[%s13455 + $0x3c] sm:$0xf]
  %v13472 = vld [vmem:[%s13455 + $0x40] sm:$0xf]
  %v13473 = vld [vmem:[%s13455 + $0x44] sm:$0xf]
  %v13474 = vld [vmem:[%s13455 + $0x48] sm:$0xf]
  %v13475 = vld [vmem:[%s13455 + $0x4c] sm:$0xf]
  %v13476 = vld [vmem:[%s13455 + $0x50] sm:$0xf]
  %v13477 = vld [vmem:[%s13455 + $0x54] sm:$0xf]
  %v13478 = vld [vmem:[%s13455 + $0x58] sm:$0xf]
  %v13479 = vld [vmem:[%s13455 + $0x5c] sm:$0xf]
  %v13480 = vld [vmem:[%s13455 + $0x60] sm:$0xf]
  %v13481 = vld [vmem:[%s13455 + $0x64] sm:$0xf]
  %v13482 = vld [vmem:[%s13455 + $0x68] sm:$0xf]
  %v13483 = vld [vmem:[%s13455 + $0x6c] sm:$0xf]
  %v13484 = vld [vmem:[%s13455 + $0x70] sm:$0xf]
  %v13485 = vld [vmem:[%s13455 + $0x74] sm:$0xf]
  %v13486 = vld [vmem:[%s13455 + $0x78] sm:$0xf]
  %v13487 = vld [vmem:[%s13455 + $0x7c] sm:$0xf]
  %v13488 = vld [vmem:[%s13455 + $0x80] sm:$0xf]
  %v13489 = vld [vmem:[%s13455 + $0x84] sm:$0xf]
  %v13490 = vld [vmem:[%s13455 + $0x88] sm:$0xf]
  %v13491 = vld [vmem:[%s13455 + $0x8c] sm:$0xf]
  %v13492 = vld [vmem:[%s13455 + $0x90] sm:$0xf]
  %v13493 = vld [vmem:[%s13455 + $0x94] sm:$0xf]
  %v13494 = vld [vmem:[%s13455 + $0x98] sm:$0xf]
  %v13495 = vld [vmem:[%s13455 + $0x9c] sm:$0xf]
  %v13496 = vld [vmem:[%s13455 + $0xa0] sm:$0xf]
  %v13497 = vld [vmem:[%s13455 + $0xa4] sm:$0xf]
  %v13498 = vld [vmem:[%s13455 + $0xa8] sm:$0xf]
  %v13499 = vld [vmem:[%s13455 + $0xac] sm:$0xf]
  %v13500 = vld [vmem:[%s13455 + $0xb0] sm:$0xf]
  %v13501 = vld [vmem:[%s13455 + $0xb4] sm:$0xf]
  %v13502 = vld [vmem:[%s13455 + $0xb8] sm:$0xf]
  %v13503 = vld [vmem:[%s13455 + $0xbc] sm:$0xf]
  %v13504 = vld [vmem:[%s13455 + $0xc0] sm:$0xf]
  %v13505 = vld [vmem:[%s13455 + $0xc4] sm:$0xf]
  %v13506 = vld [vmem:[%s13455 + $0xc8] sm:$0xf]
  %v13507 = vld [vmem:[%s13455 + $0xcc] sm:$0xf]
  %v13508 = vld [vmem:[%s13455 + $0xd0] sm:$0xf]
  %v13509 = vld [vmem:[%s13455 + $0xd4] sm:$0xf]
  %v13510 = vld [vmem:[%s13455 + $0xd8] sm:$0xf]
  %v13511 = vld [vmem:[%s13455 + $0xdc] sm:$0xf]
  %v13568 = vunpack.c.l.b16 %v13456
  %v13569 = vunpack.c.l.b16 %v13457
  %v13570 = vunpack.c.l.b16 %v13458
  %v13571 = vunpack.c.l.b16 %v13459
  %v13572 = vunpack.c.l.b16 %v13460
  %v13573 = vunpack.c.l.b16 %v13461
  %v13574 = vunpack.c.l.b16 %v13462
  %v13575 = vunpack.c.l.b16 %v13463
  %v13576 = vunpack.c.l.b16 %v13464
  %v13577 = vunpack.c.l.b16 %v13465
  %v13578 = vunpack.c.l.b16 %v13466
  %v13579 = vunpack.c.l.b16 %v13467
  %v13580 = vunpack.c.l.b16 %v13468
  %v13581 = vunpack.c.l.b16 %v13469
  %v13582 = vunpack.c.l.b16 %v13470
  %v13583 = vunpack.c.l.b16 %v13471
  %v13584 = vunpack.c.l.b16 %v13472
  %v13585 = vunpack.c.l.b16 %v13473
  %v13586 = vunpack.c.l.b16 %v13474
  %v13587 = vunpack.c.l.b16 %v13475
  %v13588 = vunpack.c.l.b16 %v13476
  %v13589 = vunpack.c.l.b16 %v13477
  %v13590 = vunpack.c.l.b16 %v13478
  %v13591 = vunpack.c.l.b16 %v13479
  %v13592 = vunpack.c.l.b16 %v13480
  %v13593 = vunpack.c.l.b16 %v13481
  %v13594 = vunpack.c.l.b16 %v13482
  %v13595 = vunpack.c.l.b16 %v13483
  %v13596 = vunpack.c.l.b16 %v13484
  %v13597 = vunpack.c.l.b16 %v13485
  %v13598 = vunpack.c.l.b16 %v13486
  %v13599 = vunpack.c.l.b16 %v13487
  %v13600 = vunpack.c.l.b16 %v13488
  %v13601 = vunpack.c.l.b16 %v13489
  %v13602 = vunpack.c.l.b16 %v13490
  %v13603 = vunpack.c.l.b16 %v13491
  %v13604 = vunpack.c.l.b16 %v13492
  %v13605 = vunpack.c.l.b16 %v13493
  %v13606 = vunpack.c.l.b16 %v13494
  %v13607 = vunpack.c.l.b16 %v13495
  %v13608 = vunpack.c.l.b16 %v13496
  %v13609 = vunpack.c.l.b16 %v13497
  %v13610 = vunpack.c.l.b16 %v13498
  %v13611 = vunpack.c.l.b16 %v13499
  %v13612 = vunpack.c.l.b16 %v13500
  %v13613 = vunpack.c.l.b16 %v13501
  %v13614 = vunpack.c.l.b16 %v13502
  %v13615 = vunpack.c.l.b16 %v13503
  %v13616 = vunpack.c.l.b16 %v13504
  %v13617 = vunpack.c.l.b16 %v13505
  %v13618 = vunpack.c.l.b16 %v13506
  %v13619 = vunpack.c.l.b16 %v13507
  %v13620 = vunpack.c.l.b16 %v13508
  %v13621 = vunpack.c.l.b16 %v13509
  %v13622 = vunpack.c.l.b16 %v13510
  %v13623 = vunpack.c.l.b16 %v13511
  %v13624 = vpack.c.b16 %v13569, %v13568
  %v13625 = vpack.c.b16 %v13571, %v13570
  %v13626 = vpack.c.b16 %v13573, %v13572
  %v13627 = vpack.c.b16 %v13575, %v13574
  %v13628 = vpack.c.b16 %v13577, %v13576
  %v13629 = vpack.c.b16 %v13579, %v13578
  %v13630 = vpack.c.b16 %v13581, %v13580
  %v13631 = vpack.c.b16 %v13583, %v13582
  %v13632 = vpack.c.b16 %v13585, %v13584
  %v13633 = vpack.c.b16 %v13587, %v13586
  %v13634 = vpack.c.b16 %v13589, %v13588
  %v13635 = vpack.c.b16 %v13591, %v13590
  %v13636 = vpack.c.b16 %v13593, %v13592
  %v13637 = vpack.c.b16 %v13595, %v13594
  %v13638 = vpack.c.b16 %v13597, %v13596
  %v13639 = vpack.c.b16 %v13599, %v13598
  %v13640 = vpack.c.b16 %v13601, %v13600
  %v13641 = vpack.c.b16 %v13603, %v13602
  %v13642 = vpack.c.b16 %v13605, %v13604
  %v13643 = vpack.c.b16 %v13607, %v13606
  %v13644 = vpack.c.b16 %v13609, %v13608
  %v13645 = vpack.c.b16 %v13611, %v13610
  %v13646 = vpack.c.b16 %v13613, %v13612
  %v13647 = vpack.c.b16 %v13615, %v13614
  %v13648 = vpack.c.b16 %v13617, %v13616
  %v13649 = vpack.c.b16 %v13619, %v13618
  %v13650 = vpack.c.b16 %v13621, %v13620
  %v13651 = vpack.c.b16 %v13623, %v13622
  %v13681 = vsel %vm2735, %v11895, 0
  %13683 = vmatprep.subr.bf16.mxu0 0
  %13684 = vmatpush1.bf16.msra.mxu0 %v13624
  %13685 = vmatprep.subr.bf16.mxu0 0
  %13686 = vmatpush1.bf16.msra.mxu0 %v13625
  %13687 = vmatprep.subr.bf16.mxu0 0
  %13688 = vmatpush1.bf16.msra.mxu0 %v13626
  %13689 = vmatprep.subr.bf16.mxu0 0
  %13690 = vmatpush1.bf16.msra.mxu0 %v13627
  %13691 = vmatprep.subr.bf16.mxu0 0
  %13692 = vmatpush1.bf16.msra.mxu0 %v13628
  %13693 = vmatprep.subr.bf16.mxu0 0
  %13694 = vmatpush1.bf16.msra.mxu0 %v13629
  %13695 = vmatprep.subr.bf16.mxu0 0
  %13696 = vmatpush1.bf16.msra.mxu0 %v13630
  %13697 = vmatprep.subr.bf16.mxu0 0
  %13698 = vmatpush1.bf16.msra.mxu0 %v13631
  %13699 = vmatprep.subr.bf16.mxu0 0
  %13700 = vmatpush1.bf16.msra.mxu0 %v13632
  %13701 = vmatprep.subr.bf16.mxu0 0
  %13702 = vmatpush1.bf16.msra.mxu0 %v13633
  %13703 = vmatprep.subr.bf16.mxu0 0
  %13704 = vmatpush1.bf16.msra.mxu0 %v13634
  %13705 = vmatprep.subr.bf16.mxu0 0
  %13706 = vmatpush1.bf16.msra.mxu0 %v13635
  %13707 = vmatprep.subr.bf16.mxu0 0
  %13708 = vmatpush1.bf16.msra.mxu0 %v13636
  %13709 = vmatprep.subr.bf16.mxu0 0
  %13710 = vmatpush1.bf16.msra.mxu0 %v13637
  %13711 = vmatprep.subr.bf16.mxu0 0
  %13712 = vmatpush1.bf16.msra.mxu0 %v13638
  %13713 = vmatprep.subr.bf16.mxu0 0
  %13714 = vmatpush1.bf16.msra.mxu0 %v13639
  %13715 = vmatprep.mubr.bf16.mxu0 %v11893
  %13716 = vmatmul.mubr.bf16.gmra.mrb[0].mxu0 %v11892
  %v13717 = vpop.f32.mrb[0].mxu0
  %v13718 = vadd.f32 0.0, %v13717
  %v13719 = vpop.f32.mrb[0].mxu0
  %v13720 = vpop.f32.mrb[0].mxu0
  %v13721 = vadd.f32 0.0, %v13720
  %v13722 = vpop.f32.mrb[0].mxu0
  %13723 = vdwg.mxu0
  %13724 = vmatprep.subr.bf16.mxu0 0
  %13725 = vmatpush1.bf16.msra.mxu0 %v13640
  %13726 = vmatprep.subr.bf16.mxu0 0
  %13727 = vmatpush1.bf16.msra.mxu0 %v13641
  %13728 = vmatprep.subr.bf16.mxu0 0
  %13729 = vmatpush1.bf16.msra.mxu0 %v13642
  %13730 = vmatprep.subr.bf16.mxu0 0
  %13731 = vmatpush1.bf16.msra.mxu0 %v13643
  %13732 = vmatprep.subr.bf16.mxu0 0
  %13733 = vmatpush1.bf16.msra.mxu0 %v13644
  %13734 = vmatprep.subr.bf16.mxu0 0
  %13735 = vmatpush1.bf16.msra.mxu0 %v13645
  %13736 = vmatprep.subr.bf16.mxu0 0
  %13737 = vmatpush1.bf16.msra.mxu0 %v13646
  %13738 = vmatprep.subr.bf16.mxu0 0
  %13739 = vmatpush1.bf16.msra.mxu0 %v13647
  %13740 = vmatprep.subr.bf16.mxu0 0
  %13741 = vmatpush1.bf16.msra.mxu0 %v13648
  %13742 = vmatprep.subr.bf16.mxu0 0
  %13743 = vmatpush1.bf16.msra.mxu0 %v13649
  %13744 = vmatprep.subr.bf16.mxu0 0
  %13745 = vmatpush1.bf16.msra.mxu0 %v13650
  %13746 = vmatprep.subr.bf16.mxu0 0
  %13747 = vmatpush1.bf16.msra.mxu0 %v13651
  %13748 = vmatprep.subr.bf16.mxu0 0
  %13749 = vmatpush1.bf16.msra.mxu0 0
  %13750 = vmatprep.subr.bf16.mxu0 0
  %13751 = vmatpush1.bf16.msra.mxu0 0
  %13752 = vmatprep.subr.bf16.mxu0 0
  %13753 = vmatpush1.bf16.msra.mxu0 0
  %13754 = vmatprep.subr.bf16.mxu0 0
  %13755 = vmatpush1.bf16.msra.mxu0 0
  %13756 = vmatprep.mubr.bf16.mxu0 %v13681
  %13757 = vmatmul.mubr.bf16.gmra.mrb[0].mxu0 %v11894
  %v13758 = vpop.f32.mrb[0].mxu0
  %v13759 = vadd.f32 %v13718, %v13758
  %v13760 = vpop.f32.mrb[0].mxu0
  %v13761 = vpop.f32.mrb[0].mxu0
  %v13762 = vadd.f32 %v13721, %v13761
  %v13763 = vpop.f32.mrb[0].mxu0
  %13764 = vdwg.mxu0
  %v13765 = vadd.f32 %v13453, %v13759
  %v13766 = vadd.f32 %v13454, %v13762
  %s13767 = scalar_lea.vmem %s5, 1344
  %v13768 = vld [vmem:[%s13767] sm:$0xf]
  %v13769 = vld [vmem:[%s13767 + $0x4] sm:$0xf]
  %v13770 = vld [vmem:[%s13767 + $0x8] sm:$0xf]
  %v13771 = vld [vmem:[%s13767 + $0xc] sm:$0xf]
  %v13772 = vld [vmem:[%s13767 + $0x10] sm:$0xf]
  %v13773 = vld [vmem:[%s13767 + $0x14] sm:$0xf]
  %v13774 = vld [vmem:[%s13767 + $0x18] sm:$0xf]
  %v13775 = vld [vmem:[%s13767 + $0x1c] sm:$0xf]
  %v13776 = vld [vmem:[%s13767 + $0x20] sm:$0xf]
  %v13777 = vld [vmem:[%s13767 + $0x24] sm:$0xf]
  %v13778 = vld [vmem:[%s13767 + $0x28] sm:$0xf]
  %v13779 = vld [vmem:[%s13767 + $0x2c] sm:$0xf]
  %v13780 = vld [vmem:[%s13767 + $0x30] sm:$0xf]
  %v13781 = vld [vmem:[%s13767 + $0x34] sm:$0xf]
  %v13782 = vld [vmem:[%s13767 + $0x38] sm:$0xf]
  %v13783 = vld [vmem:[%s13767 + $0x3c] sm:$0xf]
  %v13784 = vld [vmem:[%s13767 + $0x40] sm:$0xf]
  %v13785 = vld [vmem:[%s13767 + $0x44] sm:$0xf]
  %v13786 = vld [vmem:[%s13767 + $0x48] sm:$0xf]
  %v13787 = vld [vmem:[%s13767 + $0x4c] sm:$0xf]
  %v13788 = vld [vmem:[%s13767 + $0x50] sm:$0xf]
  %v13789 = vld [vmem:[%s13767 + $0x54] sm:$0xf]
  %v13790 = vld [vmem:[%s13767 + $0x58] sm:$0xf]
  %v13791 = vld [vmem:[%s13767 + $0x5c] sm:$0xf]
  %v13792 = vld [vmem:[%s13767 + $0x60] sm:$0xf]
  %v13793 = vld [vmem:[%s13767 + $0x64] sm:$0xf]
  %v13794 = vld [vmem:[%s13767 + $0x68] sm:$0xf]
  %v13795 = vld [vmem:[%s13767 + $0x6c] sm:$0xf]
  %v13796 = vld [vmem:[%s13767 + $0x70] sm:$0xf]
  %v13797 = vld [vmem:[%s13767 + $0x74] sm:$0xf]
  %v13798 = vld [vmem:[%s13767 + $0x78] sm:$0xf]
  %v13799 = vld [vmem:[%s13767 + $0x7c] sm:$0xf]
  %v13800 = vld [vmem:[%s13767 + $0x80] sm:$0xf]
  %v13801 = vld [vmem:[%s13767 + $0x84] sm:$0xf]
  %v13802 = vld [vmem:[%s13767 + $0x88] sm:$0xf]
  %v13803 = vld [vmem:[%s13767 + $0x8c] sm:$0xf]
  %v13804 = vld [vmem:[%s13767 + $0x90] sm:$0xf]
  %v13805 = vld [vmem:[%s13767 + $0x94] sm:$0xf]
  %v13806 = vld [vmem:[%s13767 + $0x98] sm:$0xf]
  %v13807 = vld [vmem:[%s13767 + $0x9c] sm:$0xf]
  %v13808 = vld [vmem:[%s13767 + $0xa0] sm:$0xf]
  %v13809 = vld [vmem:[%s13767 + $0xa4] sm:$0xf]
  %v13810 = vld [vmem:[%s13767 + $0xa8] sm:$0xf]
  %v13811 = vld [vmem:[%s13767 + $0xac] sm:$0xf]
  %v13812 = vld [vmem:[%s13767 + $0xb0] sm:$0xf]
  %v13813 = vld [vmem:[%s13767 + $0xb4] sm:$0xf]
  %v13814 = vld [vmem:[%s13767 + $0xb8] sm:$0xf]
  %v13815 = vld [vmem:[%s13767 + $0xbc] sm:$0xf]
  %v13816 = vld [vmem:[%s13767 + $0xc0] sm:$0xf]
  %v13817 = vld [vmem:[%s13767 + $0xc4] sm:$0xf]
  %v13818 = vld [vmem:[%s13767 + $0xc8] sm:$0xf]
  %v13819 = vld [vmem:[%s13767 + $0xcc] sm:$0xf]
  %v13820 = vld [vmem:[%s13767 + $0xd0] sm:$0xf]
  %v13821 = vld [vmem:[%s13767 + $0xd4] sm:$0xf]
  %v13822 = vld [vmem:[%s13767 + $0xd8] sm:$0xf]
  %v13823 = vld [vmem:[%s13767 + $0xdc] sm:$0xf]
  %v13880 = vunpack.c.l.b16 %v13768
  %v13881 = vunpack.c.l.b16 %v13769
  %v13882 = vunpack.c.l.b16 %v13770
  %v13883 = vunpack.c.l.b16 %v13771
  %v13884 = vunpack.c.l.b16 %v13772
  %v13885 = vunpack.c.l.b16 %v13773
  %v13886 = vunpack.c.l.b16 %v13774
  %v13887 = vunpack.c.l.b16 %v13775
  %v13888 = vunpack.c.l.b16 %v13776
  %v13889 = vunpack.c.l.b16 %v13777
  %v13890 = vunpack.c.l.b16 %v13778
  %v13891 = vunpack.c.l.b16 %v13779
  %v13892 = vunpack.c.l.b16 %v13780
  %v13893 = vunpack.c.l.b16 %v13781
  %v13894 = vunpack.c.l.b16 %v13782
  %v13895 = vunpack.c.l.b16 %v13783
  %v13896 = vunpack.c.l.b16 %v13784
  %v13897 = vunpack.c.l.b16 %v13785
  %v13898 = vunpack.c.l.b16 %v13786
  %v13899 = vunpack.c.l.b16 %v13787
  %v13900 = vunpack.c.l.b16 %v13788
  %v13901 = vunpack.c.l.b16 %v13789
  %v13902 = vunpack.c.l.b16 %v13790
  %v13903 = vunpack.c.l.b16 %v13791
  %v13904 = vunpack.c.l.b16 %v13792
  %v13905 = vunpack.c.l.b16 %v13793
  %v13906 = vunpack.c.l.b16 %v13794
  %v13907 = vunpack.c.l.b16 %v13795
  %v13908 = vunpack.c.l.b16 %v13796
  %v13909 = vunpack.c.l.b16 %v13797
  %v13910 = vunpack.c.l.b16 %v13798
  %v13911 = vunpack.c.l.b16 %v13799
  %v13912 = vunpack.c.l.b16 %v13800
  %v13913 = vunpack.c.l.b16 %v13801
  %v13914 = vunpack.c.l.b16 %v13802
  %v13915 = vunpack.c.l.b16 %v13803
  %v13916 = vunpack.c.l.b16 %v13804
  %v13917 = vunpack.c.l.b16 %v13805
  %v13918 = vunpack.c.l.b16 %v13806
  %v13919 = vunpack.c.l.b16 %v13807
  %v13920 = vunpack.c.l.b16 %v13808
  %v13921 = vunpack.c.l.b16 %v13809
  %v13922 = vunpack.c.l.b16 %v13810
  %v13923 = vunpack.c.l.b16 %v13811
  %v13924 = vunpack.c.l.b16 %v13812
  %v13925 = vunpack.c.l.b16 %v13813
  %v13926 = vunpack.c.l.b16 %v13814
  %v13927 = vunpack.c.l.b16 %v13815
  %v13928 = vunpack.c.l.b16 %v13816
  %v13929 = vunpack.c.l.b16 %v13817
  %v13930 = vunpack.c.l.b16 %v13818
  %v13931 = vunpack.c.l.b16 %v13819
  %v13932 = vunpack.c.l.b16 %v13820
  %v13933 = vunpack.c.l.b16 %v13821
  %v13934 = vunpack.c.l.b16 %v13822
  %v13935 = vunpack.c.l.b16 %v13823
  %v13936 = vpack.c.b16 %v13881, %v13880
  %v13937 = vpack.c.b16 %v13883, %v13882
  %v13938 = vpack.c.b16 %v13885, %v13884
  %v13939 = vpack.c.b16 %v13887, %v13886
  %v13940 = vpack.c.b16 %v13889, %v13888
  %v13941 = vpack.c.b16 %v13891, %v13890
  %v13942 = vpack.c.b16 %v13893, %v13892
  %v13943 = vpack.c.b16 %v13895, %v13894
  %v13944 = vpack.c.b16 %v13897, %v13896
  %v13945 = vpack.c.b16 %v13899, %v13898
  %v13946 = vpack.c.b16 %v13901, %v13900
  %v13947 = vpack.c.b16 %v13903, %v13902
  %v13948 = vpack.c.b16 %v13905, %v13904
  %v13949 = vpack.c.b16 %v13907, %v13906
  %v13950 = vpack.c.b16 %v13909, %v13908
  %v13951 = vpack.c.b16 %v13911, %v13910
  %v13952 = vpack.c.b16 %v13913, %v13912
  %v13953 = vpack.c.b16 %v13915, %v13914
  %v13954 = vpack.c.b16 %v13917, %v13916
  %v13955 = vpack.c.b16 %v13919, %v13918
  %v13956 = vpack.c.b16 %v13921, %v13920
  %v13957 = vpack.c.b16 %v13923, %v13922
  %v13958 = vpack.c.b16 %v13925, %v13924
  %v13959 = vpack.c.b16 %v13927, %v13926
  %v13960 = vpack.c.b16 %v13929, %v13928
  %v13961 = vpack.c.b16 %v13931, %v13930
  %v13962 = vpack.c.b16 %v13933, %v13932
  %v13963 = vpack.c.b16 %v13935, %v13934
  %v13993 = vsel %vm2735, %v11899, 0
  %13995 = vmatprep.subr.bf16.mxu0 0
  %13996 = vmatpush1.bf16.msra.mxu0 %v13936
  %13997 = vmatprep.subr.bf16.mxu0 0
  %13998 = vmatpush1.bf16.msra.mxu0 %v13937
  %13999 = vmatprep.subr.bf16.mxu0 0
  %14000 = vmatpush1.bf16.msra.mxu0 %v13938
  %14001 = vmatprep.subr.bf16.mxu0 0
  %14002 = vmatpush1.bf16.msra.mxu0 %v13939
  %14003 = vmatprep.subr.bf16.mxu0 0
  %14004 = vmatpush1.bf16.msra.mxu0 %v13940
  %14005 = vmatprep.subr.bf16.mxu0 0
  %14006 = vmatpush1.bf16.msra.mxu0 %v13941
  %14007 = vmatprep.subr.bf16.mxu0 0
  %14008 = vmatpush1.bf16.msra.mxu0 %v13942
  %14009 = vmatprep.subr.bf16.mxu0 0
  %14010 = vmatpush1.bf16.msra.mxu0 %v13943
  %14011 = vmatprep.subr.bf16.mxu0 0
  %14012 = vmatpush1.bf16.msra.mxu0 %v13944
  %14013 = vmatprep.subr.bf16.mxu0 0
  %14014 = vmatpush1.bf16.msra.mxu0 %v13945
  %14015 = vmatprep.subr.bf16.mxu0 0
  %14016 = vmatpush1.bf16.msra.mxu0 %v13946
  %14017 = vmatprep.subr.bf16.mxu0 0
  %14018 = vmatpush1.bf16.msra.mxu0 %v13947
  %14019 = vmatprep.subr.bf16.mxu0 0
  %14020 = vmatpush1.bf16.msra.mxu0 %v13948
  %14021 = vmatprep.subr.bf16.mxu0 0
  %14022 = vmatpush1.bf16.msra.mxu0 %v13949
  %14023 = vmatprep.subr.bf16.mxu0 0
  %14024 = vmatpush1.bf16.msra.mxu0 %v13950
  %14025 = vmatprep.subr.bf16.mxu0 0
  %14026 = vmatpush1.bf16.msra.mxu0 %v13951
  %14027 = vmatprep.mubr.bf16.mxu0 %v11897
  %14028 = vmatmul.mubr.bf16.gmra.mrb[0].mxu0 %v11896
  %v14029 = vpop.f32.mrb[0].mxu0
  %v14030 = vadd.f32 0.0, %v14029
  %v14031 = vpop.f32.mrb[0].mxu0
  %v14032 = vpop.f32.mrb[0].mxu0
  %v14033 = vadd.f32 0.0, %v14032
  %v14034 = vpop.f32.mrb[0].mxu0
  %14035 = vdwg.mxu0
  %14036 = vmatprep.subr.bf16.mxu0 0
  %14037 = vmatpush1.bf16.msra.mxu0 %v13952
  %14038 = vmatprep.subr.bf16.mxu0 0
  %14039 = vmatpush1.bf16.msra.mxu0 %v13953
  %14040 = vmatprep.subr.bf16.mxu0 0
  %14041 = vmatpush1.bf16.msra.mxu0 %v13954
  %14042 = vmatprep.subr.bf16.mxu0 0
  %14043 = vmatpush1.bf16.msra.mxu0 %v13955
  %14044 = vmatprep.subr.bf16.mxu0 0
  %14045 = vmatpush1.bf16.msra.mxu0 %v13956
  %14046 = vmatprep.subr.bf16.mxu0 0
  %14047 = vmatpush1.bf16.msra.mxu0 %v13957
  %14048 = vmatprep.subr.bf16.mxu0 0
  %14049 = vmatpush1.bf16.msra.mxu0 %v13958
  %14050 = vmatprep.subr.bf16.mxu0 0
  %14051 = vmatpush1.bf16.msra.mxu0 %v13959
  %14052 = vmatprep.subr.bf16.mxu0 0
  %14053 = vmatpush1.bf16.msra.mxu0 %v13960
  %14054 = vmatprep.subr.bf16.mxu0 0
  %14055 = vmatpush1.bf16.msra.mxu0 %v13961
  %14056 = vmatprep.subr.bf16.mxu0 0
  %14057 = vmatpush1.bf16.msra.mxu0 %v13962
  %14058 = vmatprep.subr.bf16.mxu0 0
  %14059 = vmatpush1.bf16.msra.mxu0 %v13963
  %14060 = vmatprep.subr.bf16.mxu0 0
  %14061 = vmatpush1.bf16.msra.mxu0 0
  %14062 = vmatprep.subr.bf16.mxu0 0
  %14063 = vmatpush1.bf16.msra.mxu0 0
  %14064 = vmatprep.subr.bf16.mxu0 0
  %14065 = vmatpush1.bf16.msra.mxu0 0
  %14066 = vmatprep.subr.bf16.mxu0 0
  %14067 = vmatpush1.bf16.msra.mxu0 0
  %14068 = vmatprep.mubr.bf16.mxu0 %v13993
  %14069 = vmatmul.mubr.bf16.gmra.mrb[0].mxu0 %v11898
  %v14070 = vpop.f32.mrb[0].mxu0
  %v14071 = vadd.f32 %v14030, %v14070
  %v14072 = vpop.f32.mrb[0].mxu0
  %v14073 = vpop.f32.mrb[0].mxu0
  %v14074 = vadd.f32 %v14033, %v14073
  %v14075 = vpop.f32.mrb[0].mxu0
  %14076 = vdwg.mxu0
  %v14077 = vadd.f32 %v13765, %v14071
  %v14078 = vadd.f32 %v13766, %v14074
  %v14079 = vld [vmem:[%s6] sm:$0x1]
  %v14081 = vlaneseq
  %v14082 = vshrl.u32 %v14081, 7
  %v14083 = vsub.s32 0, %v14082
  %v14084 = vrot.slane %v14079, %v14083
  %v14086 = vadd.f32 %v14077, %v14084
  %v14087 = vadd.f32 %v14078, %v14084
  %v14088 = vmax.f32 %v14086, 0.0
  %v14089 = vmax.f32 %v14087, 0.0
  %v14090 = vpack.c.bf16 %v14089, %v14088
  %v14091 = vld [vmem:[%s7] sm:$0xf]
  %v14092 = vld [vmem:[%s7 + $0x4] sm:$0xf]
  %v14093 = vld [vmem:[%s7 + $0x8] sm:$0xf]
  %v14094 = vld [vmem:[%s7 + $0xc] sm:$0xf]
  %v14095 = vld [vmem:[%s7 + $0x10] sm:$0xf]
  %v14096 = vld [vmem:[%s7 + $0x14] sm:$0xf]
  %v14097 = vld [vmem:[%s7 + $0x18] sm:$0xf]
  %v14098 = vld [vmem:[%s7 + $0x1c] sm:$0xf]
  %v14099 = vld [vmem:[%s7 + $0x20] sm:$0xf]
  %v14100 = vld [vmem:[%s7 + $0x24] sm:$0xf]
  %v14101 = vld [vmem:[%s7 + $0x28] sm:$0xf]
  %v14102 = vld [vmem:[%s7 + $0x2c] sm:$0xf]
  %v14103 = vld [vmem:[%s7 + $0x30] sm:$0xf]
  %v14104 = vld [vmem:[%s7 + $0x34] sm:$0xf]
  %v14105 = vld [vmem:[%s7 + $0x38] sm:$0xf]
  %v14106 = vld [vmem:[%s7 + $0x3c] sm:$0xf]
  %v14107 = vld [vmem:[%s8] sm:$0x1]
  %v14109 = vlaneseq
  %v14110 = vshrl.u32 %v14109, 7
  %v14111 = vsub.s32 0, %v14110
  %v14112 = vrot.slane %v14107, %v14111
  %v14130 = vunpack.c.l.b16 %v14091
  %v14131 = vunpack.c.l.b16 %v14092
  %v14132 = vunpack.c.l.b16 %v14093
  %v14133 = vunpack.c.l.b16 %v14094
  %v14134 = vunpack.c.l.b16 %v14095
  %v14135 = vunpack.c.l.b16 %v14096
  %v14136 = vunpack.c.l.b16 %v14097
  %v14137 = vunpack.c.l.b16 %v14098
  %v14138 = vunpack.c.l.b16 %v14099
  %v14139 = vunpack.c.l.b16 %v14100
  %v14140 = vunpack.c.l.b16 %v14101
  %v14141 = vunpack.c.l.b16 %v14102
  %v14142 = vunpack.c.l.b16 %v14103
  %v14143 = vunpack.c.l.b16 %v14104
  %v14144 = vunpack.c.l.b16 %v14105
  %v14145 = vunpack.c.l.b16 %v14106
  %v14146 = vpack.c.b16 %v14131, %v14130
  %v14147 = vpack.c.b16 %v14133, %v14132
  %v14148 = vpack.c.b16 %v14135, %v14134
  %v14149 = vpack.c.b16 %v14137, %v14136
  %v14150 = vpack.c.b16 %v14139, %v14138
  %v14151 = vpack.c.b16 %v14141, %v14140
  %v14152 = vpack.c.b16 %v14143, %v14142
  %v14153 = vpack.c.b16 %v14145, %v14144
  %14162 = vmatprep.subr.bf16.mxu0 0
  %14163 = vmatpush1.bf16.msra.mxu0 %v14146
  %14164 = vmatprep.subr.bf16.mxu0 0
  %14165 = vmatpush1.bf16.msra.mxu0 %v14147
  %14166 = vmatprep.subr.bf16.mxu0 0
  %14167 = vmatpush1.bf16.msra.mxu0 %v14148
  %14168 = vmatprep.subr.bf16.mxu0 0
  %14169 = vmatpush1.bf16.msra.mxu0 %v14149
  %14170 = vmatprep.subr.bf16.mxu0 0
  %14171 = vmatpush1.bf16.msra.mxu0 %v14150
  %14172 = vmatprep.subr.bf16.mxu0 0
  %14173 = vmatpush1.bf16.msra.mxu0 %v14151
  %14174 = vmatprep.subr.bf16.mxu0 0
  %14175 = vmatpush1.bf16.msra.mxu0 %v14152
  %14176 = vmatprep.subr.bf16.mxu0 0
  %14177 = vmatpush1.bf16.msra.mxu0 %v14153
  %14178 = vmatprep.subr.bf16.mxu0 0
  %14179 = vmatpush1.bf16.msra.mxu0 0
  %14180 = vmatprep.subr.bf16.mxu0 0
  %14181 = vmatpush1.bf16.msra.mxu0 0
  %14182 = vmatprep.subr.bf16.mxu0 0
  %14183 = vmatpush1.bf16.msra.mxu0 0
  %14184 = vmatprep.subr.bf16.mxu0 0
  %14185 = vmatpush1.bf16.msra.mxu0 0
  %14186 = vmatprep.subr.bf16.mxu0 0
  %14187 = vmatpush1.bf16.msra.mxu0 0
  %14188 = vmatprep.subr.bf16.mxu0 0
  %14189 = vmatpush1.bf16.msra.mxu0 0
  %14190 = vmatprep.subr.bf16.mxu0 0
  %14191 = vmatpush1.bf16.msra.mxu0 0
  %14192 = vmatprep.subr.bf16.mxu0 0
  %14193 = vmatpush1.bf16.msra.mxu0 0
  %14194 = vmatprep.mubr.bf16.mxu0 0
  %14195 = vmatmul.mubr.bf16.gmra.mrb[0].mxu0 %v14090
  %v14196 = vpop.f32.mrb[0].mxu0
  %v14197 = vadd.f32 %v14112, %v14196
  %v14198 = vpop.f32.mrb[0].mxu0
  %v14199 = vpop.f32.mrb[0].mxu0
  %v14200 = vadd.f32 %v14112, %v14199
  %v14201 = vpop.f32.mrb[0].mxu0
  %14202 = vdwg.mxu0
  %14203 = vst [vmem:[%s9] sm:$0xff] %v14197
  %14204 = vst [vmem:[%s9 + $0x8] sm:$0xff] %v14200
  // Predicated region
  $region38: #{handwriting_cnn_forward.1} parent=0 // pred_check
    _
  $region39: #{handwriting_cnn_forward.1} parent=0 // pred_check_branch
    %14206 = sbr.rel (0) target = $region41
  $region40: #{handwriting_cnn_forward.1} parent=0 // pred_region
    _
  $region41: #{handwriting_cnn_forward.1} parent=0 // pred_fallthru
    _
  // Predicated region
  $region42: #{handwriting_cnn_forward.1} parent=0 // pred_check
    _
  $region43: #{handwriting_cnn_forward.1} parent=0 // pred_check_branch
    %14208 = sbr.rel (0) target = $region45
  $region44: #{handwriting_cnn_forward.1} parent=0 // pred_region
    _
  $region45: #{handwriting_cnn_forward.1} parent=0 // pred_fallthru
    _

</llo_original>
